<compile_context>
chip_gen: v5e
topology: v5e:2x2
jax: 0.10.0
libtpu: 0.0.40
codegen_flags: <defaults>
</compile_context>

<pallas_src>
import math

import jax
import jax.numpy as jnp
from jax.experimental import pallas as pl
from jax.experimental.pallas import tpu as pltpu


def _pe_kernel(freq_ref, phase_ref, o_ref, *, tile_t: int):
    """o[t, c] = sin((t0 + t) * freq[c] + phase[c]) for one tile of positions.

    freq[c]  = exp(-(2*(c//2)) * ln(10000) / d_model)
    phase[c] = 0 for even c (sin column), pi/2 for odd c (cos column),
    so a single transcendental per element covers both sin and cos columns.
    """
    t0 = pl.program_id(0) * tile_t                                   # int32 scalar
    row = jax.lax.broadcasted_iota(jnp.int32, o_ref.shape, 0)        # (tile_t, d_pad)
    pos = (row + t0).astype(jnp.float32)
    angle = pos * freq_ref[...] + phase_ref[...]                     # (1, d_pad) rows broadcast
    o_ref[...] = jnp.sin(angle)


def _pick_tile_t(n_rows: int) -> int:
    # 512 rows: good pipelining, and 2 x 512 x d_pad x 4B output buffers stay well
    # inside even v5e's 16 MiB default scoped VMEM for realistic d_model.
    # A block equal to the full array dim is exempt from the (8,128) rule.
    return n_rows if n_rows <= 512 else 512


def compute_positional_encoding(d_model: int, max_len: int = 5000) -> jax.Array:
    """Builds the (1, max_len, d_model) float32 PE buffer with a Pallas kernel."""
    # Pad the lane (d_model) axis up to a multiple of 128 for lane-dense stores.
    d_pad = d_model if d_model % 128 == 0 else ((d_model + 127) // 128) * 128

    col = jnp.arange(d_pad)
    two_i = ((col // 2) * 2).astype(jnp.float32)
    freq = jnp.exp(two_i * jnp.float32(-(math.log(10000.0) / d_model)))
    freq = jnp.where(col < d_model, freq, 0.0)[None, :].astype(jnp.float32)    # (1, d_pad)
    phase = jnp.where((col % 2) == 0, 0.0, jnp.pi / 2)
    phase = jnp.where(col < d_model, phase, 0.0)[None, :].astype(jnp.float32)  # (1, d_pad)

    tile_t = _pick_tile_t(max_len)
    grid = (pl.cdiv(max_len, tile_t),)   # partial last block handled by Pallas masking

    kernel = lambda f, p, o: _pe_kernel(f, p, o, tile_t=tile_t)

    pe = pl.pallas_call(
        kernel,
        out_shape=jax.ShapeDtypeStruct((max_len, d_pad), jnp.float32),
        grid_spec=pltpu.PrefetchScalarGridSpec(
            num_scalar_prefetch=0,
            grid=grid,
            in_specs=[
                pl.BlockSpec((1, d_pad), lambda i: (0, 0)),   # freq  (resident in VMEM)
                pl.BlockSpec((1, d_pad), lambda i: (0, 0)),   # phase (resident in VMEM)
            ],
            out_specs=pl.BlockSpec((tile_t, d_pad), lambda i: (i, 0)),
        ),
        compiler_params=pltpu.CompilerParams(
            # Tiles are independent -> pipelined write-back + megacore sharding (v7x).
            dimension_semantics=("parallel",),
        ),
    )(freq, phase)

    if d_pad != d_model:
        pe = pe[:, :d_model]
    return pe[None, :, :]   # (1, max_len, d_model), float32


class PositionalEncoding:
    """Mirrors the PyTorch module: buffer computed once (register_buffer semantics),
    forward is a zero-cost slice pe[:, :T]."""

    def __init__(self, d_model: int, max_len: int = 5000):
        self.d_model = d_model
        self.max_len = max_len
        self.pe = compute_positional_encoding(d_model, max_len)

    def __call__(self, x: jax.Array) -> jax.Array:
        length = x.shape[1]
        assert length <= self.max_len, "sequence length exceeds max_len"
        return self.pe[:, :length]


def positional_encoding_ref(x: jax.Array, d_model: int, max_len: int = 5000) -> jax.Array:
    """Pure-JAX reference mirroring the PyTorch buffer construction."""
    length = x.shape[1]
    position = jnp.arange(0, max_len, dtype=jnp.float32)[:, None]
    div_term = jnp.exp(
        jnp.arange(0, d_model, 2, dtype=jnp.float32) * (-(math.log(10000.0) / d_model))
    )
    pe = jnp.zeros((max_len, d_model), jnp.float32)
    pe = pe.at[:, 0::2].set(jnp.sin(position * div_term))
    pe = pe.at[:, 1::2].set(jnp.cos(position * div_term))
    return pe[None, :length, :]


if __name__ == "__main__":
    key = jax.random.PRNGKey(0)
    batch, seq, d_model = 2, 8, 32
    x = jax.random.normal(key, (batch, seq, d_model), dtype=jnp.float32)  # N x T x D

    module = PositionalEncoding(d_model=d_model, max_len=5000)
    out = jax.block_until_ready(module(x))

    ref = positional_encoding_ref(x, d_model=d_model, max_len=5000)
    assert out.shape == (1, seq, d_model), out.shape
    assert out.dtype == jnp.float32
    assert jnp.allclose(out, ref, atol=1e-5, rtol=1e-5), "mismatch vs reference"

    print("KERNEL_OK")
</pallas_src>

<mosaic_0001>
module attributes {stable_mosaic.version = 11 : i64} {
  func.func @_lambda_(%arg0: i32, %arg1: memref<1x128xf32, #tpu.memory_space<vmem>>, %arg2: memref<1x128xf32, #tpu.memory_space<vmem>>, %arg3: memref<512x128xf32, #tpu.memory_space<vmem>>) attributes {dimension_semantics = [#tpu.dimension_semantics<parallel>], iteration_bounds = array<i64: 10>, scalar_prefetch = 0 : i64, scratch_operands = 0 : i64, tpu.core_type = #tpu.core_type<tc>, window_params = [{pipeline_mode = #tpu.pipeline_mode<synchronous>, transform_indices = @transform_0, window_bounds = array<i64: 1, 128>}, {pipeline_mode = #tpu.pipeline_mode<synchronous>, transform_indices = @transform_1, window_bounds = array<i64: 1, 128>}, {transform_indices = @transform_2, window_bounds = array<i64: 512, 128>}]} {
    %c512_i32 = arith.constant 512 : i32
    %0 = arith.muli %arg0, %c512_i32 : i32
    %1 = tpu.iota {dimensions = array<i32: 0>} : vector<512x128xi32>
    %2 = vector.broadcast %0 : i32 to vector<512x128xi32>
    %3 = arith.addi %1, %2 : vector<512x128xi32>
    %4 = arith.sitofp %3 : vector<512x128xi32> to vector<512x128xf32>
    %c0 = arith.constant 0 : index
    %c0_0 = arith.constant 0 : index
    %5 = vector.load %arg1[%c0, %c0_0] : memref<1x128xf32, #tpu.memory_space<vmem>>, vector<1x128xf32>
    %6 = vector.broadcast %5 : vector<1x128xf32> to vector<512x128xf32>
    %7 = arith.mulf %4, %6 : vector<512x128xf32>
    %c0_1 = arith.constant 0 : index
    %c0_2 = arith.constant 0 : index
    %8 = vector.load %arg2[%c0_1, %c0_2] : memref<1x128xf32, #tpu.memory_space<vmem>>, vector<1x128xf32>
    %9 = vector.broadcast %8 : vector<1x128xf32> to vector<512x128xf32>
    %10 = arith.addf %7, %9 : vector<512x128xf32>
    %11 = math.sin %10 : vector<512x128xf32>
    %c0_3 = arith.constant 0 : index
    %c0_4 = arith.constant 0 : index
    %12 = vector.load %arg3[%c0_3, %c0_4] : memref<512x128xf32, #tpu.memory_space<vmem>>, vector<512x128xf32>
    tpu.vector_store %arg3[%c0_3, %c0_4], %11 {strides = array<i32>} : memref<512x128xf32, #tpu.memory_space<vmem>>, vector<512x128xf32>,
    return
  }
  func.func @transform_0(%arg0: i32) -> (i32, i32) {
    %c0_i32 = arith.constant 0 : i32
    %c0_i32_0 = arith.constant 0 : i32
    %c0_i32_1 = arith.constant 0 : i32
    return %c0_i32, %c0_i32_0 : i32, i32
  }
  func.func @transform_1(%arg0: i32) -> (i32, i32) {
    %c0_i32 = arith.constant 0 : i32
    %c0_i32_0 = arith.constant 0 : i32
    %c0_i32_1 = arith.constant 0 : i32
    return %c0_i32, %c0_i32_0 : i32, i32
  }
  func.func @transform_2(%arg0: i32) -> (i32, i32) {
    %c0_i32 = arith.constant 0 : i32
    %c0_i32_0 = arith.constant 0 : i32
    return %arg0, %c0_i32 : i32, i32
  }
}

</mosaic_0001>

<llo_original>
// kernel: tpu_custom_call.1
$region0: #{tpu_custom_call.1}
  #allocation0 [shape = 'u32[]', space=smem, size = 0x4, offset = 0x4, fixed_abs, tag = 'smem constant byte address 0x4 - core index']
  #allocation1 [shape = 'u32[72,128]{1,0:T(1,128)}', space=vmem, size = 0x9000, scoped, tag = 'internal scratch']
  %s0 = inlined_call_operand.hbm [shape: f32[1,128], index: 0, kind: input, shape index: {}]
  %s1 = inlined_call_operand.hbm [shape: f32[1,128], index: 1, kind: input, shape index: {}]
  %s2 = inlined_call_operand.hbm [shape: f32[5000,128], index: 2, kind: output, shape index: {}]
  %s3 = sld [smem:[#allocation0]]
  $region49: #{tpu_custom_call.1} parent=0
    _
  %s5 = ssub.s32 1, %s3
  %s6 = scalar_select 0, %s5, %s3
  $region1: #{tpu_custom_call.1} parent=0
    #allocation2 [shape = 'u8[512]{0}', space=vmem, size = 0x400, scoped, tag = 'input window, operand 0, single buffered']
    #allocation3 [shape = 's32[2]{0}', space=sflag, size = 0x8, scoped, tag = 'scoped memory for tpu_custom_call.1']
    #allocation4 [shape = 's32[2]{0}', space=sflag, size = 0x8, scoped, tag = 'scoped memory for tpu_custom_call.1']
    #allocation5 [shape = 'u8[512]{0}', space=vmem, size = 0x400, scoped, tag = 'input window, operand 1, single buffered']
    #allocation6 [shape = 's32[1]{0}', space=sflag, size = 0x4, scoped, tag = 'scoped memory for tpu_custom_call.1']
    #allocation7 [shape = 'u8[524288]{0}', space=vmem, size = 0x80000, scoped, tag = 'output window, operand 0']
    %7 = vsyncpa [#allocation3], 0
    %8 = vsyncpa [#allocation6], 0
    %9 = vsyncpa [#allocation4], 0
    %s10 = scalar_lea.sflag [#allocation4], 1
    %11 = vsyncpa %s10, 0
    loop: start=0, step=1, limit=12
    $region2: #{tpu_custom_call.1} parent=1 // loop_pre_header
      _
    $region3: #{tpu_custom_call.1} parent=1 // loop_header
      %s13 = sphi 0, %s17
      %p14 = scmp.ge.s32.totalorder %s13, 12
      %s21 = sphi 0, %s21
      %s23 = sphi 0, %s21
      %s24 = sphi 0, %s23
      %s38 = sphi 0, %s24
      %s42 = sphi 0, %s42
      %s44 = sphi 0, %s42
      %s45 = sphi 0, %s44
      %s59 = sphi 0, %s45
      %s65 = sphi 0, %s67
      %s68 = sphi 0, %s65
      %s69 = sphi 0, %s68
      %s85 = sphi 0, %s69
    $region4: #{tpu_custom_call.1} parent=1 // loop_header_branch
      %16 = sbr.rel (%p14) target = $region8
    $region5: #{tpu_custom_call.1} parent=1 // loop_body
      %s18 = ssub.s32 %s13, 1
      %s19 = ssub.s32 %s13, 2
      %s20 = sadd.s32 %s13, 1
      %s22 = sadd.s32 %s21, 1
      %p25 = scmp.eq.s32.totalorder %s13, 9
      %p26 = scmp.ne.s32.totalorder %s21, %s23
      %p27 = scmp.eq.s32.totalorder %s13, 0
      %p28 = por %p26, %p27
      %p29 = scmp.ne.s32.totalorder %s21, %s23
      %p30 = scmp.eq.s32.totalorder %s18, 9
      %p31 = por %p29, %p30
      %p32 = scmp.ne.s32.totalorder %s23, %s24
      %p33 = scmp.eq.s32.totalorder %s18, 0
      %p34 = por %p32, %p33
      %p35 = scmp.ne.s32.totalorder %s23, %s24
      %p36 = scmp.eq.s32.totalorder %s19, 9
      %p37 = por %p35, %p36
      %p39 = scmp.ne.s32.totalorder %s24, %s38
      %p40 = scmp.eq.s32.totalorder %s19, 0
      %p41 = por %p39, %p40
      %s43 = sadd.s32 %s42, 1
      %p46 = scmp.eq.s32.totalorder %s13, 9
      %p47 = scmp.ne.s32.totalorder %s42, %s44
      %p48 = scmp.eq.s32.totalorder %s13, 0
      %p49 = por %p47, %p48
      %p50 = scmp.ne.s32.totalorder %s42, %s44
      %p51 = scmp.eq.s32.totalorder %s18, 9
      %p52 = por %p50, %p51
      %p53 = scmp.ne.s32.totalorder %s44, %s45
      %p54 = scmp.eq.s32.totalorder %s18, 0
      %p55 = por %p53, %p54
      %p56 = scmp.ne.s32.totalorder %s44, %s45
      %p57 = scmp.eq.s32.totalorder %s19, 9
      %p58 = por %p56, %p57
      %p60 = scmp.ne.s32.totalorder %s45, %s59
      %p61 = scmp.eq.s32.totalorder %s19, 0
      %p62 = por %p60, %p61
      %s63 = ssub.s32 %s13, %s20
      %p64 = scmp.eq.s32.totalorder %s63, 0
      %s66 = sadd.s32 %s65, 1
      %s67 = scalar_select %p64, %s65, %s66
      %p70 = pneg %p64
      %p71 = scmp.eq.s32.totalorder %s13, 9
      %p72 = por %p70, %p71
      %p73 = scmp.ne.s32.totalorder %s65, %s68
      %p74 = scmp.eq.s32.totalorder %s13, 0
      %p75 = por %p73, %p74
      %p76 = scmp.ne.s32.totalorder %s65, %s68
      %p77 = scmp.eq.s32.totalorder %s18, 9
      %p78 = por %p76, %p77
      %p79 = scmp.ne.s32.totalorder %s68, %s69
      %p80 = scmp.eq.s32.totalorder %s18, 0
      %p81 = por %p79, %p80
      %p82 = scmp.ne.s32.totalorder %s68, %s69
      %p83 = scmp.eq.s32.totalorder %s19, 9
      %p84 = por %p82, %p83
      %p86 = scmp.ne.s32.totalorder %s69, %s85
      %p87 = scmp.eq.s32.totalorder %s19, 0
      %p88 = por %p86, %p87
      %p89 = scmp.le.s32.totalorder 1, %s13
      %p90 = scmp.lt.s32.totalorder %s13, 11
      %p91 = pnand %p89, %p90
      %p92 = pneg %p91
      // Predicated region
      $region9: #{tpu_custom_call.1} parent=5 // pred_check
        _
      $region10: #{tpu_custom_call.1} parent=5 // pred_check_branch
        %94 = sbr.rel (%p91) target = $region12
      $region11: #{tpu_custom_call.1} parent=5 // pred_region
        %s95 = ssub.s32 %s13, 1
        // Predicated region
        $region13: #{tpu_custom_call.1} parent=11 // pred_check
          %p96 = pneg %p34
        $region14: #{tpu_custom_call.1} parent=11 // pred_check_branch
          %98 = sbr.rel (%p96) target = $region16
        $region15: #{tpu_custom_call.1} parent=11 // pred_region
          %100 = vsyncadd [#allocation3], 0
          %s102 = sshll.u32 %s0, 4
          %s103 = int_to_ptr.hbm [resolvable:$true] %s102
          %s104 = sshll.u32 [#allocation2], 4
          %s105 = int_to_ptr.vmem [resolvable:$true] %s104
          %107 = dma.hbm_to_vmem [thread:$0]  %s103, 16, %s105, [#allocation3]
        $region16: #{tpu_custom_call.1} parent=11 // pred_fallthru
          _
        // Predicated region
        $region17: #{tpu_custom_call.1} parent=11 // pred_check
          %p108 = pneg %p55
        $region18: #{tpu_custom_call.1} parent=11 // pred_check_branch
          %110 = sbr.rel (%p108) target = $region20
        $region19: #{tpu_custom_call.1} parent=11 // pred_region
          %112 = vsyncadd [#allocation6], 0
          %s114 = sshll.u32 %s1, 4
          %s115 = int_to_ptr.hbm [resolvable:$true] %s114
          %s116 = sshll.u32 [#allocation5], 4
          %s117 = int_to_ptr.vmem [resolvable:$true] %s116
          %119 = dma.hbm_to_vmem [thread:$0]  %s115, 16, %s117, [#allocation6]
        $region20: #{tpu_custom_call.1} parent=11 // pred_fallthru
          _
      $region12: #{tpu_custom_call.1} parent=5 // pred_fallthru
        _
      %p120 = scmp.lt.s32.totalorder %s13, 10
      // Predicated region
      $region21: #{tpu_custom_call.1} parent=5 // pred_check
        %p121 = pneg %p120
      $region22: #{tpu_custom_call.1} parent=5 // pred_check_branch
        %123 = sbr.rel (%p121) target = $region24
      $region23: #{tpu_custom_call.1} parent=5 // pred_region
        _
      $region24: #{tpu_custom_call.1} parent=5 // pred_fallthru
        _
      %p124 = scmp.le.s32.totalorder 1, %s13
      %p125 = scmp.lt.s32.totalorder %s13, 11
      %p126 = pnand %p124, %p125
      %p127 = pneg %p126
      // Predicated region
      $region25: #{tpu_custom_call.1} parent=5 // pred_check
        _
      $region26: #{tpu_custom_call.1} parent=5 // pred_check_branch
        %129 = sbr.rel (%p126) target = $region28
      $region27: #{tpu_custom_call.1} parent=5 // pred_region
        %s130 = ssub.s32 %s13, 1
        // Predicated region
        $region29: #{tpu_custom_call.1} parent=27 // pred_check
          %p131 = pneg %p34
        $region30: #{tpu_custom_call.1} parent=27 // pred_check_branch
          %133 = sbr.rel (%p131) target = $region32
        $region31: #{tpu_custom_call.1} parent=27 // pred_region
          %135 = dma.done [#allocation3], 16
        $region32: #{tpu_custom_call.1} parent=27 // pred_fallthru
          _
        // Predicated region
        $region33: #{tpu_custom_call.1} parent=27 // pred_check
          %p136 = pneg %p55
        $region34: #{tpu_custom_call.1} parent=27 // pred_check_branch
          %138 = sbr.rel (%p136) target = $region36
        $region35: #{tpu_custom_call.1} parent=27 // pred_region
          %140 = dma.done [#allocation6], 16
        $region36: #{tpu_custom_call.1} parent=27 // pred_fallthru
          _
        %p141 = pneg %p34
        %p142 = pneg %p31
        %p143 = pneg %p55
        %p144 = pneg %p52
        %p145 = pneg %p81
        %p146 = pneg %p78
        %s147 = sand.u32 %s68, 1
        %s148 = scalar_lea.sflag [#allocation4], %s147
        %s149 = sand.u32 %s68, 1
        %s150 = smul.addr %s149, 512
        %s151 = scalar_lea.vmem [#allocation7], %s150
        %s152 = smul.u32 64, %s18
        %s153 = ssub.s32 625, %s152
        %p154 = scmp.lt.s32.totalorder %s153, 64
        %s155 = scalar_select %p154, %s153, 64
        %s156 = smul.u32 8, %s155
        %s157 = smul.u32 %s18, 512
        %v158 = vlaneseq
        %v159 = vshrl.u32 %v158, 7
        %v160 = vadd.s32 %v159, 8
        %v161 = vadd.s32 %v159, 16
        %v162 = vadd.s32 %v159, 24
        %v163 = vadd.s32 %v159, 32
        %v164 = vadd.s32 %v159, 40
        %v165 = vadd.s32 %v159, 48
        %v166 = vadd.s32 %v159, 56
        %v167 = vadd.s32 %v159, 64
        %v168 = vadd.s32 %v159, 72
        %v169 = vadd.s32 %v159, 80
        %v170 = vadd.s32 %v159, 88
        %v171 = vadd.s32 %v159, 96
        %v172 = vadd.s32 %v159, 104
        %v173 = vadd.s32 %v159, 112
        %v174 = vadd.s32 %v159, 120
        %v175 = vadd.s32 %v159, 128
        %v176 = vadd.s32 %v159, 136
        %v177 = vadd.s32 %v159, 144
        %v178 = vadd.s32 %v159, 152
        %v179 = vadd.s32 %v159, 160
        %v180 = vadd.s32 %v159, 168
        %v181 = vadd.s32 %v159, 176
        %v182 = vadd.s32 %v159, 184
        %v183 = vadd.s32 %v159, 192
        %v184 = vadd.s32 %v159, 200
        %v185 = vadd.s32 %v159, 208
        %v186 = vadd.s32 %v159, 216
        %v187 = vadd.s32 %v159, 224
        %v188 = vadd.s32 %v159, 232
        %v189 = vadd.s32 %v159, 240
        %v190 = vadd.s32 %v159, 248
        %v191 = vadd.s32 %v159, 256
        %v192 = vadd.s32 %v159, 264
        %v193 = vadd.s32 %v159, 272
        %v194 = vadd.s32 %v159, 280
        %v195 = vadd.s32 %v159, 288
        %v196 = vadd.s32 %v159, 296
        %v197 = vadd.s32 %v159, 304
        %v198 = vadd.s32 %v159, 312
        %v199 = vadd.s32 %v159, 320
        %v200 = vadd.s32 %v159, 328
        %v201 = vadd.s32 %v159, 336
        %v202 = vadd.s32 %v159, 344
        %v203 = vadd.s32 %v159, 352
        %v204 = vadd.s32 %v159, 360
        %v205 = vadd.s32 %v159, 368
        %v206 = vadd.s32 %v159, 376
        %v207 = vadd.s32 %v159, 384
        %v208 = vadd.s32 %v159, 392
        %v209 = vadd.s32 %v159, 400
        %v210 = vadd.s32 %v159, 408
        %v211 = vadd.s32 %v159, 416
        %v212 = vadd.s32 %v159, 424
        %v213 = vadd.s32 %v159, 432
        %v214 = vadd.s32 %v159, 440
        %v215 = vadd.s32 %v159, 448
        %v216 = vadd.s32 %v159, 456
        %v217 = vadd.s32 %v159, 464
        %v218 = vadd.s32 %v159, 472
        %v219 = vadd.s32 %v159, 480
        %v220 = vadd.s32 %v159, 488
        %v221 = vadd.s32 %v159, 496
        %v222 = vadd.s32 %v159, 504
        %v223 = vstv %s157
        %v224 = vadd.s32 %v159, %v223
        %v225 = vadd.s32 %v160, %v223
        %v226 = vadd.s32 %v161, %v223
        %v227 = vadd.s32 %v162, %v223
        %v228 = vadd.s32 %v163, %v223
        %v229 = vadd.s32 %v164, %v223
        %v230 = vadd.s32 %v165, %v223
        %v231 = vadd.s32 %v166, %v223
        %v232 = vadd.s32 %v167, %v223
        %v233 = vadd.s32 %v168, %v223
        %v234 = vadd.s32 %v169, %v223
        %v235 = vadd.s32 %v170, %v223
        %v236 = vadd.s32 %v171, %v223
        %v237 = vadd.s32 %v172, %v223
        %v238 = vadd.s32 %v173, %v223
        %v239 = vadd.s32 %v174, %v223
        %v240 = vadd.s32 %v175, %v223
        %v241 = vadd.s32 %v176, %v223
        %v242 = vadd.s32 %v177, %v223
        %v243 = vadd.s32 %v178, %v223
        %v244 = vadd.s32 %v179, %v223
        %v245 = vadd.s32 %v180, %v223
        %v246 = vadd.s32 %v181, %v223
        %v247 = vadd.s32 %v182, %v223
        %v248 = vadd.s32 %v183, %v223
        %v249 = vadd.s32 %v184, %v223
        %v250 = vadd.s32 %v185, %v223
        %v251 = vadd.s32 %v186, %v223
        %v252 = vadd.s32 %v187, %v223
        %v253 = vadd.s32 %v188, %v223
        %v254 = vadd.s32 %v189, %v223
        %v255 = vadd.s32 %v190, %v223
        %v256 = vadd.s32 %v191, %v223
        %v257 = vadd.s32 %v192, %v223
        %v258 = vadd.s32 %v193, %v223
        %v259 = vadd.s32 %v194, %v223
        %v260 = vadd.s32 %v195, %v223
        %v261 = vadd.s32 %v196, %v223
        %v262 = vadd.s32 %v197, %v223
        %v263 = vadd.s32 %v198, %v223
        %v264 = vadd.s32 %v199, %v223
        %v265 = vadd.s32 %v200, %v223
        %v266 = vadd.s32 %v201, %v223
        %v267 = vadd.s32 %v202, %v223
        %v268 = vadd.s32 %v203, %v223
        %v269 = vadd.s32 %v204, %v223
        %v270 = vadd.s32 %v205, %v223
        %v271 = vadd.s32 %v206, %v223
        %v272 = vadd.s32 %v207, %v223
        %v273 = vadd.s32 %v208, %v223
        %v274 = vadd.s32 %v209, %v223
        %v275 = vadd.s32 %v210, %v223
        %v276 = vadd.s32 %v211, %v223
        %v277 = vadd.s32 %v212, %v223
        %v278 = vadd.s32 %v213, %v223
        %v279 = vadd.s32 %v214, %v223
        %v280 = vadd.s32 %v215, %v223
        %v281 = vadd.s32 %v216, %v223
        %v282 = vadd.s32 %v217, %v223
        %v283 = vadd.s32 %v218, %v223
        %v284 = vadd.s32 %v219, %v223
        %v285 = vadd.s32 %v220, %v223
        %v286 = vadd.s32 %v221, %v223
        %v287 = vadd.s32 %v222, %v223
        %v288 = vcvt.s32.f32 %v224
        %v289 = vcvt.s32.f32 %v225
        %v290 = vcvt.s32.f32 %v226
        %v291 = vcvt.s32.f32 %v227
        %v292 = vcvt.s32.f32 %v228
        %v293 = vcvt.s32.f32 %v229
        %v294 = vcvt.s32.f32 %v230
        %v295 = vcvt.s32.f32 %v231
        %v296 = vcvt.s32.f32 %v232
        %v297 = vcvt.s32.f32 %v233
        %v298 = vcvt.s32.f32 %v234
        %v299 = vcvt.s32.f32 %v235
        %v300 = vcvt.s32.f32 %v236
        %v301 = vcvt.s32.f32 %v237
        %v302 = vcvt.s32.f32 %v238
        %v303 = vcvt.s32.f32 %v239
        %v304 = vcvt.s32.f32 %v240
        %v305 = vcvt.s32.f32 %v241
        %v306 = vcvt.s32.f32 %v242
        %v307 = vcvt.s32.f32 %v243
        %v308 = vcvt.s32.f32 %v244
        %v309 = vcvt.s32.f32 %v245
        %v310 = vcvt.s32.f32 %v246
        %v311 = vcvt.s32.f32 %v247
        %v312 = vcvt.s32.f32 %v248
        %v313 = vcvt.s32.f32 %v249
        %v314 = vcvt.s32.f32 %v250
        %v315 = vcvt.s32.f32 %v251
        %v316 = vcvt.s32.f32 %v252
        %v317 = vcvt.s32.f32 %v253
        %v318 = vcvt.s32.f32 %v254
        %v319 = vcvt.s32.f32 %v255
        %v320 = vcvt.s32.f32 %v256
        %v321 = vcvt.s32.f32 %v257
        %v322 = vcvt.s32.f32 %v258
        %v323 = vcvt.s32.f32 %v259
        %v324 = vcvt.s32.f32 %v260
        %v325 = vcvt.s32.f32 %v261
        %v326 = vcvt.s32.f32 %v262
        %v327 = vcvt.s32.f32 %v263
        %v328 = vcvt.s32.f32 %v264
        %v329 = vcvt.s32.f32 %v265
        %v330 = vcvt.s32.f32 %v266
        %v331 = vcvt.s32.f32 %v267
        %v332 = vcvt.s32.f32 %v268
        %v333 = vcvt.s32.f32 %v269
        %v334 = vcvt.s32.f32 %v270
        %v335 = vcvt.s32.f32 %v271
        %v336 = vcvt.s32.f32 %v272
        %v337 = vcvt.s32.f32 %v273
        %v338 = vcvt.s32.f32 %v274
        %v339 = vcvt.s32.f32 %v275
        %v340 = vcvt.s32.f32 %v276
        %v341 = vcvt.s32.f32 %v277
        %v342 = vcvt.s32.f32 %v278
        %v343 = vcvt.s32.f32 %v279
        %v344 = vcvt.s32.f32 %v280
        %v345 = vcvt.s32.f32 %v281
        %v346 = vcvt.s32.f32 %v282
        %v347 = vcvt.s32.f32 %v283
        %v348 = vcvt.s32.f32 %v284
        %v349 = vcvt.s32.f32 %v285
        %v350 = vcvt.s32.f32 %v286
        %v351 = vcvt.s32.f32 %v287
        %v352 = vld [vmem:[#allocation2] sm:$0x1]
        %v354 = vperm.slane %v352, 0
        %v356 = vmul.f32 %v288, %v354
        %v357 = vmul.f32 %v289, %v354
        %v358 = vmul.f32 %v290, %v354
        %v359 = vmul.f32 %v291, %v354
        %v360 = vmul.f32 %v292, %v354
        %v361 = vmul.f32 %v293, %v354
        %v362 = vmul.f32 %v294, %v354
        %v363 = vmul.f32 %v295, %v354
        %v364 = vmul.f32 %v296, %v354
        %v365 = vmul.f32 %v297, %v354
        %v366 = vmul.f32 %v298, %v354
        %v367 = vmul.f32 %v299, %v354
        %v368 = vmul.f32 %v300, %v354
        %v369 = vmul.f32 %v301, %v354
        %v370 = vmul.f32 %v302, %v354
        %v371 = vmul.f32 %v303, %v354
        %v372 = vmul.f32 %v304, %v354
        %v373 = vmul.f32 %v305, %v354
        %v374 = vmul.f32 %v306, %v354
        %v375 = vmul.f32 %v307, %v354
        %v376 = vmul.f32 %v308, %v354
        %v377 = vmul.f32 %v309, %v354
        %v378 = vmul.f32 %v310, %v354
        %v379 = vmul.f32 %v311, %v354
        %v380 = vmul.f32 %v312, %v354
        %v381 = vmul.f32 %v313, %v354
        %v382 = vmul.f32 %v314, %v354
        %v383 = vmul.f32 %v315, %v354
        %v384 = vmul.f32 %v316, %v354
        %v385 = vmul.f32 %v317, %v354
        %v386 = vmul.f32 %v318, %v354
        %v387 = vmul.f32 %v319, %v354
        %v388 = vmul.f32 %v320, %v354
        %v389 = vmul.f32 %v321, %v354
        %v390 = vmul.f32 %v322, %v354
        %v391 = vmul.f32 %v323, %v354
        %v392 = vmul.f32 %v324, %v354
        %v393 = vmul.f32 %v325, %v354
        %v394 = vmul.f32 %v326, %v354
        %v395 = vmul.f32 %v327, %v354
        %v396 = vmul.f32 %v328, %v354
        %v397 = vmul.f32 %v329, %v354
        %v398 = vmul.f32 %v330, %v354
        %v399 = vmul.f32 %v331, %v354
        %v400 = vmul.f32 %v332, %v354
        %v401 = vmul.f32 %v333, %v354
        %v402 = vmul.f32 %v334, %v354
        %v403 = vmul.f32 %v335, %v354
        %v404 = vmul.f32 %v336, %v354
        %v405 = vmul.f32 %v337, %v354
        %v406 = vmul.f32 %v338, %v354
        %v407 = vmul.f32 %v339, %v354
        %v408 = vmul.f32 %v340, %v354
        %v409 = vmul.f32 %v341, %v354
        %v410 = vmul.f32 %v342, %v354
        %v411 = vmul.f32 %v343, %v354
        %v412 = vmul.f32 %v344, %v354
        %v413 = vmul.f32 %v345, %v354
        %v414 = vmul.f32 %v346, %v354
        %v415 = vmul.f32 %v347, %v354
        %v416 = vmul.f32 %v348, %v354
        %v417 = vmul.f32 %v349, %v354
        %v418 = vmul.f32 %v350, %v354
        %v419 = vmul.f32 %v351, %v354
        %v420 = vld [vmem:[#allocation5] sm:$0x1]
        %v422 = vperm.slane %v420, 0
        %v424 = vadd.f32 %v356, %v422
        %v425 = vadd.f32 %v357, %v422
        %v426 = vadd.f32 %v358, %v422
        %v427 = vadd.f32 %v359, %v422
        %v428 = vadd.f32 %v360, %v422
        %v429 = vadd.f32 %v361, %v422
        %v430 = vadd.f32 %v362, %v422
        %v431 = vadd.f32 %v363, %v422
        %v432 = vadd.f32 %v364, %v422
        %v433 = vadd.f32 %v365, %v422
        %v434 = vadd.f32 %v366, %v422
        %v435 = vadd.f32 %v367, %v422
        %v436 = vadd.f32 %v368, %v422
        %v437 = vadd.f32 %v369, %v422
        %v438 = vadd.f32 %v370, %v422
        %v439 = vadd.f32 %v371, %v422
        %v440 = vadd.f32 %v372, %v422
        %v441 = vadd.f32 %v373, %v422
        %v442 = vadd.f32 %v374, %v422
        %v443 = vadd.f32 %v375, %v422
        %v444 = vadd.f32 %v376, %v422
        %v445 = vadd.f32 %v377, %v422
        %v446 = vadd.f32 %v378, %v422
        %v447 = vadd.f32 %v379, %v422
        %v448 = vadd.f32 %v380, %v422
        %v449 = vadd.f32 %v381, %v422
        %v450 = vadd.f32 %v382, %v422
        %v451 = vadd.f32 %v383, %v422
        %v452 = vadd.f32 %v384, %v422
        %v453 = vadd.f32 %v385, %v422
        %v454 = vadd.f32 %v386, %v422
        %v455 = vadd.f32 %v387, %v422
        %v456 = vadd.f32 %v388, %v422
        %v457 = vadd.f32 %v389, %v422
        %v458 = vadd.f32 %v390, %v422
        %v459 = vadd.f32 %v391, %v422
        %v460 = vadd.f32 %v392, %v422
        %v461 = vadd.f32 %v393, %v422
        %v462 = vadd.f32 %v394, %v422
        %v463 = vadd.f32 %v395, %v422
        %v464 = vadd.f32 %v396, %v422
        %v465 = vadd.f32 %v397, %v422
        %v466 = vadd.f32 %v398, %v422
        %v467 = vadd.f32 %v399, %v422
        %v468 = vadd.f32 %v400, %v422
        %v469 = vadd.f32 %v401, %v422
        %v470 = vadd.f32 %v402, %v422
        %v471 = vadd.f32 %v403, %v422
        %v472 = vadd.f32 %v404, %v422
        %v473 = vadd.f32 %v405, %v422
        %v474 = vadd.f32 %v406, %v422
        %v475 = vadd.f32 %v407, %v422
        %v476 = vadd.f32 %v408, %v422
        %v477 = vadd.f32 %v409, %v422
        %v478 = vadd.f32 %v410, %v422
        %v479 = vadd.f32 %v411, %v422
        %v480 = vadd.f32 %v412, %v422
        %v481 = vadd.f32 %v413, %v422
        %v482 = vadd.f32 %v414, %v422
        %v483 = vadd.f32 %v415, %v422
        %v484 = vadd.f32 %v416, %v422
        %v485 = vadd.f32 %v417, %v422
        %v486 = vadd.f32 %v418, %v422
        %v487 = vadd.f32 %v419, %v422
        %v488 = vand.u32 2147483647, %v424
        %vm489 = vcmp.le.f32.partialorder %v488, 0.7853982
        %vm490 = vcmp.lt.s32.totalorder %v424, 0
        %v491 = vand.u32 %v424, 2139095040
        %v492 = vshrl.u32 %v491, 23
        %v493 = vsub.s32 %v492, 127
        %v494 = vand.u32 2147483647, %v424
        %v495 = vand.u32 %v494, 8388607
        %v496 = vor.u32 %v495, 8388608
        %v497 = vsub.s32 0, %v496
        %v498 = vadd.s32 %v493, 1
        %vm499 = vcmp.gt.s32.totalorder %v498, 0
        %v500 = vsel %vm499, %v498, 0
        %v501 = vshrl.u32 %v500, 5
        %v502 = vand.u32 %v500, 31
        %v503 = vsub.s32 32, %v502
        %v504 = vshrl.u32 683565275, %v503
        %v505 = vshll.u32 683565275, %v502
        %v506 = vshrl.u32 2475754826, %v503
        %v507 = vor.u32 %v505, %v506
        %v508 = vshll.u32 2475754826, %v502
        %v509 = vshrl.u32 2131351028, %v503
        %v510 = vor.u32 %v508, %v509
        %v511 = vshll.u32 2131351028, %v502
        %v512 = vshrl.u32 2102212464, %v503
        %v513 = vor.u32 %v511, %v512
        %v514 = vshll.u32 2102212464, %v502
        %v515 = vshrl.u32 920167782, %v503
        %v516 = vor.u32 %v514, %v515
        %v517 = vshll.u32 920167782, %v502
        %v518 = vshrl.u32 1326507024, %v503
        %v519 = vor.u32 %v517, %v518
        %vm520 = vcmp.lt.s32.totalorder %v501, 1
        %vm521 = vcmp.lt.s32.totalorder %v501, 2
        %vm522 = vcmp.lt.s32.totalorder %v501, 3
        %vm523 = vcmp.lt.s32.totalorder %v501, 4
        %v524 = vsel %vm520, %v504, %v507
        %v525 = vsel %vm523, %v513, 2102212464
        %v526 = vsel %vm522, %v510, %v525
        %v527 = vsel %vm521, %v524, %v526
        %v528 = vsel %vm520, %v507, %v510
        %v529 = vsel %vm523, %v516, 920167782
        %v530 = vsel %vm522, %v513, %v529
        %v531 = vsel %vm521, %v528, %v530
        %v532 = vsel %vm520, %v510, %v513
        %v533 = vsel %vm523, %v519, 1326507024
        %v534 = vsel %vm522, %v516, %v533
        %v535 = vsel %vm521, %v532, %v534
        %v536 = vshll.u32 %v496, 8
        %v537 = vand.u32 %v536, 65535
        %v538 = vshrl.u32 %v536, 16
        %v539 = vand.u32 %v535, 65535
        %v540 = vshrl.u32 %v535, 16
        %v541 = vmul.u32 %v537, %v539
        %v542 = vmul.u32 %v537, %v540
        %v543 = vmul.u32 %v538, %v539
        %v544 = vmul.u32 %v538, %v540
        %v545 = vshll.u32 %v542, 16
        %v546 = vshrl.u32 %v542, 16
        %v547 = vshll.u32 %v543, 16
        %v548 = vshrl.u32 %v543, 16
        %vm549 = vc.u32 %v541, %v545
        %v550 = vsel %vm549, 1, 0
        %v551 = vadd.s32 %v541, %v545
        %v552 = vadd.s32 %v544, %v550
        %vm553 = vc.u32 %v551, %v547
        %v554 = vsel %vm553, 1, 0
        %v555 = vadd.s32 %v551, %v547
        %v556 = vadd.s32 %v552, %v554
        %v557 = vadd.s32 %v556, %v546
        %v558 = vadd.s32 %v557, %v548
        %v559 = vand.u32 %v536, 65535
        %v560 = vshrl.u32 %v536, 16
        %v561 = vand.u32 %v531, 65535
        %v562 = vshrl.u32 %v531, 16
        %v563 = vmul.u32 %v559, %v561
        %v564 = vmul.u32 %v559, %v562
        %v565 = vmul.u32 %v560, %v561
        %v566 = vmul.u32 %v560, %v562
        %v567 = vshll.u32 %v564, 16
        %v568 = vshrl.u32 %v564, 16
        %v569 = vshll.u32 %v565, 16
        %v570 = vshrl.u32 %v565, 16
        %vm571 = vc.u32 %v563, %v567
        %v572 = vsel %vm571, 1, 0
        %v573 = vadd.s32 %v563, %v567
        %v574 = vadd.s32 %v566, %v572
        %vm575 = vc.u32 %v573, %v569
        %v576 = vsel %vm575, 1, 0
        %v577 = vadd.s32 %v573, %v569
        %v578 = vadd.s32 %v574, %v576
        %v579 = vadd.s32 %v578, %v568
        %v580 = vadd.s32 %v579, %v570
        %v581 = vmul.u32 %v536, %v527
        %v582 = vadd.s32 %v558, %v577
        %vm583 = vc.u32 %v558, %v577
        %v584 = vadd.s32 %v580, 1
        %v585 = vsel %vm583, %v584, %v580
        %v586 = vadd.s32 %v581, %v585
        %v587 = vadd.s32 %v586, 536870912
        %v588 = vshrl.u32 %v587, 30
        %v589 = vshll.u32 %v588, 30
        %v590 = vsub.s32 %v586, %v589
        %vm591 = vcmp.lt.s32.totalorder %v590, 0
        %v592 = vsub.s32 0, %v590
        %v593 = vsel %vm591, %v592, %v590
        %v594 = vclz %v593
        %v595 = vsub.s32 %v594, 2
        %vm596 = vcmp.gt.s32.totalorder 0, %v595
        %v597 = vsel %vm596, 0, %v595
        %v598 = vsub.s32 32, %v597
        %v599 = vshll.u32 %v590, %v597
        %v600 = vshrl.u32 %v582, %v598
        %v601 = vor.u32 %v599, %v600
        %v602 = vsub.s32 4294967266, %v597
        %v603 = vadd.s32 %v602, 127
        %v604 = vshll.u32 %v603, 23
        %v605 = vor.u32 4788187, %v604
        %v606 = vand.u32 2147483647, %v605
        %v608 = vcvt.s32.f32 %v601
        %v609 = vmul.f32 %v608, %v606
        %v610 = vxor.u32 %v609, 2147483648
        %v611 = vsel %vm490, %v610, %v609
        %v612 = vsub.s32 4, %v588
        %v613 = vsel %vm490, %v612, %v588
        %v614 = vsel %vm489, %v424, %v611
        %v615 = vsel %vm489, 0, %v613
        %v616 = vmul.f32 %v614, %v614
        %v617 = vmul.f32 %v616, -0.001358992
        %v618 = vadd.f32 %v617, 0.041655596
        %v619 = vmul.f32 %v616, %v618
        %v620 = vadd.f32 %v619, -0.4999988
        %v621 = vmul.f32 %v616, %v620
        %v622 = vadd.f32 1.0, %v621
        %v623 = vmul.f32 %v614, %v614
        %v624 = vmul.f32 %v623, -0.00019511016
        %v625 = vadd.f32 %v624, 0.008332121
        %v626 = vmul.f32 %v623, %v625
        %v627 = vadd.f32 %v626, -0.16666654
        %v628 = vmul.f32 %v623, %v627
        %v629 = vadd.f32 %v628, 1.0
        %v630 = vmul.f32 %v629, %v614
        %vm631 = vweird.f32 %v424
        %v632 = vadd.s32 %v615, 3
        %v633 = vand.u32 %v632, 3
        %vm634 = vcmp.lt.s32.totalorder %v633, 2
        %vm635 = vcmp.eq.s32.totalorder %v633, 0
        %v636 = vxor.u32 %v630, 2147483648
        %v637 = vsel %vm635, %v622, %v636
        %vm638 = vcmp.eq.s32.totalorder %v633, 2
        %v639 = vxor.u32 %v622, 2147483648
        %v640 = vsel %vm638, %v639, %v630
        %v641 = vsel %vm634, %v637, %v640
        %v642 = vsel %vm631, nan, %v641
        %v643 = vand.u32 2147483647, %v425
        %vm644 = vcmp.le.f32.partialorder %v643, 0.7853982
        %vm645 = vcmp.lt.s32.totalorder %v425, 0
        %v646 = vand.u32 %v425, 2139095040
        %v647 = vshrl.u32 %v646, 23
        %v648 = vsub.s32 %v647, 127
        %v649 = vand.u32 2147483647, %v425
        %v650 = vand.u32 %v649, 8388607
        %v651 = vor.u32 %v650, 8388608
        %v652 = vsub.s32 0, %v651
        %v653 = vadd.s32 %v648, 1
        %vm654 = vcmp.gt.s32.totalorder %v653, 0
        %v655 = vsel %vm654, %v653, 0
        %v656 = vshrl.u32 %v655, 5
        %v657 = vand.u32 %v655, 31
        %v658 = vsub.s32 32, %v657
        %v659 = vshrl.u32 683565275, %v658
        %v660 = vshll.u32 683565275, %v657
        %v661 = vshrl.u32 2475754826, %v658
        %v662 = vor.u32 %v660, %v661
        %v663 = vshll.u32 2475754826, %v657
        %v664 = vshrl.u32 2131351028, %v658
        %v665 = vor.u32 %v663, %v664
        %v666 = vshll.u32 2131351028, %v657
        %v667 = vshrl.u32 2102212464, %v658
        %v668 = vor.u32 %v666, %v667
        %v669 = vshll.u32 2102212464, %v657
        %v670 = vshrl.u32 920167782, %v658
        %v671 = vor.u32 %v669, %v670
        %v672 = vshll.u32 920167782, %v657
        %v673 = vshrl.u32 1326507024, %v658
        %v674 = vor.u32 %v672, %v673
        %vm675 = vcmp.lt.s32.totalorder %v656, 1
        %vm676 = vcmp.lt.s32.totalorder %v656, 2
        %vm677 = vcmp.lt.s32.totalorder %v656, 3
        %vm678 = vcmp.lt.s32.totalorder %v656, 4
        %v679 = vsel %vm675, %v659, %v662
        %v680 = vsel %vm678, %v668, 2102212464
        %v681 = vsel %vm677, %v665, %v680
        %v682 = vsel %vm676, %v679, %v681
        %v683 = vsel %vm675, %v662, %v665
        %v684 = vsel %vm678, %v671, 920167782
        %v685 = vsel %vm677, %v668, %v684
        %v686 = vsel %vm676, %v683, %v685
        %v687 = vsel %vm675, %v665, %v668
        %v688 = vsel %vm678, %v674, 1326507024
        %v689 = vsel %vm677, %v671, %v688
        %v690 = vsel %vm676, %v687, %v689
        %v691 = vshll.u32 %v651, 8
        %v692 = vand.u32 %v691, 65535
        %v693 = vshrl.u32 %v691, 16
        %v694 = vand.u32 %v690, 65535
        %v695 = vshrl.u32 %v690, 16
        %v696 = vmul.u32 %v692, %v694
        %v697 = vmul.u32 %v692, %v695
        %v698 = vmul.u32 %v693, %v694
        %v699 = vmul.u32 %v693, %v695
        %v700 = vshll.u32 %v697, 16
        %v701 = vshrl.u32 %v697, 16
        %v702 = vshll.u32 %v698, 16
        %v703 = vshrl.u32 %v698, 16
        %vm704 = vc.u32 %v696, %v700
        %v705 = vsel %vm704, 1, 0
        %v706 = vadd.s32 %v696, %v700
        %v707 = vadd.s32 %v699, %v705
        %vm708 = vc.u32 %v706, %v702
        %v709 = vsel %vm708, 1, 0
        %v710 = vadd.s32 %v706, %v702
        %v711 = vadd.s32 %v707, %v709
        %v712 = vadd.s32 %v711, %v701
        %v713 = vadd.s32 %v712, %v703
        %v714 = vand.u32 %v691, 65535
        %v715 = vshrl.u32 %v691, 16
        %v716 = vand.u32 %v686, 65535
        %v717 = vshrl.u32 %v686, 16
        %v718 = vmul.u32 %v714, %v716
        %v719 = vmul.u32 %v714, %v717
        %v720 = vmul.u32 %v715, %v716
        %v721 = vmul.u32 %v715, %v717
        %v722 = vshll.u32 %v719, 16
        %v723 = vshrl.u32 %v719, 16
        %v724 = vshll.u32 %v720, 16
        %v725 = vshrl.u32 %v720, 16
        %vm726 = vc.u32 %v718, %v722
        %v727 = vsel %vm726, 1, 0
        %v728 = vadd.s32 %v718, %v722
        %v729 = vadd.s32 %v721, %v727
        %vm730 = vc.u32 %v728, %v724
        %v731 = vsel %vm730, 1, 0
        %v732 = vadd.s32 %v728, %v724
        %v733 = vadd.s32 %v729, %v731
        %v734 = vadd.s32 %v733, %v723
        %v735 = vadd.s32 %v734, %v725
        %v736 = vmul.u32 %v691, %v682
        %v737 = vadd.s32 %v713, %v732
        %vm738 = vc.u32 %v713, %v732
        %v739 = vadd.s32 %v735, 1
        %v740 = vsel %vm738, %v739, %v735
        %v741 = vadd.s32 %v736, %v740
        %v742 = vadd.s32 %v741, 536870912
        %v743 = vshrl.u32 %v742, 30
        %v744 = vshll.u32 %v743, 30
        %v745 = vsub.s32 %v741, %v744
        %vm746 = vcmp.lt.s32.totalorder %v745, 0
        %v747 = vsub.s32 0, %v745
        %v748 = vsel %vm746, %v747, %v745
        %v749 = vclz %v748
        %v750 = vsub.s32 %v749, 2
        %vm751 = vcmp.gt.s32.totalorder 0, %v750
        %v752 = vsel %vm751, 0, %v750
        %v753 = vsub.s32 32, %v752
        %v754 = vshll.u32 %v745, %v752
        %v755 = vshrl.u32 %v737, %v753
        %v756 = vor.u32 %v754, %v755
        %v757 = vsub.s32 4294967266, %v752
        %v758 = vadd.s32 %v757, 127
        %v759 = vshll.u32 %v758, 23
        %v760 = vor.u32 4788187, %v759
        %v761 = vand.u32 2147483647, %v760
        %v763 = vcvt.s32.f32 %v756
        %v764 = vmul.f32 %v763, %v761
        %v765 = vxor.u32 %v764, 2147483648
        %v766 = vsel %vm645, %v765, %v764
        %v767 = vsub.s32 4, %v743
        %v768 = vsel %vm645, %v767, %v743
        %v769 = vsel %vm644, %v425, %v766
        %v770 = vsel %vm644, 0, %v768
        %v771 = vmul.f32 %v769, %v769
        %v772 = vmul.f32 %v771, -0.001358992
        %v773 = vadd.f32 %v772, 0.041655596
        %v774 = vmul.f32 %v771, %v773
        %v775 = vadd.f32 %v774, -0.4999988
        %v776 = vmul.f32 %v771, %v775
        %v777 = vadd.f32 1.0, %v776
        %v778 = vmul.f32 %v769, %v769
        %v779 = vmul.f32 %v778, -0.00019511016
        %v780 = vadd.f32 %v779, 0.008332121
        %v781 = vmul.f32 %v778, %v780
        %v782 = vadd.f32 %v781, -0.16666654
        %v783 = vmul.f32 %v778, %v782
        %v784 = vadd.f32 %v783, 1.0
        %v785 = vmul.f32 %v784, %v769
        %vm786 = vweird.f32 %v425
        %v787 = vadd.s32 %v770, 3
        %v788 = vand.u32 %v787, 3
        %vm789 = vcmp.lt.s32.totalorder %v788, 2
        %vm790 = vcmp.eq.s32.totalorder %v788, 0
        %v791 = vxor.u32 %v785, 2147483648
        %v792 = vsel %vm790, %v777, %v791
        %vm793 = vcmp.eq.s32.totalorder %v788, 2
        %v794 = vxor.u32 %v777, 2147483648
        %v795 = vsel %vm793, %v794, %v785
        %v796 = vsel %vm789, %v792, %v795
        %v797 = vsel %vm786, nan, %v796
        %v798 = vand.u32 2147483647, %v426
        %vm799 = vcmp.le.f32.partialorder %v798, 0.7853982
        %vm800 = vcmp.lt.s32.totalorder %v426, 0
        %v801 = vand.u32 %v426, 2139095040
        %v802 = vshrl.u32 %v801, 23
        %v803 = vsub.s32 %v802, 127
        %v804 = vand.u32 2147483647, %v426
        %v805 = vand.u32 %v804, 8388607
        %v806 = vor.u32 %v805, 8388608
        %v807 = vsub.s32 0, %v806
        %v808 = vadd.s32 %v803, 1
        %vm809 = vcmp.gt.s32.totalorder %v808, 0
        %v810 = vsel %vm809, %v808, 0
        %v811 = vshrl.u32 %v810, 5
        %v812 = vand.u32 %v810, 31
        %v813 = vsub.s32 32, %v812
        %v814 = vshrl.u32 683565275, %v813
        %v815 = vshll.u32 683565275, %v812
        %v816 = vshrl.u32 2475754826, %v813
        %v817 = vor.u32 %v815, %v816
        %v818 = vshll.u32 2475754826, %v812
        %v819 = vshrl.u32 2131351028, %v813
        %v820 = vor.u32 %v818, %v819
        %v821 = vshll.u32 2131351028, %v812
        %v822 = vshrl.u32 2102212464, %v813
        %v823 = vor.u32 %v821, %v822
        %v824 = vshll.u32 2102212464, %v812
        %v825 = vshrl.u32 920167782, %v813
        %v826 = vor.u32 %v824, %v825
        %v827 = vshll.u32 920167782, %v812
        %v828 = vshrl.u32 1326507024, %v813
        %v829 = vor.u32 %v827, %v828
        %vm830 = vcmp.lt.s32.totalorder %v811, 1
        %vm831 = vcmp.lt.s32.totalorder %v811, 2
        %vm832 = vcmp.lt.s32.totalorder %v811, 3
        %vm833 = vcmp.lt.s32.totalorder %v811, 4
        %v834 = vsel %vm830, %v814, %v817
        %v835 = vsel %vm833, %v823, 2102212464
        %v836 = vsel %vm832, %v820, %v835
        %v837 = vsel %vm831, %v834, %v836
        %v838 = vsel %vm830, %v817, %v820
        %v839 = vsel %vm833, %v826, 920167782
        %v840 = vsel %vm832, %v823, %v839
        %v841 = vsel %vm831, %v838, %v840
        %v842 = vsel %vm830, %v820, %v823
        %v843 = vsel %vm833, %v829, 1326507024
        %v844 = vsel %vm832, %v826, %v843
        %v845 = vsel %vm831, %v842, %v844
        %v846 = vshll.u32 %v806, 8
        %v847 = vand.u32 %v846, 65535
        %v848 = vshrl.u32 %v846, 16
        %v849 = vand.u32 %v845, 65535
        %v850 = vshrl.u32 %v845, 16
        %v851 = vmul.u32 %v847, %v849
        %v852 = vmul.u32 %v847, %v850
        %v853 = vmul.u32 %v848, %v849
        %v854 = vmul.u32 %v848, %v850
        %v855 = vshll.u32 %v852, 16
        %v856 = vshrl.u32 %v852, 16
        %v857 = vshll.u32 %v853, 16
        %v858 = vshrl.u32 %v853, 16
        %vm859 = vc.u32 %v851, %v855
        %v860 = vsel %vm859, 1, 0
        %v861 = vadd.s32 %v851, %v855
        %v862 = vadd.s32 %v854, %v860
        %vm863 = vc.u32 %v861, %v857
        %v864 = vsel %vm863, 1, 0
        %v865 = vadd.s32 %v861, %v857
        %v866 = vadd.s32 %v862, %v864
        %v867 = vadd.s32 %v866, %v856
        %v868 = vadd.s32 %v867, %v858
        %v869 = vand.u32 %v846, 65535
        %v870 = vshrl.u32 %v846, 16
        %v871 = vand.u32 %v841, 65535
        %v872 = vshrl.u32 %v841, 16
        %v873 = vmul.u32 %v869, %v871
        %v874 = vmul.u32 %v869, %v872
        %v875 = vmul.u32 %v870, %v871
        %v876 = vmul.u32 %v870, %v872
        %v877 = vshll.u32 %v874, 16
        %v878 = vshrl.u32 %v874, 16
        %v879 = vshll.u32 %v875, 16
        %v880 = vshrl.u32 %v875, 16
        %vm881 = vc.u32 %v873, %v877
        %v882 = vsel %vm881, 1, 0
        %v883 = vadd.s32 %v873, %v877
        %v884 = vadd.s32 %v876, %v882
        %vm885 = vc.u32 %v883, %v879
        %v886 = vsel %vm885, 1, 0
        %v887 = vadd.s32 %v883, %v879
        %v888 = vadd.s32 %v884, %v886
        %v889 = vadd.s32 %v888, %v878
        %v890 = vadd.s32 %v889, %v880
        %v891 = vmul.u32 %v846, %v837
        %v892 = vadd.s32 %v868, %v887
        %vm893 = vc.u32 %v868, %v887
        %v894 = vadd.s32 %v890, 1
        %v895 = vsel %vm893, %v894, %v890
        %v896 = vadd.s32 %v891, %v895
        %v897 = vadd.s32 %v896, 536870912
        %v898 = vshrl.u32 %v897, 30
        %v899 = vshll.u32 %v898, 30
        %v900 = vsub.s32 %v896, %v899
        %vm901 = vcmp.lt.s32.totalorder %v900, 0
        %v902 = vsub.s32 0, %v900
        %v903 = vsel %vm901, %v902, %v900
        %v904 = vclz %v903
        %v905 = vsub.s32 %v904, 2
        %vm906 = vcmp.gt.s32.totalorder 0, %v905
        %v907 = vsel %vm906, 0, %v905
        %v908 = vsub.s32 32, %v907
        %v909 = vshll.u32 %v900, %v907
        %v910 = vshrl.u32 %v892, %v908
        %v911 = vor.u32 %v909, %v910
        %v912 = vsub.s32 4294967266, %v907
        %v913 = vadd.s32 %v912, 127
        %v914 = vshll.u32 %v913, 23
        %v915 = vor.u32 4788187, %v914
        %v916 = vand.u32 2147483647, %v915
        %v918 = vcvt.s32.f32 %v911
        %v919 = vmul.f32 %v918, %v916
        %v920 = vxor.u32 %v919, 2147483648
        %v921 = vsel %vm800, %v920, %v919
        %v922 = vsub.s32 4, %v898
        %v923 = vsel %vm800, %v922, %v898
        %v924 = vsel %vm799, %v426, %v921
        %v925 = vsel %vm799, 0, %v923
        %v926 = vmul.f32 %v924, %v924
        %v927 = vmul.f32 %v926, -0.001358992
        %v928 = vadd.f32 %v927, 0.041655596
        %v929 = vmul.f32 %v926, %v928
        %v930 = vadd.f32 %v929, -0.4999988
        %v931 = vmul.f32 %v926, %v930
        %v932 = vadd.f32 1.0, %v931
        %v933 = vmul.f32 %v924, %v924
        %v934 = vmul.f32 %v933, -0.00019511016
        %v935 = vadd.f32 %v934, 0.008332121
        %v936 = vmul.f32 %v933, %v935
        %v937 = vadd.f32 %v936, -0.16666654
        %v938 = vmul.f32 %v933, %v937
        %v939 = vadd.f32 %v938, 1.0
        %v940 = vmul.f32 %v939, %v924
        %vm941 = vweird.f32 %v426
        %v942 = vadd.s32 %v925, 3
        %v943 = vand.u32 %v942, 3
        %vm944 = vcmp.lt.s32.totalorder %v943, 2
        %vm945 = vcmp.eq.s32.totalorder %v943, 0
        %v946 = vxor.u32 %v940, 2147483648
        %v947 = vsel %vm945, %v932, %v946
        %vm948 = vcmp.eq.s32.totalorder %v943, 2
        %v949 = vxor.u32 %v932, 2147483648
        %v950 = vsel %vm948, %v949, %v940
        %v951 = vsel %vm944, %v947, %v950
        %v952 = vsel %vm941, nan, %v951
        %v953 = vand.u32 2147483647, %v427
        %vm954 = vcmp.le.f32.partialorder %v953, 0.7853982
        %vm955 = vcmp.lt.s32.totalorder %v427, 0
        %v956 = vand.u32 %v427, 2139095040
        %v957 = vshrl.u32 %v956, 23
        %v958 = vsub.s32 %v957, 127
        %v959 = vand.u32 2147483647, %v427
        %v960 = vand.u32 %v959, 8388607
        %v961 = vor.u32 %v960, 8388608
        %v962 = vsub.s32 0, %v961
        %v963 = vadd.s32 %v958, 1
        %vm964 = vcmp.gt.s32.totalorder %v963, 0
        %v965 = vsel %vm964, %v963, 0
        %v966 = vshrl.u32 %v965, 5
        %v967 = vand.u32 %v965, 31
        %v968 = vsub.s32 32, %v967
        %v969 = vshrl.u32 683565275, %v968
        %v970 = vshll.u32 683565275, %v967
        %v971 = vshrl.u32 2475754826, %v968
        %v972 = vor.u32 %v970, %v971
        %v973 = vshll.u32 2475754826, %v967
        %v974 = vshrl.u32 2131351028, %v968
        %v975 = vor.u32 %v973, %v974
        %v976 = vshll.u32 2131351028, %v967
        %v977 = vshrl.u32 2102212464, %v968
        %v978 = vor.u32 %v976, %v977
        %v979 = vshll.u32 2102212464, %v967
        %v980 = vshrl.u32 920167782, %v968
        %v981 = vor.u32 %v979, %v980
        %v982 = vshll.u32 920167782, %v967
        %v983 = vshrl.u32 1326507024, %v968
        %v984 = vor.u32 %v982, %v983
        %vm985 = vcmp.lt.s32.totalorder %v966, 1
        %vm986 = vcmp.lt.s32.totalorder %v966, 2
        %vm987 = vcmp.lt.s32.totalorder %v966, 3
        %vm988 = vcmp.lt.s32.totalorder %v966, 4
        %v989 = vsel %vm985, %v969, %v972
        %v990 = vsel %vm988, %v978, 2102212464
        %v991 = vsel %vm987, %v975, %v990
        %v992 = vsel %vm986, %v989, %v991
        %v993 = vsel %vm985, %v972, %v975
        %v994 = vsel %vm988, %v981, 920167782
        %v995 = vsel %vm987, %v978, %v994
        %v996 = vsel %vm986, %v993, %v995
        %v997 = vsel %vm985, %v975, %v978
        %v998 = vsel %vm988, %v984, 1326507024
        %v999 = vsel %vm987, %v981, %v998
        %v1000 = vsel %vm986, %v997, %v999
        %v1001 = vshll.u32 %v961, 8
        %v1002 = vand.u32 %v1001, 65535
        %v1003 = vshrl.u32 %v1001, 16
        %v1004 = vand.u32 %v1000, 65535
        %v1005 = vshrl.u32 %v1000, 16
        %v1006 = vmul.u32 %v1002, %v1004
        %v1007 = vmul.u32 %v1002, %v1005
        %v1008 = vmul.u32 %v1003, %v1004
        %v1009 = vmul.u32 %v1003, %v1005
        %v1010 = vshll.u32 %v1007, 16
        %v1011 = vshrl.u32 %v1007, 16
        %v1012 = vshll.u32 %v1008, 16
        %v1013 = vshrl.u32 %v1008, 16
        %vm1014 = vc.u32 %v1006, %v1010
        %v1015 = vsel %vm1014, 1, 0
        %v1016 = vadd.s32 %v1006, %v1010
        %v1017 = vadd.s32 %v1009, %v1015
        %vm1018 = vc.u32 %v1016, %v1012
        %v1019 = vsel %vm1018, 1, 0
        %v1020 = vadd.s32 %v1016, %v1012
        %v1021 = vadd.s32 %v1017, %v1019
        %v1022 = vadd.s32 %v1021, %v1011
        %v1023 = vadd.s32 %v1022, %v1013
        %v1024 = vand.u32 %v1001, 65535
        %v1025 = vshrl.u32 %v1001, 16
        %v1026 = vand.u32 %v996, 65535
        %v1027 = vshrl.u32 %v996, 16
        %v1028 = vmul.u32 %v1024, %v1026
        %v1029 = vmul.u32 %v1024, %v1027
        %v1030 = vmul.u32 %v1025, %v1026
        %v1031 = vmul.u32 %v1025, %v1027
        %v1032 = vshll.u32 %v1029, 16
        %v1033 = vshrl.u32 %v1029, 16
        %v1034 = vshll.u32 %v1030, 16
        %v1035 = vshrl.u32 %v1030, 16
        %vm1036 = vc.u32 %v1028, %v1032
        %v1037 = vsel %vm1036, 1, 0
        %v1038 = vadd.s32 %v1028, %v1032
        %v1039 = vadd.s32 %v1031, %v1037
        %vm1040 = vc.u32 %v1038, %v1034
        %v1041 = vsel %vm1040, 1, 0
        %v1042 = vadd.s32 %v1038, %v1034
        %v1043 = vadd.s32 %v1039, %v1041
        %v1044 = vadd.s32 %v1043, %v1033
        %v1045 = vadd.s32 %v1044, %v1035
        %v1046 = vmul.u32 %v1001, %v992
        %v1047 = vadd.s32 %v1023, %v1042
        %vm1048 = vc.u32 %v1023, %v1042
        %v1049 = vadd.s32 %v1045, 1
        %v1050 = vsel %vm1048, %v1049, %v1045
        %v1051 = vadd.s32 %v1046, %v1050
        %v1052 = vadd.s32 %v1051, 536870912
        %v1053 = vshrl.u32 %v1052, 30
        %v1054 = vshll.u32 %v1053, 30
        %v1055 = vsub.s32 %v1051, %v1054
        %vm1056 = vcmp.lt.s32.totalorder %v1055, 0
        %v1057 = vsub.s32 0, %v1055
        %v1058 = vsel %vm1056, %v1057, %v1055
        %v1059 = vclz %v1058
        %v1060 = vsub.s32 %v1059, 2
        %vm1061 = vcmp.gt.s32.totalorder 0, %v1060
        %v1062 = vsel %vm1061, 0, %v1060
        %v1063 = vsub.s32 32, %v1062
        %v1064 = vshll.u32 %v1055, %v1062
        %v1065 = vshrl.u32 %v1047, %v1063
        %v1066 = vor.u32 %v1064, %v1065
        %v1067 = vsub.s32 4294967266, %v1062
        %v1068 = vadd.s32 %v1067, 127
        %v1069 = vshll.u32 %v1068, 23
        %v1070 = vor.u32 4788187, %v1069
        %v1071 = vand.u32 2147483647, %v1070
        %v1073 = vcvt.s32.f32 %v1066
        %v1074 = vmul.f32 %v1073, %v1071
        %v1075 = vxor.u32 %v1074, 2147483648
        %v1076 = vsel %vm955, %v1075, %v1074
        %v1077 = vsub.s32 4, %v1053
        %v1078 = vsel %vm955, %v1077, %v1053
        %v1079 = vsel %vm954, %v427, %v1076
        %v1080 = vsel %vm954, 0, %v1078
        %v1081 = vmul.f32 %v1079, %v1079
        %v1082 = vmul.f32 %v1081, -0.001358992
        %v1083 = vadd.f32 %v1082, 0.041655596
        %v1084 = vmul.f32 %v1081, %v1083
        %v1085 = vadd.f32 %v1084, -0.4999988
        %v1086 = vmul.f32 %v1081, %v1085
        %v1087 = vadd.f32 1.0, %v1086
        %v1088 = vmul.f32 %v1079, %v1079
        %v1089 = vmul.f32 %v1088, -0.00019511016
        %v1090 = vadd.f32 %v1089, 0.008332121
        %v1091 = vmul.f32 %v1088, %v1090
        %v1092 = vadd.f32 %v1091, -0.16666654
        %v1093 = vmul.f32 %v1088, %v1092
        %v1094 = vadd.f32 %v1093, 1.0
        %v1095 = vmul.f32 %v1094, %v1079
        %vm1096 = vweird.f32 %v427
        %v1097 = vadd.s32 %v1080, 3
        %v1098 = vand.u32 %v1097, 3
        %vm1099 = vcmp.lt.s32.totalorder %v1098, 2
        %vm1100 = vcmp.eq.s32.totalorder %v1098, 0
        %v1101 = vxor.u32 %v1095, 2147483648
        %v1102 = vsel %vm1100, %v1087, %v1101
        %vm1103 = vcmp.eq.s32.totalorder %v1098, 2
        %v1104 = vxor.u32 %v1087, 2147483648
        %v1105 = vsel %vm1103, %v1104, %v1095
        %v1106 = vsel %vm1099, %v1102, %v1105
        %v1107 = vsel %vm1096, nan, %v1106
        %v1108 = vand.u32 2147483647, %v428
        %vm1109 = vcmp.le.f32.partialorder %v1108, 0.7853982
        %vm1110 = vcmp.lt.s32.totalorder %v428, 0
        %v1111 = vand.u32 %v428, 2139095040
        %v1112 = vshrl.u32 %v1111, 23
        %v1113 = vsub.s32 %v1112, 127
        %v1114 = vand.u32 2147483647, %v428
        %v1115 = vand.u32 %v1114, 8388607
        %v1116 = vor.u32 %v1115, 8388608
        %v1117 = vsub.s32 0, %v1116
        %v1118 = vadd.s32 %v1113, 1
        %vm1119 = vcmp.gt.s32.totalorder %v1118, 0
        %v1120 = vsel %vm1119, %v1118, 0
        %v1121 = vshrl.u32 %v1120, 5
        %v1122 = vand.u32 %v1120, 31
        %v1123 = vsub.s32 32, %v1122
        %v1124 = vshrl.u32 683565275, %v1123
        %v1125 = vshll.u32 683565275, %v1122
        %v1126 = vshrl.u32 2475754826, %v1123
        %v1127 = vor.u32 %v1125, %v1126
        %v1128 = vshll.u32 2475754826, %v1122
        %v1129 = vshrl.u32 2131351028, %v1123
        %v1130 = vor.u32 %v1128, %v1129
        %v1131 = vshll.u32 2131351028, %v1122
        %v1132 = vshrl.u32 2102212464, %v1123
        %v1133 = vor.u32 %v1131, %v1132
        %v1134 = vshll.u32 2102212464, %v1122
        %v1135 = vshrl.u32 920167782, %v1123
        %v1136 = vor.u32 %v1134, %v1135
        %v1137 = vshll.u32 920167782, %v1122
        %v1138 = vshrl.u32 1326507024, %v1123
        %v1139 = vor.u32 %v1137, %v1138
        %vm1140 = vcmp.lt.s32.totalorder %v1121, 1
        %vm1141 = vcmp.lt.s32.totalorder %v1121, 2
        %vm1142 = vcmp.lt.s32.totalorder %v1121, 3
        %vm1143 = vcmp.lt.s32.totalorder %v1121, 4
        %v1144 = vsel %vm1140, %v1124, %v1127
        %v1145 = vsel %vm1143, %v1133, 2102212464
        %v1146 = vsel %vm1142, %v1130, %v1145
        %v1147 = vsel %vm1141, %v1144, %v1146
        %v1148 = vsel %vm1140, %v1127, %v1130
        %v1149 = vsel %vm1143, %v1136, 920167782
        %v1150 = vsel %vm1142, %v1133, %v1149
        %v1151 = vsel %vm1141, %v1148, %v1150
        %v1152 = vsel %vm1140, %v1130, %v1133
        %v1153 = vsel %vm1143, %v1139, 1326507024
        %v1154 = vsel %vm1142, %v1136, %v1153
        %v1155 = vsel %vm1141, %v1152, %v1154
        %v1156 = vshll.u32 %v1116, 8
        %v1157 = vand.u32 %v1156, 65535
        %v1158 = vshrl.u32 %v1156, 16
        %v1159 = vand.u32 %v1155, 65535
        %v1160 = vshrl.u32 %v1155, 16
        %v1161 = vmul.u32 %v1157, %v1159
        %v1162 = vmul.u32 %v1157, %v1160
        %v1163 = vmul.u32 %v1158, %v1159
        %v1164 = vmul.u32 %v1158, %v1160
        %v1165 = vshll.u32 %v1162, 16
        %v1166 = vshrl.u32 %v1162, 16
        %v1167 = vshll.u32 %v1163, 16
        %v1168 = vshrl.u32 %v1163, 16
        %vm1169 = vc.u32 %v1161, %v1165
        %v1170 = vsel %vm1169, 1, 0
        %v1171 = vadd.s32 %v1161, %v1165
        %v1172 = vadd.s32 %v1164, %v1170
        %vm1173 = vc.u32 %v1171, %v1167
        %v1174 = vsel %vm1173, 1, 0
        %v1175 = vadd.s32 %v1171, %v1167
        %v1176 = vadd.s32 %v1172, %v1174
        %v1177 = vadd.s32 %v1176, %v1166
        %v1178 = vadd.s32 %v1177, %v1168
        %v1179 = vand.u32 %v1156, 65535
        %v1180 = vshrl.u32 %v1156, 16
        %v1181 = vand.u32 %v1151, 65535
        %v1182 = vshrl.u32 %v1151, 16
        %v1183 = vmul.u32 %v1179, %v1181
        %v1184 = vmul.u32 %v1179, %v1182
        %v1185 = vmul.u32 %v1180, %v1181
        %v1186 = vmul.u32 %v1180, %v1182
        %v1187 = vshll.u32 %v1184, 16
        %v1188 = vshrl.u32 %v1184, 16
        %v1189 = vshll.u32 %v1185, 16
        %v1190 = vshrl.u32 %v1185, 16
        %vm1191 = vc.u32 %v1183, %v1187
        %v1192 = vsel %vm1191, 1, 0
        %v1193 = vadd.s32 %v1183, %v1187
        %v1194 = vadd.s32 %v1186, %v1192
        %vm1195 = vc.u32 %v1193, %v1189
        %v1196 = vsel %vm1195, 1, 0
        %v1197 = vadd.s32 %v1193, %v1189
        %v1198 = vadd.s32 %v1194, %v1196
        %v1199 = vadd.s32 %v1198, %v1188
        %v1200 = vadd.s32 %v1199, %v1190
        %v1201 = vmul.u32 %v1156, %v1147
        %v1202 = vadd.s32 %v1178, %v1197
        %vm1203 = vc.u32 %v1178, %v1197
        %v1204 = vadd.s32 %v1200, 1
        %v1205 = vsel %vm1203, %v1204, %v1200
        %v1206 = vadd.s32 %v1201, %v1205
        %v1207 = vadd.s32 %v1206, 536870912
        %v1208 = vshrl.u32 %v1207, 30
        %v1209 = vshll.u32 %v1208, 30
        %v1210 = vsub.s32 %v1206, %v1209
        %vm1211 = vcmp.lt.s32.totalorder %v1210, 0
        %v1212 = vsub.s32 0, %v1210
        %v1213 = vsel %vm1211, %v1212, %v1210
        %v1214 = vclz %v1213
        %v1215 = vsub.s32 %v1214, 2
        %vm1216 = vcmp.gt.s32.totalorder 0, %v1215
        %v1217 = vsel %vm1216, 0, %v1215
        %v1218 = vsub.s32 32, %v1217
        %v1219 = vshll.u32 %v1210, %v1217
        %v1220 = vshrl.u32 %v1202, %v1218
        %v1221 = vor.u32 %v1219, %v1220
        %v1222 = vsub.s32 4294967266, %v1217
        %v1223 = vadd.s32 %v1222, 127
        %v1224 = vshll.u32 %v1223, 23
        %v1225 = vor.u32 4788187, %v1224
        %v1226 = vand.u32 2147483647, %v1225
        %v1228 = vcvt.s32.f32 %v1221
        %v1229 = vmul.f32 %v1228, %v1226
        %v1230 = vxor.u32 %v1229, 2147483648
        %v1231 = vsel %vm1110, %v1230, %v1229
        %v1232 = vsub.s32 4, %v1208
        %v1233 = vsel %vm1110, %v1232, %v1208
        %v1234 = vsel %vm1109, %v428, %v1231
        %v1235 = vsel %vm1109, 0, %v1233
        %v1236 = vmul.f32 %v1234, %v1234
        %v1237 = vmul.f32 %v1236, -0.001358992
        %v1238 = vadd.f32 %v1237, 0.041655596
        %v1239 = vmul.f32 %v1236, %v1238
        %v1240 = vadd.f32 %v1239, -0.4999988
        %v1241 = vmul.f32 %v1236, %v1240
        %v1242 = vadd.f32 1.0, %v1241
        %v1243 = vmul.f32 %v1234, %v1234
        %v1244 = vmul.f32 %v1243, -0.00019511016
        %v1245 = vadd.f32 %v1244, 0.008332121
        %v1246 = vmul.f32 %v1243, %v1245
        %v1247 = vadd.f32 %v1246, -0.16666654
        %v1248 = vmul.f32 %v1243, %v1247
        %v1249 = vadd.f32 %v1248, 1.0
        %v1250 = vmul.f32 %v1249, %v1234
        %vm1251 = vweird.f32 %v428
        %v1252 = vadd.s32 %v1235, 3
        %v1253 = vand.u32 %v1252, 3
        %vm1254 = vcmp.lt.s32.totalorder %v1253, 2
        %vm1255 = vcmp.eq.s32.totalorder %v1253, 0
        %v1256 = vxor.u32 %v1250, 2147483648
        %v1257 = vsel %vm1255, %v1242, %v1256
        %vm1258 = vcmp.eq.s32.totalorder %v1253, 2
        %v1259 = vxor.u32 %v1242, 2147483648
        %v1260 = vsel %vm1258, %v1259, %v1250
        %v1261 = vsel %vm1254, %v1257, %v1260
        %v1262 = vsel %vm1251, nan, %v1261
        %v1263 = vand.u32 2147483647, %v429
        %vm1264 = vcmp.le.f32.partialorder %v1263, 0.7853982
        %vm1265 = vcmp.lt.s32.totalorder %v429, 0
        %v1266 = vand.u32 %v429, 2139095040
        %v1267 = vshrl.u32 %v1266, 23
        %v1268 = vsub.s32 %v1267, 127
        %v1269 = vand.u32 2147483647, %v429
        %v1270 = vand.u32 %v1269, 8388607
        %v1271 = vor.u32 %v1270, 8388608
        %v1272 = vsub.s32 0, %v1271
        %v1273 = vadd.s32 %v1268, 1
        %vm1274 = vcmp.gt.s32.totalorder %v1273, 0
        %v1275 = vsel %vm1274, %v1273, 0
        %v1276 = vshrl.u32 %v1275, 5
        %v1277 = vand.u32 %v1275, 31
        %v1278 = vsub.s32 32, %v1277
        %v1279 = vshrl.u32 683565275, %v1278
        %v1280 = vshll.u32 683565275, %v1277
        %v1281 = vshrl.u32 2475754826, %v1278
        %v1282 = vor.u32 %v1280, %v1281
        %v1283 = vshll.u32 2475754826, %v1277
        %v1284 = vshrl.u32 2131351028, %v1278
        %v1285 = vor.u32 %v1283, %v1284
        %v1286 = vshll.u32 2131351028, %v1277
        %v1287 = vshrl.u32 2102212464, %v1278
        %v1288 = vor.u32 %v1286, %v1287
        %v1289 = vshll.u32 2102212464, %v1277
        %v1290 = vshrl.u32 920167782, %v1278
        %v1291 = vor.u32 %v1289, %v1290
        %v1292 = vshll.u32 920167782, %v1277
        %v1293 = vshrl.u32 1326507024, %v1278
        %v1294 = vor.u32 %v1292, %v1293
        %vm1295 = vcmp.lt.s32.totalorder %v1276, 1
        %vm1296 = vcmp.lt.s32.totalorder %v1276, 2
        %vm1297 = vcmp.lt.s32.totalorder %v1276, 3
        %vm1298 = vcmp.lt.s32.totalorder %v1276, 4
        %v1299 = vsel %vm1295, %v1279, %v1282
        %v1300 = vsel %vm1298, %v1288, 2102212464
        %v1301 = vsel %vm1297, %v1285, %v1300
        %v1302 = vsel %vm1296, %v1299, %v1301
        %v1303 = vsel %vm1295, %v1282, %v1285
        %v1304 = vsel %vm1298, %v1291, 920167782
        %v1305 = vsel %vm1297, %v1288, %v1304
        %v1306 = vsel %vm1296, %v1303, %v1305
        %v1307 = vsel %vm1295, %v1285, %v1288
        %v1308 = vsel %vm1298, %v1294, 1326507024
        %v1309 = vsel %vm1297, %v1291, %v1308
        %v1310 = vsel %vm1296, %v1307, %v1309
        %v1311 = vshll.u32 %v1271, 8
        %v1312 = vand.u32 %v1311, 65535
        %v1313 = vshrl.u32 %v1311, 16
        %v1314 = vand.u32 %v1310, 65535
        %v1315 = vshrl.u32 %v1310, 16
        %v1316 = vmul.u32 %v1312, %v1314
        %v1317 = vmul.u32 %v1312, %v1315
        %v1318 = vmul.u32 %v1313, %v1314
        %v1319 = vmul.u32 %v1313, %v1315
        %v1320 = vshll.u32 %v1317, 16
        %v1321 = vshrl.u32 %v1317, 16
        %v1322 = vshll.u32 %v1318, 16
        %v1323 = vshrl.u32 %v1318, 16
        %vm1324 = vc.u32 %v1316, %v1320
        %v1325 = vsel %vm1324, 1, 0
        %v1326 = vadd.s32 %v1316, %v1320
        %v1327 = vadd.s32 %v1319, %v1325
        %vm1328 = vc.u32 %v1326, %v1322
        %v1329 = vsel %vm1328, 1, 0
        %v1330 = vadd.s32 %v1326, %v1322
        %v1331 = vadd.s32 %v1327, %v1329
        %v1332 = vadd.s32 %v1331, %v1321
        %v1333 = vadd.s32 %v1332, %v1323
        %v1334 = vand.u32 %v1311, 65535
        %v1335 = vshrl.u32 %v1311, 16
        %v1336 = vand.u32 %v1306, 65535
        %v1337 = vshrl.u32 %v1306, 16
        %v1338 = vmul.u32 %v1334, %v1336
        %v1339 = vmul.u32 %v1334, %v1337
        %v1340 = vmul.u32 %v1335, %v1336
        %v1341 = vmul.u32 %v1335, %v1337
        %v1342 = vshll.u32 %v1339, 16
        %v1343 = vshrl.u32 %v1339, 16
        %v1344 = vshll.u32 %v1340, 16
        %v1345 = vshrl.u32 %v1340, 16
        %vm1346 = vc.u32 %v1338, %v1342
        %v1347 = vsel %vm1346, 1, 0
        %v1348 = vadd.s32 %v1338, %v1342
        %v1349 = vadd.s32 %v1341, %v1347
        %vm1350 = vc.u32 %v1348, %v1344
        %v1351 = vsel %vm1350, 1, 0
        %v1352 = vadd.s32 %v1348, %v1344
        %v1353 = vadd.s32 %v1349, %v1351
        %v1354 = vadd.s32 %v1353, %v1343
        %v1355 = vadd.s32 %v1354, %v1345
        %v1356 = vmul.u32 %v1311, %v1302
        %v1357 = vadd.s32 %v1333, %v1352
        %vm1358 = vc.u32 %v1333, %v1352
        %v1359 = vadd.s32 %v1355, 1
        %v1360 = vsel %vm1358, %v1359, %v1355
        %v1361 = vadd.s32 %v1356, %v1360
        %v1362 = vadd.s32 %v1361, 536870912
        %v1363 = vshrl.u32 %v1362, 30
        %v1364 = vshll.u32 %v1363, 30
        %v1365 = vsub.s32 %v1361, %v1364
        %vm1366 = vcmp.lt.s32.totalorder %v1365, 0
        %v1367 = vsub.s32 0, %v1365
        %v1368 = vsel %vm1366, %v1367, %v1365
        %v1369 = vclz %v1368
        %v1370 = vsub.s32 %v1369, 2
        %vm1371 = vcmp.gt.s32.totalorder 0, %v1370
        %v1372 = vsel %vm1371, 0, %v1370
        %v1373 = vsub.s32 32, %v1372
        %v1374 = vshll.u32 %v1365, %v1372
        %v1375 = vshrl.u32 %v1357, %v1373
        %v1376 = vor.u32 %v1374, %v1375
        %v1377 = vsub.s32 4294967266, %v1372
        %v1378 = vadd.s32 %v1377, 127
        %v1379 = vshll.u32 %v1378, 23
        %v1380 = vor.u32 4788187, %v1379
        %v1381 = vand.u32 2147483647, %v1380
        %v1383 = vcvt.s32.f32 %v1376
        %v1384 = vmul.f32 %v1383, %v1381
        %v1385 = vxor.u32 %v1384, 2147483648
        %v1386 = vsel %vm1265, %v1385, %v1384
        %v1387 = vsub.s32 4, %v1363
        %v1388 = vsel %vm1265, %v1387, %v1363
        %v1389 = vsel %vm1264, %v429, %v1386
        %v1390 = vsel %vm1264, 0, %v1388
        %v1391 = vmul.f32 %v1389, %v1389
        %v1392 = vmul.f32 %v1391, -0.001358992
        %v1393 = vadd.f32 %v1392, 0.041655596
        %v1394 = vmul.f32 %v1391, %v1393
        %v1395 = vadd.f32 %v1394, -0.4999988
        %v1396 = vmul.f32 %v1391, %v1395
        %v1397 = vadd.f32 1.0, %v1396
        %v1398 = vmul.f32 %v1389, %v1389
        %v1399 = vmul.f32 %v1398, -0.00019511016
        %v1400 = vadd.f32 %v1399, 0.008332121
        %v1401 = vmul.f32 %v1398, %v1400
        %v1402 = vadd.f32 %v1401, -0.16666654
        %v1403 = vmul.f32 %v1398, %v1402
        %v1404 = vadd.f32 %v1403, 1.0
        %v1405 = vmul.f32 %v1404, %v1389
        %vm1406 = vweird.f32 %v429
        %v1407 = vadd.s32 %v1390, 3
        %v1408 = vand.u32 %v1407, 3
        %vm1409 = vcmp.lt.s32.totalorder %v1408, 2
        %vm1410 = vcmp.eq.s32.totalorder %v1408, 0
        %v1411 = vxor.u32 %v1405, 2147483648
        %v1412 = vsel %vm1410, %v1397, %v1411
        %vm1413 = vcmp.eq.s32.totalorder %v1408, 2
        %v1414 = vxor.u32 %v1397, 2147483648
        %v1415 = vsel %vm1413, %v1414, %v1405
        %v1416 = vsel %vm1409, %v1412, %v1415
        %v1417 = vsel %vm1406, nan, %v1416
        %v1418 = vand.u32 2147483647, %v430
        %vm1419 = vcmp.le.f32.partialorder %v1418, 0.7853982
        %vm1420 = vcmp.lt.s32.totalorder %v430, 0
        %v1421 = vand.u32 %v430, 2139095040
        %v1422 = vshrl.u32 %v1421, 23
        %v1423 = vsub.s32 %v1422, 127
        %v1424 = vand.u32 2147483647, %v430
        %v1425 = vand.u32 %v1424, 8388607
        %v1426 = vor.u32 %v1425, 8388608
        %v1427 = vsub.s32 0, %v1426
        %v1428 = vadd.s32 %v1423, 1
        %vm1429 = vcmp.gt.s32.totalorder %v1428, 0
        %v1430 = vsel %vm1429, %v1428, 0
        %v1431 = vshrl.u32 %v1430, 5
        %v1432 = vand.u32 %v1430, 31
        %v1433 = vsub.s32 32, %v1432
        %v1434 = vshrl.u32 683565275, %v1433
        %v1435 = vshll.u32 683565275, %v1432
        %v1436 = vshrl.u32 2475754826, %v1433
        %v1437 = vor.u32 %v1435, %v1436
        %v1438 = vshll.u32 2475754826, %v1432
        %v1439 = vshrl.u32 2131351028, %v1433
        %v1440 = vor.u32 %v1438, %v1439
        %v1441 = vshll.u32 2131351028, %v1432
        %v1442 = vshrl.u32 2102212464, %v1433
        %v1443 = vor.u32 %v1441, %v1442
        %v1444 = vshll.u32 2102212464, %v1432
        %v1445 = vshrl.u32 920167782, %v1433
        %v1446 = vor.u32 %v1444, %v1445
        %v1447 = vshll.u32 920167782, %v1432
        %v1448 = vshrl.u32 1326507024, %v1433
        %v1449 = vor.u32 %v1447, %v1448
        %vm1450 = vcmp.lt.s32.totalorder %v1431, 1
        %vm1451 = vcmp.lt.s32.totalorder %v1431, 2
        %vm1452 = vcmp.lt.s32.totalorder %v1431, 3
        %vm1453 = vcmp.lt.s32.totalorder %v1431, 4
        %v1454 = vsel %vm1450, %v1434, %v1437
        %v1455 = vsel %vm1453, %v1443, 2102212464
        %v1456 = vsel %vm1452, %v1440, %v1455
        %v1457 = vsel %vm1451, %v1454, %v1456
        %v1458 = vsel %vm1450, %v1437, %v1440
        %v1459 = vsel %vm1453, %v1446, 920167782
        %v1460 = vsel %vm1452, %v1443, %v1459
        %v1461 = vsel %vm1451, %v1458, %v1460
        %v1462 = vsel %vm1450, %v1440, %v1443
        %v1463 = vsel %vm1453, %v1449, 1326507024
        %v1464 = vsel %vm1452, %v1446, %v1463
        %v1465 = vsel %vm1451, %v1462, %v1464
        %v1466 = vshll.u32 %v1426, 8
        %v1467 = vand.u32 %v1466, 65535
        %v1468 = vshrl.u32 %v1466, 16
        %v1469 = vand.u32 %v1465, 65535
        %v1470 = vshrl.u32 %v1465, 16
        %v1471 = vmul.u32 %v1467, %v1469
        %v1472 = vmul.u32 %v1467, %v1470
        %v1473 = vmul.u32 %v1468, %v1469
        %v1474 = vmul.u32 %v1468, %v1470
        %v1475 = vshll.u32 %v1472, 16
        %v1476 = vshrl.u32 %v1472, 16
        %v1477 = vshll.u32 %v1473, 16
        %v1478 = vshrl.u32 %v1473, 16
        %vm1479 = vc.u32 %v1471, %v1475
        %v1480 = vsel %vm1479, 1, 0
        %v1481 = vadd.s32 %v1471, %v1475
        %v1482 = vadd.s32 %v1474, %v1480
        %vm1483 = vc.u32 %v1481, %v1477
        %v1484 = vsel %vm1483, 1, 0
        %v1485 = vadd.s32 %v1481, %v1477
        %v1486 = vadd.s32 %v1482, %v1484
        %v1487 = vadd.s32 %v1486, %v1476
        %v1488 = vadd.s32 %v1487, %v1478
        %v1489 = vand.u32 %v1466, 65535
        %v1490 = vshrl.u32 %v1466, 16
        %v1491 = vand.u32 %v1461, 65535
        %v1492 = vshrl.u32 %v1461, 16
        %v1493 = vmul.u32 %v1489, %v1491
        %v1494 = vmul.u32 %v1489, %v1492
        %v1495 = vmul.u32 %v1490, %v1491
        %v1496 = vmul.u32 %v1490, %v1492
        %v1497 = vshll.u32 %v1494, 16
        %v1498 = vshrl.u32 %v1494, 16
        %v1499 = vshll.u32 %v1495, 16
        %v1500 = vshrl.u32 %v1495, 16
        %vm1501 = vc.u32 %v1493, %v1497
        %v1502 = vsel %vm1501, 1, 0
        %v1503 = vadd.s32 %v1493, %v1497
        %v1504 = vadd.s32 %v1496, %v1502
        %vm1505 = vc.u32 %v1503, %v1499
        %v1506 = vsel %vm1505, 1, 0
        %v1507 = vadd.s32 %v1503, %v1499
        %v1508 = vadd.s32 %v1504, %v1506
        %v1509 = vadd.s32 %v1508, %v1498
        %v1510 = vadd.s32 %v1509, %v1500
        %v1511 = vmul.u32 %v1466, %v1457
        %v1512 = vadd.s32 %v1488, %v1507
        %vm1513 = vc.u32 %v1488, %v1507
        %v1514 = vadd.s32 %v1510, 1
        %v1515 = vsel %vm1513, %v1514, %v1510
        %v1516 = vadd.s32 %v1511, %v1515
        %v1517 = vadd.s32 %v1516, 536870912
        %v1518 = vshrl.u32 %v1517, 30
        %v1519 = vshll.u32 %v1518, 30
        %v1520 = vsub.s32 %v1516, %v1519
        %vm1521 = vcmp.lt.s32.totalorder %v1520, 0
        %v1522 = vsub.s32 0, %v1520
        %v1523 = vsel %vm1521, %v1522, %v1520
        %v1524 = vclz %v1523
        %v1525 = vsub.s32 %v1524, 2
        %vm1526 = vcmp.gt.s32.totalorder 0, %v1525
        %v1527 = vsel %vm1526, 0, %v1525
        %v1528 = vsub.s32 32, %v1527
        %v1529 = vshll.u32 %v1520, %v1527
        %v1530 = vshrl.u32 %v1512, %v1528
        %v1531 = vor.u32 %v1529, %v1530
        %v1532 = vsub.s32 4294967266, %v1527
        %v1533 = vadd.s32 %v1532, 127
        %v1534 = vshll.u32 %v1533, 23
        %v1535 = vor.u32 4788187, %v1534
        %v1536 = vand.u32 2147483647, %v1535
        %v1538 = vcvt.s32.f32 %v1531
        %v1539 = vmul.f32 %v1538, %v1536
        %v1540 = vxor.u32 %v1539, 2147483648
        %v1541 = vsel %vm1420, %v1540, %v1539
        %v1542 = vsub.s32 4, %v1518
        %v1543 = vsel %vm1420, %v1542, %v1518
        %v1544 = vsel %vm1419, %v430, %v1541
        %v1545 = vsel %vm1419, 0, %v1543
        %v1546 = vmul.f32 %v1544, %v1544
        %v1547 = vmul.f32 %v1546, -0.001358992
        %v1548 = vadd.f32 %v1547, 0.041655596
        %v1549 = vmul.f32 %v1546, %v1548
        %v1550 = vadd.f32 %v1549, -0.4999988
        %v1551 = vmul.f32 %v1546, %v1550
        %v1552 = vadd.f32 1.0, %v1551
        %v1553 = vmul.f32 %v1544, %v1544
        %v1554 = vmul.f32 %v1553, -0.00019511016
        %v1555 = vadd.f32 %v1554, 0.008332121
        %v1556 = vmul.f32 %v1553, %v1555
        %v1557 = vadd.f32 %v1556, -0.16666654
        %v1558 = vmul.f32 %v1553, %v1557
        %v1559 = vadd.f32 %v1558, 1.0
        %v1560 = vmul.f32 %v1559, %v1544
        %vm1561 = vweird.f32 %v430
        %v1562 = vadd.s32 %v1545, 3
        %v1563 = vand.u32 %v1562, 3
        %vm1564 = vcmp.lt.s32.totalorder %v1563, 2
        %vm1565 = vcmp.eq.s32.totalorder %v1563, 0
        %v1566 = vxor.u32 %v1560, 2147483648
        %v1567 = vsel %vm1565, %v1552, %v1566
        %vm1568 = vcmp.eq.s32.totalorder %v1563, 2
        %v1569 = vxor.u32 %v1552, 2147483648
        %v1570 = vsel %vm1568, %v1569, %v1560
        %v1571 = vsel %vm1564, %v1567, %v1570
        %v1572 = vsel %vm1561, nan, %v1571
        %v1573 = vand.u32 2147483647, %v431
        %vm1574 = vcmp.le.f32.partialorder %v1573, 0.7853982
        %vm1575 = vcmp.lt.s32.totalorder %v431, 0
        %v1576 = vand.u32 %v431, 2139095040
        %v1577 = vshrl.u32 %v1576, 23
        %v1578 = vsub.s32 %v1577, 127
        %v1579 = vand.u32 2147483647, %v431
        %v1580 = vand.u32 %v1579, 8388607
        %v1581 = vor.u32 %v1580, 8388608
        %v1582 = vsub.s32 0, %v1581
        %v1583 = vadd.s32 %v1578, 1
        %vm1584 = vcmp.gt.s32.totalorder %v1583, 0
        %v1585 = vsel %vm1584, %v1583, 0
        %v1586 = vshrl.u32 %v1585, 5
        %v1587 = vand.u32 %v1585, 31
        %v1588 = vsub.s32 32, %v1587
        %v1589 = vshrl.u32 683565275, %v1588
        %v1590 = vshll.u32 683565275, %v1587
        %v1591 = vshrl.u32 2475754826, %v1588
        %v1592 = vor.u32 %v1590, %v1591
        %v1593 = vshll.u32 2475754826, %v1587
        %v1594 = vshrl.u32 2131351028, %v1588
        %v1595 = vor.u32 %v1593, %v1594
        %v1596 = vshll.u32 2131351028, %v1587
        %v1597 = vshrl.u32 2102212464, %v1588
        %v1598 = vor.u32 %v1596, %v1597
        %v1599 = vshll.u32 2102212464, %v1587
        %v1600 = vshrl.u32 920167782, %v1588
        %v1601 = vor.u32 %v1599, %v1600
        %v1602 = vshll.u32 920167782, %v1587
        %v1603 = vshrl.u32 1326507024, %v1588
        %v1604 = vor.u32 %v1602, %v1603
        %vm1605 = vcmp.lt.s32.totalorder %v1586, 1
        %vm1606 = vcmp.lt.s32.totalorder %v1586, 2
        %vm1607 = vcmp.lt.s32.totalorder %v1586, 3
        %vm1608 = vcmp.lt.s32.totalorder %v1586, 4
        %v1609 = vsel %vm1605, %v1589, %v1592
        %v1610 = vsel %vm1608, %v1598, 2102212464
        %v1611 = vsel %vm1607, %v1595, %v1610
        %v1612 = vsel %vm1606, %v1609, %v1611
        %v1613 = vsel %vm1605, %v1592, %v1595
        %v1614 = vsel %vm1608, %v1601, 920167782
        %v1615 = vsel %vm1607, %v1598, %v1614
        %v1616 = vsel %vm1606, %v1613, %v1615
        %v1617 = vsel %vm1605, %v1595, %v1598
        %v1618 = vsel %vm1608, %v1604, 1326507024
        %v1619 = vsel %vm1607, %v1601, %v1618
        %v1620 = vsel %vm1606, %v1617, %v1619
        %v1621 = vshll.u32 %v1581, 8
        %v1622 = vand.u32 %v1621, 65535
        %v1623 = vshrl.u32 %v1621, 16
        %v1624 = vand.u32 %v1620, 65535
        %v1625 = vshrl.u32 %v1620, 16
        %v1626 = vmul.u32 %v1622, %v1624
        %v1627 = vmul.u32 %v1622, %v1625
        %v1628 = vmul.u32 %v1623, %v1624
        %v1629 = vmul.u32 %v1623, %v1625
        %v1630 = vshll.u32 %v1627, 16
        %v1631 = vshrl.u32 %v1627, 16
        %v1632 = vshll.u32 %v1628, 16
        %v1633 = vshrl.u32 %v1628, 16
        %vm1634 = vc.u32 %v1626, %v1630
        %v1635 = vsel %vm1634, 1, 0
        %v1636 = vadd.s32 %v1626, %v1630
        %v1637 = vadd.s32 %v1629, %v1635
        %vm1638 = vc.u32 %v1636, %v1632
        %v1639 = vsel %vm1638, 1, 0
        %v1640 = vadd.s32 %v1636, %v1632
        %v1641 = vadd.s32 %v1637, %v1639
        %v1642 = vadd.s32 %v1641, %v1631
        %v1643 = vadd.s32 %v1642, %v1633
        %v1644 = vand.u32 %v1621, 65535
        %v1645 = vshrl.u32 %v1621, 16
        %v1646 = vand.u32 %v1616, 65535
        %v1647 = vshrl.u32 %v1616, 16
        %v1648 = vmul.u32 %v1644, %v1646
        %v1649 = vmul.u32 %v1644, %v1647
        %v1650 = vmul.u32 %v1645, %v1646
        %v1651 = vmul.u32 %v1645, %v1647
        %v1652 = vshll.u32 %v1649, 16
        %v1653 = vshrl.u32 %v1649, 16
        %v1654 = vshll.u32 %v1650, 16
        %v1655 = vshrl.u32 %v1650, 16
        %vm1656 = vc.u32 %v1648, %v1652
        %v1657 = vsel %vm1656, 1, 0
        %v1658 = vadd.s32 %v1648, %v1652
        %v1659 = vadd.s32 %v1651, %v1657
        %vm1660 = vc.u32 %v1658, %v1654
        %v1661 = vsel %vm1660, 1, 0
        %v1662 = vadd.s32 %v1658, %v1654
        %v1663 = vadd.s32 %v1659, %v1661
        %v1664 = vadd.s32 %v1663, %v1653
        %v1665 = vadd.s32 %v1664, %v1655
        %v1666 = vmul.u32 %v1621, %v1612
        %v1667 = vadd.s32 %v1643, %v1662
        %vm1668 = vc.u32 %v1643, %v1662
        %v1669 = vadd.s32 %v1665, 1
        %v1670 = vsel %vm1668, %v1669, %v1665
        %v1671 = vadd.s32 %v1666, %v1670
        %v1672 = vadd.s32 %v1671, 536870912
        %v1673 = vshrl.u32 %v1672, 30
        %v1674 = vshll.u32 %v1673, 30
        %v1675 = vsub.s32 %v1671, %v1674
        %vm1676 = vcmp.lt.s32.totalorder %v1675, 0
        %v1677 = vsub.s32 0, %v1675
        %v1678 = vsel %vm1676, %v1677, %v1675
        %v1679 = vclz %v1678
        %v1680 = vsub.s32 %v1679, 2
        %vm1681 = vcmp.gt.s32.totalorder 0, %v1680
        %v1682 = vsel %vm1681, 0, %v1680
        %v1683 = vsub.s32 32, %v1682
        %v1684 = vshll.u32 %v1675, %v1682
        %v1685 = vshrl.u32 %v1667, %v1683
        %v1686 = vor.u32 %v1684, %v1685
        %v1687 = vsub.s32 4294967266, %v1682
        %v1688 = vadd.s32 %v1687, 127
        %v1689 = vshll.u32 %v1688, 23
        %v1690 = vor.u32 4788187, %v1689
        %v1691 = vand.u32 2147483647, %v1690
        %v1693 = vcvt.s32.f32 %v1686
        %v1694 = vmul.f32 %v1693, %v1691
        %v1695 = vxor.u32 %v1694, 2147483648
        %v1696 = vsel %vm1575, %v1695, %v1694
        %v1697 = vsub.s32 4, %v1673
        %v1698 = vsel %vm1575, %v1697, %v1673
        %v1699 = vsel %vm1574, %v431, %v1696
        %v1700 = vsel %vm1574, 0, %v1698
        %v1701 = vmul.f32 %v1699, %v1699
        %v1702 = vmul.f32 %v1701, -0.001358992
        %v1703 = vadd.f32 %v1702, 0.041655596
        %v1704 = vmul.f32 %v1701, %v1703
        %v1705 = vadd.f32 %v1704, -0.4999988
        %v1706 = vmul.f32 %v1701, %v1705
        %v1707 = vadd.f32 1.0, %v1706
        %v1708 = vmul.f32 %v1699, %v1699
        %v1709 = vmul.f32 %v1708, -0.00019511016
        %v1710 = vadd.f32 %v1709, 0.008332121
        %v1711 = vmul.f32 %v1708, %v1710
        %v1712 = vadd.f32 %v1711, -0.16666654
        %v1713 = vmul.f32 %v1708, %v1712
        %v1714 = vadd.f32 %v1713, 1.0
        %v1715 = vmul.f32 %v1714, %v1699
        %vm1716 = vweird.f32 %v431
        %v1717 = vadd.s32 %v1700, 3
        %v1718 = vand.u32 %v1717, 3
        %vm1719 = vcmp.lt.s32.totalorder %v1718, 2
        %vm1720 = vcmp.eq.s32.totalorder %v1718, 0
        %v1721 = vxor.u32 %v1715, 2147483648
        %v1722 = vsel %vm1720, %v1707, %v1721
        %vm1723 = vcmp.eq.s32.totalorder %v1718, 2
        %v1724 = vxor.u32 %v1707, 2147483648
        %v1725 = vsel %vm1723, %v1724, %v1715
        %v1726 = vsel %vm1719, %v1722, %v1725
        %v1727 = vsel %vm1716, nan, %v1726
        %v1728 = vand.u32 2147483647, %v432
        %vm1729 = vcmp.le.f32.partialorder %v1728, 0.7853982
        %vm1730 = vcmp.lt.s32.totalorder %v432, 0
        %v1731 = vand.u32 %v432, 2139095040
        %v1732 = vshrl.u32 %v1731, 23
        %v1733 = vsub.s32 %v1732, 127
        %v1734 = vand.u32 2147483647, %v432
        %v1735 = vand.u32 %v1734, 8388607
        %v1736 = vor.u32 %v1735, 8388608
        %v1737 = vsub.s32 0, %v1736
        %v1738 = vadd.s32 %v1733, 1
        %vm1739 = vcmp.gt.s32.totalorder %v1738, 0
        %v1740 = vsel %vm1739, %v1738, 0
        %v1741 = vshrl.u32 %v1740, 5
        %v1742 = vand.u32 %v1740, 31
        %v1743 = vsub.s32 32, %v1742
        %v1744 = vshrl.u32 683565275, %v1743
        %v1745 = vshll.u32 683565275, %v1742
        %v1746 = vshrl.u32 2475754826, %v1743
        %v1747 = vor.u32 %v1745, %v1746
        %v1748 = vshll.u32 2475754826, %v1742
        %v1749 = vshrl.u32 2131351028, %v1743
        %v1750 = vor.u32 %v1748, %v1749
        %v1751 = vshll.u32 2131351028, %v1742
        %v1752 = vshrl.u32 2102212464, %v1743
        %v1753 = vor.u32 %v1751, %v1752
        %v1754 = vshll.u32 2102212464, %v1742
        %v1755 = vshrl.u32 920167782, %v1743
        %v1756 = vor.u32 %v1754, %v1755
        %v1757 = vshll.u32 920167782, %v1742
        %v1758 = vshrl.u32 1326507024, %v1743
        %v1759 = vor.u32 %v1757, %v1758
        %vm1760 = vcmp.lt.s32.totalorder %v1741, 1
        %vm1761 = vcmp.lt.s32.totalorder %v1741, 2
        %vm1762 = vcmp.lt.s32.totalorder %v1741, 3
        %vm1763 = vcmp.lt.s32.totalorder %v1741, 4
        %v1764 = vsel %vm1760, %v1744, %v1747
        %v1765 = vsel %vm1763, %v1753, 2102212464
        %v1766 = vsel %vm1762, %v1750, %v1765
        %v1767 = vsel %vm1761, %v1764, %v1766
        %v1768 = vsel %vm1760, %v1747, %v1750
        %v1769 = vsel %vm1763, %v1756, 920167782
        %v1770 = vsel %vm1762, %v1753, %v1769
        %v1771 = vsel %vm1761, %v1768, %v1770
        %v1772 = vsel %vm1760, %v1750, %v1753
        %v1773 = vsel %vm1763, %v1759, 1326507024
        %v1774 = vsel %vm1762, %v1756, %v1773
        %v1775 = vsel %vm1761, %v1772, %v1774
        %v1776 = vshll.u32 %v1736, 8
        %v1777 = vand.u32 %v1776, 65535
        %v1778 = vshrl.u32 %v1776, 16
        %v1779 = vand.u32 %v1775, 65535
        %v1780 = vshrl.u32 %v1775, 16
        %v1781 = vmul.u32 %v1777, %v1779
        %v1782 = vmul.u32 %v1777, %v1780
        %v1783 = vmul.u32 %v1778, %v1779
        %v1784 = vmul.u32 %v1778, %v1780
        %v1785 = vshll.u32 %v1782, 16
        %v1786 = vshrl.u32 %v1782, 16
        %v1787 = vshll.u32 %v1783, 16
        %v1788 = vshrl.u32 %v1783, 16
        %vm1789 = vc.u32 %v1781, %v1785
        %v1790 = vsel %vm1789, 1, 0
        %v1791 = vadd.s32 %v1781, %v1785
        %v1792 = vadd.s32 %v1784, %v1790
        %vm1793 = vc.u32 %v1791, %v1787
        %v1794 = vsel %vm1793, 1, 0
        %v1795 = vadd.s32 %v1791, %v1787
        %v1796 = vadd.s32 %v1792, %v1794
        %v1797 = vadd.s32 %v1796, %v1786
        %v1798 = vadd.s32 %v1797, %v1788
        %v1799 = vand.u32 %v1776, 65535
        %v1800 = vshrl.u32 %v1776, 16
        %v1801 = vand.u32 %v1771, 65535
        %v1802 = vshrl.u32 %v1771, 16
        %v1803 = vmul.u32 %v1799, %v1801
        %v1804 = vmul.u32 %v1799, %v1802
        %v1805 = vmul.u32 %v1800, %v1801
        %v1806 = vmul.u32 %v1800, %v1802
        %v1807 = vshll.u32 %v1804, 16
        %v1808 = vshrl.u32 %v1804, 16
        %v1809 = vshll.u32 %v1805, 16
        %v1810 = vshrl.u32 %v1805, 16
        %vm1811 = vc.u32 %v1803, %v1807
        %v1812 = vsel %vm1811, 1, 0
        %v1813 = vadd.s32 %v1803, %v1807
        %v1814 = vadd.s32 %v1806, %v1812
        %vm1815 = vc.u32 %v1813, %v1809
        %v1816 = vsel %vm1815, 1, 0
        %v1817 = vadd.s32 %v1813, %v1809
        %v1818 = vadd.s32 %v1814, %v1816
        %v1819 = vadd.s32 %v1818, %v1808
        %v1820 = vadd.s32 %v1819, %v1810
        %v1821 = vmul.u32 %v1776, %v1767
        %v1822 = vadd.s32 %v1798, %v1817
        %vm1823 = vc.u32 %v1798, %v1817
        %v1824 = vadd.s32 %v1820, 1
        %v1825 = vsel %vm1823, %v1824, %v1820
        %v1826 = vadd.s32 %v1821, %v1825
        %v1827 = vadd.s32 %v1826, 536870912
        %v1828 = vshrl.u32 %v1827, 30
        %v1829 = vshll.u32 %v1828, 30
        %v1830 = vsub.s32 %v1826, %v1829
        %vm1831 = vcmp.lt.s32.totalorder %v1830, 0
        %v1832 = vsub.s32 0, %v1830
        %v1833 = vsel %vm1831, %v1832, %v1830
        %v1834 = vclz %v1833
        %v1835 = vsub.s32 %v1834, 2
        %vm1836 = vcmp.gt.s32.totalorder 0, %v1835
        %v1837 = vsel %vm1836, 0, %v1835
        %v1838 = vsub.s32 32, %v1837
        %v1839 = vshll.u32 %v1830, %v1837
        %v1840 = vshrl.u32 %v1822, %v1838
        %v1841 = vor.u32 %v1839, %v1840
        %v1842 = vsub.s32 4294967266, %v1837
        %v1843 = vadd.s32 %v1842, 127
        %v1844 = vshll.u32 %v1843, 23
        %v1845 = vor.u32 4788187, %v1844
        %v1846 = vand.u32 2147483647, %v1845
        %v1848 = vcvt.s32.f32 %v1841
        %v1849 = vmul.f32 %v1848, %v1846
        %v1850 = vxor.u32 %v1849, 2147483648
        %v1851 = vsel %vm1730, %v1850, %v1849
        %v1852 = vsub.s32 4, %v1828
        %v1853 = vsel %vm1730, %v1852, %v1828
        %v1854 = vsel %vm1729, %v432, %v1851
        %v1855 = vsel %vm1729, 0, %v1853
        %v1856 = vmul.f32 %v1854, %v1854
        %v1857 = vmul.f32 %v1856, -0.001358992
        %v1858 = vadd.f32 %v1857, 0.041655596
        %v1859 = vmul.f32 %v1856, %v1858
        %v1860 = vadd.f32 %v1859, -0.4999988
        %v1861 = vmul.f32 %v1856, %v1860
        %v1862 = vadd.f32 1.0, %v1861
        %v1863 = vmul.f32 %v1854, %v1854
        %v1864 = vmul.f32 %v1863, -0.00019511016
        %v1865 = vadd.f32 %v1864, 0.008332121
        %v1866 = vmul.f32 %v1863, %v1865
        %v1867 = vadd.f32 %v1866, -0.16666654
        %v1868 = vmul.f32 %v1863, %v1867
        %v1869 = vadd.f32 %v1868, 1.0
        %v1870 = vmul.f32 %v1869, %v1854
        %vm1871 = vweird.f32 %v432
        %v1872 = vadd.s32 %v1855, 3
        %v1873 = vand.u32 %v1872, 3
        %vm1874 = vcmp.lt.s32.totalorder %v1873, 2
        %vm1875 = vcmp.eq.s32.totalorder %v1873, 0
        %v1876 = vxor.u32 %v1870, 2147483648
        %v1877 = vsel %vm1875, %v1862, %v1876
        %vm1878 = vcmp.eq.s32.totalorder %v1873, 2
        %v1879 = vxor.u32 %v1862, 2147483648
        %v1880 = vsel %vm1878, %v1879, %v1870
        %v1881 = vsel %vm1874, %v1877, %v1880
        %v1882 = vsel %vm1871, nan, %v1881
        %v1883 = vand.u32 2147483647, %v433
        %vm1884 = vcmp.le.f32.partialorder %v1883, 0.7853982
        %vm1885 = vcmp.lt.s32.totalorder %v433, 0
        %v1886 = vand.u32 %v433, 2139095040
        %v1887 = vshrl.u32 %v1886, 23
        %v1888 = vsub.s32 %v1887, 127
        %v1889 = vand.u32 2147483647, %v433
        %v1890 = vand.u32 %v1889, 8388607
        %v1891 = vor.u32 %v1890, 8388608
        %v1892 = vsub.s32 0, %v1891
        %v1893 = vadd.s32 %v1888, 1
        %vm1894 = vcmp.gt.s32.totalorder %v1893, 0
        %v1895 = vsel %vm1894, %v1893, 0
        %v1896 = vshrl.u32 %v1895, 5
        %v1897 = vand.u32 %v1895, 31
        %v1898 = vsub.s32 32, %v1897
        %v1899 = vshrl.u32 683565275, %v1898
        %v1900 = vshll.u32 683565275, %v1897
        %v1901 = vshrl.u32 2475754826, %v1898
        %v1902 = vor.u32 %v1900, %v1901
        %v1903 = vshll.u32 2475754826, %v1897
        %v1904 = vshrl.u32 2131351028, %v1898
        %v1905 = vor.u32 %v1903, %v1904
        %v1906 = vshll.u32 2131351028, %v1897
        %v1907 = vshrl.u32 2102212464, %v1898
        %v1908 = vor.u32 %v1906, %v1907
        %v1909 = vshll.u32 2102212464, %v1897
        %v1910 = vshrl.u32 920167782, %v1898
        %v1911 = vor.u32 %v1909, %v1910
        %v1912 = vshll.u32 920167782, %v1897
        %v1913 = vshrl.u32 1326507024, %v1898
        %v1914 = vor.u32 %v1912, %v1913
        %vm1915 = vcmp.lt.s32.totalorder %v1896, 1
        %vm1916 = vcmp.lt.s32.totalorder %v1896, 2
        %vm1917 = vcmp.lt.s32.totalorder %v1896, 3
        %vm1918 = vcmp.lt.s32.totalorder %v1896, 4
        %v1919 = vsel %vm1915, %v1899, %v1902
        %v1920 = vsel %vm1918, %v1908, 2102212464
        %v1921 = vsel %vm1917, %v1905, %v1920
        %v1922 = vsel %vm1916, %v1919, %v1921
        %v1923 = vsel %vm1915, %v1902, %v1905
        %v1924 = vsel %vm1918, %v1911, 920167782
        %v1925 = vsel %vm1917, %v1908, %v1924
        %v1926 = vsel %vm1916, %v1923, %v1925
        %v1927 = vsel %vm1915, %v1905, %v1908
        %v1928 = vsel %vm1918, %v1914, 1326507024
        %v1929 = vsel %vm1917, %v1911, %v1928
        %v1930 = vsel %vm1916, %v1927, %v1929
        %v1931 = vshll.u32 %v1891, 8
        %v1932 = vand.u32 %v1931, 65535
        %v1933 = vshrl.u32 %v1931, 16
        %v1934 = vand.u32 %v1930, 65535
        %v1935 = vshrl.u32 %v1930, 16
        %v1936 = vmul.u32 %v1932, %v1934
        %v1937 = vmul.u32 %v1932, %v1935
        %v1938 = vmul.u32 %v1933, %v1934
        %v1939 = vmul.u32 %v1933, %v1935
        %v1940 = vshll.u32 %v1937, 16
        %v1941 = vshrl.u32 %v1937, 16
        %v1942 = vshll.u32 %v1938, 16
        %v1943 = vshrl.u32 %v1938, 16
        %vm1944 = vc.u32 %v1936, %v1940
        %v1945 = vsel %vm1944, 1, 0
        %v1946 = vadd.s32 %v1936, %v1940
        %v1947 = vadd.s32 %v1939, %v1945
        %vm1948 = vc.u32 %v1946, %v1942
        %v1949 = vsel %vm1948, 1, 0
        %v1950 = vadd.s32 %v1946, %v1942
        %v1951 = vadd.s32 %v1947, %v1949
        %v1952 = vadd.s32 %v1951, %v1941
        %v1953 = vadd.s32 %v1952, %v1943
        %v1954 = vand.u32 %v1931, 65535
        %v1955 = vshrl.u32 %v1931, 16
        %v1956 = vand.u32 %v1926, 65535
        %v1957 = vshrl.u32 %v1926, 16
        %v1958 = vmul.u32 %v1954, %v1956
        %v1959 = vmul.u32 %v1954, %v1957
        %v1960 = vmul.u32 %v1955, %v1956
        %v1961 = vmul.u32 %v1955, %v1957
        %v1962 = vshll.u32 %v1959, 16
        %v1963 = vshrl.u32 %v1959, 16
        %v1964 = vshll.u32 %v1960, 16
        %v1965 = vshrl.u32 %v1960, 16
        %vm1966 = vc.u32 %v1958, %v1962
        %v1967 = vsel %vm1966, 1, 0
        %v1968 = vadd.s32 %v1958, %v1962
        %v1969 = vadd.s32 %v1961, %v1967
        %vm1970 = vc.u32 %v1968, %v1964
        %v1971 = vsel %vm1970, 1, 0
        %v1972 = vadd.s32 %v1968, %v1964
        %v1973 = vadd.s32 %v1969, %v1971
        %v1974 = vadd.s32 %v1973, %v1963
        %v1975 = vadd.s32 %v1974, %v1965
        %v1976 = vmul.u32 %v1931, %v1922
        %v1977 = vadd.s32 %v1953, %v1972
        %vm1978 = vc.u32 %v1953, %v1972
        %v1979 = vadd.s32 %v1975, 1
        %v1980 = vsel %vm1978, %v1979, %v1975
        %v1981 = vadd.s32 %v1976, %v1980
        %v1982 = vadd.s32 %v1981, 536870912
        %v1983 = vshrl.u32 %v1982, 30
        %v1984 = vshll.u32 %v1983, 30
        %v1985 = vsub.s32 %v1981, %v1984
        %vm1986 = vcmp.lt.s32.totalorder %v1985, 0
        %v1987 = vsub.s32 0, %v1985
        %v1988 = vsel %vm1986, %v1987, %v1985
        %v1989 = vclz %v1988
        %v1990 = vsub.s32 %v1989, 2
        %vm1991 = vcmp.gt.s32.totalorder 0, %v1990
        %v1992 = vsel %vm1991, 0, %v1990
        %v1993 = vsub.s32 32, %v1992
        %v1994 = vshll.u32 %v1985, %v1992
        %v1995 = vshrl.u32 %v1977, %v1993
        %v1996 = vor.u32 %v1994, %v1995
        %v1997 = vsub.s32 4294967266, %v1992
        %v1998 = vadd.s32 %v1997, 127
        %v1999 = vshll.u32 %v1998, 23
        %v2000 = vor.u32 4788187, %v1999
        %v2001 = vand.u32 2147483647, %v2000
        %v2003 = vcvt.s32.f32 %v1996
        %v2004 = vmul.f32 %v2003, %v2001
        %v2005 = vxor.u32 %v2004, 2147483648
        %v2006 = vsel %vm1885, %v2005, %v2004
        %v2007 = vsub.s32 4, %v1983
        %v2008 = vsel %vm1885, %v2007, %v1983
        %v2009 = vsel %vm1884, %v433, %v2006
        %v2010 = vsel %vm1884, 0, %v2008
        %v2011 = vmul.f32 %v2009, %v2009
        %v2012 = vmul.f32 %v2011, -0.001358992
        %v2013 = vadd.f32 %v2012, 0.041655596
        %v2014 = vmul.f32 %v2011, %v2013
        %v2015 = vadd.f32 %v2014, -0.4999988
        %v2016 = vmul.f32 %v2011, %v2015
        %v2017 = vadd.f32 1.0, %v2016
        %v2018 = vmul.f32 %v2009, %v2009
        %v2019 = vmul.f32 %v2018, -0.00019511016
        %v2020 = vadd.f32 %v2019, 0.008332121
        %v2021 = vmul.f32 %v2018, %v2020
        %v2022 = vadd.f32 %v2021, -0.16666654
        %v2023 = vmul.f32 %v2018, %v2022
        %v2024 = vadd.f32 %v2023, 1.0
        %v2025 = vmul.f32 %v2024, %v2009
        %vm2026 = vweird.f32 %v433
        %v2027 = vadd.s32 %v2010, 3
        %v2028 = vand.u32 %v2027, 3
        %vm2029 = vcmp.lt.s32.totalorder %v2028, 2
        %vm2030 = vcmp.eq.s32.totalorder %v2028, 0
        %v2031 = vxor.u32 %v2025, 2147483648
        %v2032 = vsel %vm2030, %v2017, %v2031
        %vm2033 = vcmp.eq.s32.totalorder %v2028, 2
        %v2034 = vxor.u32 %v2017, 2147483648
        %v2035 = vsel %vm2033, %v2034, %v2025
        %v2036 = vsel %vm2029, %v2032, %v2035
        %v2037 = vsel %vm2026, nan, %v2036
        %v2038 = vand.u32 2147483647, %v434
        %vm2039 = vcmp.le.f32.partialorder %v2038, 0.7853982
        %vm2040 = vcmp.lt.s32.totalorder %v434, 0
        %v2041 = vand.u32 %v434, 2139095040
        %v2042 = vshrl.u32 %v2041, 23
        %v2043 = vsub.s32 %v2042, 127
        %v2044 = vand.u32 2147483647, %v434
        %v2045 = vand.u32 %v2044, 8388607
        %v2046 = vor.u32 %v2045, 8388608
        %v2047 = vsub.s32 0, %v2046
        %v2048 = vadd.s32 %v2043, 1
        %vm2049 = vcmp.gt.s32.totalorder %v2048, 0
        %v2050 = vsel %vm2049, %v2048, 0
        %v2051 = vshrl.u32 %v2050, 5
        %v2052 = vand.u32 %v2050, 31
        %v2053 = vsub.s32 32, %v2052
        %v2054 = vshrl.u32 683565275, %v2053
        %v2055 = vshll.u32 683565275, %v2052
        %v2056 = vshrl.u32 2475754826, %v2053
        %v2057 = vor.u32 %v2055, %v2056
        %v2058 = vshll.u32 2475754826, %v2052
        %v2059 = vshrl.u32 2131351028, %v2053
        %v2060 = vor.u32 %v2058, %v2059
        %v2061 = vshll.u32 2131351028, %v2052
        %v2062 = vshrl.u32 2102212464, %v2053
        %v2063 = vor.u32 %v2061, %v2062
        %v2064 = vshll.u32 2102212464, %v2052
        %v2065 = vshrl.u32 920167782, %v2053
        %v2066 = vor.u32 %v2064, %v2065
        %v2067 = vshll.u32 920167782, %v2052
        %v2068 = vshrl.u32 1326507024, %v2053
        %v2069 = vor.u32 %v2067, %v2068
        %vm2070 = vcmp.lt.s32.totalorder %v2051, 1
        %vm2071 = vcmp.lt.s32.totalorder %v2051, 2
        %vm2072 = vcmp.lt.s32.totalorder %v2051, 3
        %vm2073 = vcmp.lt.s32.totalorder %v2051, 4
        %v2074 = vsel %vm2070, %v2054, %v2057
        %v2075 = vsel %vm2073, %v2063, 2102212464
        %v2076 = vsel %vm2072, %v2060, %v2075
        %v2077 = vsel %vm2071, %v2074, %v2076
        %v2078 = vsel %vm2070, %v2057, %v2060
        %v2079 = vsel %vm2073, %v2066, 920167782
        %v2080 = vsel %vm2072, %v2063, %v2079
        %v2081 = vsel %vm2071, %v2078, %v2080
        %v2082 = vsel %vm2070, %v2060, %v2063
        %v2083 = vsel %vm2073, %v2069, 1326507024
        %v2084 = vsel %vm2072, %v2066, %v2083
        %v2085 = vsel %vm2071, %v2082, %v2084
        %v2086 = vshll.u32 %v2046, 8
        %v2087 = vand.u32 %v2086, 65535
        %v2088 = vshrl.u32 %v2086, 16
        %v2089 = vand.u32 %v2085, 65535
        %v2090 = vshrl.u32 %v2085, 16
        %v2091 = vmul.u32 %v2087, %v2089
        %v2092 = vmul.u32 %v2087, %v2090
        %v2093 = vmul.u32 %v2088, %v2089
        %v2094 = vmul.u32 %v2088, %v2090
        %v2095 = vshll.u32 %v2092, 16
        %v2096 = vshrl.u32 %v2092, 16
        %v2097 = vshll.u32 %v2093, 16
        %v2098 = vshrl.u32 %v2093, 16
        %vm2099 = vc.u32 %v2091, %v2095
        %v2100 = vsel %vm2099, 1, 0
        %v2101 = vadd.s32 %v2091, %v2095
        %v2102 = vadd.s32 %v2094, %v2100
        %vm2103 = vc.u32 %v2101, %v2097
        %v2104 = vsel %vm2103, 1, 0
        %v2105 = vadd.s32 %v2101, %v2097
        %v2106 = vadd.s32 %v2102, %v2104
        %v2107 = vadd.s32 %v2106, %v2096
        %v2108 = vadd.s32 %v2107, %v2098
        %v2109 = vand.u32 %v2086, 65535
        %v2110 = vshrl.u32 %v2086, 16
        %v2111 = vand.u32 %v2081, 65535
        %v2112 = vshrl.u32 %v2081, 16
        %v2113 = vmul.u32 %v2109, %v2111
        %v2114 = vmul.u32 %v2109, %v2112
        %v2115 = vmul.u32 %v2110, %v2111
        %v2116 = vmul.u32 %v2110, %v2112
        %v2117 = vshll.u32 %v2114, 16
        %v2118 = vshrl.u32 %v2114, 16
        %v2119 = vshll.u32 %v2115, 16
        %v2120 = vshrl.u32 %v2115, 16
        %vm2121 = vc.u32 %v2113, %v2117
        %v2122 = vsel %vm2121, 1, 0
        %v2123 = vadd.s32 %v2113, %v2117
        %v2124 = vadd.s32 %v2116, %v2122
        %vm2125 = vc.u32 %v2123, %v2119
        %v2126 = vsel %vm2125, 1, 0
        %v2127 = vadd.s32 %v2123, %v2119
        %v2128 = vadd.s32 %v2124, %v2126
        %v2129 = vadd.s32 %v2128, %v2118
        %v2130 = vadd.s32 %v2129, %v2120
        %v2131 = vmul.u32 %v2086, %v2077
        %v2132 = vadd.s32 %v2108, %v2127
        %vm2133 = vc.u32 %v2108, %v2127
        %v2134 = vadd.s32 %v2130, 1
        %v2135 = vsel %vm2133, %v2134, %v2130
        %v2136 = vadd.s32 %v2131, %v2135
        %v2137 = vadd.s32 %v2136, 536870912
        %v2138 = vshrl.u32 %v2137, 30
        %v2139 = vshll.u32 %v2138, 30
        %v2140 = vsub.s32 %v2136, %v2139
        %vm2141 = vcmp.lt.s32.totalorder %v2140, 0
        %v2142 = vsub.s32 0, %v2140
        %v2143 = vsel %vm2141, %v2142, %v2140
        %v2144 = vclz %v2143
        %v2145 = vsub.s32 %v2144, 2
        %vm2146 = vcmp.gt.s32.totalorder 0, %v2145
        %v2147 = vsel %vm2146, 0, %v2145
        %v2148 = vsub.s32 32, %v2147
        %v2149 = vshll.u32 %v2140, %v2147
        %v2150 = vshrl.u32 %v2132, %v2148
        %v2151 = vor.u32 %v2149, %v2150
        %v2152 = vsub.s32 4294967266, %v2147
        %v2153 = vadd.s32 %v2152, 127
        %v2154 = vshll.u32 %v2153, 23
        %v2155 = vor.u32 4788187, %v2154
        %v2156 = vand.u32 2147483647, %v2155
        %v2158 = vcvt.s32.f32 %v2151
        %v2159 = vmul.f32 %v2158, %v2156
        %v2160 = vxor.u32 %v2159, 2147483648
        %v2161 = vsel %vm2040, %v2160, %v2159
        %v2162 = vsub.s32 4, %v2138
        %v2163 = vsel %vm2040, %v2162, %v2138
        %v2164 = vsel %vm2039, %v434, %v2161
        %v2165 = vsel %vm2039, 0, %v2163
        %v2166 = vmul.f32 %v2164, %v2164
        %v2167 = vmul.f32 %v2166, -0.001358992
        %v2168 = vadd.f32 %v2167, 0.041655596
        %v2169 = vmul.f32 %v2166, %v2168
        %v2170 = vadd.f32 %v2169, -0.4999988
        %v2171 = vmul.f32 %v2166, %v2170
        %v2172 = vadd.f32 1.0, %v2171
        %v2173 = vmul.f32 %v2164, %v2164
        %v2174 = vmul.f32 %v2173, -0.00019511016
        %v2175 = vadd.f32 %v2174, 0.008332121
        %v2176 = vmul.f32 %v2173, %v2175
        %v2177 = vadd.f32 %v2176, -0.16666654
        %v2178 = vmul.f32 %v2173, %v2177
        %v2179 = vadd.f32 %v2178, 1.0
        %v2180 = vmul.f32 %v2179, %v2164
        %vm2181 = vweird.f32 %v434
        %v2182 = vadd.s32 %v2165, 3
        %v2183 = vand.u32 %v2182, 3
        %vm2184 = vcmp.lt.s32.totalorder %v2183, 2
        %vm2185 = vcmp.eq.s32.totalorder %v2183, 0
        %v2186 = vxor.u32 %v2180, 2147483648
        %v2187 = vsel %vm2185, %v2172, %v2186
        %vm2188 = vcmp.eq.s32.totalorder %v2183, 2
        %v2189 = vxor.u32 %v2172, 2147483648
        %v2190 = vsel %vm2188, %v2189, %v2180
        %v2191 = vsel %vm2184, %v2187, %v2190
        %v2192 = vsel %vm2181, nan, %v2191
        %v2193 = vand.u32 2147483647, %v435
        %vm2194 = vcmp.le.f32.partialorder %v2193, 0.7853982
        %vm2195 = vcmp.lt.s32.totalorder %v435, 0
        %v2196 = vand.u32 %v435, 2139095040
        %v2197 = vshrl.u32 %v2196, 23
        %v2198 = vsub.s32 %v2197, 127
        %v2199 = vand.u32 2147483647, %v435
        %v2200 = vand.u32 %v2199, 8388607
        %v2201 = vor.u32 %v2200, 8388608
        %v2202 = vsub.s32 0, %v2201
        %v2203 = vadd.s32 %v2198, 1
        %vm2204 = vcmp.gt.s32.totalorder %v2203, 0
        %v2205 = vsel %vm2204, %v2203, 0
        %v2206 = vshrl.u32 %v2205, 5
        %v2207 = vand.u32 %v2205, 31
        %v2208 = vsub.s32 32, %v2207
        %v2209 = vshrl.u32 683565275, %v2208
        %v2210 = vshll.u32 683565275, %v2207
        %v2211 = vshrl.u32 2475754826, %v2208
        %v2212 = vor.u32 %v2210, %v2211
        %v2213 = vshll.u32 2475754826, %v2207
        %v2214 = vshrl.u32 2131351028, %v2208
        %v2215 = vor.u32 %v2213, %v2214
        %v2216 = vshll.u32 2131351028, %v2207
        %v2217 = vshrl.u32 2102212464, %v2208
        %v2218 = vor.u32 %v2216, %v2217
        %v2219 = vshll.u32 2102212464, %v2207
        %v2220 = vshrl.u32 920167782, %v2208
        %v2221 = vor.u32 %v2219, %v2220
        %v2222 = vshll.u32 920167782, %v2207
        %v2223 = vshrl.u32 1326507024, %v2208
        %v2224 = vor.u32 %v2222, %v2223
        %vm2225 = vcmp.lt.s32.totalorder %v2206, 1
        %vm2226 = vcmp.lt.s32.totalorder %v2206, 2
        %vm2227 = vcmp.lt.s32.totalorder %v2206, 3
        %vm2228 = vcmp.lt.s32.totalorder %v2206, 4
        %v2229 = vsel %vm2225, %v2209, %v2212
        %v2230 = vsel %vm2228, %v2218, 2102212464
        %v2231 = vsel %vm2227, %v2215, %v2230
        %v2232 = vsel %vm2226, %v2229, %v2231
        %v2233 = vsel %vm2225, %v2212, %v2215
        %v2234 = vsel %vm2228, %v2221, 920167782
        %v2235 = vsel %vm2227, %v2218, %v2234
        %v2236 = vsel %vm2226, %v2233, %v2235
        %v2237 = vsel %vm2225, %v2215, %v2218
        %v2238 = vsel %vm2228, %v2224, 1326507024
        %v2239 = vsel %vm2227, %v2221, %v2238
        %v2240 = vsel %vm2226, %v2237, %v2239
        %v2241 = vshll.u32 %v2201, 8
        %v2242 = vand.u32 %v2241, 65535
        %v2243 = vshrl.u32 %v2241, 16
        %v2244 = vand.u32 %v2240, 65535
        %v2245 = vshrl.u32 %v2240, 16
        %v2246 = vmul.u32 %v2242, %v2244
        %v2247 = vmul.u32 %v2242, %v2245
        %v2248 = vmul.u32 %v2243, %v2244
        %v2249 = vmul.u32 %v2243, %v2245
        %v2250 = vshll.u32 %v2247, 16
        %v2251 = vshrl.u32 %v2247, 16
        %v2252 = vshll.u32 %v2248, 16
        %v2253 = vshrl.u32 %v2248, 16
        %vm2254 = vc.u32 %v2246, %v2250
        %v2255 = vsel %vm2254, 1, 0
        %v2256 = vadd.s32 %v2246, %v2250
        %v2257 = vadd.s32 %v2249, %v2255
        %vm2258 = vc.u32 %v2256, %v2252
        %v2259 = vsel %vm2258, 1, 0
        %v2260 = vadd.s32 %v2256, %v2252
        %v2261 = vadd.s32 %v2257, %v2259
        %v2262 = vadd.s32 %v2261, %v2251
        %v2263 = vadd.s32 %v2262, %v2253
        %v2264 = vand.u32 %v2241, 65535
        %v2265 = vshrl.u32 %v2241, 16
        %v2266 = vand.u32 %v2236, 65535
        %v2267 = vshrl.u32 %v2236, 16
        %v2268 = vmul.u32 %v2264, %v2266
        %v2269 = vmul.u32 %v2264, %v2267
        %v2270 = vmul.u32 %v2265, %v2266
        %v2271 = vmul.u32 %v2265, %v2267
        %v2272 = vshll.u32 %v2269, 16
        %v2273 = vshrl.u32 %v2269, 16
        %v2274 = vshll.u32 %v2270, 16
        %v2275 = vshrl.u32 %v2270, 16
        %vm2276 = vc.u32 %v2268, %v2272
        %v2277 = vsel %vm2276, 1, 0
        %v2278 = vadd.s32 %v2268, %v2272
        %v2279 = vadd.s32 %v2271, %v2277
        %vm2280 = vc.u32 %v2278, %v2274
        %v2281 = vsel %vm2280, 1, 0
        %v2282 = vadd.s32 %v2278, %v2274
        %v2283 = vadd.s32 %v2279, %v2281
        %v2284 = vadd.s32 %v2283, %v2273
        %v2285 = vadd.s32 %v2284, %v2275
        %v2286 = vmul.u32 %v2241, %v2232
        %v2287 = vadd.s32 %v2263, %v2282
        %vm2288 = vc.u32 %v2263, %v2282
        %v2289 = vadd.s32 %v2285, 1
        %v2290 = vsel %vm2288, %v2289, %v2285
        %v2291 = vadd.s32 %v2286, %v2290
        %v2292 = vadd.s32 %v2291, 536870912
        %v2293 = vshrl.u32 %v2292, 30
        %v2294 = vshll.u32 %v2293, 30
        %v2295 = vsub.s32 %v2291, %v2294
        %vm2296 = vcmp.lt.s32.totalorder %v2295, 0
        %v2297 = vsub.s32 0, %v2295
        %v2298 = vsel %vm2296, %v2297, %v2295
        %v2299 = vclz %v2298
        %v2300 = vsub.s32 %v2299, 2
        %vm2301 = vcmp.gt.s32.totalorder 0, %v2300
        %v2302 = vsel %vm2301, 0, %v2300
        %v2303 = vsub.s32 32, %v2302
        %v2304 = vshll.u32 %v2295, %v2302
        %v2305 = vshrl.u32 %v2287, %v2303
        %v2306 = vor.u32 %v2304, %v2305
        %v2307 = vsub.s32 4294967266, %v2302
        %v2308 = vadd.s32 %v2307, 127
        %v2309 = vshll.u32 %v2308, 23
        %v2310 = vor.u32 4788187, %v2309
        %v2311 = vand.u32 2147483647, %v2310
        %v2313 = vcvt.s32.f32 %v2306
        %v2314 = vmul.f32 %v2313, %v2311
        %v2315 = vxor.u32 %v2314, 2147483648
        %v2316 = vsel %vm2195, %v2315, %v2314
        %v2317 = vsub.s32 4, %v2293
        %v2318 = vsel %vm2195, %v2317, %v2293
        %v2319 = vsel %vm2194, %v435, %v2316
        %v2320 = vsel %vm2194, 0, %v2318
        %v2321 = vmul.f32 %v2319, %v2319
        %v2322 = vmul.f32 %v2321, -0.001358992
        %v2323 = vadd.f32 %v2322, 0.041655596
        %v2324 = vmul.f32 %v2321, %v2323
        %v2325 = vadd.f32 %v2324, -0.4999988
        %v2326 = vmul.f32 %v2321, %v2325
        %v2327 = vadd.f32 1.0, %v2326
        %v2328 = vmul.f32 %v2319, %v2319
        %v2329 = vmul.f32 %v2328, -0.00019511016
        %v2330 = vadd.f32 %v2329, 0.008332121
        %v2331 = vmul.f32 %v2328, %v2330
        %v2332 = vadd.f32 %v2331, -0.16666654
        %v2333 = vmul.f32 %v2328, %v2332
        %v2334 = vadd.f32 %v2333, 1.0
        %v2335 = vmul.f32 %v2334, %v2319
        %vm2336 = vweird.f32 %v435
        %v2337 = vadd.s32 %v2320, 3
        %v2338 = vand.u32 %v2337, 3
        %vm2339 = vcmp.lt.s32.totalorder %v2338, 2
        %vm2340 = vcmp.eq.s32.totalorder %v2338, 0
        %v2341 = vxor.u32 %v2335, 2147483648
        %v2342 = vsel %vm2340, %v2327, %v2341
        %vm2343 = vcmp.eq.s32.totalorder %v2338, 2
        %v2344 = vxor.u32 %v2327, 2147483648
        %v2345 = vsel %vm2343, %v2344, %v2335
        %v2346 = vsel %vm2339, %v2342, %v2345
        %v2347 = vsel %vm2336, nan, %v2346
        %v2348 = vand.u32 2147483647, %v436
        %vm2349 = vcmp.le.f32.partialorder %v2348, 0.7853982
        %vm2350 = vcmp.lt.s32.totalorder %v436, 0
        %v2351 = vand.u32 %v436, 2139095040
        %v2352 = vshrl.u32 %v2351, 23
        %v2353 = vsub.s32 %v2352, 127
        %v2354 = vand.u32 2147483647, %v436
        %v2355 = vand.u32 %v2354, 8388607
        %v2356 = vor.u32 %v2355, 8388608
        %v2357 = vsub.s32 0, %v2356
        %v2358 = vadd.s32 %v2353, 1
        %vm2359 = vcmp.gt.s32.totalorder %v2358, 0
        %v2360 = vsel %vm2359, %v2358, 0
        %v2361 = vshrl.u32 %v2360, 5
        %v2362 = vand.u32 %v2360, 31
        %v2363 = vsub.s32 32, %v2362
        %v2364 = vshrl.u32 683565275, %v2363
        %v2365 = vshll.u32 683565275, %v2362
        %v2366 = vshrl.u32 2475754826, %v2363
        %v2367 = vor.u32 %v2365, %v2366
        %v2368 = vshll.u32 2475754826, %v2362
        %v2369 = vshrl.u32 2131351028, %v2363
        %v2370 = vor.u32 %v2368, %v2369
        %v2371 = vshll.u32 2131351028, %v2362
        %v2372 = vshrl.u32 2102212464, %v2363
        %v2373 = vor.u32 %v2371, %v2372
        %v2374 = vshll.u32 2102212464, %v2362
        %v2375 = vshrl.u32 920167782, %v2363
        %v2376 = vor.u32 %v2374, %v2375
        %v2377 = vshll.u32 920167782, %v2362
        %v2378 = vshrl.u32 1326507024, %v2363
        %v2379 = vor.u32 %v2377, %v2378
        %vm2380 = vcmp.lt.s32.totalorder %v2361, 1
        %vm2381 = vcmp.lt.s32.totalorder %v2361, 2
        %vm2382 = vcmp.lt.s32.totalorder %v2361, 3
        %vm2383 = vcmp.lt.s32.totalorder %v2361, 4
        %v2384 = vsel %vm2380, %v2364, %v2367
        %v2385 = vsel %vm2383, %v2373, 2102212464
        %v2386 = vsel %vm2382, %v2370, %v2385
        %v2387 = vsel %vm2381, %v2384, %v2386
        %v2388 = vsel %vm2380, %v2367, %v2370
        %v2389 = vsel %vm2383, %v2376, 920167782
        %v2390 = vsel %vm2382, %v2373, %v2389
        %v2391 = vsel %vm2381, %v2388, %v2390
        %v2392 = vsel %vm2380, %v2370, %v2373
        %v2393 = vsel %vm2383, %v2379, 1326507024
        %v2394 = vsel %vm2382, %v2376, %v2393
        %v2395 = vsel %vm2381, %v2392, %v2394
        %v2396 = vshll.u32 %v2356, 8
        %v2397 = vand.u32 %v2396, 65535
        %v2398 = vshrl.u32 %v2396, 16
        %v2399 = vand.u32 %v2395, 65535
        %v2400 = vshrl.u32 %v2395, 16
        %v2401 = vmul.u32 %v2397, %v2399
        %v2402 = vmul.u32 %v2397, %v2400
        %v2403 = vmul.u32 %v2398, %v2399
        %v2404 = vmul.u32 %v2398, %v2400
        %v2405 = vshll.u32 %v2402, 16
        %v2406 = vshrl.u32 %v2402, 16
        %v2407 = vshll.u32 %v2403, 16
        %v2408 = vshrl.u32 %v2403, 16
        %vm2409 = vc.u32 %v2401, %v2405
        %v2410 = vsel %vm2409, 1, 0
        %v2411 = vadd.s32 %v2401, %v2405
        %v2412 = vadd.s32 %v2404, %v2410
        %vm2413 = vc.u32 %v2411, %v2407
        %v2414 = vsel %vm2413, 1, 0
        %v2415 = vadd.s32 %v2411, %v2407
        %v2416 = vadd.s32 %v2412, %v2414
        %v2417 = vadd.s32 %v2416, %v2406
        %v2418 = vadd.s32 %v2417, %v2408
        %v2419 = vand.u32 %v2396, 65535
        %v2420 = vshrl.u32 %v2396, 16
        %v2421 = vand.u32 %v2391, 65535
        %v2422 = vshrl.u32 %v2391, 16
        %v2423 = vmul.u32 %v2419, %v2421
        %v2424 = vmul.u32 %v2419, %v2422
        %v2425 = vmul.u32 %v2420, %v2421
        %v2426 = vmul.u32 %v2420, %v2422
        %v2427 = vshll.u32 %v2424, 16
        %v2428 = vshrl.u32 %v2424, 16
        %v2429 = vshll.u32 %v2425, 16
        %v2430 = vshrl.u32 %v2425, 16
        %vm2431 = vc.u32 %v2423, %v2427
        %v2432 = vsel %vm2431, 1, 0
        %v2433 = vadd.s32 %v2423, %v2427
        %v2434 = vadd.s32 %v2426, %v2432
        %vm2435 = vc.u32 %v2433, %v2429
        %v2436 = vsel %vm2435, 1, 0
        %v2437 = vadd.s32 %v2433, %v2429
        %v2438 = vadd.s32 %v2434, %v2436
        %v2439 = vadd.s32 %v2438, %v2428
        %v2440 = vadd.s32 %v2439, %v2430
        %v2441 = vmul.u32 %v2396, %v2387
        %v2442 = vadd.s32 %v2418, %v2437
        %vm2443 = vc.u32 %v2418, %v2437
        %v2444 = vadd.s32 %v2440, 1
        %v2445 = vsel %vm2443, %v2444, %v2440
        %v2446 = vadd.s32 %v2441, %v2445
        %v2447 = vadd.s32 %v2446, 536870912
        %v2448 = vshrl.u32 %v2447, 30
        %v2449 = vshll.u32 %v2448, 30
        %v2450 = vsub.s32 %v2446, %v2449
        %vm2451 = vcmp.lt.s32.totalorder %v2450, 0
        %v2452 = vsub.s32 0, %v2450
        %v2453 = vsel %vm2451, %v2452, %v2450
        %v2454 = vclz %v2453
        %v2455 = vsub.s32 %v2454, 2
        %vm2456 = vcmp.gt.s32.totalorder 0, %v2455
        %v2457 = vsel %vm2456, 0, %v2455
        %v2458 = vsub.s32 32, %v2457
        %v2459 = vshll.u32 %v2450, %v2457
        %v2460 = vshrl.u32 %v2442, %v2458
        %v2461 = vor.u32 %v2459, %v2460
        %v2462 = vsub.s32 4294967266, %v2457
        %v2463 = vadd.s32 %v2462, 127
        %v2464 = vshll.u32 %v2463, 23
        %v2465 = vor.u32 4788187, %v2464
        %v2466 = vand.u32 2147483647, %v2465
        %v2468 = vcvt.s32.f32 %v2461
        %v2469 = vmul.f32 %v2468, %v2466
        %v2470 = vxor.u32 %v2469, 2147483648
        %v2471 = vsel %vm2350, %v2470, %v2469
        %v2472 = vsub.s32 4, %v2448
        %v2473 = vsel %vm2350, %v2472, %v2448
        %v2474 = vsel %vm2349, %v436, %v2471
        %v2475 = vsel %vm2349, 0, %v2473
        %v2476 = vmul.f32 %v2474, %v2474
        %v2477 = vmul.f32 %v2476, -0.001358992
        %v2478 = vadd.f32 %v2477, 0.041655596
        %v2479 = vmul.f32 %v2476, %v2478
        %v2480 = vadd.f32 %v2479, -0.4999988
        %v2481 = vmul.f32 %v2476, %v2480
        %v2482 = vadd.f32 1.0, %v2481
        %v2483 = vmul.f32 %v2474, %v2474
        %v2484 = vmul.f32 %v2483, -0.00019511016
        %v2485 = vadd.f32 %v2484, 0.008332121
        %v2486 = vmul.f32 %v2483, %v2485
        %v2487 = vadd.f32 %v2486, -0.16666654
        %v2488 = vmul.f32 %v2483, %v2487
        %v2489 = vadd.f32 %v2488, 1.0
        %v2490 = vmul.f32 %v2489, %v2474
        %vm2491 = vweird.f32 %v436
        %v2492 = vadd.s32 %v2475, 3
        %v2493 = vand.u32 %v2492, 3
        %vm2494 = vcmp.lt.s32.totalorder %v2493, 2
        %vm2495 = vcmp.eq.s32.totalorder %v2493, 0
        %v2496 = vxor.u32 %v2490, 2147483648
        %v2497 = vsel %vm2495, %v2482, %v2496
        %vm2498 = vcmp.eq.s32.totalorder %v2493, 2
        %v2499 = vxor.u32 %v2482, 2147483648
        %v2500 = vsel %vm2498, %v2499, %v2490
        %v2501 = vsel %vm2494, %v2497, %v2500
        %v2502 = vsel %vm2491, nan, %v2501
        %v2503 = vand.u32 2147483647, %v437
        %vm2504 = vcmp.le.f32.partialorder %v2503, 0.7853982
        %vm2505 = vcmp.lt.s32.totalorder %v437, 0
        %v2506 = vand.u32 %v437, 2139095040
        %v2507 = vshrl.u32 %v2506, 23
        %v2508 = vsub.s32 %v2507, 127
        %v2509 = vand.u32 2147483647, %v437
        %v2510 = vand.u32 %v2509, 8388607
        %v2511 = vor.u32 %v2510, 8388608
        %v2512 = vsub.s32 0, %v2511
        %v2513 = vadd.s32 %v2508, 1
        %vm2514 = vcmp.gt.s32.totalorder %v2513, 0
        %v2515 = vsel %vm2514, %v2513, 0
        %v2516 = vshrl.u32 %v2515, 5
        %v2517 = vand.u32 %v2515, 31
        %v2518 = vsub.s32 32, %v2517
        %v2519 = vshrl.u32 683565275, %v2518
        %v2520 = vshll.u32 683565275, %v2517
        %v2521 = vshrl.u32 2475754826, %v2518
        %v2522 = vor.u32 %v2520, %v2521
        %v2523 = vshll.u32 2475754826, %v2517
        %v2524 = vshrl.u32 2131351028, %v2518
        %v2525 = vor.u32 %v2523, %v2524
        %v2526 = vshll.u32 2131351028, %v2517
        %v2527 = vshrl.u32 2102212464, %v2518
        %v2528 = vor.u32 %v2526, %v2527
        %v2529 = vshll.u32 2102212464, %v2517
        %v2530 = vshrl.u32 920167782, %v2518
        %v2531 = vor.u32 %v2529, %v2530
        %v2532 = vshll.u32 920167782, %v2517
        %v2533 = vshrl.u32 1326507024, %v2518
        %v2534 = vor.u32 %v2532, %v2533
        %vm2535 = vcmp.lt.s32.totalorder %v2516, 1
        %vm2536 = vcmp.lt.s32.totalorder %v2516, 2
        %vm2537 = vcmp.lt.s32.totalorder %v2516, 3
        %vm2538 = vcmp.lt.s32.totalorder %v2516, 4
        %v2539 = vsel %vm2535, %v2519, %v2522
        %v2540 = vsel %vm2538, %v2528, 2102212464
        %v2541 = vsel %vm2537, %v2525, %v2540
        %v2542 = vsel %vm2536, %v2539, %v2541
        %v2543 = vsel %vm2535, %v2522, %v2525
        %v2544 = vsel %vm2538, %v2531, 920167782
        %v2545 = vsel %vm2537, %v2528, %v2544
        %v2546 = vsel %vm2536, %v2543, %v2545
        %v2547 = vsel %vm2535, %v2525, %v2528
        %v2548 = vsel %vm2538, %v2534, 1326507024
        %v2549 = vsel %vm2537, %v2531, %v2548
        %v2550 = vsel %vm2536, %v2547, %v2549
        %v2551 = vshll.u32 %v2511, 8
        %v2552 = vand.u32 %v2551, 65535
        %v2553 = vshrl.u32 %v2551, 16
        %v2554 = vand.u32 %v2550, 65535
        %v2555 = vshrl.u32 %v2550, 16
        %v2556 = vmul.u32 %v2552, %v2554
        %v2557 = vmul.u32 %v2552, %v2555
        %v2558 = vmul.u32 %v2553, %v2554
        %v2559 = vmul.u32 %v2553, %v2555
        %v2560 = vshll.u32 %v2557, 16
        %v2561 = vshrl.u32 %v2557, 16
        %v2562 = vshll.u32 %v2558, 16
        %v2563 = vshrl.u32 %v2558, 16
        %vm2564 = vc.u32 %v2556, %v2560
        %v2565 = vsel %vm2564, 1, 0
        %v2566 = vadd.s32 %v2556, %v2560
        %v2567 = vadd.s32 %v2559, %v2565
        %vm2568 = vc.u32 %v2566, %v2562
        %v2569 = vsel %vm2568, 1, 0
        %v2570 = vadd.s32 %v2566, %v2562
        %v2571 = vadd.s32 %v2567, %v2569
        %v2572 = vadd.s32 %v2571, %v2561
        %v2573 = vadd.s32 %v2572, %v2563
        %v2574 = vand.u32 %v2551, 65535
        %v2575 = vshrl.u32 %v2551, 16
        %v2576 = vand.u32 %v2546, 65535
        %v2577 = vshrl.u32 %v2546, 16
        %v2578 = vmul.u32 %v2574, %v2576
        %v2579 = vmul.u32 %v2574, %v2577
        %v2580 = vmul.u32 %v2575, %v2576
        %v2581 = vmul.u32 %v2575, %v2577
        %v2582 = vshll.u32 %v2579, 16
        %v2583 = vshrl.u32 %v2579, 16
        %v2584 = vshll.u32 %v2580, 16
        %v2585 = vshrl.u32 %v2580, 16
        %vm2586 = vc.u32 %v2578, %v2582
        %v2587 = vsel %vm2586, 1, 0
        %v2588 = vadd.s32 %v2578, %v2582
        %v2589 = vadd.s32 %v2581, %v2587
        %vm2590 = vc.u32 %v2588, %v2584
        %v2591 = vsel %vm2590, 1, 0
        %v2592 = vadd.s32 %v2588, %v2584
        %v2593 = vadd.s32 %v2589, %v2591
        %v2594 = vadd.s32 %v2593, %v2583
        %v2595 = vadd.s32 %v2594, %v2585
        %v2596 = vmul.u32 %v2551, %v2542
        %v2597 = vadd.s32 %v2573, %v2592
        %vm2598 = vc.u32 %v2573, %v2592
        %v2599 = vadd.s32 %v2595, 1
        %v2600 = vsel %vm2598, %v2599, %v2595
        %v2601 = vadd.s32 %v2596, %v2600
        %v2602 = vadd.s32 %v2601, 536870912
        %v2603 = vshrl.u32 %v2602, 30
        %v2604 = vshll.u32 %v2603, 30
        %v2605 = vsub.s32 %v2601, %v2604
        %vm2606 = vcmp.lt.s32.totalorder %v2605, 0
        %v2607 = vsub.s32 0, %v2605
        %v2608 = vsel %vm2606, %v2607, %v2605
        %v2609 = vclz %v2608
        %v2610 = vsub.s32 %v2609, 2
        %vm2611 = vcmp.gt.s32.totalorder 0, %v2610
        %v2612 = vsel %vm2611, 0, %v2610
        %v2613 = vsub.s32 32, %v2612
        %v2614 = vshll.u32 %v2605, %v2612
        %v2615 = vshrl.u32 %v2597, %v2613
        %v2616 = vor.u32 %v2614, %v2615
        %v2617 = vsub.s32 4294967266, %v2612
        %v2618 = vadd.s32 %v2617, 127
        %v2619 = vshll.u32 %v2618, 23
        %v2620 = vor.u32 4788187, %v2619
        %v2621 = vand.u32 2147483647, %v2620
        %v2623 = vcvt.s32.f32 %v2616
        %v2624 = vmul.f32 %v2623, %v2621
        %v2625 = vxor.u32 %v2624, 2147483648
        %v2626 = vsel %vm2505, %v2625, %v2624
        %v2627 = vsub.s32 4, %v2603
        %v2628 = vsel %vm2505, %v2627, %v2603
        %v2629 = vsel %vm2504, %v437, %v2626
        %v2630 = vsel %vm2504, 0, %v2628
        %v2631 = vmul.f32 %v2629, %v2629
        %v2632 = vmul.f32 %v2631, -0.001358992
        %v2633 = vadd.f32 %v2632, 0.041655596
        %v2634 = vmul.f32 %v2631, %v2633
        %v2635 = vadd.f32 %v2634, -0.4999988
        %v2636 = vmul.f32 %v2631, %v2635
        %v2637 = vadd.f32 1.0, %v2636
        %v2638 = vmul.f32 %v2629, %v2629
        %v2639 = vmul.f32 %v2638, -0.00019511016
        %v2640 = vadd.f32 %v2639, 0.008332121
        %v2641 = vmul.f32 %v2638, %v2640
        %v2642 = vadd.f32 %v2641, -0.16666654
        %v2643 = vmul.f32 %v2638, %v2642
        %v2644 = vadd.f32 %v2643, 1.0
        %v2645 = vmul.f32 %v2644, %v2629
        %vm2646 = vweird.f32 %v437
        %v2647 = vadd.s32 %v2630, 3
        %v2648 = vand.u32 %v2647, 3
        %vm2649 = vcmp.lt.s32.totalorder %v2648, 2
        %vm2650 = vcmp.eq.s32.totalorder %v2648, 0
        %v2651 = vxor.u32 %v2645, 2147483648
        %v2652 = vsel %vm2650, %v2637, %v2651
        %vm2653 = vcmp.eq.s32.totalorder %v2648, 2
        %v2654 = vxor.u32 %v2637, 2147483648
        %v2655 = vsel %vm2653, %v2654, %v2645
        %v2656 = vsel %vm2649, %v2652, %v2655
        %v2657 = vsel %vm2646, nan, %v2656
        %v2658 = vand.u32 2147483647, %v438
        %vm2659 = vcmp.le.f32.partialorder %v2658, 0.7853982
        %vm2660 = vcmp.lt.s32.totalorder %v438, 0
        %v2661 = vand.u32 %v438, 2139095040
        %v2662 = vshrl.u32 %v2661, 23
        %v2663 = vsub.s32 %v2662, 127
        %v2664 = vand.u32 2147483647, %v438
        %v2665 = vand.u32 %v2664, 8388607
        %v2666 = vor.u32 %v2665, 8388608
        %v2667 = vsub.s32 0, %v2666
        %v2668 = vadd.s32 %v2663, 1
        %vm2669 = vcmp.gt.s32.totalorder %v2668, 0
        %v2670 = vsel %vm2669, %v2668, 0
        %v2671 = vshrl.u32 %v2670, 5
        %v2672 = vand.u32 %v2670, 31
        %v2673 = vsub.s32 32, %v2672
        %v2674 = vshrl.u32 683565275, %v2673
        %v2675 = vshll.u32 683565275, %v2672
        %v2676 = vshrl.u32 2475754826, %v2673
        %v2677 = vor.u32 %v2675, %v2676
        %v2678 = vshll.u32 2475754826, %v2672
        %v2679 = vshrl.u32 2131351028, %v2673
        %v2680 = vor.u32 %v2678, %v2679
        %v2681 = vshll.u32 2131351028, %v2672
        %v2682 = vshrl.u32 2102212464, %v2673
        %v2683 = vor.u32 %v2681, %v2682
        %v2684 = vshll.u32 2102212464, %v2672
        %v2685 = vshrl.u32 920167782, %v2673
        %v2686 = vor.u32 %v2684, %v2685
        %v2687 = vshll.u32 920167782, %v2672
        %v2688 = vshrl.u32 1326507024, %v2673
        %v2689 = vor.u32 %v2687, %v2688
        %vm2690 = vcmp.lt.s32.totalorder %v2671, 1
        %vm2691 = vcmp.lt.s32.totalorder %v2671, 2
        %vm2692 = vcmp.lt.s32.totalorder %v2671, 3
        %vm2693 = vcmp.lt.s32.totalorder %v2671, 4
        %v2694 = vsel %vm2690, %v2674, %v2677
        %v2695 = vsel %vm2693, %v2683, 2102212464
        %v2696 = vsel %vm2692, %v2680, %v2695
        %v2697 = vsel %vm2691, %v2694, %v2696
        %v2698 = vsel %vm2690, %v2677, %v2680
        %v2699 = vsel %vm2693, %v2686, 920167782
        %v2700 = vsel %vm2692, %v2683, %v2699
        %v2701 = vsel %vm2691, %v2698, %v2700
        %v2702 = vsel %vm2690, %v2680, %v2683
        %v2703 = vsel %vm2693, %v2689, 1326507024
        %v2704 = vsel %vm2692, %v2686, %v2703
        %v2705 = vsel %vm2691, %v2702, %v2704
        %v2706 = vshll.u32 %v2666, 8
        %v2707 = vand.u32 %v2706, 65535
        %v2708 = vshrl.u32 %v2706, 16
        %v2709 = vand.u32 %v2705, 65535
        %v2710 = vshrl.u32 %v2705, 16
        %v2711 = vmul.u32 %v2707, %v2709
        %v2712 = vmul.u32 %v2707, %v2710
        %v2713 = vmul.u32 %v2708, %v2709
        %v2714 = vmul.u32 %v2708, %v2710
        %v2715 = vshll.u32 %v2712, 16
        %v2716 = vshrl.u32 %v2712, 16
        %v2717 = vshll.u32 %v2713, 16
        %v2718 = vshrl.u32 %v2713, 16
        %vm2719 = vc.u32 %v2711, %v2715
        %v2720 = vsel %vm2719, 1, 0
        %v2721 = vadd.s32 %v2711, %v2715
        %v2722 = vadd.s32 %v2714, %v2720
        %vm2723 = vc.u32 %v2721, %v2717
        %v2724 = vsel %vm2723, 1, 0
        %v2725 = vadd.s32 %v2721, %v2717
        %v2726 = vadd.s32 %v2722, %v2724
        %v2727 = vadd.s32 %v2726, %v2716
        %v2728 = vadd.s32 %v2727, %v2718
        %v2729 = vand.u32 %v2706, 65535
        %v2730 = vshrl.u32 %v2706, 16
        %v2731 = vand.u32 %v2701, 65535
        %v2732 = vshrl.u32 %v2701, 16
        %v2733 = vmul.u32 %v2729, %v2731
        %v2734 = vmul.u32 %v2729, %v2732
        %v2735 = vmul.u32 %v2730, %v2731
        %v2736 = vmul.u32 %v2730, %v2732
        %v2737 = vshll.u32 %v2734, 16
        %v2738 = vshrl.u32 %v2734, 16
        %v2739 = vshll.u32 %v2735, 16
        %v2740 = vshrl.u32 %v2735, 16
        %vm2741 = vc.u32 %v2733, %v2737
        %v2742 = vsel %vm2741, 1, 0
        %v2743 = vadd.s32 %v2733, %v2737
        %v2744 = vadd.s32 %v2736, %v2742
        %vm2745 = vc.u32 %v2743, %v2739
        %v2746 = vsel %vm2745, 1, 0
        %v2747 = vadd.s32 %v2743, %v2739
        %v2748 = vadd.s32 %v2744, %v2746
        %v2749 = vadd.s32 %v2748, %v2738
        %v2750 = vadd.s32 %v2749, %v2740
        %v2751 = vmul.u32 %v2706, %v2697
        %v2752 = vadd.s32 %v2728, %v2747
        %vm2753 = vc.u32 %v2728, %v2747
        %v2754 = vadd.s32 %v2750, 1
        %v2755 = vsel %vm2753, %v2754, %v2750
        %v2756 = vadd.s32 %v2751, %v2755
        %v2757 = vadd.s32 %v2756, 536870912
        %v2758 = vshrl.u32 %v2757, 30
        %v2759 = vshll.u32 %v2758, 30
        %v2760 = vsub.s32 %v2756, %v2759
        %vm2761 = vcmp.lt.s32.totalorder %v2760, 0
        %v2762 = vsub.s32 0, %v2760
        %v2763 = vsel %vm2761, %v2762, %v2760
        %v2764 = vclz %v2763
        %v2765 = vsub.s32 %v2764, 2
        %vm2766 = vcmp.gt.s32.totalorder 0, %v2765
        %v2767 = vsel %vm2766, 0, %v2765
        %v2768 = vsub.s32 32, %v2767
        %v2769 = vshll.u32 %v2760, %v2767
        %v2770 = vshrl.u32 %v2752, %v2768
        %v2771 = vor.u32 %v2769, %v2770
        %v2772 = vsub.s32 4294967266, %v2767
        %v2773 = vadd.s32 %v2772, 127
        %v2774 = vshll.u32 %v2773, 23
        %v2775 = vor.u32 4788187, %v2774
        %v2776 = vand.u32 2147483647, %v2775
        %v2778 = vcvt.s32.f32 %v2771
        %v2779 = vmul.f32 %v2778, %v2776
        %v2780 = vxor.u32 %v2779, 2147483648
        %v2781 = vsel %vm2660, %v2780, %v2779
        %v2782 = vsub.s32 4, %v2758
        %v2783 = vsel %vm2660, %v2782, %v2758
        %v2784 = vsel %vm2659, %v438, %v2781
        %v2785 = vsel %vm2659, 0, %v2783
        %v2786 = vmul.f32 %v2784, %v2784
        %v2787 = vmul.f32 %v2786, -0.001358992
        %v2788 = vadd.f32 %v2787, 0.041655596
        %v2789 = vmul.f32 %v2786, %v2788
        %v2790 = vadd.f32 %v2789, -0.4999988
        %v2791 = vmul.f32 %v2786, %v2790
        %v2792 = vadd.f32 1.0, %v2791
        %v2793 = vmul.f32 %v2784, %v2784
        %v2794 = vmul.f32 %v2793, -0.00019511016
        %v2795 = vadd.f32 %v2794, 0.008332121
        %v2796 = vmul.f32 %v2793, %v2795
        %v2797 = vadd.f32 %v2796, -0.16666654
        %v2798 = vmul.f32 %v2793, %v2797
        %v2799 = vadd.f32 %v2798, 1.0
        %v2800 = vmul.f32 %v2799, %v2784
        %vm2801 = vweird.f32 %v438
        %v2802 = vadd.s32 %v2785, 3
        %v2803 = vand.u32 %v2802, 3
        %vm2804 = vcmp.lt.s32.totalorder %v2803, 2
        %vm2805 = vcmp.eq.s32.totalorder %v2803, 0
        %v2806 = vxor.u32 %v2800, 2147483648
        %v2807 = vsel %vm2805, %v2792, %v2806
        %vm2808 = vcmp.eq.s32.totalorder %v2803, 2
        %v2809 = vxor.u32 %v2792, 2147483648
        %v2810 = vsel %vm2808, %v2809, %v2800
        %v2811 = vsel %vm2804, %v2807, %v2810
        %v2812 = vsel %vm2801, nan, %v2811
        %v2813 = vand.u32 2147483647, %v439
        %vm2814 = vcmp.le.f32.partialorder %v2813, 0.7853982
        %vm2815 = vcmp.lt.s32.totalorder %v439, 0
        %v2816 = vand.u32 %v439, 2139095040
        %v2817 = vshrl.u32 %v2816, 23
        %v2818 = vsub.s32 %v2817, 127
        %v2819 = vand.u32 2147483647, %v439
        %v2820 = vand.u32 %v2819, 8388607
        %v2821 = vor.u32 %v2820, 8388608
        %v2822 = vsub.s32 0, %v2821
        %v2823 = vadd.s32 %v2818, 1
        %vm2824 = vcmp.gt.s32.totalorder %v2823, 0
        %v2825 = vsel %vm2824, %v2823, 0
        %v2826 = vshrl.u32 %v2825, 5
        %v2827 = vand.u32 %v2825, 31
        %v2828 = vsub.s32 32, %v2827
        %v2829 = vshrl.u32 683565275, %v2828
        %v2830 = vshll.u32 683565275, %v2827
        %v2831 = vshrl.u32 2475754826, %v2828
        %v2832 = vor.u32 %v2830, %v2831
        %v2833 = vshll.u32 2475754826, %v2827
        %v2834 = vshrl.u32 2131351028, %v2828
        %v2835 = vor.u32 %v2833, %v2834
        %v2836 = vshll.u32 2131351028, %v2827
        %v2837 = vshrl.u32 2102212464, %v2828
        %v2838 = vor.u32 %v2836, %v2837
        %v2839 = vshll.u32 2102212464, %v2827
        %v2840 = vshrl.u32 920167782, %v2828
        %v2841 = vor.u32 %v2839, %v2840
        %v2842 = vshll.u32 920167782, %v2827
        %v2843 = vshrl.u32 1326507024, %v2828
        %v2844 = vor.u32 %v2842, %v2843
        %vm2845 = vcmp.lt.s32.totalorder %v2826, 1
        %vm2846 = vcmp.lt.s32.totalorder %v2826, 2
        %vm2847 = vcmp.lt.s32.totalorder %v2826, 3
        %vm2848 = vcmp.lt.s32.totalorder %v2826, 4
        %v2849 = vsel %vm2845, %v2829, %v2832
        %v2850 = vsel %vm2848, %v2838, 2102212464
        %v2851 = vsel %vm2847, %v2835, %v2850
        %v2852 = vsel %vm2846, %v2849, %v2851
        %v2853 = vsel %vm2845, %v2832, %v2835
        %v2854 = vsel %vm2848, %v2841, 920167782
        %v2855 = vsel %vm2847, %v2838, %v2854
        %v2856 = vsel %vm2846, %v2853, %v2855
        %v2857 = vsel %vm2845, %v2835, %v2838
        %v2858 = vsel %vm2848, %v2844, 1326507024
        %v2859 = vsel %vm2847, %v2841, %v2858
        %v2860 = vsel %vm2846, %v2857, %v2859
        %v2861 = vshll.u32 %v2821, 8
        %v2862 = vand.u32 %v2861, 65535
        %v2863 = vshrl.u32 %v2861, 16
        %v2864 = vand.u32 %v2860, 65535
        %v2865 = vshrl.u32 %v2860, 16
        %v2866 = vmul.u32 %v2862, %v2864
        %v2867 = vmul.u32 %v2862, %v2865
        %v2868 = vmul.u32 %v2863, %v2864
        %v2869 = vmul.u32 %v2863, %v2865
        %v2870 = vshll.u32 %v2867, 16
        %v2871 = vshrl.u32 %v2867, 16
        %v2872 = vshll.u32 %v2868, 16
        %v2873 = vshrl.u32 %v2868, 16
        %vm2874 = vc.u32 %v2866, %v2870
        %v2875 = vsel %vm2874, 1, 0
        %v2876 = vadd.s32 %v2866, %v2870
        %v2877 = vadd.s32 %v2869, %v2875
        %vm2878 = vc.u32 %v2876, %v2872
        %v2879 = vsel %vm2878, 1, 0
        %v2880 = vadd.s32 %v2876, %v2872
        %v2881 = vadd.s32 %v2877, %v2879
        %v2882 = vadd.s32 %v2881, %v2871
        %v2883 = vadd.s32 %v2882, %v2873
        %v2884 = vand.u32 %v2861, 65535
        %v2885 = vshrl.u32 %v2861, 16
        %v2886 = vand.u32 %v2856, 65535
        %v2887 = vshrl.u32 %v2856, 16
        %v2888 = vmul.u32 %v2884, %v2886
        %v2889 = vmul.u32 %v2884, %v2887
        %v2890 = vmul.u32 %v2885, %v2886
        %v2891 = vmul.u32 %v2885, %v2887
        %v2892 = vshll.u32 %v2889, 16
        %v2893 = vshrl.u32 %v2889, 16
        %v2894 = vshll.u32 %v2890, 16
        %v2895 = vshrl.u32 %v2890, 16
        %vm2896 = vc.u32 %v2888, %v2892
        %v2897 = vsel %vm2896, 1, 0
        %v2898 = vadd.s32 %v2888, %v2892
        %v2899 = vadd.s32 %v2891, %v2897
        %vm2900 = vc.u32 %v2898, %v2894
        %v2901 = vsel %vm2900, 1, 0
        %v2902 = vadd.s32 %v2898, %v2894
        %v2903 = vadd.s32 %v2899, %v2901
        %v2904 = vadd.s32 %v2903, %v2893
        %v2905 = vadd.s32 %v2904, %v2895
        %v2906 = vmul.u32 %v2861, %v2852
        %v2907 = vadd.s32 %v2883, %v2902
        %vm2908 = vc.u32 %v2883, %v2902
        %v2909 = vadd.s32 %v2905, 1
        %v2910 = vsel %vm2908, %v2909, %v2905
        %v2911 = vadd.s32 %v2906, %v2910
        %v2912 = vadd.s32 %v2911, 536870912
        %v2913 = vshrl.u32 %v2912, 30
        %v2914 = vshll.u32 %v2913, 30
        %v2915 = vsub.s32 %v2911, %v2914
        %vm2916 = vcmp.lt.s32.totalorder %v2915, 0
        %v2917 = vsub.s32 0, %v2915
        %v2918 = vsel %vm2916, %v2917, %v2915
        %v2919 = vclz %v2918
        %v2920 = vsub.s32 %v2919, 2
        %vm2921 = vcmp.gt.s32.totalorder 0, %v2920
        %v2922 = vsel %vm2921, 0, %v2920
        %v2923 = vsub.s32 32, %v2922
        %v2924 = vshll.u32 %v2915, %v2922
        %v2925 = vshrl.u32 %v2907, %v2923
        %v2926 = vor.u32 %v2924, %v2925
        %v2927 = vsub.s32 4294967266, %v2922
        %v2928 = vadd.s32 %v2927, 127
        %v2929 = vshll.u32 %v2928, 23
        %v2930 = vor.u32 4788187, %v2929
        %v2931 = vand.u32 2147483647, %v2930
        %v2933 = vcvt.s32.f32 %v2926
        %v2934 = vmul.f32 %v2933, %v2931
        %v2935 = vxor.u32 %v2934, 2147483648
        %v2936 = vsel %vm2815, %v2935, %v2934
        %v2937 = vsub.s32 4, %v2913
        %v2938 = vsel %vm2815, %v2937, %v2913
        %v2939 = vsel %vm2814, %v439, %v2936
        %v2940 = vsel %vm2814, 0, %v2938
        %v2941 = vmul.f32 %v2939, %v2939
        %v2942 = vmul.f32 %v2941, -0.001358992
        %v2943 = vadd.f32 %v2942, 0.041655596
        %v2944 = vmul.f32 %v2941, %v2943
        %v2945 = vadd.f32 %v2944, -0.4999988
        %v2946 = vmul.f32 %v2941, %v2945
        %v2947 = vadd.f32 1.0, %v2946
        %v2948 = vmul.f32 %v2939, %v2939
        %v2949 = vmul.f32 %v2948, -0.00019511016
        %v2950 = vadd.f32 %v2949, 0.008332121
        %v2951 = vmul.f32 %v2948, %v2950
        %v2952 = vadd.f32 %v2951, -0.16666654
        %v2953 = vmul.f32 %v2948, %v2952
        %v2954 = vadd.f32 %v2953, 1.0
        %v2955 = vmul.f32 %v2954, %v2939
        %vm2956 = vweird.f32 %v439
        %v2957 = vadd.s32 %v2940, 3
        %v2958 = vand.u32 %v2957, 3
        %vm2959 = vcmp.lt.s32.totalorder %v2958, 2
        %vm2960 = vcmp.eq.s32.totalorder %v2958, 0
        %v2961 = vxor.u32 %v2955, 2147483648
        %v2962 = vsel %vm2960, %v2947, %v2961
        %vm2963 = vcmp.eq.s32.totalorder %v2958, 2
        %v2964 = vxor.u32 %v2947, 2147483648
        %v2965 = vsel %vm2963, %v2964, %v2955
        %v2966 = vsel %vm2959, %v2962, %v2965
        %v2967 = vsel %vm2956, nan, %v2966
        %v2968 = vand.u32 2147483647, %v440
        %vm2969 = vcmp.le.f32.partialorder %v2968, 0.7853982
        %vm2970 = vcmp.lt.s32.totalorder %v440, 0
        %v2971 = vand.u32 %v440, 2139095040
        %v2972 = vshrl.u32 %v2971, 23
        %v2973 = vsub.s32 %v2972, 127
        %v2974 = vand.u32 2147483647, %v440
        %v2975 = vand.u32 %v2974, 8388607
        %v2976 = vor.u32 %v2975, 8388608
        %v2977 = vsub.s32 0, %v2976
        %v2978 = vadd.s32 %v2973, 1
        %vm2979 = vcmp.gt.s32.totalorder %v2978, 0
        %v2980 = vsel %vm2979, %v2978, 0
        %v2981 = vshrl.u32 %v2980, 5
        %v2982 = vand.u32 %v2980, 31
        %v2983 = vsub.s32 32, %v2982
        %v2984 = vshrl.u32 683565275, %v2983
        %v2985 = vshll.u32 683565275, %v2982
        %v2986 = vshrl.u32 2475754826, %v2983
        %v2987 = vor.u32 %v2985, %v2986
        %v2988 = vshll.u32 2475754826, %v2982
        %v2989 = vshrl.u32 2131351028, %v2983
        %v2990 = vor.u32 %v2988, %v2989
        %v2991 = vshll.u32 2131351028, %v2982
        %v2992 = vshrl.u32 2102212464, %v2983
        %v2993 = vor.u32 %v2991, %v2992
        %v2994 = vshll.u32 2102212464, %v2982
        %v2995 = vshrl.u32 920167782, %v2983
        %v2996 = vor.u32 %v2994, %v2995
        %v2997 = vshll.u32 920167782, %v2982
        %v2998 = vshrl.u32 1326507024, %v2983
        %v2999 = vor.u32 %v2997, %v2998
        %vm3000 = vcmp.lt.s32.totalorder %v2981, 1
        %vm3001 = vcmp.lt.s32.totalorder %v2981, 2
        %vm3002 = vcmp.lt.s32.totalorder %v2981, 3
        %vm3003 = vcmp.lt.s32.totalorder %v2981, 4
        %v3004 = vsel %vm3000, %v2984, %v2987
        %v3005 = vsel %vm3003, %v2993, 2102212464
        %v3006 = vsel %vm3002, %v2990, %v3005
        %v3007 = vsel %vm3001, %v3004, %v3006
        %v3008 = vsel %vm3000, %v2987, %v2990
        %v3009 = vsel %vm3003, %v2996, 920167782
        %v3010 = vsel %vm3002, %v2993, %v3009
        %v3011 = vsel %vm3001, %v3008, %v3010
        %v3012 = vsel %vm3000, %v2990, %v2993
        %v3013 = vsel %vm3003, %v2999, 1326507024
        %v3014 = vsel %vm3002, %v2996, %v3013
        %v3015 = vsel %vm3001, %v3012, %v3014
        %v3016 = vshll.u32 %v2976, 8
        %v3017 = vand.u32 %v3016, 65535
        %v3018 = vshrl.u32 %v3016, 16
        %v3019 = vand.u32 %v3015, 65535
        %v3020 = vshrl.u32 %v3015, 16
        %v3021 = vmul.u32 %v3017, %v3019
        %v3022 = vmul.u32 %v3017, %v3020
        %v3023 = vmul.u32 %v3018, %v3019
        %v3024 = vmul.u32 %v3018, %v3020
        %v3025 = vshll.u32 %v3022, 16
        %v3026 = vshrl.u32 %v3022, 16
        %v3027 = vshll.u32 %v3023, 16
        %v3028 = vshrl.u32 %v3023, 16
        %vm3029 = vc.u32 %v3021, %v3025
        %v3030 = vsel %vm3029, 1, 0
        %v3031 = vadd.s32 %v3021, %v3025
        %v3032 = vadd.s32 %v3024, %v3030
        %vm3033 = vc.u32 %v3031, %v3027
        %v3034 = vsel %vm3033, 1, 0
        %v3035 = vadd.s32 %v3031, %v3027
        %v3036 = vadd.s32 %v3032, %v3034
        %v3037 = vadd.s32 %v3036, %v3026
        %v3038 = vadd.s32 %v3037, %v3028
        %v3039 = vand.u32 %v3016, 65535
        %v3040 = vshrl.u32 %v3016, 16
        %v3041 = vand.u32 %v3011, 65535
        %v3042 = vshrl.u32 %v3011, 16
        %v3043 = vmul.u32 %v3039, %v3041
        %v3044 = vmul.u32 %v3039, %v3042
        %v3045 = vmul.u32 %v3040, %v3041
        %v3046 = vmul.u32 %v3040, %v3042
        %v3047 = vshll.u32 %v3044, 16
        %v3048 = vshrl.u32 %v3044, 16
        %v3049 = vshll.u32 %v3045, 16
        %v3050 = vshrl.u32 %v3045, 16
        %vm3051 = vc.u32 %v3043, %v3047
        %v3052 = vsel %vm3051, 1, 0
        %v3053 = vadd.s32 %v3043, %v3047
        %v3054 = vadd.s32 %v3046, %v3052
        %vm3055 = vc.u32 %v3053, %v3049
        %v3056 = vsel %vm3055, 1, 0
        %v3057 = vadd.s32 %v3053, %v3049
        %v3058 = vadd.s32 %v3054, %v3056
        %v3059 = vadd.s32 %v3058, %v3048
        %v3060 = vadd.s32 %v3059, %v3050
        %v3061 = vmul.u32 %v3016, %v3007
        %v3062 = vadd.s32 %v3038, %v3057
        %vm3063 = vc.u32 %v3038, %v3057
        %v3064 = vadd.s32 %v3060, 1
        %v3065 = vsel %vm3063, %v3064, %v3060
        %v3066 = vadd.s32 %v3061, %v3065
        %v3067 = vadd.s32 %v3066, 536870912
        %v3068 = vshrl.u32 %v3067, 30
        %v3069 = vshll.u32 %v3068, 30
        %v3070 = vsub.s32 %v3066, %v3069
        %vm3071 = vcmp.lt.s32.totalorder %v3070, 0
        %v3072 = vsub.s32 0, %v3070
        %v3073 = vsel %vm3071, %v3072, %v3070
        %v3074 = vclz %v3073
        %v3075 = vsub.s32 %v3074, 2
        %vm3076 = vcmp.gt.s32.totalorder 0, %v3075
        %v3077 = vsel %vm3076, 0, %v3075
        %v3078 = vsub.s32 32, %v3077
        %v3079 = vshll.u32 %v3070, %v3077
        %v3080 = vshrl.u32 %v3062, %v3078
        %v3081 = vor.u32 %v3079, %v3080
        %v3082 = vsub.s32 4294967266, %v3077
        %v3083 = vadd.s32 %v3082, 127
        %v3084 = vshll.u32 %v3083, 23
        %v3085 = vor.u32 4788187, %v3084
        %v3086 = vand.u32 2147483647, %v3085
        %v3088 = vcvt.s32.f32 %v3081
        %v3089 = vmul.f32 %v3088, %v3086
        %v3090 = vxor.u32 %v3089, 2147483648
        %v3091 = vsel %vm2970, %v3090, %v3089
        %v3092 = vsub.s32 4, %v3068
        %v3093 = vsel %vm2970, %v3092, %v3068
        %v3094 = vsel %vm2969, %v440, %v3091
        %v3095 = vsel %vm2969, 0, %v3093
        %v3096 = vmul.f32 %v3094, %v3094
        %v3097 = vmul.f32 %v3096, -0.001358992
        %v3098 = vadd.f32 %v3097, 0.041655596
        %v3099 = vmul.f32 %v3096, %v3098
        %v3100 = vadd.f32 %v3099, -0.4999988
        %v3101 = vmul.f32 %v3096, %v3100
        %v3102 = vadd.f32 1.0, %v3101
        %v3103 = vmul.f32 %v3094, %v3094
        %v3104 = vmul.f32 %v3103, -0.00019511016
        %v3105 = vadd.f32 %v3104, 0.008332121
        %v3106 = vmul.f32 %v3103, %v3105
        %v3107 = vadd.f32 %v3106, -0.16666654
        %v3108 = vmul.f32 %v3103, %v3107
        %v3109 = vadd.f32 %v3108, 1.0
        %v3110 = vmul.f32 %v3109, %v3094
        %vm3111 = vweird.f32 %v440
        %v3112 = vadd.s32 %v3095, 3
        %v3113 = vand.u32 %v3112, 3
        %vm3114 = vcmp.lt.s32.totalorder %v3113, 2
        %vm3115 = vcmp.eq.s32.totalorder %v3113, 0
        %v3116 = vxor.u32 %v3110, 2147483648
        %v3117 = vsel %vm3115, %v3102, %v3116
        %vm3118 = vcmp.eq.s32.totalorder %v3113, 2
        %v3119 = vxor.u32 %v3102, 2147483648
        %v3120 = vsel %vm3118, %v3119, %v3110
        %v3121 = vsel %vm3114, %v3117, %v3120
        %v3122 = vsel %vm3111, nan, %v3121
        %v3123 = vand.u32 2147483647, %v441
        %vm3124 = vcmp.le.f32.partialorder %v3123, 0.7853982
        %vm3125 = vcmp.lt.s32.totalorder %v441, 0
        %v3126 = vand.u32 %v441, 2139095040
        %v3127 = vshrl.u32 %v3126, 23
        %v3128 = vsub.s32 %v3127, 127
        %v3129 = vand.u32 2147483647, %v441
        %v3130 = vand.u32 %v3129, 8388607
        %v3131 = vor.u32 %v3130, 8388608
        %v3132 = vsub.s32 0, %v3131
        %v3133 = vadd.s32 %v3128, 1
        %vm3134 = vcmp.gt.s32.totalorder %v3133, 0
        %v3135 = vsel %vm3134, %v3133, 0
        %v3136 = vshrl.u32 %v3135, 5
        %v3137 = vand.u32 %v3135, 31
        %v3138 = vsub.s32 32, %v3137
        %v3139 = vshrl.u32 683565275, %v3138
        %v3140 = vshll.u32 683565275, %v3137
        %v3141 = vshrl.u32 2475754826, %v3138
        %v3142 = vor.u32 %v3140, %v3141
        %v3143 = vshll.u32 2475754826, %v3137
        %v3144 = vshrl.u32 2131351028, %v3138
        %v3145 = vor.u32 %v3143, %v3144
        %v3146 = vshll.u32 2131351028, %v3137
        %v3147 = vshrl.u32 2102212464, %v3138
        %v3148 = vor.u32 %v3146, %v3147
        %v3149 = vshll.u32 2102212464, %v3137
        %v3150 = vshrl.u32 920167782, %v3138
        %v3151 = vor.u32 %v3149, %v3150
        %v3152 = vshll.u32 920167782, %v3137
        %v3153 = vshrl.u32 1326507024, %v3138
        %v3154 = vor.u32 %v3152, %v3153
        %vm3155 = vcmp.lt.s32.totalorder %v3136, 1
        %vm3156 = vcmp.lt.s32.totalorder %v3136, 2
        %vm3157 = vcmp.lt.s32.totalorder %v3136, 3
        %vm3158 = vcmp.lt.s32.totalorder %v3136, 4
        %v3159 = vsel %vm3155, %v3139, %v3142
        %v3160 = vsel %vm3158, %v3148, 2102212464
        %v3161 = vsel %vm3157, %v3145, %v3160
        %v3162 = vsel %vm3156, %v3159, %v3161
        %v3163 = vsel %vm3155, %v3142, %v3145
        %v3164 = vsel %vm3158, %v3151, 920167782
        %v3165 = vsel %vm3157, %v3148, %v3164
        %v3166 = vsel %vm3156, %v3163, %v3165
        %v3167 = vsel %vm3155, %v3145, %v3148
        %v3168 = vsel %vm3158, %v3154, 1326507024
        %v3169 = vsel %vm3157, %v3151, %v3168
        %v3170 = vsel %vm3156, %v3167, %v3169
        %v3171 = vshll.u32 %v3131, 8
        %v3172 = vand.u32 %v3171, 65535
        %v3173 = vshrl.u32 %v3171, 16
        %v3174 = vand.u32 %v3170, 65535
        %v3175 = vshrl.u32 %v3170, 16
        %v3176 = vmul.u32 %v3172, %v3174
        %v3177 = vmul.u32 %v3172, %v3175
        %v3178 = vmul.u32 %v3173, %v3174
        %v3179 = vmul.u32 %v3173, %v3175
        %v3180 = vshll.u32 %v3177, 16
        %v3181 = vshrl.u32 %v3177, 16
        %v3182 = vshll.u32 %v3178, 16
        %v3183 = vshrl.u32 %v3178, 16
        %vm3184 = vc.u32 %v3176, %v3180
        %v3185 = vsel %vm3184, 1, 0
        %v3186 = vadd.s32 %v3176, %v3180
        %v3187 = vadd.s32 %v3179, %v3185
        %vm3188 = vc.u32 %v3186, %v3182
        %v3189 = vsel %vm3188, 1, 0
        %v3190 = vadd.s32 %v3186, %v3182
        %v3191 = vadd.s32 %v3187, %v3189
        %v3192 = vadd.s32 %v3191, %v3181
        %v3193 = vadd.s32 %v3192, %v3183
        %v3194 = vand.u32 %v3171, 65535
        %v3195 = vshrl.u32 %v3171, 16
        %v3196 = vand.u32 %v3166, 65535
        %v3197 = vshrl.u32 %v3166, 16
        %v3198 = vmul.u32 %v3194, %v3196
        %v3199 = vmul.u32 %v3194, %v3197
        %v3200 = vmul.u32 %v3195, %v3196
        %v3201 = vmul.u32 %v3195, %v3197
        %v3202 = vshll.u32 %v3199, 16
        %v3203 = vshrl.u32 %v3199, 16
        %v3204 = vshll.u32 %v3200, 16
        %v3205 = vshrl.u32 %v3200, 16
        %vm3206 = vc.u32 %v3198, %v3202
        %v3207 = vsel %vm3206, 1, 0
        %v3208 = vadd.s32 %v3198, %v3202
        %v3209 = vadd.s32 %v3201, %v3207
        %vm3210 = vc.u32 %v3208, %v3204
        %v3211 = vsel %vm3210, 1, 0
        %v3212 = vadd.s32 %v3208, %v3204
        %v3213 = vadd.s32 %v3209, %v3211
        %v3214 = vadd.s32 %v3213, %v3203
        %v3215 = vadd.s32 %v3214, %v3205
        %v3216 = vmul.u32 %v3171, %v3162
        %v3217 = vadd.s32 %v3193, %v3212
        %vm3218 = vc.u32 %v3193, %v3212
        %v3219 = vadd.s32 %v3215, 1
        %v3220 = vsel %vm3218, %v3219, %v3215
        %v3221 = vadd.s32 %v3216, %v3220
        %v3222 = vadd.s32 %v3221, 536870912
        %v3223 = vshrl.u32 %v3222, 30
        %v3224 = vshll.u32 %v3223, 30
        %v3225 = vsub.s32 %v3221, %v3224
        %vm3226 = vcmp.lt.s32.totalorder %v3225, 0
        %v3227 = vsub.s32 0, %v3225
        %v3228 = vsel %vm3226, %v3227, %v3225
        %v3229 = vclz %v3228
        %v3230 = vsub.s32 %v3229, 2
        %vm3231 = vcmp.gt.s32.totalorder 0, %v3230
        %v3232 = vsel %vm3231, 0, %v3230
        %v3233 = vsub.s32 32, %v3232
        %v3234 = vshll.u32 %v3225, %v3232
        %v3235 = vshrl.u32 %v3217, %v3233
        %v3236 = vor.u32 %v3234, %v3235
        %v3237 = vsub.s32 4294967266, %v3232
        %v3238 = vadd.s32 %v3237, 127
        %v3239 = vshll.u32 %v3238, 23
        %v3240 = vor.u32 4788187, %v3239
        %v3241 = vand.u32 2147483647, %v3240
        %v3243 = vcvt.s32.f32 %v3236
        %v3244 = vmul.f32 %v3243, %v3241
        %v3245 = vxor.u32 %v3244, 2147483648
        %v3246 = vsel %vm3125, %v3245, %v3244
        %v3247 = vsub.s32 4, %v3223
        %v3248 = vsel %vm3125, %v3247, %v3223
        %v3249 = vsel %vm3124, %v441, %v3246
        %v3250 = vsel %vm3124, 0, %v3248
        %v3251 = vmul.f32 %v3249, %v3249
        %v3252 = vmul.f32 %v3251, -0.001358992
        %v3253 = vadd.f32 %v3252, 0.041655596
        %v3254 = vmul.f32 %v3251, %v3253
        %v3255 = vadd.f32 %v3254, -0.4999988
        %v3256 = vmul.f32 %v3251, %v3255
        %v3257 = vadd.f32 1.0, %v3256
        %v3258 = vmul.f32 %v3249, %v3249
        %v3259 = vmul.f32 %v3258, -0.00019511016
        %v3260 = vadd.f32 %v3259, 0.008332121
        %v3261 = vmul.f32 %v3258, %v3260
        %v3262 = vadd.f32 %v3261, -0.16666654
        %v3263 = vmul.f32 %v3258, %v3262
        %v3264 = vadd.f32 %v3263, 1.0
        %v3265 = vmul.f32 %v3264, %v3249
        %vm3266 = vweird.f32 %v441
        %v3267 = vadd.s32 %v3250, 3
        %v3268 = vand.u32 %v3267, 3
        %vm3269 = vcmp.lt.s32.totalorder %v3268, 2
        %vm3270 = vcmp.eq.s32.totalorder %v3268, 0
        %v3271 = vxor.u32 %v3265, 2147483648
        %v3272 = vsel %vm3270, %v3257, %v3271
        %vm3273 = vcmp.eq.s32.totalorder %v3268, 2
        %v3274 = vxor.u32 %v3257, 2147483648
        %v3275 = vsel %vm3273, %v3274, %v3265
        %v3276 = vsel %vm3269, %v3272, %v3275
        %v3277 = vsel %vm3266, nan, %v3276
        %v3278 = vand.u32 2147483647, %v442
        %vm3279 = vcmp.le.f32.partialorder %v3278, 0.7853982
        %vm3280 = vcmp.lt.s32.totalorder %v442, 0
        %v3281 = vand.u32 %v442, 2139095040
        %v3282 = vshrl.u32 %v3281, 23
        %v3283 = vsub.s32 %v3282, 127
        %v3284 = vand.u32 2147483647, %v442
        %v3285 = vand.u32 %v3284, 8388607
        %v3286 = vor.u32 %v3285, 8388608
        %v3287 = vsub.s32 0, %v3286
        %v3288 = vadd.s32 %v3283, 1
        %vm3289 = vcmp.gt.s32.totalorder %v3288, 0
        %v3290 = vsel %vm3289, %v3288, 0
        %v3291 = vshrl.u32 %v3290, 5
        %v3292 = vand.u32 %v3290, 31
        %v3293 = vsub.s32 32, %v3292
        %v3294 = vshrl.u32 683565275, %v3293
        %v3295 = vshll.u32 683565275, %v3292
        %v3296 = vshrl.u32 2475754826, %v3293
        %v3297 = vor.u32 %v3295, %v3296
        %v3298 = vshll.u32 2475754826, %v3292
        %v3299 = vshrl.u32 2131351028, %v3293
        %v3300 = vor.u32 %v3298, %v3299
        %v3301 = vshll.u32 2131351028, %v3292
        %v3302 = vshrl.u32 2102212464, %v3293
        %v3303 = vor.u32 %v3301, %v3302
        %v3304 = vshll.u32 2102212464, %v3292
        %v3305 = vshrl.u32 920167782, %v3293
        %v3306 = vor.u32 %v3304, %v3305
        %v3307 = vshll.u32 920167782, %v3292
        %v3308 = vshrl.u32 1326507024, %v3293
        %v3309 = vor.u32 %v3307, %v3308
        %vm3310 = vcmp.lt.s32.totalorder %v3291, 1
        %vm3311 = vcmp.lt.s32.totalorder %v3291, 2
        %vm3312 = vcmp.lt.s32.totalorder %v3291, 3
        %vm3313 = vcmp.lt.s32.totalorder %v3291, 4
        %v3314 = vsel %vm3310, %v3294, %v3297
        %v3315 = vsel %vm3313, %v3303, 2102212464
        %v3316 = vsel %vm3312, %v3300, %v3315
        %v3317 = vsel %vm3311, %v3314, %v3316
        %v3318 = vsel %vm3310, %v3297, %v3300
        %v3319 = vsel %vm3313, %v3306, 920167782
        %v3320 = vsel %vm3312, %v3303, %v3319
        %v3321 = vsel %vm3311, %v3318, %v3320
        %v3322 = vsel %vm3310, %v3300, %v3303
        %v3323 = vsel %vm3313, %v3309, 1326507024
        %v3324 = vsel %vm3312, %v3306, %v3323
        %v3325 = vsel %vm3311, %v3322, %v3324
        %v3326 = vshll.u32 %v3286, 8
        %v3327 = vand.u32 %v3326, 65535
        %v3328 = vshrl.u32 %v3326, 16
        %v3329 = vand.u32 %v3325, 65535
        %v3330 = vshrl.u32 %v3325, 16
        %v3331 = vmul.u32 %v3327, %v3329
        %v3332 = vmul.u32 %v3327, %v3330
        %v3333 = vmul.u32 %v3328, %v3329
        %v3334 = vmul.u32 %v3328, %v3330
        %v3335 = vshll.u32 %v3332, 16
        %v3336 = vshrl.u32 %v3332, 16
        %v3337 = vshll.u32 %v3333, 16
        %v3338 = vshrl.u32 %v3333, 16
        %vm3339 = vc.u32 %v3331, %v3335
        %v3340 = vsel %vm3339, 1, 0
        %v3341 = vadd.s32 %v3331, %v3335
        %v3342 = vadd.s32 %v3334, %v3340
        %vm3343 = vc.u32 %v3341, %v3337
        %v3344 = vsel %vm3343, 1, 0
        %v3345 = vadd.s32 %v3341, %v3337
        %v3346 = vadd.s32 %v3342, %v3344
        %v3347 = vadd.s32 %v3346, %v3336
        %v3348 = vadd.s32 %v3347, %v3338
        %v3349 = vand.u32 %v3326, 65535
        %v3350 = vshrl.u32 %v3326, 16
        %v3351 = vand.u32 %v3321, 65535
        %v3352 = vshrl.u32 %v3321, 16
        %v3353 = vmul.u32 %v3349, %v3351
        %v3354 = vmul.u32 %v3349, %v3352
        %v3355 = vmul.u32 %v3350, %v3351
        %v3356 = vmul.u32 %v3350, %v3352
        %v3357 = vshll.u32 %v3354, 16
        %v3358 = vshrl.u32 %v3354, 16
        %v3359 = vshll.u32 %v3355, 16
        %v3360 = vshrl.u32 %v3355, 16
        %vm3361 = vc.u32 %v3353, %v3357
        %v3362 = vsel %vm3361, 1, 0
        %v3363 = vadd.s32 %v3353, %v3357
        %v3364 = vadd.s32 %v3356, %v3362
        %vm3365 = vc.u32 %v3363, %v3359
        %v3366 = vsel %vm3365, 1, 0
        %v3367 = vadd.s32 %v3363, %v3359
        %v3368 = vadd.s32 %v3364, %v3366
        %v3369 = vadd.s32 %v3368, %v3358
        %v3370 = vadd.s32 %v3369, %v3360
        %v3371 = vmul.u32 %v3326, %v3317
        %v3372 = vadd.s32 %v3348, %v3367
        %vm3373 = vc.u32 %v3348, %v3367
        %v3374 = vadd.s32 %v3370, 1
        %v3375 = vsel %vm3373, %v3374, %v3370
        %v3376 = vadd.s32 %v3371, %v3375
        %v3377 = vadd.s32 %v3376, 536870912
        %v3378 = vshrl.u32 %v3377, 30
        %v3379 = vshll.u32 %v3378, 30
        %v3380 = vsub.s32 %v3376, %v3379
        %vm3381 = vcmp.lt.s32.totalorder %v3380, 0
        %v3382 = vsub.s32 0, %v3380
        %v3383 = vsel %vm3381, %v3382, %v3380
        %v3384 = vclz %v3383
        %v3385 = vsub.s32 %v3384, 2
        %vm3386 = vcmp.gt.s32.totalorder 0, %v3385
        %v3387 = vsel %vm3386, 0, %v3385
        %v3388 = vsub.s32 32, %v3387
        %v3389 = vshll.u32 %v3380, %v3387
        %v3390 = vshrl.u32 %v3372, %v3388
        %v3391 = vor.u32 %v3389, %v3390
        %v3392 = vsub.s32 4294967266, %v3387
        %v3393 = vadd.s32 %v3392, 127
        %v3394 = vshll.u32 %v3393, 23
        %v3395 = vor.u32 4788187, %v3394
        %v3396 = vand.u32 2147483647, %v3395
        %v3398 = vcvt.s32.f32 %v3391
        %v3399 = vmul.f32 %v3398, %v3396
        %v3400 = vxor.u32 %v3399, 2147483648
        %v3401 = vsel %vm3280, %v3400, %v3399
        %v3402 = vsub.s32 4, %v3378
        %v3403 = vsel %vm3280, %v3402, %v3378
        %v3404 = vsel %vm3279, %v442, %v3401
        %v3405 = vsel %vm3279, 0, %v3403
        %v3406 = vmul.f32 %v3404, %v3404
        %v3407 = vmul.f32 %v3406, -0.001358992
        %v3408 = vadd.f32 %v3407, 0.041655596
        %v3409 = vmul.f32 %v3406, %v3408
        %v3410 = vadd.f32 %v3409, -0.4999988
        %v3411 = vmul.f32 %v3406, %v3410
        %v3412 = vadd.f32 1.0, %v3411
        %v3413 = vmul.f32 %v3404, %v3404
        %v3414 = vmul.f32 %v3413, -0.00019511016
        %v3415 = vadd.f32 %v3414, 0.008332121
        %v3416 = vmul.f32 %v3413, %v3415
        %v3417 = vadd.f32 %v3416, -0.16666654
        %v3418 = vmul.f32 %v3413, %v3417
        %v3419 = vadd.f32 %v3418, 1.0
        %v3420 = vmul.f32 %v3419, %v3404
        %vm3421 = vweird.f32 %v442
        %v3422 = vadd.s32 %v3405, 3
        %v3423 = vand.u32 %v3422, 3
        %vm3424 = vcmp.lt.s32.totalorder %v3423, 2
        %vm3425 = vcmp.eq.s32.totalorder %v3423, 0
        %v3426 = vxor.u32 %v3420, 2147483648
        %v3427 = vsel %vm3425, %v3412, %v3426
        %vm3428 = vcmp.eq.s32.totalorder %v3423, 2
        %v3429 = vxor.u32 %v3412, 2147483648
        %v3430 = vsel %vm3428, %v3429, %v3420
        %v3431 = vsel %vm3424, %v3427, %v3430
        %v3432 = vsel %vm3421, nan, %v3431
        %v3433 = vand.u32 2147483647, %v443
        %vm3434 = vcmp.le.f32.partialorder %v3433, 0.7853982
        %vm3435 = vcmp.lt.s32.totalorder %v443, 0
        %v3436 = vand.u32 %v443, 2139095040
        %v3437 = vshrl.u32 %v3436, 23
        %v3438 = vsub.s32 %v3437, 127
        %v3439 = vand.u32 2147483647, %v443
        %v3440 = vand.u32 %v3439, 8388607
        %v3441 = vor.u32 %v3440, 8388608
        %v3442 = vsub.s32 0, %v3441
        %v3443 = vadd.s32 %v3438, 1
        %vm3444 = vcmp.gt.s32.totalorder %v3443, 0
        %v3445 = vsel %vm3444, %v3443, 0
        %v3446 = vshrl.u32 %v3445, 5
        %v3447 = vand.u32 %v3445, 31
        %v3448 = vsub.s32 32, %v3447
        %v3449 = vshrl.u32 683565275, %v3448
        %v3450 = vshll.u32 683565275, %v3447
        %v3451 = vshrl.u32 2475754826, %v3448
        %v3452 = vor.u32 %v3450, %v3451
        %v3453 = vshll.u32 2475754826, %v3447
        %v3454 = vshrl.u32 2131351028, %v3448
        %v3455 = vor.u32 %v3453, %v3454
        %v3456 = vshll.u32 2131351028, %v3447
        %v3457 = vshrl.u32 2102212464, %v3448
        %v3458 = vor.u32 %v3456, %v3457
        %v3459 = vshll.u32 2102212464, %v3447
        %v3460 = vshrl.u32 920167782, %v3448
        %v3461 = vor.u32 %v3459, %v3460
        %v3462 = vshll.u32 920167782, %v3447
        %v3463 = vshrl.u32 1326507024, %v3448
        %v3464 = vor.u32 %v3462, %v3463
        %vm3465 = vcmp.lt.s32.totalorder %v3446, 1
        %vm3466 = vcmp.lt.s32.totalorder %v3446, 2
        %vm3467 = vcmp.lt.s32.totalorder %v3446, 3
        %vm3468 = vcmp.lt.s32.totalorder %v3446, 4
        %v3469 = vsel %vm3465, %v3449, %v3452
        %v3470 = vsel %vm3468, %v3458, 2102212464
        %v3471 = vsel %vm3467, %v3455, %v3470
        %v3472 = vsel %vm3466, %v3469, %v3471
        %v3473 = vsel %vm3465, %v3452, %v3455
        %v3474 = vsel %vm3468, %v3461, 920167782
        %v3475 = vsel %vm3467, %v3458, %v3474
        %v3476 = vsel %vm3466, %v3473, %v3475
        %v3477 = vsel %vm3465, %v3455, %v3458
        %v3478 = vsel %vm3468, %v3464, 1326507024
        %v3479 = vsel %vm3467, %v3461, %v3478
        %v3480 = vsel %vm3466, %v3477, %v3479
        %v3481 = vshll.u32 %v3441, 8
        %v3482 = vand.u32 %v3481, 65535
        %v3483 = vshrl.u32 %v3481, 16
        %v3484 = vand.u32 %v3480, 65535
        %v3485 = vshrl.u32 %v3480, 16
        %v3486 = vmul.u32 %v3482, %v3484
        %v3487 = vmul.u32 %v3482, %v3485
        %v3488 = vmul.u32 %v3483, %v3484
        %v3489 = vmul.u32 %v3483, %v3485
        %v3490 = vshll.u32 %v3487, 16
        %v3491 = vshrl.u32 %v3487, 16
        %v3492 = vshll.u32 %v3488, 16
        %v3493 = vshrl.u32 %v3488, 16
        %vm3494 = vc.u32 %v3486, %v3490
        %v3495 = vsel %vm3494, 1, 0
        %v3496 = vadd.s32 %v3486, %v3490
        %v3497 = vadd.s32 %v3489, %v3495
        %vm3498 = vc.u32 %v3496, %v3492
        %v3499 = vsel %vm3498, 1, 0
        %v3500 = vadd.s32 %v3496, %v3492
        %v3501 = vadd.s32 %v3497, %v3499
        %v3502 = vadd.s32 %v3501, %v3491
        %v3503 = vadd.s32 %v3502, %v3493
        %v3504 = vand.u32 %v3481, 65535
        %v3505 = vshrl.u32 %v3481, 16
        %v3506 = vand.u32 %v3476, 65535
        %v3507 = vshrl.u32 %v3476, 16
        %v3508 = vmul.u32 %v3504, %v3506
        %v3509 = vmul.u32 %v3504, %v3507
        %v3510 = vmul.u32 %v3505, %v3506
        %v3511 = vmul.u32 %v3505, %v3507
        %v3512 = vshll.u32 %v3509, 16
        %v3513 = vshrl.u32 %v3509, 16
        %v3514 = vshll.u32 %v3510, 16
        %v3515 = vshrl.u32 %v3510, 16
        %vm3516 = vc.u32 %v3508, %v3512
        %v3517 = vsel %vm3516, 1, 0
        %v3518 = vadd.s32 %v3508, %v3512
        %v3519 = vadd.s32 %v3511, %v3517
        %vm3520 = vc.u32 %v3518, %v3514
        %v3521 = vsel %vm3520, 1, 0
        %v3522 = vadd.s32 %v3518, %v3514
        %v3523 = vadd.s32 %v3519, %v3521
        %v3524 = vadd.s32 %v3523, %v3513
        %v3525 = vadd.s32 %v3524, %v3515
        %v3526 = vmul.u32 %v3481, %v3472
        %v3527 = vadd.s32 %v3503, %v3522
        %vm3528 = vc.u32 %v3503, %v3522
        %v3529 = vadd.s32 %v3525, 1
        %v3530 = vsel %vm3528, %v3529, %v3525
        %v3531 = vadd.s32 %v3526, %v3530
        %v3532 = vadd.s32 %v3531, 536870912
        %v3533 = vshrl.u32 %v3532, 30
        %v3534 = vshll.u32 %v3533, 30
        %v3535 = vsub.s32 %v3531, %v3534
        %vm3536 = vcmp.lt.s32.totalorder %v3535, 0
        %v3537 = vsub.s32 0, %v3535
        %v3538 = vsel %vm3536, %v3537, %v3535
        %v3539 = vclz %v3538
        %v3540 = vsub.s32 %v3539, 2
        %vm3541 = vcmp.gt.s32.totalorder 0, %v3540
        %v3542 = vsel %vm3541, 0, %v3540
        %v3543 = vsub.s32 32, %v3542
        %v3544 = vshll.u32 %v3535, %v3542
        %v3545 = vshrl.u32 %v3527, %v3543
        %v3546 = vor.u32 %v3544, %v3545
        %v3547 = vsub.s32 4294967266, %v3542
        %v3548 = vadd.s32 %v3547, 127
        %v3549 = vshll.u32 %v3548, 23
        %v3550 = vor.u32 4788187, %v3549
        %v3551 = vand.u32 2147483647, %v3550
        %v3553 = vcvt.s32.f32 %v3546
        %v3554 = vmul.f32 %v3553, %v3551
        %v3555 = vxor.u32 %v3554, 2147483648
        %v3556 = vsel %vm3435, %v3555, %v3554
        %v3557 = vsub.s32 4, %v3533
        %v3558 = vsel %vm3435, %v3557, %v3533
        %v3559 = vsel %vm3434, %v443, %v3556
        %v3560 = vsel %vm3434, 0, %v3558
        %v3561 = vmul.f32 %v3559, %v3559
        %v3562 = vmul.f32 %v3561, -0.001358992
        %v3563 = vadd.f32 %v3562, 0.041655596
        %v3564 = vmul.f32 %v3561, %v3563
        %v3565 = vadd.f32 %v3564, -0.4999988
        %v3566 = vmul.f32 %v3561, %v3565
        %v3567 = vadd.f32 1.0, %v3566
        %v3568 = vmul.f32 %v3559, %v3559
        %v3569 = vmul.f32 %v3568, -0.00019511016
        %v3570 = vadd.f32 %v3569, 0.008332121
        %v3571 = vmul.f32 %v3568, %v3570
        %v3572 = vadd.f32 %v3571, -0.16666654
        %v3573 = vmul.f32 %v3568, %v3572
        %v3574 = vadd.f32 %v3573, 1.0
        %v3575 = vmul.f32 %v3574, %v3559
        %vm3576 = vweird.f32 %v443
        %v3577 = vadd.s32 %v3560, 3
        %v3578 = vand.u32 %v3577, 3
        %vm3579 = vcmp.lt.s32.totalorder %v3578, 2
        %vm3580 = vcmp.eq.s32.totalorder %v3578, 0
        %v3581 = vxor.u32 %v3575, 2147483648
        %v3582 = vsel %vm3580, %v3567, %v3581
        %vm3583 = vcmp.eq.s32.totalorder %v3578, 2
        %v3584 = vxor.u32 %v3567, 2147483648
        %v3585 = vsel %vm3583, %v3584, %v3575
        %v3586 = vsel %vm3579, %v3582, %v3585
        %v3587 = vsel %vm3576, nan, %v3586
        %v3588 = vand.u32 2147483647, %v444
        %vm3589 = vcmp.le.f32.partialorder %v3588, 0.7853982
        %vm3590 = vcmp.lt.s32.totalorder %v444, 0
        %v3591 = vand.u32 %v444, 2139095040
        %v3592 = vshrl.u32 %v3591, 23
        %v3593 = vsub.s32 %v3592, 127
        %v3594 = vand.u32 2147483647, %v444
        %v3595 = vand.u32 %v3594, 8388607
        %v3596 = vor.u32 %v3595, 8388608
        %v3597 = vsub.s32 0, %v3596
        %v3598 = vadd.s32 %v3593, 1
        %vm3599 = vcmp.gt.s32.totalorder %v3598, 0
        %v3600 = vsel %vm3599, %v3598, 0
        %v3601 = vshrl.u32 %v3600, 5
        %v3602 = vand.u32 %v3600, 31
        %v3603 = vsub.s32 32, %v3602
        %v3604 = vshrl.u32 683565275, %v3603
        %v3605 = vshll.u32 683565275, %v3602
        %v3606 = vshrl.u32 2475754826, %v3603
        %v3607 = vor.u32 %v3605, %v3606
        %v3608 = vshll.u32 2475754826, %v3602
        %v3609 = vshrl.u32 2131351028, %v3603
        %v3610 = vor.u32 %v3608, %v3609
        %v3611 = vshll.u32 2131351028, %v3602
        %v3612 = vshrl.u32 2102212464, %v3603
        %v3613 = vor.u32 %v3611, %v3612
        %v3614 = vshll.u32 2102212464, %v3602
        %v3615 = vshrl.u32 920167782, %v3603
        %v3616 = vor.u32 %v3614, %v3615
        %v3617 = vshll.u32 920167782, %v3602
        %v3618 = vshrl.u32 1326507024, %v3603
        %v3619 = vor.u32 %v3617, %v3618
        %vm3620 = vcmp.lt.s32.totalorder %v3601, 1
        %vm3621 = vcmp.lt.s32.totalorder %v3601, 2
        %vm3622 = vcmp.lt.s32.totalorder %v3601, 3
        %vm3623 = vcmp.lt.s32.totalorder %v3601, 4
        %v3624 = vsel %vm3620, %v3604, %v3607
        %v3625 = vsel %vm3623, %v3613, 2102212464
        %v3626 = vsel %vm3622, %v3610, %v3625
        %v3627 = vsel %vm3621, %v3624, %v3626
        %v3628 = vsel %vm3620, %v3607, %v3610
        %v3629 = vsel %vm3623, %v3616, 920167782
        %v3630 = vsel %vm3622, %v3613, %v3629
        %v3631 = vsel %vm3621, %v3628, %v3630
        %v3632 = vsel %vm3620, %v3610, %v3613
        %v3633 = vsel %vm3623, %v3619, 1326507024
        %v3634 = vsel %vm3622, %v3616, %v3633
        %v3635 = vsel %vm3621, %v3632, %v3634
        %v3636 = vshll.u32 %v3596, 8
        %v3637 = vand.u32 %v3636, 65535
        %v3638 = vshrl.u32 %v3636, 16
        %v3639 = vand.u32 %v3635, 65535
        %v3640 = vshrl.u32 %v3635, 16
        %v3641 = vmul.u32 %v3637, %v3639
        %v3642 = vmul.u32 %v3637, %v3640
        %v3643 = vmul.u32 %v3638, %v3639
        %v3644 = vmul.u32 %v3638, %v3640
        %v3645 = vshll.u32 %v3642, 16
        %v3646 = vshrl.u32 %v3642, 16
        %v3647 = vshll.u32 %v3643, 16
        %v3648 = vshrl.u32 %v3643, 16
        %vm3649 = vc.u32 %v3641, %v3645
        %v3650 = vsel %vm3649, 1, 0
        %v3651 = vadd.s32 %v3641, %v3645
        %v3652 = vadd.s32 %v3644, %v3650
        %vm3653 = vc.u32 %v3651, %v3647
        %v3654 = vsel %vm3653, 1, 0
        %v3655 = vadd.s32 %v3651, %v3647
        %v3656 = vadd.s32 %v3652, %v3654
        %v3657 = vadd.s32 %v3656, %v3646
        %v3658 = vadd.s32 %v3657, %v3648
        %v3659 = vand.u32 %v3636, 65535
        %v3660 = vshrl.u32 %v3636, 16
        %v3661 = vand.u32 %v3631, 65535
        %v3662 = vshrl.u32 %v3631, 16
        %v3663 = vmul.u32 %v3659, %v3661
        %v3664 = vmul.u32 %v3659, %v3662
        %v3665 = vmul.u32 %v3660, %v3661
        %v3666 = vmul.u32 %v3660, %v3662
        %v3667 = vshll.u32 %v3664, 16
        %v3668 = vshrl.u32 %v3664, 16
        %v3669 = vshll.u32 %v3665, 16
        %v3670 = vshrl.u32 %v3665, 16
        %vm3671 = vc.u32 %v3663, %v3667
        %v3672 = vsel %vm3671, 1, 0
        %v3673 = vadd.s32 %v3663, %v3667
        %v3674 = vadd.s32 %v3666, %v3672
        %vm3675 = vc.u32 %v3673, %v3669
        %v3676 = vsel %vm3675, 1, 0
        %v3677 = vadd.s32 %v3673, %v3669
        %v3678 = vadd.s32 %v3674, %v3676
        %v3679 = vadd.s32 %v3678, %v3668
        %v3680 = vadd.s32 %v3679, %v3670
        %v3681 = vmul.u32 %v3636, %v3627
        %v3682 = vadd.s32 %v3658, %v3677
        %vm3683 = vc.u32 %v3658, %v3677
        %v3684 = vadd.s32 %v3680, 1
        %v3685 = vsel %vm3683, %v3684, %v3680
        %v3686 = vadd.s32 %v3681, %v3685
        %v3687 = vadd.s32 %v3686, 536870912
        %v3688 = vshrl.u32 %v3687, 30
        %v3689 = vshll.u32 %v3688, 30
        %v3690 = vsub.s32 %v3686, %v3689
        %vm3691 = vcmp.lt.s32.totalorder %v3690, 0
        %v3692 = vsub.s32 0, %v3690
        %v3693 = vsel %vm3691, %v3692, %v3690
        %v3694 = vclz %v3693
        %v3695 = vsub.s32 %v3694, 2
        %vm3696 = vcmp.gt.s32.totalorder 0, %v3695
        %v3697 = vsel %vm3696, 0, %v3695
        %v3698 = vsub.s32 32, %v3697
        %v3699 = vshll.u32 %v3690, %v3697
        %v3700 = vshrl.u32 %v3682, %v3698
        %v3701 = vor.u32 %v3699, %v3700
        %v3702 = vsub.s32 4294967266, %v3697
        %v3703 = vadd.s32 %v3702, 127
        %v3704 = vshll.u32 %v3703, 23
        %v3705 = vor.u32 4788187, %v3704
        %v3706 = vand.u32 2147483647, %v3705
        %v3708 = vcvt.s32.f32 %v3701
        %v3709 = vmul.f32 %v3708, %v3706
        %v3710 = vxor.u32 %v3709, 2147483648
        %v3711 = vsel %vm3590, %v3710, %v3709
        %v3712 = vsub.s32 4, %v3688
        %v3713 = vsel %vm3590, %v3712, %v3688
        %v3714 = vsel %vm3589, %v444, %v3711
        %v3715 = vsel %vm3589, 0, %v3713
        %v3716 = vmul.f32 %v3714, %v3714
        %v3717 = vmul.f32 %v3716, -0.001358992
        %v3718 = vadd.f32 %v3717, 0.041655596
        %v3719 = vmul.f32 %v3716, %v3718
        %v3720 = vadd.f32 %v3719, -0.4999988
        %v3721 = vmul.f32 %v3716, %v3720
        %v3722 = vadd.f32 1.0, %v3721
        %v3723 = vmul.f32 %v3714, %v3714
        %v3724 = vmul.f32 %v3723, -0.00019511016
        %v3725 = vadd.f32 %v3724, 0.008332121
        %v3726 = vmul.f32 %v3723, %v3725
        %v3727 = vadd.f32 %v3726, -0.16666654
        %v3728 = vmul.f32 %v3723, %v3727
        %v3729 = vadd.f32 %v3728, 1.0
        %v3730 = vmul.f32 %v3729, %v3714
        %vm3731 = vweird.f32 %v444
        %v3732 = vadd.s32 %v3715, 3
        %v3733 = vand.u32 %v3732, 3
        %vm3734 = vcmp.lt.s32.totalorder %v3733, 2
        %vm3735 = vcmp.eq.s32.totalorder %v3733, 0
        %v3736 = vxor.u32 %v3730, 2147483648
        %v3737 = vsel %vm3735, %v3722, %v3736
        %vm3738 = vcmp.eq.s32.totalorder %v3733, 2
        %v3739 = vxor.u32 %v3722, 2147483648
        %v3740 = vsel %vm3738, %v3739, %v3730
        %v3741 = vsel %vm3734, %v3737, %v3740
        %v3742 = vsel %vm3731, nan, %v3741
        %v3743 = vand.u32 2147483647, %v445
        %vm3744 = vcmp.le.f32.partialorder %v3743, 0.7853982
        %vm3745 = vcmp.lt.s32.totalorder %v445, 0
        %v3746 = vand.u32 %v445, 2139095040
        %v3747 = vshrl.u32 %v3746, 23
        %v3748 = vsub.s32 %v3747, 127
        %v3749 = vand.u32 2147483647, %v445
        %v3750 = vand.u32 %v3749, 8388607
        %v3751 = vor.u32 %v3750, 8388608
        %v3752 = vsub.s32 0, %v3751
        %v3753 = vadd.s32 %v3748, 1
        %vm3754 = vcmp.gt.s32.totalorder %v3753, 0
        %v3755 = vsel %vm3754, %v3753, 0
        %v3756 = vshrl.u32 %v3755, 5
        %v3757 = vand.u32 %v3755, 31
        %v3758 = vsub.s32 32, %v3757
        %v3759 = vshrl.u32 683565275, %v3758
        %v3760 = vshll.u32 683565275, %v3757
        %v3761 = vshrl.u32 2475754826, %v3758
        %v3762 = vor.u32 %v3760, %v3761
        %v3763 = vshll.u32 2475754826, %v3757
        %v3764 = vshrl.u32 2131351028, %v3758
        %v3765 = vor.u32 %v3763, %v3764
        %v3766 = vshll.u32 2131351028, %v3757
        %v3767 = vshrl.u32 2102212464, %v3758
        %v3768 = vor.u32 %v3766, %v3767
        %v3769 = vshll.u32 2102212464, %v3757
        %v3770 = vshrl.u32 920167782, %v3758
        %v3771 = vor.u32 %v3769, %v3770
        %v3772 = vshll.u32 920167782, %v3757
        %v3773 = vshrl.u32 1326507024, %v3758
        %v3774 = vor.u32 %v3772, %v3773
        %vm3775 = vcmp.lt.s32.totalorder %v3756, 1
        %vm3776 = vcmp.lt.s32.totalorder %v3756, 2
        %vm3777 = vcmp.lt.s32.totalorder %v3756, 3
        %vm3778 = vcmp.lt.s32.totalorder %v3756, 4
        %v3779 = vsel %vm3775, %v3759, %v3762
        %v3780 = vsel %vm3778, %v3768, 2102212464
        %v3781 = vsel %vm3777, %v3765, %v3780
        %v3782 = vsel %vm3776, %v3779, %v3781
        %v3783 = vsel %vm3775, %v3762, %v3765
        %v3784 = vsel %vm3778, %v3771, 920167782
        %v3785 = vsel %vm3777, %v3768, %v3784
        %v3786 = vsel %vm3776, %v3783, %v3785
        %v3787 = vsel %vm3775, %v3765, %v3768
        %v3788 = vsel %vm3778, %v3774, 1326507024
        %v3789 = vsel %vm3777, %v3771, %v3788
        %v3790 = vsel %vm3776, %v3787, %v3789
        %v3791 = vshll.u32 %v3751, 8
        %v3792 = vand.u32 %v3791, 65535
        %v3793 = vshrl.u32 %v3791, 16
        %v3794 = vand.u32 %v3790, 65535
        %v3795 = vshrl.u32 %v3790, 16
        %v3796 = vmul.u32 %v3792, %v3794
        %v3797 = vmul.u32 %v3792, %v3795
        %v3798 = vmul.u32 %v3793, %v3794
        %v3799 = vmul.u32 %v3793, %v3795
        %v3800 = vshll.u32 %v3797, 16
        %v3801 = vshrl.u32 %v3797, 16
        %v3802 = vshll.u32 %v3798, 16
        %v3803 = vshrl.u32 %v3798, 16
        %vm3804 = vc.u32 %v3796, %v3800
        %v3805 = vsel %vm3804, 1, 0
        %v3806 = vadd.s32 %v3796, %v3800
        %v3807 = vadd.s32 %v3799, %v3805
        %vm3808 = vc.u32 %v3806, %v3802
        %v3809 = vsel %vm3808, 1, 0
        %v3810 = vadd.s32 %v3806, %v3802
        %v3811 = vadd.s32 %v3807, %v3809
        %v3812 = vadd.s32 %v3811, %v3801
        %v3813 = vadd.s32 %v3812, %v3803
        %v3814 = vand.u32 %v3791, 65535
        %v3815 = vshrl.u32 %v3791, 16
        %v3816 = vand.u32 %v3786, 65535
        %v3817 = vshrl.u32 %v3786, 16
        %v3818 = vmul.u32 %v3814, %v3816
        %v3819 = vmul.u32 %v3814, %v3817
        %v3820 = vmul.u32 %v3815, %v3816
        %v3821 = vmul.u32 %v3815, %v3817
        %v3822 = vshll.u32 %v3819, 16
        %v3823 = vshrl.u32 %v3819, 16
        %v3824 = vshll.u32 %v3820, 16
        %v3825 = vshrl.u32 %v3820, 16
        %vm3826 = vc.u32 %v3818, %v3822
        %v3827 = vsel %vm3826, 1, 0
        %v3828 = vadd.s32 %v3818, %v3822
        %v3829 = vadd.s32 %v3821, %v3827
        %vm3830 = vc.u32 %v3828, %v3824
        %v3831 = vsel %vm3830, 1, 0
        %v3832 = vadd.s32 %v3828, %v3824
        %v3833 = vadd.s32 %v3829, %v3831
        %v3834 = vadd.s32 %v3833, %v3823
        %v3835 = vadd.s32 %v3834, %v3825
        %v3836 = vmul.u32 %v3791, %v3782
        %v3837 = vadd.s32 %v3813, %v3832
        %vm3838 = vc.u32 %v3813, %v3832
        %v3839 = vadd.s32 %v3835, 1
        %v3840 = vsel %vm3838, %v3839, %v3835
        %v3841 = vadd.s32 %v3836, %v3840
        %v3842 = vadd.s32 %v3841, 536870912
        %v3843 = vshrl.u32 %v3842, 30
        %v3844 = vshll.u32 %v3843, 30
        %v3845 = vsub.s32 %v3841, %v3844
        %vm3846 = vcmp.lt.s32.totalorder %v3845, 0
        %v3847 = vsub.s32 0, %v3845
        %v3848 = vsel %vm3846, %v3847, %v3845
        %v3849 = vclz %v3848
        %v3850 = vsub.s32 %v3849, 2
        %vm3851 = vcmp.gt.s32.totalorder 0, %v3850
        %v3852 = vsel %vm3851, 0, %v3850
        %v3853 = vsub.s32 32, %v3852
        %v3854 = vshll.u32 %v3845, %v3852
        %v3855 = vshrl.u32 %v3837, %v3853
        %v3856 = vor.u32 %v3854, %v3855
        %v3857 = vsub.s32 4294967266, %v3852
        %v3858 = vadd.s32 %v3857, 127
        %v3859 = vshll.u32 %v3858, 23
        %v3860 = vor.u32 4788187, %v3859
        %v3861 = vand.u32 2147483647, %v3860
        %v3863 = vcvt.s32.f32 %v3856
        %v3864 = vmul.f32 %v3863, %v3861
        %v3865 = vxor.u32 %v3864, 2147483648
        %v3866 = vsel %vm3745, %v3865, %v3864
        %v3867 = vsub.s32 4, %v3843
        %v3868 = vsel %vm3745, %v3867, %v3843
        %v3869 = vsel %vm3744, %v445, %v3866
        %v3870 = vsel %vm3744, 0, %v3868
        %v3871 = vmul.f32 %v3869, %v3869
        %v3872 = vmul.f32 %v3871, -0.001358992
        %v3873 = vadd.f32 %v3872, 0.041655596
        %v3874 = vmul.f32 %v3871, %v3873
        %v3875 = vadd.f32 %v3874, -0.4999988
        %v3876 = vmul.f32 %v3871, %v3875
        %v3877 = vadd.f32 1.0, %v3876
        %v3878 = vmul.f32 %v3869, %v3869
        %v3879 = vmul.f32 %v3878, -0.00019511016
        %v3880 = vadd.f32 %v3879, 0.008332121
        %v3881 = vmul.f32 %v3878, %v3880
        %v3882 = vadd.f32 %v3881, -0.16666654
        %v3883 = vmul.f32 %v3878, %v3882
        %v3884 = vadd.f32 %v3883, 1.0
        %v3885 = vmul.f32 %v3884, %v3869
        %vm3886 = vweird.f32 %v445
        %v3887 = vadd.s32 %v3870, 3
        %v3888 = vand.u32 %v3887, 3
        %vm3889 = vcmp.lt.s32.totalorder %v3888, 2
        %vm3890 = vcmp.eq.s32.totalorder %v3888, 0
        %v3891 = vxor.u32 %v3885, 2147483648
        %v3892 = vsel %vm3890, %v3877, %v3891
        %vm3893 = vcmp.eq.s32.totalorder %v3888, 2
        %v3894 = vxor.u32 %v3877, 2147483648
        %v3895 = vsel %vm3893, %v3894, %v3885
        %v3896 = vsel %vm3889, %v3892, %v3895
        %v3897 = vsel %vm3886, nan, %v3896
        %v3898 = vand.u32 2147483647, %v446
        %vm3899 = vcmp.le.f32.partialorder %v3898, 0.7853982
        %vm3900 = vcmp.lt.s32.totalorder %v446, 0
        %v3901 = vand.u32 %v446, 2139095040
        %v3902 = vshrl.u32 %v3901, 23
        %v3903 = vsub.s32 %v3902, 127
        %v3904 = vand.u32 2147483647, %v446
        %v3905 = vand.u32 %v3904, 8388607
        %v3906 = vor.u32 %v3905, 8388608
        %v3907 = vsub.s32 0, %v3906
        %v3908 = vadd.s32 %v3903, 1
        %vm3909 = vcmp.gt.s32.totalorder %v3908, 0
        %v3910 = vsel %vm3909, %v3908, 0
        %v3911 = vshrl.u32 %v3910, 5
        %v3912 = vand.u32 %v3910, 31
        %v3913 = vsub.s32 32, %v3912
        %v3914 = vshrl.u32 683565275, %v3913
        %v3915 = vshll.u32 683565275, %v3912
        %v3916 = vshrl.u32 2475754826, %v3913
        %v3917 = vor.u32 %v3915, %v3916
        %v3918 = vshll.u32 2475754826, %v3912
        %v3919 = vshrl.u32 2131351028, %v3913
        %v3920 = vor.u32 %v3918, %v3919
        %v3921 = vshll.u32 2131351028, %v3912
        %v3922 = vshrl.u32 2102212464, %v3913
        %v3923 = vor.u32 %v3921, %v3922
        %v3924 = vshll.u32 2102212464, %v3912
        %v3925 = vshrl.u32 920167782, %v3913
        %v3926 = vor.u32 %v3924, %v3925
        %v3927 = vshll.u32 920167782, %v3912
        %v3928 = vshrl.u32 1326507024, %v3913
        %v3929 = vor.u32 %v3927, %v3928
        %vm3930 = vcmp.lt.s32.totalorder %v3911, 1
        %vm3931 = vcmp.lt.s32.totalorder %v3911, 2
        %vm3932 = vcmp.lt.s32.totalorder %v3911, 3
        %vm3933 = vcmp.lt.s32.totalorder %v3911, 4
        %v3934 = vsel %vm3930, %v3914, %v3917
        %v3935 = vsel %vm3933, %v3923, 2102212464
        %v3936 = vsel %vm3932, %v3920, %v3935
        %v3937 = vsel %vm3931, %v3934, %v3936
        %v3938 = vsel %vm3930, %v3917, %v3920
        %v3939 = vsel %vm3933, %v3926, 920167782
        %v3940 = vsel %vm3932, %v3923, %v3939
        %v3941 = vsel %vm3931, %v3938, %v3940
        %v3942 = vsel %vm3930, %v3920, %v3923
        %v3943 = vsel %vm3933, %v3929, 1326507024
        %v3944 = vsel %vm3932, %v3926, %v3943
        %v3945 = vsel %vm3931, %v3942, %v3944
        %v3946 = vshll.u32 %v3906, 8
        %v3947 = vand.u32 %v3946, 65535
        %v3948 = vshrl.u32 %v3946, 16
        %v3949 = vand.u32 %v3945, 65535
        %v3950 = vshrl.u32 %v3945, 16
        %v3951 = vmul.u32 %v3947, %v3949
        %v3952 = vmul.u32 %v3947, %v3950
        %v3953 = vmul.u32 %v3948, %v3949
        %v3954 = vmul.u32 %v3948, %v3950
        %v3955 = vshll.u32 %v3952, 16
        %v3956 = vshrl.u32 %v3952, 16
        %v3957 = vshll.u32 %v3953, 16
        %v3958 = vshrl.u32 %v3953, 16
        %vm3959 = vc.u32 %v3951, %v3955
        %v3960 = vsel %vm3959, 1, 0
        %v3961 = vadd.s32 %v3951, %v3955
        %v3962 = vadd.s32 %v3954, %v3960
        %vm3963 = vc.u32 %v3961, %v3957
        %v3964 = vsel %vm3963, 1, 0
        %v3965 = vadd.s32 %v3961, %v3957
        %v3966 = vadd.s32 %v3962, %v3964
        %v3967 = vadd.s32 %v3966, %v3956
        %v3968 = vadd.s32 %v3967, %v3958
        %v3969 = vand.u32 %v3946, 65535
        %v3970 = vshrl.u32 %v3946, 16
        %v3971 = vand.u32 %v3941, 65535
        %v3972 = vshrl.u32 %v3941, 16
        %v3973 = vmul.u32 %v3969, %v3971
        %v3974 = vmul.u32 %v3969, %v3972
        %v3975 = vmul.u32 %v3970, %v3971
        %v3976 = vmul.u32 %v3970, %v3972
        %v3977 = vshll.u32 %v3974, 16
        %v3978 = vshrl.u32 %v3974, 16
        %v3979 = vshll.u32 %v3975, 16
        %v3980 = vshrl.u32 %v3975, 16
        %vm3981 = vc.u32 %v3973, %v3977
        %v3982 = vsel %vm3981, 1, 0
        %v3983 = vadd.s32 %v3973, %v3977
        %v3984 = vadd.s32 %v3976, %v3982
        %vm3985 = vc.u32 %v3983, %v3979
        %v3986 = vsel %vm3985, 1, 0
        %v3987 = vadd.s32 %v3983, %v3979
        %v3988 = vadd.s32 %v3984, %v3986
        %v3989 = vadd.s32 %v3988, %v3978
        %v3990 = vadd.s32 %v3989, %v3980
        %v3991 = vmul.u32 %v3946, %v3937
        %v3992 = vadd.s32 %v3968, %v3987
        %vm3993 = vc.u32 %v3968, %v3987
        %v3994 = vadd.s32 %v3990, 1
        %v3995 = vsel %vm3993, %v3994, %v3990
        %v3996 = vadd.s32 %v3991, %v3995
        %v3997 = vadd.s32 %v3996, 536870912
        %v3998 = vshrl.u32 %v3997, 30
        %v3999 = vshll.u32 %v3998, 30
        %v4000 = vsub.s32 %v3996, %v3999
        %vm4001 = vcmp.lt.s32.totalorder %v4000, 0
        %v4002 = vsub.s32 0, %v4000
        %v4003 = vsel %vm4001, %v4002, %v4000
        %v4004 = vclz %v4003
        %v4005 = vsub.s32 %v4004, 2
        %vm4006 = vcmp.gt.s32.totalorder 0, %v4005
        %v4007 = vsel %vm4006, 0, %v4005
        %v4008 = vsub.s32 32, %v4007
        %v4009 = vshll.u32 %v4000, %v4007
        %v4010 = vshrl.u32 %v3992, %v4008
        %v4011 = vor.u32 %v4009, %v4010
        %v4012 = vsub.s32 4294967266, %v4007
        %v4013 = vadd.s32 %v4012, 127
        %v4014 = vshll.u32 %v4013, 23
        %v4015 = vor.u32 4788187, %v4014
        %v4016 = vand.u32 2147483647, %v4015
        %v4018 = vcvt.s32.f32 %v4011
        %v4019 = vmul.f32 %v4018, %v4016
        %v4020 = vxor.u32 %v4019, 2147483648
        %v4021 = vsel %vm3900, %v4020, %v4019
        %v4022 = vsub.s32 4, %v3998
        %v4023 = vsel %vm3900, %v4022, %v3998
        %v4024 = vsel %vm3899, %v446, %v4021
        %v4025 = vsel %vm3899, 0, %v4023
        %v4026 = vmul.f32 %v4024, %v4024
        %v4027 = vmul.f32 %v4026, -0.001358992
        %v4028 = vadd.f32 %v4027, 0.041655596
        %v4029 = vmul.f32 %v4026, %v4028
        %v4030 = vadd.f32 %v4029, -0.4999988
        %v4031 = vmul.f32 %v4026, %v4030
        %v4032 = vadd.f32 1.0, %v4031
        %v4033 = vmul.f32 %v4024, %v4024
        %v4034 = vmul.f32 %v4033, -0.00019511016
        %v4035 = vadd.f32 %v4034, 0.008332121
        %v4036 = vmul.f32 %v4033, %v4035
        %v4037 = vadd.f32 %v4036, -0.16666654
        %v4038 = vmul.f32 %v4033, %v4037
        %v4039 = vadd.f32 %v4038, 1.0
        %v4040 = vmul.f32 %v4039, %v4024
        %vm4041 = vweird.f32 %v446
        %v4042 = vadd.s32 %v4025, 3
        %v4043 = vand.u32 %v4042, 3
        %vm4044 = vcmp.lt.s32.totalorder %v4043, 2
        %vm4045 = vcmp.eq.s32.totalorder %v4043, 0
        %v4046 = vxor.u32 %v4040, 2147483648
        %v4047 = vsel %vm4045, %v4032, %v4046
        %vm4048 = vcmp.eq.s32.totalorder %v4043, 2
        %v4049 = vxor.u32 %v4032, 2147483648
        %v4050 = vsel %vm4048, %v4049, %v4040
        %v4051 = vsel %vm4044, %v4047, %v4050
        %v4052 = vsel %vm4041, nan, %v4051
        %v4053 = vand.u32 2147483647, %v447
        %vm4054 = vcmp.le.f32.partialorder %v4053, 0.7853982
        %vm4055 = vcmp.lt.s32.totalorder %v447, 0
        %v4056 = vand.u32 %v447, 2139095040
        %v4057 = vshrl.u32 %v4056, 23
        %v4058 = vsub.s32 %v4057, 127
        %v4059 = vand.u32 2147483647, %v447
        %v4060 = vand.u32 %v4059, 8388607
        %v4061 = vor.u32 %v4060, 8388608
        %v4062 = vsub.s32 0, %v4061
        %v4063 = vadd.s32 %v4058, 1
        %vm4064 = vcmp.gt.s32.totalorder %v4063, 0
        %v4065 = vsel %vm4064, %v4063, 0
        %v4066 = vshrl.u32 %v4065, 5
        %v4067 = vand.u32 %v4065, 31
        %v4068 = vsub.s32 32, %v4067
        %v4069 = vshrl.u32 683565275, %v4068
        %v4070 = vshll.u32 683565275, %v4067
        %v4071 = vshrl.u32 2475754826, %v4068
        %v4072 = vor.u32 %v4070, %v4071
        %v4073 = vshll.u32 2475754826, %v4067
        %v4074 = vshrl.u32 2131351028, %v4068
        %v4075 = vor.u32 %v4073, %v4074
        %v4076 = vshll.u32 2131351028, %v4067
        %v4077 = vshrl.u32 2102212464, %v4068
        %v4078 = vor.u32 %v4076, %v4077
        %v4079 = vshll.u32 2102212464, %v4067
        %v4080 = vshrl.u32 920167782, %v4068
        %v4081 = vor.u32 %v4079, %v4080
        %v4082 = vshll.u32 920167782, %v4067
        %v4083 = vshrl.u32 1326507024, %v4068
        %v4084 = vor.u32 %v4082, %v4083
        %vm4085 = vcmp.lt.s32.totalorder %v4066, 1
        %vm4086 = vcmp.lt.s32.totalorder %v4066, 2
        %vm4087 = vcmp.lt.s32.totalorder %v4066, 3
        %vm4088 = vcmp.lt.s32.totalorder %v4066, 4
        %v4089 = vsel %vm4085, %v4069, %v4072
        %v4090 = vsel %vm4088, %v4078, 2102212464
        %v4091 = vsel %vm4087, %v4075, %v4090
        %v4092 = vsel %vm4086, %v4089, %v4091
        %v4093 = vsel %vm4085, %v4072, %v4075
        %v4094 = vsel %vm4088, %v4081, 920167782
        %v4095 = vsel %vm4087, %v4078, %v4094
        %v4096 = vsel %vm4086, %v4093, %v4095
        %v4097 = vsel %vm4085, %v4075, %v4078
        %v4098 = vsel %vm4088, %v4084, 1326507024
        %v4099 = vsel %vm4087, %v4081, %v4098
        %v4100 = vsel %vm4086, %v4097, %v4099
        %v4101 = vshll.u32 %v4061, 8
        %v4102 = vand.u32 %v4101, 65535
        %v4103 = vshrl.u32 %v4101, 16
        %v4104 = vand.u32 %v4100, 65535
        %v4105 = vshrl.u32 %v4100, 16
        %v4106 = vmul.u32 %v4102, %v4104
        %v4107 = vmul.u32 %v4102, %v4105
        %v4108 = vmul.u32 %v4103, %v4104
        %v4109 = vmul.u32 %v4103, %v4105
        %v4110 = vshll.u32 %v4107, 16
        %v4111 = vshrl.u32 %v4107, 16
        %v4112 = vshll.u32 %v4108, 16
        %v4113 = vshrl.u32 %v4108, 16
        %vm4114 = vc.u32 %v4106, %v4110
        %v4115 = vsel %vm4114, 1, 0
        %v4116 = vadd.s32 %v4106, %v4110
        %v4117 = vadd.s32 %v4109, %v4115
        %vm4118 = vc.u32 %v4116, %v4112
        %v4119 = vsel %vm4118, 1, 0
        %v4120 = vadd.s32 %v4116, %v4112
        %v4121 = vadd.s32 %v4117, %v4119
        %v4122 = vadd.s32 %v4121, %v4111
        %v4123 = vadd.s32 %v4122, %v4113
        %v4124 = vand.u32 %v4101, 65535
        %v4125 = vshrl.u32 %v4101, 16
        %v4126 = vand.u32 %v4096, 65535
        %v4127 = vshrl.u32 %v4096, 16
        %v4128 = vmul.u32 %v4124, %v4126
        %v4129 = vmul.u32 %v4124, %v4127
        %v4130 = vmul.u32 %v4125, %v4126
        %v4131 = vmul.u32 %v4125, %v4127
        %v4132 = vshll.u32 %v4129, 16
        %v4133 = vshrl.u32 %v4129, 16
        %v4134 = vshll.u32 %v4130, 16
        %v4135 = vshrl.u32 %v4130, 16
        %vm4136 = vc.u32 %v4128, %v4132
        %v4137 = vsel %vm4136, 1, 0
        %v4138 = vadd.s32 %v4128, %v4132
        %v4139 = vadd.s32 %v4131, %v4137
        %vm4140 = vc.u32 %v4138, %v4134
        %v4141 = vsel %vm4140, 1, 0
        %v4142 = vadd.s32 %v4138, %v4134
        %v4143 = vadd.s32 %v4139, %v4141
        %v4144 = vadd.s32 %v4143, %v4133
        %v4145 = vadd.s32 %v4144, %v4135
        %v4146 = vmul.u32 %v4101, %v4092
        %v4147 = vadd.s32 %v4123, %v4142
        %vm4148 = vc.u32 %v4123, %v4142
        %v4149 = vadd.s32 %v4145, 1
        %v4150 = vsel %vm4148, %v4149, %v4145
        %v4151 = vadd.s32 %v4146, %v4150
        %v4152 = vadd.s32 %v4151, 536870912
        %v4153 = vshrl.u32 %v4152, 30
        %v4154 = vshll.u32 %v4153, 30
        %v4155 = vsub.s32 %v4151, %v4154
        %vm4156 = vcmp.lt.s32.totalorder %v4155, 0
        %v4157 = vsub.s32 0, %v4155
        %v4158 = vsel %vm4156, %v4157, %v4155
        %v4159 = vclz %v4158
        %v4160 = vsub.s32 %v4159, 2
        %vm4161 = vcmp.gt.s32.totalorder 0, %v4160
        %v4162 = vsel %vm4161, 0, %v4160
        %v4163 = vsub.s32 32, %v4162
        %v4164 = vshll.u32 %v4155, %v4162
        %v4165 = vshrl.u32 %v4147, %v4163
        %v4166 = vor.u32 %v4164, %v4165
        %v4167 = vsub.s32 4294967266, %v4162
        %v4168 = vadd.s32 %v4167, 127
        %v4169 = vshll.u32 %v4168, 23
        %v4170 = vor.u32 4788187, %v4169
        %v4171 = vand.u32 2147483647, %v4170
        %v4173 = vcvt.s32.f32 %v4166
        %v4174 = vmul.f32 %v4173, %v4171
        %v4175 = vxor.u32 %v4174, 2147483648
        %v4176 = vsel %vm4055, %v4175, %v4174
        %v4177 = vsub.s32 4, %v4153
        %v4178 = vsel %vm4055, %v4177, %v4153
        %v4179 = vsel %vm4054, %v447, %v4176
        %v4180 = vsel %vm4054, 0, %v4178
        %v4181 = vmul.f32 %v4179, %v4179
        %v4182 = vmul.f32 %v4181, -0.001358992
        %v4183 = vadd.f32 %v4182, 0.041655596
        %v4184 = vmul.f32 %v4181, %v4183
        %v4185 = vadd.f32 %v4184, -0.4999988
        %v4186 = vmul.f32 %v4181, %v4185
        %v4187 = vadd.f32 1.0, %v4186
        %v4188 = vmul.f32 %v4179, %v4179
        %v4189 = vmul.f32 %v4188, -0.00019511016
        %v4190 = vadd.f32 %v4189, 0.008332121
        %v4191 = vmul.f32 %v4188, %v4190
        %v4192 = vadd.f32 %v4191, -0.16666654
        %v4193 = vmul.f32 %v4188, %v4192
        %v4194 = vadd.f32 %v4193, 1.0
        %v4195 = vmul.f32 %v4194, %v4179
        %vm4196 = vweird.f32 %v447
        %v4197 = vadd.s32 %v4180, 3
        %v4198 = vand.u32 %v4197, 3
        %vm4199 = vcmp.lt.s32.totalorder %v4198, 2
        %vm4200 = vcmp.eq.s32.totalorder %v4198, 0
        %v4201 = vxor.u32 %v4195, 2147483648
        %v4202 = vsel %vm4200, %v4187, %v4201
        %vm4203 = vcmp.eq.s32.totalorder %v4198, 2
        %v4204 = vxor.u32 %v4187, 2147483648
        %v4205 = vsel %vm4203, %v4204, %v4195
        %v4206 = vsel %vm4199, %v4202, %v4205
        %v4207 = vsel %vm4196, nan, %v4206
        %v4208 = vand.u32 2147483647, %v448
        %vm4209 = vcmp.le.f32.partialorder %v4208, 0.7853982
        %vm4210 = vcmp.lt.s32.totalorder %v448, 0
        %v4211 = vand.u32 %v448, 2139095040
        %v4212 = vshrl.u32 %v4211, 23
        %v4213 = vsub.s32 %v4212, 127
        %v4214 = vand.u32 2147483647, %v448
        %v4215 = vand.u32 %v4214, 8388607
        %v4216 = vor.u32 %v4215, 8388608
        %v4217 = vsub.s32 0, %v4216
        %v4218 = vadd.s32 %v4213, 1
        %vm4219 = vcmp.gt.s32.totalorder %v4218, 0
        %v4220 = vsel %vm4219, %v4218, 0
        %v4221 = vshrl.u32 %v4220, 5
        %v4222 = vand.u32 %v4220, 31
        %v4223 = vsub.s32 32, %v4222
        %v4224 = vshrl.u32 683565275, %v4223
        %v4225 = vshll.u32 683565275, %v4222
        %v4226 = vshrl.u32 2475754826, %v4223
        %v4227 = vor.u32 %v4225, %v4226
        %v4228 = vshll.u32 2475754826, %v4222
        %v4229 = vshrl.u32 2131351028, %v4223
        %v4230 = vor.u32 %v4228, %v4229
        %v4231 = vshll.u32 2131351028, %v4222
        %v4232 = vshrl.u32 2102212464, %v4223
        %v4233 = vor.u32 %v4231, %v4232
        %v4234 = vshll.u32 2102212464, %v4222
        %v4235 = vshrl.u32 920167782, %v4223
        %v4236 = vor.u32 %v4234, %v4235
        %v4237 = vshll.u32 920167782, %v4222
        %v4238 = vshrl.u32 1326507024, %v4223
        %v4239 = vor.u32 %v4237, %v4238
        %vm4240 = vcmp.lt.s32.totalorder %v4221, 1
        %vm4241 = vcmp.lt.s32.totalorder %v4221, 2
        %vm4242 = vcmp.lt.s32.totalorder %v4221, 3
        %vm4243 = vcmp.lt.s32.totalorder %v4221, 4
        %v4244 = vsel %vm4240, %v4224, %v4227
        %v4245 = vsel %vm4243, %v4233, 2102212464
        %v4246 = vsel %vm4242, %v4230, %v4245
        %v4247 = vsel %vm4241, %v4244, %v4246
        %v4248 = vsel %vm4240, %v4227, %v4230
        %v4249 = vsel %vm4243, %v4236, 920167782
        %v4250 = vsel %vm4242, %v4233, %v4249
        %v4251 = vsel %vm4241, %v4248, %v4250
        %v4252 = vsel %vm4240, %v4230, %v4233
        %v4253 = vsel %vm4243, %v4239, 1326507024
        %v4254 = vsel %vm4242, %v4236, %v4253
        %v4255 = vsel %vm4241, %v4252, %v4254
        %v4256 = vshll.u32 %v4216, 8
        %v4257 = vand.u32 %v4256, 65535
        %v4258 = vshrl.u32 %v4256, 16
        %v4259 = vand.u32 %v4255, 65535
        %v4260 = vshrl.u32 %v4255, 16
        %v4261 = vmul.u32 %v4257, %v4259
        %v4262 = vmul.u32 %v4257, %v4260
        %v4263 = vmul.u32 %v4258, %v4259
        %v4264 = vmul.u32 %v4258, %v4260
        %v4265 = vshll.u32 %v4262, 16
        %v4266 = vshrl.u32 %v4262, 16
        %v4267 = vshll.u32 %v4263, 16
        %v4268 = vshrl.u32 %v4263, 16
        %vm4269 = vc.u32 %v4261, %v4265
        %v4270 = vsel %vm4269, 1, 0
        %v4271 = vadd.s32 %v4261, %v4265
        %v4272 = vadd.s32 %v4264, %v4270
        %vm4273 = vc.u32 %v4271, %v4267
        %v4274 = vsel %vm4273, 1, 0
        %v4275 = vadd.s32 %v4271, %v4267
        %v4276 = vadd.s32 %v4272, %v4274
        %v4277 = vadd.s32 %v4276, %v4266
        %v4278 = vadd.s32 %v4277, %v4268
        %v4279 = vand.u32 %v4256, 65535
        %v4280 = vshrl.u32 %v4256, 16
        %v4281 = vand.u32 %v4251, 65535
        %v4282 = vshrl.u32 %v4251, 16
        %v4283 = vmul.u32 %v4279, %v4281
        %v4284 = vmul.u32 %v4279, %v4282
        %v4285 = vmul.u32 %v4280, %v4281
        %v4286 = vmul.u32 %v4280, %v4282
        %v4287 = vshll.u32 %v4284, 16
        %v4288 = vshrl.u32 %v4284, 16
        %v4289 = vshll.u32 %v4285, 16
        %v4290 = vshrl.u32 %v4285, 16
        %vm4291 = vc.u32 %v4283, %v4287
        %v4292 = vsel %vm4291, 1, 0
        %v4293 = vadd.s32 %v4283, %v4287
        %v4294 = vadd.s32 %v4286, %v4292
        %vm4295 = vc.u32 %v4293, %v4289
        %v4296 = vsel %vm4295, 1, 0
        %v4297 = vadd.s32 %v4293, %v4289
        %v4298 = vadd.s32 %v4294, %v4296
        %v4299 = vadd.s32 %v4298, %v4288
        %v4300 = vadd.s32 %v4299, %v4290
        %v4301 = vmul.u32 %v4256, %v4247
        %v4302 = vadd.s32 %v4278, %v4297
        %vm4303 = vc.u32 %v4278, %v4297
        %v4304 = vadd.s32 %v4300, 1
        %v4305 = vsel %vm4303, %v4304, %v4300
        %v4306 = vadd.s32 %v4301, %v4305
        %v4307 = vadd.s32 %v4306, 536870912
        %v4308 = vshrl.u32 %v4307, 30
        %v4309 = vshll.u32 %v4308, 30
        %v4310 = vsub.s32 %v4306, %v4309
        %vm4311 = vcmp.lt.s32.totalorder %v4310, 0
        %v4312 = vsub.s32 0, %v4310
        %v4313 = vsel %vm4311, %v4312, %v4310
        %v4314 = vclz %v4313
        %v4315 = vsub.s32 %v4314, 2
        %vm4316 = vcmp.gt.s32.totalorder 0, %v4315
        %v4317 = vsel %vm4316, 0, %v4315
        %v4318 = vsub.s32 32, %v4317
        %v4319 = vshll.u32 %v4310, %v4317
        %v4320 = vshrl.u32 %v4302, %v4318
        %v4321 = vor.u32 %v4319, %v4320
        %v4322 = vsub.s32 4294967266, %v4317
        %v4323 = vadd.s32 %v4322, 127
        %v4324 = vshll.u32 %v4323, 23
        %v4325 = vor.u32 4788187, %v4324
        %v4326 = vand.u32 2147483647, %v4325
        %v4328 = vcvt.s32.f32 %v4321
        %v4329 = vmul.f32 %v4328, %v4326
        %v4330 = vxor.u32 %v4329, 2147483648
        %v4331 = vsel %vm4210, %v4330, %v4329
        %v4332 = vsub.s32 4, %v4308
        %v4333 = vsel %vm4210, %v4332, %v4308
        %v4334 = vsel %vm4209, %v448, %v4331
        %v4335 = vsel %vm4209, 0, %v4333
        %v4336 = vmul.f32 %v4334, %v4334
        %v4337 = vmul.f32 %v4336, -0.001358992
        %v4338 = vadd.f32 %v4337, 0.041655596
        %v4339 = vmul.f32 %v4336, %v4338
        %v4340 = vadd.f32 %v4339, -0.4999988
        %v4341 = vmul.f32 %v4336, %v4340
        %v4342 = vadd.f32 1.0, %v4341
        %v4343 = vmul.f32 %v4334, %v4334
        %v4344 = vmul.f32 %v4343, -0.00019511016
        %v4345 = vadd.f32 %v4344, 0.008332121
        %v4346 = vmul.f32 %v4343, %v4345
        %v4347 = vadd.f32 %v4346, -0.16666654
        %v4348 = vmul.f32 %v4343, %v4347
        %v4349 = vadd.f32 %v4348, 1.0
        %v4350 = vmul.f32 %v4349, %v4334
        %vm4351 = vweird.f32 %v448
        %v4352 = vadd.s32 %v4335, 3
        %v4353 = vand.u32 %v4352, 3
        %vm4354 = vcmp.lt.s32.totalorder %v4353, 2
        %vm4355 = vcmp.eq.s32.totalorder %v4353, 0
        %v4356 = vxor.u32 %v4350, 2147483648
        %v4357 = vsel %vm4355, %v4342, %v4356
        %vm4358 = vcmp.eq.s32.totalorder %v4353, 2
        %v4359 = vxor.u32 %v4342, 2147483648
        %v4360 = vsel %vm4358, %v4359, %v4350
        %v4361 = vsel %vm4354, %v4357, %v4360
        %v4362 = vsel %vm4351, nan, %v4361
        %v4363 = vand.u32 2147483647, %v449
        %vm4364 = vcmp.le.f32.partialorder %v4363, 0.7853982
        %vm4365 = vcmp.lt.s32.totalorder %v449, 0
        %v4366 = vand.u32 %v449, 2139095040
        %v4367 = vshrl.u32 %v4366, 23
        %v4368 = vsub.s32 %v4367, 127
        %v4369 = vand.u32 2147483647, %v449
        %v4370 = vand.u32 %v4369, 8388607
        %v4371 = vor.u32 %v4370, 8388608
        %v4372 = vsub.s32 0, %v4371
        %v4373 = vadd.s32 %v4368, 1
        %vm4374 = vcmp.gt.s32.totalorder %v4373, 0
        %v4375 = vsel %vm4374, %v4373, 0
        %v4376 = vshrl.u32 %v4375, 5
        %v4377 = vand.u32 %v4375, 31
        %v4378 = vsub.s32 32, %v4377
        %v4379 = vshrl.u32 683565275, %v4378
        %v4380 = vshll.u32 683565275, %v4377
        %v4381 = vshrl.u32 2475754826, %v4378
        %v4382 = vor.u32 %v4380, %v4381
        %v4383 = vshll.u32 2475754826, %v4377
        %v4384 = vshrl.u32 2131351028, %v4378
        %v4385 = vor.u32 %v4383, %v4384
        %v4386 = vshll.u32 2131351028, %v4377
        %v4387 = vshrl.u32 2102212464, %v4378
        %v4388 = vor.u32 %v4386, %v4387
        %v4389 = vshll.u32 2102212464, %v4377
        %v4390 = vshrl.u32 920167782, %v4378
        %v4391 = vor.u32 %v4389, %v4390
        %v4392 = vshll.u32 920167782, %v4377
        %v4393 = vshrl.u32 1326507024, %v4378
        %v4394 = vor.u32 %v4392, %v4393
        %vm4395 = vcmp.lt.s32.totalorder %v4376, 1
        %vm4396 = vcmp.lt.s32.totalorder %v4376, 2
        %vm4397 = vcmp.lt.s32.totalorder %v4376, 3
        %vm4398 = vcmp.lt.s32.totalorder %v4376, 4
        %v4399 = vsel %vm4395, %v4379, %v4382
        %v4400 = vsel %vm4398, %v4388, 2102212464
        %v4401 = vsel %vm4397, %v4385, %v4400
        %v4402 = vsel %vm4396, %v4399, %v4401
        %v4403 = vsel %vm4395, %v4382, %v4385
        %v4404 = vsel %vm4398, %v4391, 920167782
        %v4405 = vsel %vm4397, %v4388, %v4404
        %v4406 = vsel %vm4396, %v4403, %v4405
        %v4407 = vsel %vm4395, %v4385, %v4388
        %v4408 = vsel %vm4398, %v4394, 1326507024
        %v4409 = vsel %vm4397, %v4391, %v4408
        %v4410 = vsel %vm4396, %v4407, %v4409
        %v4411 = vshll.u32 %v4371, 8
        %v4412 = vand.u32 %v4411, 65535
        %v4413 = vshrl.u32 %v4411, 16
        %v4414 = vand.u32 %v4410, 65535
        %v4415 = vshrl.u32 %v4410, 16
        %v4416 = vmul.u32 %v4412, %v4414
        %v4417 = vmul.u32 %v4412, %v4415
        %v4418 = vmul.u32 %v4413, %v4414
        %v4419 = vmul.u32 %v4413, %v4415
        %v4420 = vshll.u32 %v4417, 16
        %v4421 = vshrl.u32 %v4417, 16
        %v4422 = vshll.u32 %v4418, 16
        %v4423 = vshrl.u32 %v4418, 16
        %vm4424 = vc.u32 %v4416, %v4420
        %v4425 = vsel %vm4424, 1, 0
        %v4426 = vadd.s32 %v4416, %v4420
        %v4427 = vadd.s32 %v4419, %v4425
        %vm4428 = vc.u32 %v4426, %v4422
        %v4429 = vsel %vm4428, 1, 0
        %v4430 = vadd.s32 %v4426, %v4422
        %v4431 = vadd.s32 %v4427, %v4429
        %v4432 = vadd.s32 %v4431, %v4421
        %v4433 = vadd.s32 %v4432, %v4423
        %v4434 = vand.u32 %v4411, 65535
        %v4435 = vshrl.u32 %v4411, 16
        %v4436 = vand.u32 %v4406, 65535
        %v4437 = vshrl.u32 %v4406, 16
        %v4438 = vmul.u32 %v4434, %v4436
        %v4439 = vmul.u32 %v4434, %v4437
        %v4440 = vmul.u32 %v4435, %v4436
        %v4441 = vmul.u32 %v4435, %v4437
        %v4442 = vshll.u32 %v4439, 16
        %v4443 = vshrl.u32 %v4439, 16
        %v4444 = vshll.u32 %v4440, 16
        %v4445 = vshrl.u32 %v4440, 16
        %vm4446 = vc.u32 %v4438, %v4442
        %v4447 = vsel %vm4446, 1, 0
        %v4448 = vadd.s32 %v4438, %v4442
        %v4449 = vadd.s32 %v4441, %v4447
        %vm4450 = vc.u32 %v4448, %v4444
        %v4451 = vsel %vm4450, 1, 0
        %v4452 = vadd.s32 %v4448, %v4444
        %v4453 = vadd.s32 %v4449, %v4451
        %v4454 = vadd.s32 %v4453, %v4443
        %v4455 = vadd.s32 %v4454, %v4445
        %v4456 = vmul.u32 %v4411, %v4402
        %v4457 = vadd.s32 %v4433, %v4452
        %vm4458 = vc.u32 %v4433, %v4452
        %v4459 = vadd.s32 %v4455, 1
        %v4460 = vsel %vm4458, %v4459, %v4455
        %v4461 = vadd.s32 %v4456, %v4460
        %v4462 = vadd.s32 %v4461, 536870912
        %v4463 = vshrl.u32 %v4462, 30
        %v4464 = vshll.u32 %v4463, 30
        %v4465 = vsub.s32 %v4461, %v4464
        %vm4466 = vcmp.lt.s32.totalorder %v4465, 0
        %v4467 = vsub.s32 0, %v4465
        %v4468 = vsel %vm4466, %v4467, %v4465
        %v4469 = vclz %v4468
        %v4470 = vsub.s32 %v4469, 2
        %vm4471 = vcmp.gt.s32.totalorder 0, %v4470
        %v4472 = vsel %vm4471, 0, %v4470
        %v4473 = vsub.s32 32, %v4472
        %v4474 = vshll.u32 %v4465, %v4472
        %v4475 = vshrl.u32 %v4457, %v4473
        %v4476 = vor.u32 %v4474, %v4475
        %v4477 = vsub.s32 4294967266, %v4472
        %v4478 = vadd.s32 %v4477, 127
        %v4479 = vshll.u32 %v4478, 23
        %v4480 = vor.u32 4788187, %v4479
        %v4481 = vand.u32 2147483647, %v4480
        %v4483 = vcvt.s32.f32 %v4476
        %v4484 = vmul.f32 %v4483, %v4481
        %v4485 = vxor.u32 %v4484, 2147483648
        %v4486 = vsel %vm4365, %v4485, %v4484
        %v4487 = vsub.s32 4, %v4463
        %v4488 = vsel %vm4365, %v4487, %v4463
        %v4489 = vsel %vm4364, %v449, %v4486
        %v4490 = vsel %vm4364, 0, %v4488
        %v4491 = vmul.f32 %v4489, %v4489
        %v4492 = vmul.f32 %v4491, -0.001358992
        %v4493 = vadd.f32 %v4492, 0.041655596
        %v4494 = vmul.f32 %v4491, %v4493
        %v4495 = vadd.f32 %v4494, -0.4999988
        %v4496 = vmul.f32 %v4491, %v4495
        %v4497 = vadd.f32 1.0, %v4496
        %v4498 = vmul.f32 %v4489, %v4489
        %v4499 = vmul.f32 %v4498, -0.00019511016
        %v4500 = vadd.f32 %v4499, 0.008332121
        %v4501 = vmul.f32 %v4498, %v4500
        %v4502 = vadd.f32 %v4501, -0.16666654
        %v4503 = vmul.f32 %v4498, %v4502
        %v4504 = vadd.f32 %v4503, 1.0
        %v4505 = vmul.f32 %v4504, %v4489
        %vm4506 = vweird.f32 %v449
        %v4507 = vadd.s32 %v4490, 3
        %v4508 = vand.u32 %v4507, 3
        %vm4509 = vcmp.lt.s32.totalorder %v4508, 2
        %vm4510 = vcmp.eq.s32.totalorder %v4508, 0
        %v4511 = vxor.u32 %v4505, 2147483648
        %v4512 = vsel %vm4510, %v4497, %v4511
        %vm4513 = vcmp.eq.s32.totalorder %v4508, 2
        %v4514 = vxor.u32 %v4497, 2147483648
        %v4515 = vsel %vm4513, %v4514, %v4505
        %v4516 = vsel %vm4509, %v4512, %v4515
        %v4517 = vsel %vm4506, nan, %v4516
        %v4518 = vand.u32 2147483647, %v450
        %vm4519 = vcmp.le.f32.partialorder %v4518, 0.7853982
        %vm4520 = vcmp.lt.s32.totalorder %v450, 0
        %v4521 = vand.u32 %v450, 2139095040
        %v4522 = vshrl.u32 %v4521, 23
        %v4523 = vsub.s32 %v4522, 127
        %v4524 = vand.u32 2147483647, %v450
        %v4525 = vand.u32 %v4524, 8388607
        %v4526 = vor.u32 %v4525, 8388608
        %v4527 = vsub.s32 0, %v4526
        %v4528 = vadd.s32 %v4523, 1
        %vm4529 = vcmp.gt.s32.totalorder %v4528, 0
        %v4530 = vsel %vm4529, %v4528, 0
        %v4531 = vshrl.u32 %v4530, 5
        %v4532 = vand.u32 %v4530, 31
        %v4533 = vsub.s32 32, %v4532
        %v4534 = vshrl.u32 683565275, %v4533
        %v4535 = vshll.u32 683565275, %v4532
        %v4536 = vshrl.u32 2475754826, %v4533
        %v4537 = vor.u32 %v4535, %v4536
        %v4538 = vshll.u32 2475754826, %v4532
        %v4539 = vshrl.u32 2131351028, %v4533
        %v4540 = vor.u32 %v4538, %v4539
        %v4541 = vshll.u32 2131351028, %v4532
        %v4542 = vshrl.u32 2102212464, %v4533
        %v4543 = vor.u32 %v4541, %v4542
        %v4544 = vshll.u32 2102212464, %v4532
        %v4545 = vshrl.u32 920167782, %v4533
        %v4546 = vor.u32 %v4544, %v4545
        %v4547 = vshll.u32 920167782, %v4532
        %v4548 = vshrl.u32 1326507024, %v4533
        %v4549 = vor.u32 %v4547, %v4548
        %vm4550 = vcmp.lt.s32.totalorder %v4531, 1
        %vm4551 = vcmp.lt.s32.totalorder %v4531, 2
        %vm4552 = vcmp.lt.s32.totalorder %v4531, 3
        %vm4553 = vcmp.lt.s32.totalorder %v4531, 4
        %v4554 = vsel %vm4550, %v4534, %v4537
        %v4555 = vsel %vm4553, %v4543, 2102212464
        %v4556 = vsel %vm4552, %v4540, %v4555
        %v4557 = vsel %vm4551, %v4554, %v4556
        %v4558 = vsel %vm4550, %v4537, %v4540
        %v4559 = vsel %vm4553, %v4546, 920167782
        %v4560 = vsel %vm4552, %v4543, %v4559
        %v4561 = vsel %vm4551, %v4558, %v4560
        %v4562 = vsel %vm4550, %v4540, %v4543
        %v4563 = vsel %vm4553, %v4549, 1326507024
        %v4564 = vsel %vm4552, %v4546, %v4563
        %v4565 = vsel %vm4551, %v4562, %v4564
        %v4566 = vshll.u32 %v4526, 8
        %v4567 = vand.u32 %v4566, 65535
        %v4568 = vshrl.u32 %v4566, 16
        %v4569 = vand.u32 %v4565, 65535
        %v4570 = vshrl.u32 %v4565, 16
        %v4571 = vmul.u32 %v4567, %v4569
        %v4572 = vmul.u32 %v4567, %v4570
        %v4573 = vmul.u32 %v4568, %v4569
        %v4574 = vmul.u32 %v4568, %v4570
        %v4575 = vshll.u32 %v4572, 16
        %v4576 = vshrl.u32 %v4572, 16
        %v4577 = vshll.u32 %v4573, 16
        %v4578 = vshrl.u32 %v4573, 16
        %vm4579 = vc.u32 %v4571, %v4575
        %v4580 = vsel %vm4579, 1, 0
        %v4581 = vadd.s32 %v4571, %v4575
        %v4582 = vadd.s32 %v4574, %v4580
        %vm4583 = vc.u32 %v4581, %v4577
        %v4584 = vsel %vm4583, 1, 0
        %v4585 = vadd.s32 %v4581, %v4577
        %v4586 = vadd.s32 %v4582, %v4584
        %v4587 = vadd.s32 %v4586, %v4576
        %v4588 = vadd.s32 %v4587, %v4578
        %v4589 = vand.u32 %v4566, 65535
        %v4590 = vshrl.u32 %v4566, 16
        %v4591 = vand.u32 %v4561, 65535
        %v4592 = vshrl.u32 %v4561, 16
        %v4593 = vmul.u32 %v4589, %v4591
        %v4594 = vmul.u32 %v4589, %v4592
        %v4595 = vmul.u32 %v4590, %v4591
        %v4596 = vmul.u32 %v4590, %v4592
        %v4597 = vshll.u32 %v4594, 16
        %v4598 = vshrl.u32 %v4594, 16
        %v4599 = vshll.u32 %v4595, 16
        %v4600 = vshrl.u32 %v4595, 16
        %vm4601 = vc.u32 %v4593, %v4597
        %v4602 = vsel %vm4601, 1, 0
        %v4603 = vadd.s32 %v4593, %v4597
        %v4604 = vadd.s32 %v4596, %v4602
        %vm4605 = vc.u32 %v4603, %v4599
        %v4606 = vsel %vm4605, 1, 0
        %v4607 = vadd.s32 %v4603, %v4599
        %v4608 = vadd.s32 %v4604, %v4606
        %v4609 = vadd.s32 %v4608, %v4598
        %v4610 = vadd.s32 %v4609, %v4600
        %v4611 = vmul.u32 %v4566, %v4557
        %v4612 = vadd.s32 %v4588, %v4607
        %vm4613 = vc.u32 %v4588, %v4607
        %v4614 = vadd.s32 %v4610, 1
        %v4615 = vsel %vm4613, %v4614, %v4610
        %v4616 = vadd.s32 %v4611, %v4615
        %v4617 = vadd.s32 %v4616, 536870912
        %v4618 = vshrl.u32 %v4617, 30
        %v4619 = vshll.u32 %v4618, 30
        %v4620 = vsub.s32 %v4616, %v4619
        %vm4621 = vcmp.lt.s32.totalorder %v4620, 0
        %v4622 = vsub.s32 0, %v4620
        %v4623 = vsel %vm4621, %v4622, %v4620
        %v4624 = vclz %v4623
        %v4625 = vsub.s32 %v4624, 2
        %vm4626 = vcmp.gt.s32.totalorder 0, %v4625
        %v4627 = vsel %vm4626, 0, %v4625
        %v4628 = vsub.s32 32, %v4627
        %v4629 = vshll.u32 %v4620, %v4627
        %v4630 = vshrl.u32 %v4612, %v4628
        %v4631 = vor.u32 %v4629, %v4630
        %v4632 = vsub.s32 4294967266, %v4627
        %v4633 = vadd.s32 %v4632, 127
        %v4634 = vshll.u32 %v4633, 23
        %v4635 = vor.u32 4788187, %v4634
        %v4636 = vand.u32 2147483647, %v4635
        %v4638 = vcvt.s32.f32 %v4631
        %v4639 = vmul.f32 %v4638, %v4636
        %v4640 = vxor.u32 %v4639, 2147483648
        %v4641 = vsel %vm4520, %v4640, %v4639
        %v4642 = vsub.s32 4, %v4618
        %v4643 = vsel %vm4520, %v4642, %v4618
        %v4644 = vsel %vm4519, %v450, %v4641
        %v4645 = vsel %vm4519, 0, %v4643
        %v4646 = vmul.f32 %v4644, %v4644
        %v4647 = vmul.f32 %v4646, -0.001358992
        %v4648 = vadd.f32 %v4647, 0.041655596
        %v4649 = vmul.f32 %v4646, %v4648
        %v4650 = vadd.f32 %v4649, -0.4999988
        %v4651 = vmul.f32 %v4646, %v4650
        %v4652 = vadd.f32 1.0, %v4651
        %v4653 = vmul.f32 %v4644, %v4644
        %v4654 = vmul.f32 %v4653, -0.00019511016
        %v4655 = vadd.f32 %v4654, 0.008332121
        %v4656 = vmul.f32 %v4653, %v4655
        %v4657 = vadd.f32 %v4656, -0.16666654
        %v4658 = vmul.f32 %v4653, %v4657
        %v4659 = vadd.f32 %v4658, 1.0
        %v4660 = vmul.f32 %v4659, %v4644
        %vm4661 = vweird.f32 %v450
        %v4662 = vadd.s32 %v4645, 3
        %v4663 = vand.u32 %v4662, 3
        %vm4664 = vcmp.lt.s32.totalorder %v4663, 2
        %vm4665 = vcmp.eq.s32.totalorder %v4663, 0
        %v4666 = vxor.u32 %v4660, 2147483648
        %v4667 = vsel %vm4665, %v4652, %v4666
        %vm4668 = vcmp.eq.s32.totalorder %v4663, 2
        %v4669 = vxor.u32 %v4652, 2147483648
        %v4670 = vsel %vm4668, %v4669, %v4660
        %v4671 = vsel %vm4664, %v4667, %v4670
        %v4672 = vsel %vm4661, nan, %v4671
        %v4673 = vand.u32 2147483647, %v451
        %vm4674 = vcmp.le.f32.partialorder %v4673, 0.7853982
        %vm4675 = vcmp.lt.s32.totalorder %v451, 0
        %v4676 = vand.u32 %v451, 2139095040
        %v4677 = vshrl.u32 %v4676, 23
        %v4678 = vsub.s32 %v4677, 127
        %v4679 = vand.u32 2147483647, %v451
        %v4680 = vand.u32 %v4679, 8388607
        %v4681 = vor.u32 %v4680, 8388608
        %v4682 = vsub.s32 0, %v4681
        %v4683 = vadd.s32 %v4678, 1
        %vm4684 = vcmp.gt.s32.totalorder %v4683, 0
        %v4685 = vsel %vm4684, %v4683, 0
        %v4686 = vshrl.u32 %v4685, 5
        %v4687 = vand.u32 %v4685, 31
        %v4688 = vsub.s32 32, %v4687
        %v4689 = vshrl.u32 683565275, %v4688
        %v4690 = vshll.u32 683565275, %v4687
        %v4691 = vshrl.u32 2475754826, %v4688
        %v4692 = vor.u32 %v4690, %v4691
        %v4693 = vshll.u32 2475754826, %v4687
        %v4694 = vshrl.u32 2131351028, %v4688
        %v4695 = vor.u32 %v4693, %v4694
        %v4696 = vshll.u32 2131351028, %v4687
        %v4697 = vshrl.u32 2102212464, %v4688
        %v4698 = vor.u32 %v4696, %v4697
        %v4699 = vshll.u32 2102212464, %v4687
        %v4700 = vshrl.u32 920167782, %v4688
        %v4701 = vor.u32 %v4699, %v4700
        %v4702 = vshll.u32 920167782, %v4687
        %v4703 = vshrl.u32 1326507024, %v4688
        %v4704 = vor.u32 %v4702, %v4703
        %vm4705 = vcmp.lt.s32.totalorder %v4686, 1
        %vm4706 = vcmp.lt.s32.totalorder %v4686, 2
        %vm4707 = vcmp.lt.s32.totalorder %v4686, 3
        %vm4708 = vcmp.lt.s32.totalorder %v4686, 4
        %v4709 = vsel %vm4705, %v4689, %v4692
        %v4710 = vsel %vm4708, %v4698, 2102212464
        %v4711 = vsel %vm4707, %v4695, %v4710
        %v4712 = vsel %vm4706, %v4709, %v4711
        %v4713 = vsel %vm4705, %v4692, %v4695
        %v4714 = vsel %vm4708, %v4701, 920167782
        %v4715 = vsel %vm4707, %v4698, %v4714
        %v4716 = vsel %vm4706, %v4713, %v4715
        %v4717 = vsel %vm4705, %v4695, %v4698
        %v4718 = vsel %vm4708, %v4704, 1326507024
        %v4719 = vsel %vm4707, %v4701, %v4718
        %v4720 = vsel %vm4706, %v4717, %v4719
        %v4721 = vshll.u32 %v4681, 8
        %v4722 = vand.u32 %v4721, 65535
        %v4723 = vshrl.u32 %v4721, 16
        %v4724 = vand.u32 %v4720, 65535
        %v4725 = vshrl.u32 %v4720, 16
        %v4726 = vmul.u32 %v4722, %v4724
        %v4727 = vmul.u32 %v4722, %v4725
        %v4728 = vmul.u32 %v4723, %v4724
        %v4729 = vmul.u32 %v4723, %v4725
        %v4730 = vshll.u32 %v4727, 16
        %v4731 = vshrl.u32 %v4727, 16
        %v4732 = vshll.u32 %v4728, 16
        %v4733 = vshrl.u32 %v4728, 16
        %vm4734 = vc.u32 %v4726, %v4730
        %v4735 = vsel %vm4734, 1, 0
        %v4736 = vadd.s32 %v4726, %v4730
        %v4737 = vadd.s32 %v4729, %v4735
        %vm4738 = vc.u32 %v4736, %v4732
        %v4739 = vsel %vm4738, 1, 0
        %v4740 = vadd.s32 %v4736, %v4732
        %v4741 = vadd.s32 %v4737, %v4739
        %v4742 = vadd.s32 %v4741, %v4731
        %v4743 = vadd.s32 %v4742, %v4733
        %v4744 = vand.u32 %v4721, 65535
        %v4745 = vshrl.u32 %v4721, 16
        %v4746 = vand.u32 %v4716, 65535
        %v4747 = vshrl.u32 %v4716, 16
        %v4748 = vmul.u32 %v4744, %v4746
        %v4749 = vmul.u32 %v4744, %v4747
        %v4750 = vmul.u32 %v4745, %v4746
        %v4751 = vmul.u32 %v4745, %v4747
        %v4752 = vshll.u32 %v4749, 16
        %v4753 = vshrl.u32 %v4749, 16
        %v4754 = vshll.u32 %v4750, 16
        %v4755 = vshrl.u32 %v4750, 16
        %vm4756 = vc.u32 %v4748, %v4752
        %v4757 = vsel %vm4756, 1, 0
        %v4758 = vadd.s32 %v4748, %v4752
        %v4759 = vadd.s32 %v4751, %v4757
        %vm4760 = vc.u32 %v4758, %v4754
        %v4761 = vsel %vm4760, 1, 0
        %v4762 = vadd.s32 %v4758, %v4754
        %v4763 = vadd.s32 %v4759, %v4761
        %v4764 = vadd.s32 %v4763, %v4753
        %v4765 = vadd.s32 %v4764, %v4755
        %v4766 = vmul.u32 %v4721, %v4712
        %v4767 = vadd.s32 %v4743, %v4762
        %vm4768 = vc.u32 %v4743, %v4762
        %v4769 = vadd.s32 %v4765, 1
        %v4770 = vsel %vm4768, %v4769, %v4765
        %v4771 = vadd.s32 %v4766, %v4770
        %v4772 = vadd.s32 %v4771, 536870912
        %v4773 = vshrl.u32 %v4772, 30
        %v4774 = vshll.u32 %v4773, 30
        %v4775 = vsub.s32 %v4771, %v4774
        %vm4776 = vcmp.lt.s32.totalorder %v4775, 0
        %v4777 = vsub.s32 0, %v4775
        %v4778 = vsel %vm4776, %v4777, %v4775
        %v4779 = vclz %v4778
        %v4780 = vsub.s32 %v4779, 2
        %vm4781 = vcmp.gt.s32.totalorder 0, %v4780
        %v4782 = vsel %vm4781, 0, %v4780
        %v4783 = vsub.s32 32, %v4782
        %v4784 = vshll.u32 %v4775, %v4782
        %v4785 = vshrl.u32 %v4767, %v4783
        %v4786 = vor.u32 %v4784, %v4785
        %v4787 = vsub.s32 4294967266, %v4782
        %v4788 = vadd.s32 %v4787, 127
        %v4789 = vshll.u32 %v4788, 23
        %v4790 = vor.u32 4788187, %v4789
        %v4791 = vand.u32 2147483647, %v4790
        %v4793 = vcvt.s32.f32 %v4786
        %v4794 = vmul.f32 %v4793, %v4791
        %v4795 = vxor.u32 %v4794, 2147483648
        %v4796 = vsel %vm4675, %v4795, %v4794
        %v4797 = vsub.s32 4, %v4773
        %v4798 = vsel %vm4675, %v4797, %v4773
        %v4799 = vsel %vm4674, %v451, %v4796
        %v4800 = vsel %vm4674, 0, %v4798
        %v4801 = vmul.f32 %v4799, %v4799
        %v4802 = vmul.f32 %v4801, -0.001358992
        %v4803 = vadd.f32 %v4802, 0.041655596
        %v4804 = vmul.f32 %v4801, %v4803
        %v4805 = vadd.f32 %v4804, -0.4999988
        %v4806 = vmul.f32 %v4801, %v4805
        %v4807 = vadd.f32 1.0, %v4806
        %v4808 = vmul.f32 %v4799, %v4799
        %v4809 = vmul.f32 %v4808, -0.00019511016
        %v4810 = vadd.f32 %v4809, 0.008332121
        %v4811 = vmul.f32 %v4808, %v4810
        %v4812 = vadd.f32 %v4811, -0.16666654
        %v4813 = vmul.f32 %v4808, %v4812
        %v4814 = vadd.f32 %v4813, 1.0
        %v4815 = vmul.f32 %v4814, %v4799
        %vm4816 = vweird.f32 %v451
        %v4817 = vadd.s32 %v4800, 3
        %v4818 = vand.u32 %v4817, 3
        %vm4819 = vcmp.lt.s32.totalorder %v4818, 2
        %vm4820 = vcmp.eq.s32.totalorder %v4818, 0
        %v4821 = vxor.u32 %v4815, 2147483648
        %v4822 = vsel %vm4820, %v4807, %v4821
        %vm4823 = vcmp.eq.s32.totalorder %v4818, 2
        %v4824 = vxor.u32 %v4807, 2147483648
        %v4825 = vsel %vm4823, %v4824, %v4815
        %v4826 = vsel %vm4819, %v4822, %v4825
        %v4827 = vsel %vm4816, nan, %v4826
        %v4828 = vand.u32 2147483647, %v452
        %vm4829 = vcmp.le.f32.partialorder %v4828, 0.7853982
        %vm4830 = vcmp.lt.s32.totalorder %v452, 0
        %v4831 = vand.u32 %v452, 2139095040
        %v4832 = vshrl.u32 %v4831, 23
        %v4833 = vsub.s32 %v4832, 127
        %v4834 = vand.u32 2147483647, %v452
        %v4835 = vand.u32 %v4834, 8388607
        %v4836 = vor.u32 %v4835, 8388608
        %v4837 = vsub.s32 0, %v4836
        %v4838 = vadd.s32 %v4833, 1
        %vm4839 = vcmp.gt.s32.totalorder %v4838, 0
        %v4840 = vsel %vm4839, %v4838, 0
        %v4841 = vshrl.u32 %v4840, 5
        %v4842 = vand.u32 %v4840, 31
        %v4843 = vsub.s32 32, %v4842
        %v4844 = vshrl.u32 683565275, %v4843
        %v4845 = vshll.u32 683565275, %v4842
        %v4846 = vshrl.u32 2475754826, %v4843
        %v4847 = vor.u32 %v4845, %v4846
        %v4848 = vshll.u32 2475754826, %v4842
        %v4849 = vshrl.u32 2131351028, %v4843
        %v4850 = vor.u32 %v4848, %v4849
        %v4851 = vshll.u32 2131351028, %v4842
        %v4852 = vshrl.u32 2102212464, %v4843
        %v4853 = vor.u32 %v4851, %v4852
        %v4854 = vshll.u32 2102212464, %v4842
        %v4855 = vshrl.u32 920167782, %v4843
        %v4856 = vor.u32 %v4854, %v4855
        %v4857 = vshll.u32 920167782, %v4842
        %v4858 = vshrl.u32 1326507024, %v4843
        %v4859 = vor.u32 %v4857, %v4858
        %vm4860 = vcmp.lt.s32.totalorder %v4841, 1
        %vm4861 = vcmp.lt.s32.totalorder %v4841, 2
        %vm4862 = vcmp.lt.s32.totalorder %v4841, 3
        %vm4863 = vcmp.lt.s32.totalorder %v4841, 4
        %v4864 = vsel %vm4860, %v4844, %v4847
        %v4865 = vsel %vm4863, %v4853, 2102212464
        %v4866 = vsel %vm4862, %v4850, %v4865
        %v4867 = vsel %vm4861, %v4864, %v4866
        %v4868 = vsel %vm4860, %v4847, %v4850
        %v4869 = vsel %vm4863, %v4856, 920167782
        %v4870 = vsel %vm4862, %v4853, %v4869
        %v4871 = vsel %vm4861, %v4868, %v4870
        %v4872 = vsel %vm4860, %v4850, %v4853
        %v4873 = vsel %vm4863, %v4859, 1326507024
        %v4874 = vsel %vm4862, %v4856, %v4873
        %v4875 = vsel %vm4861, %v4872, %v4874
        %v4876 = vshll.u32 %v4836, 8
        %v4877 = vand.u32 %v4876, 65535
        %v4878 = vshrl.u32 %v4876, 16
        %v4879 = vand.u32 %v4875, 65535
        %v4880 = vshrl.u32 %v4875, 16
        %v4881 = vmul.u32 %v4877, %v4879
        %v4882 = vmul.u32 %v4877, %v4880
        %v4883 = vmul.u32 %v4878, %v4879
        %v4884 = vmul.u32 %v4878, %v4880
        %v4885 = vshll.u32 %v4882, 16
        %v4886 = vshrl.u32 %v4882, 16
        %v4887 = vshll.u32 %v4883, 16
        %v4888 = vshrl.u32 %v4883, 16
        %vm4889 = vc.u32 %v4881, %v4885
        %v4890 = vsel %vm4889, 1, 0
        %v4891 = vadd.s32 %v4881, %v4885
        %v4892 = vadd.s32 %v4884, %v4890
        %vm4893 = vc.u32 %v4891, %v4887
        %v4894 = vsel %vm4893, 1, 0
        %v4895 = vadd.s32 %v4891, %v4887
        %v4896 = vadd.s32 %v4892, %v4894
        %v4897 = vadd.s32 %v4896, %v4886
        %v4898 = vadd.s32 %v4897, %v4888
        %v4899 = vand.u32 %v4876, 65535
        %v4900 = vshrl.u32 %v4876, 16
        %v4901 = vand.u32 %v4871, 65535
        %v4902 = vshrl.u32 %v4871, 16
        %v4903 = vmul.u32 %v4899, %v4901
        %v4904 = vmul.u32 %v4899, %v4902
        %v4905 = vmul.u32 %v4900, %v4901
        %v4906 = vmul.u32 %v4900, %v4902
        %v4907 = vshll.u32 %v4904, 16
        %v4908 = vshrl.u32 %v4904, 16
        %v4909 = vshll.u32 %v4905, 16
        %v4910 = vshrl.u32 %v4905, 16
        %vm4911 = vc.u32 %v4903, %v4907
        %v4912 = vsel %vm4911, 1, 0
        %v4913 = vadd.s32 %v4903, %v4907
        %v4914 = vadd.s32 %v4906, %v4912
        %vm4915 = vc.u32 %v4913, %v4909
        %v4916 = vsel %vm4915, 1, 0
        %v4917 = vadd.s32 %v4913, %v4909
        %v4918 = vadd.s32 %v4914, %v4916
        %v4919 = vadd.s32 %v4918, %v4908
        %v4920 = vadd.s32 %v4919, %v4910
        %v4921 = vmul.u32 %v4876, %v4867
        %v4922 = vadd.s32 %v4898, %v4917
        %vm4923 = vc.u32 %v4898, %v4917
        %v4924 = vadd.s32 %v4920, 1
        %v4925 = vsel %vm4923, %v4924, %v4920
        %v4926 = vadd.s32 %v4921, %v4925
        %v4927 = vadd.s32 %v4926, 536870912
        %v4928 = vshrl.u32 %v4927, 30
        %v4929 = vshll.u32 %v4928, 30
        %v4930 = vsub.s32 %v4926, %v4929
        %vm4931 = vcmp.lt.s32.totalorder %v4930, 0
        %v4932 = vsub.s32 0, %v4930
        %v4933 = vsel %vm4931, %v4932, %v4930
        %v4934 = vclz %v4933
        %v4935 = vsub.s32 %v4934, 2
        %vm4936 = vcmp.gt.s32.totalorder 0, %v4935
        %v4937 = vsel %vm4936, 0, %v4935
        %v4938 = vsub.s32 32, %v4937
        %v4939 = vshll.u32 %v4930, %v4937
        %v4940 = vshrl.u32 %v4922, %v4938
        %v4941 = vor.u32 %v4939, %v4940
        %v4942 = vsub.s32 4294967266, %v4937
        %v4943 = vadd.s32 %v4942, 127
        %v4944 = vshll.u32 %v4943, 23
        %v4945 = vor.u32 4788187, %v4944
        %v4946 = vand.u32 2147483647, %v4945
        %v4948 = vcvt.s32.f32 %v4941
        %v4949 = vmul.f32 %v4948, %v4946
        %v4950 = vxor.u32 %v4949, 2147483648
        %v4951 = vsel %vm4830, %v4950, %v4949
        %v4952 = vsub.s32 4, %v4928
        %v4953 = vsel %vm4830, %v4952, %v4928
        %v4954 = vsel %vm4829, %v452, %v4951
        %v4955 = vsel %vm4829, 0, %v4953
        %v4956 = vmul.f32 %v4954, %v4954
        %v4957 = vmul.f32 %v4956, -0.001358992
        %v4958 = vadd.f32 %v4957, 0.041655596
        %v4959 = vmul.f32 %v4956, %v4958
        %v4960 = vadd.f32 %v4959, -0.4999988
        %v4961 = vmul.f32 %v4956, %v4960
        %v4962 = vadd.f32 1.0, %v4961
        %v4963 = vmul.f32 %v4954, %v4954
        %v4964 = vmul.f32 %v4963, -0.00019511016
        %v4965 = vadd.f32 %v4964, 0.008332121
        %v4966 = vmul.f32 %v4963, %v4965
        %v4967 = vadd.f32 %v4966, -0.16666654
        %v4968 = vmul.f32 %v4963, %v4967
        %v4969 = vadd.f32 %v4968, 1.0
        %v4970 = vmul.f32 %v4969, %v4954
        %vm4971 = vweird.f32 %v452
        %v4972 = vadd.s32 %v4955, 3
        %v4973 = vand.u32 %v4972, 3
        %vm4974 = vcmp.lt.s32.totalorder %v4973, 2
        %vm4975 = vcmp.eq.s32.totalorder %v4973, 0
        %v4976 = vxor.u32 %v4970, 2147483648
        %v4977 = vsel %vm4975, %v4962, %v4976
        %vm4978 = vcmp.eq.s32.totalorder %v4973, 2
        %v4979 = vxor.u32 %v4962, 2147483648
        %v4980 = vsel %vm4978, %v4979, %v4970
        %v4981 = vsel %vm4974, %v4977, %v4980
        %v4982 = vsel %vm4971, nan, %v4981
        %v4983 = vand.u32 2147483647, %v453
        %vm4984 = vcmp.le.f32.partialorder %v4983, 0.7853982
        %vm4985 = vcmp.lt.s32.totalorder %v453, 0
        %v4986 = vand.u32 %v453, 2139095040
        %v4987 = vshrl.u32 %v4986, 23
        %v4988 = vsub.s32 %v4987, 127
        %v4989 = vand.u32 2147483647, %v453
        %v4990 = vand.u32 %v4989, 8388607
        %v4991 = vor.u32 %v4990, 8388608
        %v4992 = vsub.s32 0, %v4991
        %v4993 = vadd.s32 %v4988, 1
        %vm4994 = vcmp.gt.s32.totalorder %v4993, 0
        %v4995 = vsel %vm4994, %v4993, 0
        %v4996 = vshrl.u32 %v4995, 5
        %v4997 = vand.u32 %v4995, 31
        %v4998 = vsub.s32 32, %v4997
        %v4999 = vshrl.u32 683565275, %v4998
        %v5000 = vshll.u32 683565275, %v4997
        %v5001 = vshrl.u32 2475754826, %v4998
        %v5002 = vor.u32 %v5000, %v5001
        %v5003 = vshll.u32 2475754826, %v4997
        %v5004 = vshrl.u32 2131351028, %v4998
        %v5005 = vor.u32 %v5003, %v5004
        %v5006 = vshll.u32 2131351028, %v4997
        %v5007 = vshrl.u32 2102212464, %v4998
        %v5008 = vor.u32 %v5006, %v5007
        %v5009 = vshll.u32 2102212464, %v4997
        %v5010 = vshrl.u32 920167782, %v4998
        %v5011 = vor.u32 %v5009, %v5010
        %v5012 = vshll.u32 920167782, %v4997
        %v5013 = vshrl.u32 1326507024, %v4998
        %v5014 = vor.u32 %v5012, %v5013
        %vm5015 = vcmp.lt.s32.totalorder %v4996, 1
        %vm5016 = vcmp.lt.s32.totalorder %v4996, 2
        %vm5017 = vcmp.lt.s32.totalorder %v4996, 3
        %vm5018 = vcmp.lt.s32.totalorder %v4996, 4
        %v5019 = vsel %vm5015, %v4999, %v5002
        %v5020 = vsel %vm5018, %v5008, 2102212464
        %v5021 = vsel %vm5017, %v5005, %v5020
        %v5022 = vsel %vm5016, %v5019, %v5021
        %v5023 = vsel %vm5015, %v5002, %v5005
        %v5024 = vsel %vm5018, %v5011, 920167782
        %v5025 = vsel %vm5017, %v5008, %v5024
        %v5026 = vsel %vm5016, %v5023, %v5025
        %v5027 = vsel %vm5015, %v5005, %v5008
        %v5028 = vsel %vm5018, %v5014, 1326507024
        %v5029 = vsel %vm5017, %v5011, %v5028
        %v5030 = vsel %vm5016, %v5027, %v5029
        %v5031 = vshll.u32 %v4991, 8
        %v5032 = vand.u32 %v5031, 65535
        %v5033 = vshrl.u32 %v5031, 16
        %v5034 = vand.u32 %v5030, 65535
        %v5035 = vshrl.u32 %v5030, 16
        %v5036 = vmul.u32 %v5032, %v5034
        %v5037 = vmul.u32 %v5032, %v5035
        %v5038 = vmul.u32 %v5033, %v5034
        %v5039 = vmul.u32 %v5033, %v5035
        %v5040 = vshll.u32 %v5037, 16
        %v5041 = vshrl.u32 %v5037, 16
        %v5042 = vshll.u32 %v5038, 16
        %v5043 = vshrl.u32 %v5038, 16
        %vm5044 = vc.u32 %v5036, %v5040
        %v5045 = vsel %vm5044, 1, 0
        %v5046 = vadd.s32 %v5036, %v5040
        %v5047 = vadd.s32 %v5039, %v5045
        %vm5048 = vc.u32 %v5046, %v5042
        %v5049 = vsel %vm5048, 1, 0
        %v5050 = vadd.s32 %v5046, %v5042
        %v5051 = vadd.s32 %v5047, %v5049
        %v5052 = vadd.s32 %v5051, %v5041
        %v5053 = vadd.s32 %v5052, %v5043
        %v5054 = vand.u32 %v5031, 65535
        %v5055 = vshrl.u32 %v5031, 16
        %v5056 = vand.u32 %v5026, 65535
        %v5057 = vshrl.u32 %v5026, 16
        %v5058 = vmul.u32 %v5054, %v5056
        %v5059 = vmul.u32 %v5054, %v5057
        %v5060 = vmul.u32 %v5055, %v5056
        %v5061 = vmul.u32 %v5055, %v5057
        %v5062 = vshll.u32 %v5059, 16
        %v5063 = vshrl.u32 %v5059, 16
        %v5064 = vshll.u32 %v5060, 16
        %v5065 = vshrl.u32 %v5060, 16
        %vm5066 = vc.u32 %v5058, %v5062
        %v5067 = vsel %vm5066, 1, 0
        %v5068 = vadd.s32 %v5058, %v5062
        %v5069 = vadd.s32 %v5061, %v5067
        %vm5070 = vc.u32 %v5068, %v5064
        %v5071 = vsel %vm5070, 1, 0
        %v5072 = vadd.s32 %v5068, %v5064
        %v5073 = vadd.s32 %v5069, %v5071
        %v5074 = vadd.s32 %v5073, %v5063
        %v5075 = vadd.s32 %v5074, %v5065
        %v5076 = vmul.u32 %v5031, %v5022
        %v5077 = vadd.s32 %v5053, %v5072
        %vm5078 = vc.u32 %v5053, %v5072
        %v5079 = vadd.s32 %v5075, 1
        %v5080 = vsel %vm5078, %v5079, %v5075
        %v5081 = vadd.s32 %v5076, %v5080
        %v5082 = vadd.s32 %v5081, 536870912
        %v5083 = vshrl.u32 %v5082, 30
        %v5084 = vshll.u32 %v5083, 30
        %v5085 = vsub.s32 %v5081, %v5084
        %vm5086 = vcmp.lt.s32.totalorder %v5085, 0
        %v5087 = vsub.s32 0, %v5085
        %v5088 = vsel %vm5086, %v5087, %v5085
        %v5089 = vclz %v5088
        %v5090 = vsub.s32 %v5089, 2
        %vm5091 = vcmp.gt.s32.totalorder 0, %v5090
        %v5092 = vsel %vm5091, 0, %v5090
        %v5093 = vsub.s32 32, %v5092
        %v5094 = vshll.u32 %v5085, %v5092
        %v5095 = vshrl.u32 %v5077, %v5093
        %v5096 = vor.u32 %v5094, %v5095
        %v5097 = vsub.s32 4294967266, %v5092
        %v5098 = vadd.s32 %v5097, 127
        %v5099 = vshll.u32 %v5098, 23
        %v5100 = vor.u32 4788187, %v5099
        %v5101 = vand.u32 2147483647, %v5100
        %v5103 = vcvt.s32.f32 %v5096
        %v5104 = vmul.f32 %v5103, %v5101
        %v5105 = vxor.u32 %v5104, 2147483648
        %v5106 = vsel %vm4985, %v5105, %v5104
        %v5107 = vsub.s32 4, %v5083
        %v5108 = vsel %vm4985, %v5107, %v5083
        %v5109 = vsel %vm4984, %v453, %v5106
        %v5110 = vsel %vm4984, 0, %v5108
        %v5111 = vmul.f32 %v5109, %v5109
        %v5112 = vmul.f32 %v5111, -0.001358992
        %v5113 = vadd.f32 %v5112, 0.041655596
        %v5114 = vmul.f32 %v5111, %v5113
        %v5115 = vadd.f32 %v5114, -0.4999988
        %v5116 = vmul.f32 %v5111, %v5115
        %v5117 = vadd.f32 1.0, %v5116
        %v5118 = vmul.f32 %v5109, %v5109
        %v5119 = vmul.f32 %v5118, -0.00019511016
        %v5120 = vadd.f32 %v5119, 0.008332121
        %v5121 = vmul.f32 %v5118, %v5120
        %v5122 = vadd.f32 %v5121, -0.16666654
        %v5123 = vmul.f32 %v5118, %v5122
        %v5124 = vadd.f32 %v5123, 1.0
        %v5125 = vmul.f32 %v5124, %v5109
        %vm5126 = vweird.f32 %v453
        %v5127 = vadd.s32 %v5110, 3
        %v5128 = vand.u32 %v5127, 3
        %vm5129 = vcmp.lt.s32.totalorder %v5128, 2
        %vm5130 = vcmp.eq.s32.totalorder %v5128, 0
        %v5131 = vxor.u32 %v5125, 2147483648
        %v5132 = vsel %vm5130, %v5117, %v5131
        %vm5133 = vcmp.eq.s32.totalorder %v5128, 2
        %v5134 = vxor.u32 %v5117, 2147483648
        %v5135 = vsel %vm5133, %v5134, %v5125
        %v5136 = vsel %vm5129, %v5132, %v5135
        %v5137 = vsel %vm5126, nan, %v5136
        %v5138 = vand.u32 2147483647, %v454
        %vm5139 = vcmp.le.f32.partialorder %v5138, 0.7853982
        %vm5140 = vcmp.lt.s32.totalorder %v454, 0
        %v5141 = vand.u32 %v454, 2139095040
        %v5142 = vshrl.u32 %v5141, 23
        %v5143 = vsub.s32 %v5142, 127
        %v5144 = vand.u32 2147483647, %v454
        %v5145 = vand.u32 %v5144, 8388607
        %v5146 = vor.u32 %v5145, 8388608
        %v5147 = vsub.s32 0, %v5146
        %v5148 = vadd.s32 %v5143, 1
        %vm5149 = vcmp.gt.s32.totalorder %v5148, 0
        %v5150 = vsel %vm5149, %v5148, 0
        %v5151 = vshrl.u32 %v5150, 5
        %v5152 = vand.u32 %v5150, 31
        %v5153 = vsub.s32 32, %v5152
        %v5154 = vshrl.u32 683565275, %v5153
        %v5155 = vshll.u32 683565275, %v5152
        %v5156 = vshrl.u32 2475754826, %v5153
        %v5157 = vor.u32 %v5155, %v5156
        %v5158 = vshll.u32 2475754826, %v5152
        %v5159 = vshrl.u32 2131351028, %v5153
        %v5160 = vor.u32 %v5158, %v5159
        %v5161 = vshll.u32 2131351028, %v5152
        %v5162 = vshrl.u32 2102212464, %v5153
        %v5163 = vor.u32 %v5161, %v5162
        %v5164 = vshll.u32 2102212464, %v5152
        %v5165 = vshrl.u32 920167782, %v5153
        %v5166 = vor.u32 %v5164, %v5165
        %v5167 = vshll.u32 920167782, %v5152
        %v5168 = vshrl.u32 1326507024, %v5153
        %v5169 = vor.u32 %v5167, %v5168
        %vm5170 = vcmp.lt.s32.totalorder %v5151, 1
        %vm5171 = vcmp.lt.s32.totalorder %v5151, 2
        %vm5172 = vcmp.lt.s32.totalorder %v5151, 3
        %vm5173 = vcmp.lt.s32.totalorder %v5151, 4
        %v5174 = vsel %vm5170, %v5154, %v5157
        %v5175 = vsel %vm5173, %v5163, 2102212464
        %v5176 = vsel %vm5172, %v5160, %v5175
        %v5177 = vsel %vm5171, %v5174, %v5176
        %v5178 = vsel %vm5170, %v5157, %v5160
        %v5179 = vsel %vm5173, %v5166, 920167782
        %v5180 = vsel %vm5172, %v5163, %v5179
        %v5181 = vsel %vm5171, %v5178, %v5180
        %v5182 = vsel %vm5170, %v5160, %v5163
        %v5183 = vsel %vm5173, %v5169, 1326507024
        %v5184 = vsel %vm5172, %v5166, %v5183
        %v5185 = vsel %vm5171, %v5182, %v5184
        %v5186 = vshll.u32 %v5146, 8
        %v5187 = vand.u32 %v5186, 65535
        %v5188 = vshrl.u32 %v5186, 16
        %v5189 = vand.u32 %v5185, 65535
        %v5190 = vshrl.u32 %v5185, 16
        %v5191 = vmul.u32 %v5187, %v5189
        %v5192 = vmul.u32 %v5187, %v5190
        %v5193 = vmul.u32 %v5188, %v5189
        %v5194 = vmul.u32 %v5188, %v5190
        %v5195 = vshll.u32 %v5192, 16
        %v5196 = vshrl.u32 %v5192, 16
        %v5197 = vshll.u32 %v5193, 16
        %v5198 = vshrl.u32 %v5193, 16
        %vm5199 = vc.u32 %v5191, %v5195
        %v5200 = vsel %vm5199, 1, 0
        %v5201 = vadd.s32 %v5191, %v5195
        %v5202 = vadd.s32 %v5194, %v5200
        %vm5203 = vc.u32 %v5201, %v5197
        %v5204 = vsel %vm5203, 1, 0
        %v5205 = vadd.s32 %v5201, %v5197
        %v5206 = vadd.s32 %v5202, %v5204
        %v5207 = vadd.s32 %v5206, %v5196
        %v5208 = vadd.s32 %v5207, %v5198
        %v5209 = vand.u32 %v5186, 65535
        %v5210 = vshrl.u32 %v5186, 16
        %v5211 = vand.u32 %v5181, 65535
        %v5212 = vshrl.u32 %v5181, 16
        %v5213 = vmul.u32 %v5209, %v5211
        %v5214 = vmul.u32 %v5209, %v5212
        %v5215 = vmul.u32 %v5210, %v5211
        %v5216 = vmul.u32 %v5210, %v5212
        %v5217 = vshll.u32 %v5214, 16
        %v5218 = vshrl.u32 %v5214, 16
        %v5219 = vshll.u32 %v5215, 16
        %v5220 = vshrl.u32 %v5215, 16
        %vm5221 = vc.u32 %v5213, %v5217
        %v5222 = vsel %vm5221, 1, 0
        %v5223 = vadd.s32 %v5213, %v5217
        %v5224 = vadd.s32 %v5216, %v5222
        %vm5225 = vc.u32 %v5223, %v5219
        %v5226 = vsel %vm5225, 1, 0
        %v5227 = vadd.s32 %v5223, %v5219
        %v5228 = vadd.s32 %v5224, %v5226
        %v5229 = vadd.s32 %v5228, %v5218
        %v5230 = vadd.s32 %v5229, %v5220
        %v5231 = vmul.u32 %v5186, %v5177
        %v5232 = vadd.s32 %v5208, %v5227
        %vm5233 = vc.u32 %v5208, %v5227
        %v5234 = vadd.s32 %v5230, 1
        %v5235 = vsel %vm5233, %v5234, %v5230
        %v5236 = vadd.s32 %v5231, %v5235
        %v5237 = vadd.s32 %v5236, 536870912
        %v5238 = vshrl.u32 %v5237, 30
        %v5239 = vshll.u32 %v5238, 30
        %v5240 = vsub.s32 %v5236, %v5239
        %vm5241 = vcmp.lt.s32.totalorder %v5240, 0
        %v5242 = vsub.s32 0, %v5240
        %v5243 = vsel %vm5241, %v5242, %v5240
        %v5244 = vclz %v5243
        %v5245 = vsub.s32 %v5244, 2
        %vm5246 = vcmp.gt.s32.totalorder 0, %v5245
        %v5247 = vsel %vm5246, 0, %v5245
        %v5248 = vsub.s32 32, %v5247
        %v5249 = vshll.u32 %v5240, %v5247
        %v5250 = vshrl.u32 %v5232, %v5248
        %v5251 = vor.u32 %v5249, %v5250
        %v5252 = vsub.s32 4294967266, %v5247
        %v5253 = vadd.s32 %v5252, 127
        %v5254 = vshll.u32 %v5253, 23
        %v5255 = vor.u32 4788187, %v5254
        %v5256 = vand.u32 2147483647, %v5255
        %v5258 = vcvt.s32.f32 %v5251
        %v5259 = vmul.f32 %v5258, %v5256
        %v5260 = vxor.u32 %v5259, 2147483648
        %v5261 = vsel %vm5140, %v5260, %v5259
        %v5262 = vsub.s32 4, %v5238
        %v5263 = vsel %vm5140, %v5262, %v5238
        %v5264 = vsel %vm5139, %v454, %v5261
        %v5265 = vsel %vm5139, 0, %v5263
        %v5266 = vmul.f32 %v5264, %v5264
        %v5267 = vmul.f32 %v5266, -0.001358992
        %v5268 = vadd.f32 %v5267, 0.041655596
        %v5269 = vmul.f32 %v5266, %v5268
        %v5270 = vadd.f32 %v5269, -0.4999988
        %v5271 = vmul.f32 %v5266, %v5270
        %v5272 = vadd.f32 1.0, %v5271
        %v5273 = vmul.f32 %v5264, %v5264
        %v5274 = vmul.f32 %v5273, -0.00019511016
        %v5275 = vadd.f32 %v5274, 0.008332121
        %v5276 = vmul.f32 %v5273, %v5275
        %v5277 = vadd.f32 %v5276, -0.16666654
        %v5278 = vmul.f32 %v5273, %v5277
        %v5279 = vadd.f32 %v5278, 1.0
        %v5280 = vmul.f32 %v5279, %v5264
        %vm5281 = vweird.f32 %v454
        %v5282 = vadd.s32 %v5265, 3
        %v5283 = vand.u32 %v5282, 3
        %vm5284 = vcmp.lt.s32.totalorder %v5283, 2
        %vm5285 = vcmp.eq.s32.totalorder %v5283, 0
        %v5286 = vxor.u32 %v5280, 2147483648
        %v5287 = vsel %vm5285, %v5272, %v5286
        %vm5288 = vcmp.eq.s32.totalorder %v5283, 2
        %v5289 = vxor.u32 %v5272, 2147483648
        %v5290 = vsel %vm5288, %v5289, %v5280
        %v5291 = vsel %vm5284, %v5287, %v5290
        %v5292 = vsel %vm5281, nan, %v5291
        %v5293 = vand.u32 2147483647, %v455
        %vm5294 = vcmp.le.f32.partialorder %v5293, 0.7853982
        %vm5295 = vcmp.lt.s32.totalorder %v455, 0
        %v5296 = vand.u32 %v455, 2139095040
        %v5297 = vshrl.u32 %v5296, 23
        %v5298 = vsub.s32 %v5297, 127
        %v5299 = vand.u32 2147483647, %v455
        %v5300 = vand.u32 %v5299, 8388607
        %v5301 = vor.u32 %v5300, 8388608
        %v5302 = vsub.s32 0, %v5301
        %v5303 = vadd.s32 %v5298, 1
        %vm5304 = vcmp.gt.s32.totalorder %v5303, 0
        %v5305 = vsel %vm5304, %v5303, 0
        %v5306 = vshrl.u32 %v5305, 5
        %v5307 = vand.u32 %v5305, 31
        %v5308 = vsub.s32 32, %v5307
        %v5309 = vshrl.u32 683565275, %v5308
        %v5310 = vshll.u32 683565275, %v5307
        %v5311 = vshrl.u32 2475754826, %v5308
        %v5312 = vor.u32 %v5310, %v5311
        %v5313 = vshll.u32 2475754826, %v5307
        %v5314 = vshrl.u32 2131351028, %v5308
        %v5315 = vor.u32 %v5313, %v5314
        %v5316 = vshll.u32 2131351028, %v5307
        %v5317 = vshrl.u32 2102212464, %v5308
        %v5318 = vor.u32 %v5316, %v5317
        %v5319 = vshll.u32 2102212464, %v5307
        %v5320 = vshrl.u32 920167782, %v5308
        %v5321 = vor.u32 %v5319, %v5320
        %v5322 = vshll.u32 920167782, %v5307
        %v5323 = vshrl.u32 1326507024, %v5308
        %v5324 = vor.u32 %v5322, %v5323
        %vm5325 = vcmp.lt.s32.totalorder %v5306, 1
        %vm5326 = vcmp.lt.s32.totalorder %v5306, 2
        %vm5327 = vcmp.lt.s32.totalorder %v5306, 3
        %vm5328 = vcmp.lt.s32.totalorder %v5306, 4
        %v5329 = vsel %vm5325, %v5309, %v5312
        %v5330 = vsel %vm5328, %v5318, 2102212464
        %v5331 = vsel %vm5327, %v5315, %v5330
        %v5332 = vsel %vm5326, %v5329, %v5331
        %v5333 = vsel %vm5325, %v5312, %v5315
        %v5334 = vsel %vm5328, %v5321, 920167782
        %v5335 = vsel %vm5327, %v5318, %v5334
        %v5336 = vsel %vm5326, %v5333, %v5335
        %v5337 = vsel %vm5325, %v5315, %v5318
        %v5338 = vsel %vm5328, %v5324, 1326507024
        %v5339 = vsel %vm5327, %v5321, %v5338
        %v5340 = vsel %vm5326, %v5337, %v5339
        %v5341 = vshll.u32 %v5301, 8
        %v5342 = vand.u32 %v5341, 65535
        %v5343 = vshrl.u32 %v5341, 16
        %v5344 = vand.u32 %v5340, 65535
        %v5345 = vshrl.u32 %v5340, 16
        %v5346 = vmul.u32 %v5342, %v5344
        %v5347 = vmul.u32 %v5342, %v5345
        %v5348 = vmul.u32 %v5343, %v5344
        %v5349 = vmul.u32 %v5343, %v5345
        %v5350 = vshll.u32 %v5347, 16
        %v5351 = vshrl.u32 %v5347, 16
        %v5352 = vshll.u32 %v5348, 16
        %v5353 = vshrl.u32 %v5348, 16
        %vm5354 = vc.u32 %v5346, %v5350
        %v5355 = vsel %vm5354, 1, 0
        %v5356 = vadd.s32 %v5346, %v5350
        %v5357 = vadd.s32 %v5349, %v5355
        %vm5358 = vc.u32 %v5356, %v5352
        %v5359 = vsel %vm5358, 1, 0
        %v5360 = vadd.s32 %v5356, %v5352
        %v5361 = vadd.s32 %v5357, %v5359
        %v5362 = vadd.s32 %v5361, %v5351
        %v5363 = vadd.s32 %v5362, %v5353
        %v5364 = vand.u32 %v5341, 65535
        %v5365 = vshrl.u32 %v5341, 16
        %v5366 = vand.u32 %v5336, 65535
        %v5367 = vshrl.u32 %v5336, 16
        %v5368 = vmul.u32 %v5364, %v5366
        %v5369 = vmul.u32 %v5364, %v5367
        %v5370 = vmul.u32 %v5365, %v5366
        %v5371 = vmul.u32 %v5365, %v5367
        %v5372 = vshll.u32 %v5369, 16
        %v5373 = vshrl.u32 %v5369, 16
        %v5374 = vshll.u32 %v5370, 16
        %v5375 = vshrl.u32 %v5370, 16
        %vm5376 = vc.u32 %v5368, %v5372
        %v5377 = vsel %vm5376, 1, 0
        %v5378 = vadd.s32 %v5368, %v5372
        %v5379 = vadd.s32 %v5371, %v5377
        %vm5380 = vc.u32 %v5378, %v5374
        %v5381 = vsel %vm5380, 1, 0
        %v5382 = vadd.s32 %v5378, %v5374
        %v5383 = vadd.s32 %v5379, %v5381
        %v5384 = vadd.s32 %v5383, %v5373
        %v5385 = vadd.s32 %v5384, %v5375
        %v5386 = vmul.u32 %v5341, %v5332
        %v5387 = vadd.s32 %v5363, %v5382
        %vm5388 = vc.u32 %v5363, %v5382
        %v5389 = vadd.s32 %v5385, 1
        %v5390 = vsel %vm5388, %v5389, %v5385
        %v5391 = vadd.s32 %v5386, %v5390
        %v5392 = vadd.s32 %v5391, 536870912
        %v5393 = vshrl.u32 %v5392, 30
        %v5394 = vshll.u32 %v5393, 30
        %v5395 = vsub.s32 %v5391, %v5394
        %vm5396 = vcmp.lt.s32.totalorder %v5395, 0
        %v5397 = vsub.s32 0, %v5395
        %v5398 = vsel %vm5396, %v5397, %v5395
        %v5399 = vclz %v5398
        %v5400 = vsub.s32 %v5399, 2
        %vm5401 = vcmp.gt.s32.totalorder 0, %v5400
        %v5402 = vsel %vm5401, 0, %v5400
        %v5403 = vsub.s32 32, %v5402
        %v5404 = vshll.u32 %v5395, %v5402
        %v5405 = vshrl.u32 %v5387, %v5403
        %v5406 = vor.u32 %v5404, %v5405
        %v5407 = vsub.s32 4294967266, %v5402
        %v5408 = vadd.s32 %v5407, 127
        %v5409 = vshll.u32 %v5408, 23
        %v5410 = vor.u32 4788187, %v5409
        %v5411 = vand.u32 2147483647, %v5410
        %v5413 = vcvt.s32.f32 %v5406
        %v5414 = vmul.f32 %v5413, %v5411
        %v5415 = vxor.u32 %v5414, 2147483648
        %v5416 = vsel %vm5295, %v5415, %v5414
        %v5417 = vsub.s32 4, %v5393
        %v5418 = vsel %vm5295, %v5417, %v5393
        %v5419 = vsel %vm5294, %v455, %v5416
        %v5420 = vsel %vm5294, 0, %v5418
        %v5421 = vmul.f32 %v5419, %v5419
        %v5422 = vmul.f32 %v5421, -0.001358992
        %v5423 = vadd.f32 %v5422, 0.041655596
        %v5424 = vmul.f32 %v5421, %v5423
        %v5425 = vadd.f32 %v5424, -0.4999988
        %v5426 = vmul.f32 %v5421, %v5425
        %v5427 = vadd.f32 1.0, %v5426
        %v5428 = vmul.f32 %v5419, %v5419
        %v5429 = vmul.f32 %v5428, -0.00019511016
        %v5430 = vadd.f32 %v5429, 0.008332121
        %v5431 = vmul.f32 %v5428, %v5430
        %v5432 = vadd.f32 %v5431, -0.16666654
        %v5433 = vmul.f32 %v5428, %v5432
        %v5434 = vadd.f32 %v5433, 1.0
        %v5435 = vmul.f32 %v5434, %v5419
        %vm5436 = vweird.f32 %v455
        %v5437 = vadd.s32 %v5420, 3
        %v5438 = vand.u32 %v5437, 3
        %vm5439 = vcmp.lt.s32.totalorder %v5438, 2
        %vm5440 = vcmp.eq.s32.totalorder %v5438, 0
        %v5441 = vxor.u32 %v5435, 2147483648
        %v5442 = vsel %vm5440, %v5427, %v5441
        %vm5443 = vcmp.eq.s32.totalorder %v5438, 2
        %v5444 = vxor.u32 %v5427, 2147483648
        %v5445 = vsel %vm5443, %v5444, %v5435
        %v5446 = vsel %vm5439, %v5442, %v5445
        %v5447 = vsel %vm5436, nan, %v5446
        %v5448 = vand.u32 2147483647, %v456
        %vm5449 = vcmp.le.f32.partialorder %v5448, 0.7853982
        %vm5450 = vcmp.lt.s32.totalorder %v456, 0
        %v5451 = vand.u32 %v456, 2139095040
        %v5452 = vshrl.u32 %v5451, 23
        %v5453 = vsub.s32 %v5452, 127
        %v5454 = vand.u32 2147483647, %v456
        %v5455 = vand.u32 %v5454, 8388607
        %v5456 = vor.u32 %v5455, 8388608
        %v5457 = vsub.s32 0, %v5456
        %v5458 = vadd.s32 %v5453, 1
        %vm5459 = vcmp.gt.s32.totalorder %v5458, 0
        %v5460 = vsel %vm5459, %v5458, 0
        %v5461 = vshrl.u32 %v5460, 5
        %v5462 = vand.u32 %v5460, 31
        %v5463 = vsub.s32 32, %v5462
        %v5464 = vshrl.u32 683565275, %v5463
        %v5465 = vshll.u32 683565275, %v5462
        %v5466 = vshrl.u32 2475754826, %v5463
        %v5467 = vor.u32 %v5465, %v5466
        %v5468 = vshll.u32 2475754826, %v5462
        %v5469 = vshrl.u32 2131351028, %v5463
        %v5470 = vor.u32 %v5468, %v5469
        %v5471 = vshll.u32 2131351028, %v5462
        %v5472 = vshrl.u32 2102212464, %v5463
        %v5473 = vor.u32 %v5471, %v5472
        %v5474 = vshll.u32 2102212464, %v5462
        %v5475 = vshrl.u32 920167782, %v5463
        %v5476 = vor.u32 %v5474, %v5475
        %v5477 = vshll.u32 920167782, %v5462
        %v5478 = vshrl.u32 1326507024, %v5463
        %v5479 = vor.u32 %v5477, %v5478
        %vm5480 = vcmp.lt.s32.totalorder %v5461, 1
        %vm5481 = vcmp.lt.s32.totalorder %v5461, 2
        %vm5482 = vcmp.lt.s32.totalorder %v5461, 3
        %vm5483 = vcmp.lt.s32.totalorder %v5461, 4
        %v5484 = vsel %vm5480, %v5464, %v5467
        %v5485 = vsel %vm5483, %v5473, 2102212464
        %v5486 = vsel %vm5482, %v5470, %v5485
        %v5487 = vsel %vm5481, %v5484, %v5486
        %v5488 = vsel %vm5480, %v5467, %v5470
        %v5489 = vsel %vm5483, %v5476, 920167782
        %v5490 = vsel %vm5482, %v5473, %v5489
        %v5491 = vsel %vm5481, %v5488, %v5490
        %v5492 = vsel %vm5480, %v5470, %v5473
        %v5493 = vsel %vm5483, %v5479, 1326507024
        %v5494 = vsel %vm5482, %v5476, %v5493
        %v5495 = vsel %vm5481, %v5492, %v5494
        %v5496 = vshll.u32 %v5456, 8
        %v5497 = vand.u32 %v5496, 65535
        %v5498 = vshrl.u32 %v5496, 16
        %v5499 = vand.u32 %v5495, 65535
        %v5500 = vshrl.u32 %v5495, 16
        %v5501 = vmul.u32 %v5497, %v5499
        %v5502 = vmul.u32 %v5497, %v5500
        %v5503 = vmul.u32 %v5498, %v5499
        %v5504 = vmul.u32 %v5498, %v5500
        %v5505 = vshll.u32 %v5502, 16
        %v5506 = vshrl.u32 %v5502, 16
        %v5507 = vshll.u32 %v5503, 16
        %v5508 = vshrl.u32 %v5503, 16
        %vm5509 = vc.u32 %v5501, %v5505
        %v5510 = vsel %vm5509, 1, 0
        %v5511 = vadd.s32 %v5501, %v5505
        %v5512 = vadd.s32 %v5504, %v5510
        %vm5513 = vc.u32 %v5511, %v5507
        %v5514 = vsel %vm5513, 1, 0
        %v5515 = vadd.s32 %v5511, %v5507
        %v5516 = vadd.s32 %v5512, %v5514
        %v5517 = vadd.s32 %v5516, %v5506
        %v5518 = vadd.s32 %v5517, %v5508
        %v5519 = vand.u32 %v5496, 65535
        %v5520 = vshrl.u32 %v5496, 16
        %v5521 = vand.u32 %v5491, 65535
        %v5522 = vshrl.u32 %v5491, 16
        %v5523 = vmul.u32 %v5519, %v5521
        %v5524 = vmul.u32 %v5519, %v5522
        %v5525 = vmul.u32 %v5520, %v5521
        %v5526 = vmul.u32 %v5520, %v5522
        %v5527 = vshll.u32 %v5524, 16
        %v5528 = vshrl.u32 %v5524, 16
        %v5529 = vshll.u32 %v5525, 16
        %v5530 = vshrl.u32 %v5525, 16
        %vm5531 = vc.u32 %v5523, %v5527
        %v5532 = vsel %vm5531, 1, 0
        %v5533 = vadd.s32 %v5523, %v5527
        %v5534 = vadd.s32 %v5526, %v5532
        %vm5535 = vc.u32 %v5533, %v5529
        %v5536 = vsel %vm5535, 1, 0
        %v5537 = vadd.s32 %v5533, %v5529
        %v5538 = vadd.s32 %v5534, %v5536
        %v5539 = vadd.s32 %v5538, %v5528
        %v5540 = vadd.s32 %v5539, %v5530
        %v5541 = vmul.u32 %v5496, %v5487
        %v5542 = vadd.s32 %v5518, %v5537
        %vm5543 = vc.u32 %v5518, %v5537
        %v5544 = vadd.s32 %v5540, 1
        %v5545 = vsel %vm5543, %v5544, %v5540
        %v5546 = vadd.s32 %v5541, %v5545
        %v5547 = vadd.s32 %v5546, 536870912
        %v5548 = vshrl.u32 %v5547, 30
        %v5549 = vshll.u32 %v5548, 30
        %v5550 = vsub.s32 %v5546, %v5549
        %vm5551 = vcmp.lt.s32.totalorder %v5550, 0
        %v5552 = vsub.s32 0, %v5550
        %v5553 = vsel %vm5551, %v5552, %v5550
        %v5554 = vclz %v5553
        %v5555 = vsub.s32 %v5554, 2
        %vm5556 = vcmp.gt.s32.totalorder 0, %v5555
        %v5557 = vsel %vm5556, 0, %v5555
        %v5558 = vsub.s32 32, %v5557
        %v5559 = vshll.u32 %v5550, %v5557
        %v5560 = vshrl.u32 %v5542, %v5558
        %v5561 = vor.u32 %v5559, %v5560
        %v5562 = vsub.s32 4294967266, %v5557
        %v5563 = vadd.s32 %v5562, 127
        %v5564 = vshll.u32 %v5563, 23
        %v5565 = vor.u32 4788187, %v5564
        %v5566 = vand.u32 2147483647, %v5565
        %v5568 = vcvt.s32.f32 %v5561
        %v5569 = vmul.f32 %v5568, %v5566
        %v5570 = vxor.u32 %v5569, 2147483648
        %v5571 = vsel %vm5450, %v5570, %v5569
        %v5572 = vsub.s32 4, %v5548
        %v5573 = vsel %vm5450, %v5572, %v5548
        %v5574 = vsel %vm5449, %v456, %v5571
        %v5575 = vsel %vm5449, 0, %v5573
        %v5576 = vmul.f32 %v5574, %v5574
        %v5577 = vmul.f32 %v5576, -0.001358992
        %v5578 = vadd.f32 %v5577, 0.041655596
        %v5579 = vmul.f32 %v5576, %v5578
        %v5580 = vadd.f32 %v5579, -0.4999988
        %v5581 = vmul.f32 %v5576, %v5580
        %v5582 = vadd.f32 1.0, %v5581
        %v5583 = vmul.f32 %v5574, %v5574
        %v5584 = vmul.f32 %v5583, -0.00019511016
        %v5585 = vadd.f32 %v5584, 0.008332121
        %v5586 = vmul.f32 %v5583, %v5585
        %v5587 = vadd.f32 %v5586, -0.16666654
        %v5588 = vmul.f32 %v5583, %v5587
        %v5589 = vadd.f32 %v5588, 1.0
        %v5590 = vmul.f32 %v5589, %v5574
        %vm5591 = vweird.f32 %v456
        %v5592 = vadd.s32 %v5575, 3
        %v5593 = vand.u32 %v5592, 3
        %vm5594 = vcmp.lt.s32.totalorder %v5593, 2
        %vm5595 = vcmp.eq.s32.totalorder %v5593, 0
        %v5596 = vxor.u32 %v5590, 2147483648
        %v5597 = vsel %vm5595, %v5582, %v5596
        %vm5598 = vcmp.eq.s32.totalorder %v5593, 2
        %v5599 = vxor.u32 %v5582, 2147483648
        %v5600 = vsel %vm5598, %v5599, %v5590
        %v5601 = vsel %vm5594, %v5597, %v5600
        %v5602 = vsel %vm5591, nan, %v5601
        %v5603 = vand.u32 2147483647, %v457
        %vm5604 = vcmp.le.f32.partialorder %v5603, 0.7853982
        %vm5605 = vcmp.lt.s32.totalorder %v457, 0
        %v5606 = vand.u32 %v457, 2139095040
        %v5607 = vshrl.u32 %v5606, 23
        %v5608 = vsub.s32 %v5607, 127
        %v5609 = vand.u32 2147483647, %v457
        %v5610 = vand.u32 %v5609, 8388607
        %v5611 = vor.u32 %v5610, 8388608
        %v5612 = vsub.s32 0, %v5611
        %v5613 = vadd.s32 %v5608, 1
        %vm5614 = vcmp.gt.s32.totalorder %v5613, 0
        %v5615 = vsel %vm5614, %v5613, 0
        %v5616 = vshrl.u32 %v5615, 5
        %v5617 = vand.u32 %v5615, 31
        %v5618 = vsub.s32 32, %v5617
        %v5619 = vshrl.u32 683565275, %v5618
        %v5620 = vshll.u32 683565275, %v5617
        %v5621 = vshrl.u32 2475754826, %v5618
        %v5622 = vor.u32 %v5620, %v5621
        %v5623 = vshll.u32 2475754826, %v5617
        %v5624 = vshrl.u32 2131351028, %v5618
        %v5625 = vor.u32 %v5623, %v5624
        %v5626 = vshll.u32 2131351028, %v5617
        %v5627 = vshrl.u32 2102212464, %v5618
        %v5628 = vor.u32 %v5626, %v5627
        %v5629 = vshll.u32 2102212464, %v5617
        %v5630 = vshrl.u32 920167782, %v5618
        %v5631 = vor.u32 %v5629, %v5630
        %v5632 = vshll.u32 920167782, %v5617
        %v5633 = vshrl.u32 1326507024, %v5618
        %v5634 = vor.u32 %v5632, %v5633
        %vm5635 = vcmp.lt.s32.totalorder %v5616, 1
        %vm5636 = vcmp.lt.s32.totalorder %v5616, 2
        %vm5637 = vcmp.lt.s32.totalorder %v5616, 3
        %vm5638 = vcmp.lt.s32.totalorder %v5616, 4
        %v5639 = vsel %vm5635, %v5619, %v5622
        %v5640 = vsel %vm5638, %v5628, 2102212464
        %v5641 = vsel %vm5637, %v5625, %v5640
        %v5642 = vsel %vm5636, %v5639, %v5641
        %v5643 = vsel %vm5635, %v5622, %v5625
        %v5644 = vsel %vm5638, %v5631, 920167782
        %v5645 = vsel %vm5637, %v5628, %v5644
        %v5646 = vsel %vm5636, %v5643, %v5645
        %v5647 = vsel %vm5635, %v5625, %v5628
        %v5648 = vsel %vm5638, %v5634, 1326507024
        %v5649 = vsel %vm5637, %v5631, %v5648
        %v5650 = vsel %vm5636, %v5647, %v5649
        %v5651 = vshll.u32 %v5611, 8
        %v5652 = vand.u32 %v5651, 65535
        %v5653 = vshrl.u32 %v5651, 16
        %v5654 = vand.u32 %v5650, 65535
        %v5655 = vshrl.u32 %v5650, 16
        %v5656 = vmul.u32 %v5652, %v5654
        %v5657 = vmul.u32 %v5652, %v5655
        %v5658 = vmul.u32 %v5653, %v5654
        %v5659 = vmul.u32 %v5653, %v5655
        %v5660 = vshll.u32 %v5657, 16
        %v5661 = vshrl.u32 %v5657, 16
        %v5662 = vshll.u32 %v5658, 16
        %v5663 = vshrl.u32 %v5658, 16
        %vm5664 = vc.u32 %v5656, %v5660
        %v5665 = vsel %vm5664, 1, 0
        %v5666 = vadd.s32 %v5656, %v5660
        %v5667 = vadd.s32 %v5659, %v5665
        %vm5668 = vc.u32 %v5666, %v5662
        %v5669 = vsel %vm5668, 1, 0
        %v5670 = vadd.s32 %v5666, %v5662
        %v5671 = vadd.s32 %v5667, %v5669
        %v5672 = vadd.s32 %v5671, %v5661
        %v5673 = vadd.s32 %v5672, %v5663
        %v5674 = vand.u32 %v5651, 65535
        %v5675 = vshrl.u32 %v5651, 16
        %v5676 = vand.u32 %v5646, 65535
        %v5677 = vshrl.u32 %v5646, 16
        %v5678 = vmul.u32 %v5674, %v5676
        %v5679 = vmul.u32 %v5674, %v5677
        %v5680 = vmul.u32 %v5675, %v5676
        %v5681 = vmul.u32 %v5675, %v5677
        %v5682 = vshll.u32 %v5679, 16
        %v5683 = vshrl.u32 %v5679, 16
        %v5684 = vshll.u32 %v5680, 16
        %v5685 = vshrl.u32 %v5680, 16
        %vm5686 = vc.u32 %v5678, %v5682
        %v5687 = vsel %vm5686, 1, 0
        %v5688 = vadd.s32 %v5678, %v5682
        %v5689 = vadd.s32 %v5681, %v5687
        %vm5690 = vc.u32 %v5688, %v5684
        %v5691 = vsel %vm5690, 1, 0
        %v5692 = vadd.s32 %v5688, %v5684
        %v5693 = vadd.s32 %v5689, %v5691
        %v5694 = vadd.s32 %v5693, %v5683
        %v5695 = vadd.s32 %v5694, %v5685
        %v5696 = vmul.u32 %v5651, %v5642
        %v5697 = vadd.s32 %v5673, %v5692
        %vm5698 = vc.u32 %v5673, %v5692
        %v5699 = vadd.s32 %v5695, 1
        %v5700 = vsel %vm5698, %v5699, %v5695
        %v5701 = vadd.s32 %v5696, %v5700
        %v5702 = vadd.s32 %v5701, 536870912
        %v5703 = vshrl.u32 %v5702, 30
        %v5704 = vshll.u32 %v5703, 30
        %v5705 = vsub.s32 %v5701, %v5704
        %vm5706 = vcmp.lt.s32.totalorder %v5705, 0
        %v5707 = vsub.s32 0, %v5705
        %v5708 = vsel %vm5706, %v5707, %v5705
        %v5709 = vclz %v5708
        %v5710 = vsub.s32 %v5709, 2
        %vm5711 = vcmp.gt.s32.totalorder 0, %v5710
        %v5712 = vsel %vm5711, 0, %v5710
        %v5713 = vsub.s32 32, %v5712
        %v5714 = vshll.u32 %v5705, %v5712
        %v5715 = vshrl.u32 %v5697, %v5713
        %v5716 = vor.u32 %v5714, %v5715
        %v5717 = vsub.s32 4294967266, %v5712
        %v5718 = vadd.s32 %v5717, 127
        %v5719 = vshll.u32 %v5718, 23
        %v5720 = vor.u32 4788187, %v5719
        %v5721 = vand.u32 2147483647, %v5720
        %v5723 = vcvt.s32.f32 %v5716
        %v5724 = vmul.f32 %v5723, %v5721
        %v5725 = vxor.u32 %v5724, 2147483648
        %v5726 = vsel %vm5605, %v5725, %v5724
        %v5727 = vsub.s32 4, %v5703
        %v5728 = vsel %vm5605, %v5727, %v5703
        %v5729 = vsel %vm5604, %v457, %v5726
        %v5730 = vsel %vm5604, 0, %v5728
        %v5731 = vmul.f32 %v5729, %v5729
        %v5732 = vmul.f32 %v5731, -0.001358992
        %v5733 = vadd.f32 %v5732, 0.041655596
        %v5734 = vmul.f32 %v5731, %v5733
        %v5735 = vadd.f32 %v5734, -0.4999988
        %v5736 = vmul.f32 %v5731, %v5735
        %v5737 = vadd.f32 1.0, %v5736
        %v5738 = vmul.f32 %v5729, %v5729
        %v5739 = vmul.f32 %v5738, -0.00019511016
        %v5740 = vadd.f32 %v5739, 0.008332121
        %v5741 = vmul.f32 %v5738, %v5740
        %v5742 = vadd.f32 %v5741, -0.16666654
        %v5743 = vmul.f32 %v5738, %v5742
        %v5744 = vadd.f32 %v5743, 1.0
        %v5745 = vmul.f32 %v5744, %v5729
        %vm5746 = vweird.f32 %v457
        %v5747 = vadd.s32 %v5730, 3
        %v5748 = vand.u32 %v5747, 3
        %vm5749 = vcmp.lt.s32.totalorder %v5748, 2
        %vm5750 = vcmp.eq.s32.totalorder %v5748, 0
        %v5751 = vxor.u32 %v5745, 2147483648
        %v5752 = vsel %vm5750, %v5737, %v5751
        %vm5753 = vcmp.eq.s32.totalorder %v5748, 2
        %v5754 = vxor.u32 %v5737, 2147483648
        %v5755 = vsel %vm5753, %v5754, %v5745
        %v5756 = vsel %vm5749, %v5752, %v5755
        %v5757 = vsel %vm5746, nan, %v5756
        %v5758 = vand.u32 2147483647, %v458
        %vm5759 = vcmp.le.f32.partialorder %v5758, 0.7853982
        %vm5760 = vcmp.lt.s32.totalorder %v458, 0
        %v5761 = vand.u32 %v458, 2139095040
        %v5762 = vshrl.u32 %v5761, 23
        %v5763 = vsub.s32 %v5762, 127
        %v5764 = vand.u32 2147483647, %v458
        %v5765 = vand.u32 %v5764, 8388607
        %v5766 = vor.u32 %v5765, 8388608
        %v5767 = vsub.s32 0, %v5766
        %v5768 = vadd.s32 %v5763, 1
        %vm5769 = vcmp.gt.s32.totalorder %v5768, 0
        %v5770 = vsel %vm5769, %v5768, 0
        %v5771 = vshrl.u32 %v5770, 5
        %v5772 = vand.u32 %v5770, 31
        %v5773 = vsub.s32 32, %v5772
        %v5774 = vshrl.u32 683565275, %v5773
        %v5775 = vshll.u32 683565275, %v5772
        %v5776 = vshrl.u32 2475754826, %v5773
        %v5777 = vor.u32 %v5775, %v5776
        %v5778 = vshll.u32 2475754826, %v5772
        %v5779 = vshrl.u32 2131351028, %v5773
        %v5780 = vor.u32 %v5778, %v5779
        %v5781 = vshll.u32 2131351028, %v5772
        %v5782 = vshrl.u32 2102212464, %v5773
        %v5783 = vor.u32 %v5781, %v5782
        %v5784 = vshll.u32 2102212464, %v5772
        %v5785 = vshrl.u32 920167782, %v5773
        %v5786 = vor.u32 %v5784, %v5785
        %v5787 = vshll.u32 920167782, %v5772
        %v5788 = vshrl.u32 1326507024, %v5773
        %v5789 = vor.u32 %v5787, %v5788
        %vm5790 = vcmp.lt.s32.totalorder %v5771, 1
        %vm5791 = vcmp.lt.s32.totalorder %v5771, 2
        %vm5792 = vcmp.lt.s32.totalorder %v5771, 3
        %vm5793 = vcmp.lt.s32.totalorder %v5771, 4
        %v5794 = vsel %vm5790, %v5774, %v5777
        %v5795 = vsel %vm5793, %v5783, 2102212464
        %v5796 = vsel %vm5792, %v5780, %v5795
        %v5797 = vsel %vm5791, %v5794, %v5796
        %v5798 = vsel %vm5790, %v5777, %v5780
        %v5799 = vsel %vm5793, %v5786, 920167782
        %v5800 = vsel %vm5792, %v5783, %v5799
        %v5801 = vsel %vm5791, %v5798, %v5800
        %v5802 = vsel %vm5790, %v5780, %v5783
        %v5803 = vsel %vm5793, %v5789, 1326507024
        %v5804 = vsel %vm5792, %v5786, %v5803
        %v5805 = vsel %vm5791, %v5802, %v5804
        %v5806 = vshll.u32 %v5766, 8
        %v5807 = vand.u32 %v5806, 65535
        %v5808 = vshrl.u32 %v5806, 16
        %v5809 = vand.u32 %v5805, 65535
        %v5810 = vshrl.u32 %v5805, 16
        %v5811 = vmul.u32 %v5807, %v5809
        %v5812 = vmul.u32 %v5807, %v5810
        %v5813 = vmul.u32 %v5808, %v5809
        %v5814 = vmul.u32 %v5808, %v5810
        %v5815 = vshll.u32 %v5812, 16
        %v5816 = vshrl.u32 %v5812, 16
        %v5817 = vshll.u32 %v5813, 16
        %v5818 = vshrl.u32 %v5813, 16
        %vm5819 = vc.u32 %v5811, %v5815
        %v5820 = vsel %vm5819, 1, 0
        %v5821 = vadd.s32 %v5811, %v5815
        %v5822 = vadd.s32 %v5814, %v5820
        %vm5823 = vc.u32 %v5821, %v5817
        %v5824 = vsel %vm5823, 1, 0
        %v5825 = vadd.s32 %v5821, %v5817
        %v5826 = vadd.s32 %v5822, %v5824
        %v5827 = vadd.s32 %v5826, %v5816
        %v5828 = vadd.s32 %v5827, %v5818
        %v5829 = vand.u32 %v5806, 65535
        %v5830 = vshrl.u32 %v5806, 16
        %v5831 = vand.u32 %v5801, 65535
        %v5832 = vshrl.u32 %v5801, 16
        %v5833 = vmul.u32 %v5829, %v5831
        %v5834 = vmul.u32 %v5829, %v5832
        %v5835 = vmul.u32 %v5830, %v5831
        %v5836 = vmul.u32 %v5830, %v5832
        %v5837 = vshll.u32 %v5834, 16
        %v5838 = vshrl.u32 %v5834, 16
        %v5839 = vshll.u32 %v5835, 16
        %v5840 = vshrl.u32 %v5835, 16
        %vm5841 = vc.u32 %v5833, %v5837
        %v5842 = vsel %vm5841, 1, 0
        %v5843 = vadd.s32 %v5833, %v5837
        %v5844 = vadd.s32 %v5836, %v5842
        %vm5845 = vc.u32 %v5843, %v5839
        %v5846 = vsel %vm5845, 1, 0
        %v5847 = vadd.s32 %v5843, %v5839
        %v5848 = vadd.s32 %v5844, %v5846
        %v5849 = vadd.s32 %v5848, %v5838
        %v5850 = vadd.s32 %v5849, %v5840
        %v5851 = vmul.u32 %v5806, %v5797
        %v5852 = vadd.s32 %v5828, %v5847
        %vm5853 = vc.u32 %v5828, %v5847
        %v5854 = vadd.s32 %v5850, 1
        %v5855 = vsel %vm5853, %v5854, %v5850
        %v5856 = vadd.s32 %v5851, %v5855
        %v5857 = vadd.s32 %v5856, 536870912
        %v5858 = vshrl.u32 %v5857, 30
        %v5859 = vshll.u32 %v5858, 30
        %v5860 = vsub.s32 %v5856, %v5859
        %vm5861 = vcmp.lt.s32.totalorder %v5860, 0
        %v5862 = vsub.s32 0, %v5860
        %v5863 = vsel %vm5861, %v5862, %v5860
        %v5864 = vclz %v5863
        %v5865 = vsub.s32 %v5864, 2
        %vm5866 = vcmp.gt.s32.totalorder 0, %v5865
        %v5867 = vsel %vm5866, 0, %v5865
        %v5868 = vsub.s32 32, %v5867
        %v5869 = vshll.u32 %v5860, %v5867
        %v5870 = vshrl.u32 %v5852, %v5868
        %v5871 = vor.u32 %v5869, %v5870
        %v5872 = vsub.s32 4294967266, %v5867
        %v5873 = vadd.s32 %v5872, 127
        %v5874 = vshll.u32 %v5873, 23
        %v5875 = vor.u32 4788187, %v5874
        %v5876 = vand.u32 2147483647, %v5875
        %v5878 = vcvt.s32.f32 %v5871
        %v5879 = vmul.f32 %v5878, %v5876
        %v5880 = vxor.u32 %v5879, 2147483648
        %v5881 = vsel %vm5760, %v5880, %v5879
        %v5882 = vsub.s32 4, %v5858
        %v5883 = vsel %vm5760, %v5882, %v5858
        %v5884 = vsel %vm5759, %v458, %v5881
        %v5885 = vsel %vm5759, 0, %v5883
        %v5886 = vmul.f32 %v5884, %v5884
        %v5887 = vmul.f32 %v5886, -0.001358992
        %v5888 = vadd.f32 %v5887, 0.041655596
        %v5889 = vmul.f32 %v5886, %v5888
        %v5890 = vadd.f32 %v5889, -0.4999988
        %v5891 = vmul.f32 %v5886, %v5890
        %v5892 = vadd.f32 1.0, %v5891
        %v5893 = vmul.f32 %v5884, %v5884
        %v5894 = vmul.f32 %v5893, -0.00019511016
        %v5895 = vadd.f32 %v5894, 0.008332121
        %v5896 = vmul.f32 %v5893, %v5895
        %v5897 = vadd.f32 %v5896, -0.16666654
        %v5898 = vmul.f32 %v5893, %v5897
        %v5899 = vadd.f32 %v5898, 1.0
        %v5900 = vmul.f32 %v5899, %v5884
        %vm5901 = vweird.f32 %v458
        %v5902 = vadd.s32 %v5885, 3
        %v5903 = vand.u32 %v5902, 3
        %vm5904 = vcmp.lt.s32.totalorder %v5903, 2
        %vm5905 = vcmp.eq.s32.totalorder %v5903, 0
        %v5906 = vxor.u32 %v5900, 2147483648
        %v5907 = vsel %vm5905, %v5892, %v5906
        %vm5908 = vcmp.eq.s32.totalorder %v5903, 2
        %v5909 = vxor.u32 %v5892, 2147483648
        %v5910 = vsel %vm5908, %v5909, %v5900
        %v5911 = vsel %vm5904, %v5907, %v5910
        %v5912 = vsel %vm5901, nan, %v5911
        %v5913 = vand.u32 2147483647, %v459
        %vm5914 = vcmp.le.f32.partialorder %v5913, 0.7853982
        %vm5915 = vcmp.lt.s32.totalorder %v459, 0
        %v5916 = vand.u32 %v459, 2139095040
        %v5917 = vshrl.u32 %v5916, 23
        %v5918 = vsub.s32 %v5917, 127
        %v5919 = vand.u32 2147483647, %v459
        %v5920 = vand.u32 %v5919, 8388607
        %v5921 = vor.u32 %v5920, 8388608
        %v5922 = vsub.s32 0, %v5921
        %v5923 = vadd.s32 %v5918, 1
        %vm5924 = vcmp.gt.s32.totalorder %v5923, 0
        %v5925 = vsel %vm5924, %v5923, 0
        %v5926 = vshrl.u32 %v5925, 5
        %v5927 = vand.u32 %v5925, 31
        %v5928 = vsub.s32 32, %v5927
        %v5929 = vshrl.u32 683565275, %v5928
        %v5930 = vshll.u32 683565275, %v5927
        %v5931 = vshrl.u32 2475754826, %v5928
        %v5932 = vor.u32 %v5930, %v5931
        %v5933 = vshll.u32 2475754826, %v5927
        %v5934 = vshrl.u32 2131351028, %v5928
        %v5935 = vor.u32 %v5933, %v5934
        %v5936 = vshll.u32 2131351028, %v5927
        %v5937 = vshrl.u32 2102212464, %v5928
        %v5938 = vor.u32 %v5936, %v5937
        %v5939 = vshll.u32 2102212464, %v5927
        %v5940 = vshrl.u32 920167782, %v5928
        %v5941 = vor.u32 %v5939, %v5940
        %v5942 = vshll.u32 920167782, %v5927
        %v5943 = vshrl.u32 1326507024, %v5928
        %v5944 = vor.u32 %v5942, %v5943
        %vm5945 = vcmp.lt.s32.totalorder %v5926, 1
        %vm5946 = vcmp.lt.s32.totalorder %v5926, 2
        %vm5947 = vcmp.lt.s32.totalorder %v5926, 3
        %vm5948 = vcmp.lt.s32.totalorder %v5926, 4
        %v5949 = vsel %vm5945, %v5929, %v5932
        %v5950 = vsel %vm5948, %v5938, 2102212464
        %v5951 = vsel %vm5947, %v5935, %v5950
        %v5952 = vsel %vm5946, %v5949, %v5951
        %v5953 = vsel %vm5945, %v5932, %v5935
        %v5954 = vsel %vm5948, %v5941, 920167782
        %v5955 = vsel %vm5947, %v5938, %v5954
        %v5956 = vsel %vm5946, %v5953, %v5955
        %v5957 = vsel %vm5945, %v5935, %v5938
        %v5958 = vsel %vm5948, %v5944, 1326507024
        %v5959 = vsel %vm5947, %v5941, %v5958
        %v5960 = vsel %vm5946, %v5957, %v5959
        %v5961 = vshll.u32 %v5921, 8
        %v5962 = vand.u32 %v5961, 65535
        %v5963 = vshrl.u32 %v5961, 16
        %v5964 = vand.u32 %v5960, 65535
        %v5965 = vshrl.u32 %v5960, 16
        %v5966 = vmul.u32 %v5962, %v5964
        %v5967 = vmul.u32 %v5962, %v5965
        %v5968 = vmul.u32 %v5963, %v5964
        %v5969 = vmul.u32 %v5963, %v5965
        %v5970 = vshll.u32 %v5967, 16
        %v5971 = vshrl.u32 %v5967, 16
        %v5972 = vshll.u32 %v5968, 16
        %v5973 = vshrl.u32 %v5968, 16
        %vm5974 = vc.u32 %v5966, %v5970
        %v5975 = vsel %vm5974, 1, 0
        %v5976 = vadd.s32 %v5966, %v5970
        %v5977 = vadd.s32 %v5969, %v5975
        %vm5978 = vc.u32 %v5976, %v5972
        %v5979 = vsel %vm5978, 1, 0
        %v5980 = vadd.s32 %v5976, %v5972
        %v5981 = vadd.s32 %v5977, %v5979
        %v5982 = vadd.s32 %v5981, %v5971
        %v5983 = vadd.s32 %v5982, %v5973
        %v5984 = vand.u32 %v5961, 65535
        %v5985 = vshrl.u32 %v5961, 16
        %v5986 = vand.u32 %v5956, 65535
        %v5987 = vshrl.u32 %v5956, 16
        %v5988 = vmul.u32 %v5984, %v5986
        %v5989 = vmul.u32 %v5984, %v5987
        %v5990 = vmul.u32 %v5985, %v5986
        %v5991 = vmul.u32 %v5985, %v5987
        %v5992 = vshll.u32 %v5989, 16
        %v5993 = vshrl.u32 %v5989, 16
        %v5994 = vshll.u32 %v5990, 16
        %v5995 = vshrl.u32 %v5990, 16
        %vm5996 = vc.u32 %v5988, %v5992
        %v5997 = vsel %vm5996, 1, 0
        %v5998 = vadd.s32 %v5988, %v5992
        %v5999 = vadd.s32 %v5991, %v5997
        %vm6000 = vc.u32 %v5998, %v5994
        %v6001 = vsel %vm6000, 1, 0
        %v6002 = vadd.s32 %v5998, %v5994
        %v6003 = vadd.s32 %v5999, %v6001
        %v6004 = vadd.s32 %v6003, %v5993
        %v6005 = vadd.s32 %v6004, %v5995
        %v6006 = vmul.u32 %v5961, %v5952
        %v6007 = vadd.s32 %v5983, %v6002
        %vm6008 = vc.u32 %v5983, %v6002
        %v6009 = vadd.s32 %v6005, 1
        %v6010 = vsel %vm6008, %v6009, %v6005
        %v6011 = vadd.s32 %v6006, %v6010
        %v6012 = vadd.s32 %v6011, 536870912
        %v6013 = vshrl.u32 %v6012, 30
        %v6014 = vshll.u32 %v6013, 30
        %v6015 = vsub.s32 %v6011, %v6014
        %vm6016 = vcmp.lt.s32.totalorder %v6015, 0
        %v6017 = vsub.s32 0, %v6015
        %v6018 = vsel %vm6016, %v6017, %v6015
        %v6019 = vclz %v6018
        %v6020 = vsub.s32 %v6019, 2
        %vm6021 = vcmp.gt.s32.totalorder 0, %v6020
        %v6022 = vsel %vm6021, 0, %v6020
        %v6023 = vsub.s32 32, %v6022
        %v6024 = vshll.u32 %v6015, %v6022
        %v6025 = vshrl.u32 %v6007, %v6023
        %v6026 = vor.u32 %v6024, %v6025
        %v6027 = vsub.s32 4294967266, %v6022
        %v6028 = vadd.s32 %v6027, 127
        %v6029 = vshll.u32 %v6028, 23
        %v6030 = vor.u32 4788187, %v6029
        %v6031 = vand.u32 2147483647, %v6030
        %v6033 = vcvt.s32.f32 %v6026
        %v6034 = vmul.f32 %v6033, %v6031
        %v6035 = vxor.u32 %v6034, 2147483648
        %v6036 = vsel %vm5915, %v6035, %v6034
        %v6037 = vsub.s32 4, %v6013
        %v6038 = vsel %vm5915, %v6037, %v6013
        %v6039 = vsel %vm5914, %v459, %v6036
        %v6040 = vsel %vm5914, 0, %v6038
        %v6041 = vmul.f32 %v6039, %v6039
        %v6042 = vmul.f32 %v6041, -0.001358992
        %v6043 = vadd.f32 %v6042, 0.041655596
        %v6044 = vmul.f32 %v6041, %v6043
        %v6045 = vadd.f32 %v6044, -0.4999988
        %v6046 = vmul.f32 %v6041, %v6045
        %v6047 = vadd.f32 1.0, %v6046
        %v6048 = vmul.f32 %v6039, %v6039
        %v6049 = vmul.f32 %v6048, -0.00019511016
        %v6050 = vadd.f32 %v6049, 0.008332121
        %v6051 = vmul.f32 %v6048, %v6050
        %v6052 = vadd.f32 %v6051, -0.16666654
        %v6053 = vmul.f32 %v6048, %v6052
        %v6054 = vadd.f32 %v6053, 1.0
        %v6055 = vmul.f32 %v6054, %v6039
        %vm6056 = vweird.f32 %v459
        %v6057 = vadd.s32 %v6040, 3
        %v6058 = vand.u32 %v6057, 3
        %vm6059 = vcmp.lt.s32.totalorder %v6058, 2
        %vm6060 = vcmp.eq.s32.totalorder %v6058, 0
        %v6061 = vxor.u32 %v6055, 2147483648
        %v6062 = vsel %vm6060, %v6047, %v6061
        %vm6063 = vcmp.eq.s32.totalorder %v6058, 2
        %v6064 = vxor.u32 %v6047, 2147483648
        %v6065 = vsel %vm6063, %v6064, %v6055
        %v6066 = vsel %vm6059, %v6062, %v6065
        %v6067 = vsel %vm6056, nan, %v6066
        %v6068 = vand.u32 2147483647, %v460
        %vm6069 = vcmp.le.f32.partialorder %v6068, 0.7853982
        %vm6070 = vcmp.lt.s32.totalorder %v460, 0
        %v6071 = vand.u32 %v460, 2139095040
        %v6072 = vshrl.u32 %v6071, 23
        %v6073 = vsub.s32 %v6072, 127
        %v6074 = vand.u32 2147483647, %v460
        %v6075 = vand.u32 %v6074, 8388607
        %v6076 = vor.u32 %v6075, 8388608
        %v6077 = vsub.s32 0, %v6076
        %v6078 = vadd.s32 %v6073, 1
        %vm6079 = vcmp.gt.s32.totalorder %v6078, 0
        %v6080 = vsel %vm6079, %v6078, 0
        %v6081 = vshrl.u32 %v6080, 5
        %v6082 = vand.u32 %v6080, 31
        %v6083 = vsub.s32 32, %v6082
        %v6084 = vshrl.u32 683565275, %v6083
        %v6085 = vshll.u32 683565275, %v6082
        %v6086 = vshrl.u32 2475754826, %v6083
        %v6087 = vor.u32 %v6085, %v6086
        %v6088 = vshll.u32 2475754826, %v6082
        %v6089 = vshrl.u32 2131351028, %v6083
        %v6090 = vor.u32 %v6088, %v6089
        %v6091 = vshll.u32 2131351028, %v6082
        %v6092 = vshrl.u32 2102212464, %v6083
        %v6093 = vor.u32 %v6091, %v6092
        %v6094 = vshll.u32 2102212464, %v6082
        %v6095 = vshrl.u32 920167782, %v6083
        %v6096 = vor.u32 %v6094, %v6095
        %v6097 = vshll.u32 920167782, %v6082
        %v6098 = vshrl.u32 1326507024, %v6083
        %v6099 = vor.u32 %v6097, %v6098
        %vm6100 = vcmp.lt.s32.totalorder %v6081, 1
        %vm6101 = vcmp.lt.s32.totalorder %v6081, 2
        %vm6102 = vcmp.lt.s32.totalorder %v6081, 3
        %vm6103 = vcmp.lt.s32.totalorder %v6081, 4
        %v6104 = vsel %vm6100, %v6084, %v6087
        %v6105 = vsel %vm6103, %v6093, 2102212464
        %v6106 = vsel %vm6102, %v6090, %v6105
        %v6107 = vsel %vm6101, %v6104, %v6106
        %v6108 = vsel %vm6100, %v6087, %v6090
        %v6109 = vsel %vm6103, %v6096, 920167782
        %v6110 = vsel %vm6102, %v6093, %v6109
        %v6111 = vsel %vm6101, %v6108, %v6110
        %v6112 = vsel %vm6100, %v6090, %v6093
        %v6113 = vsel %vm6103, %v6099, 1326507024
        %v6114 = vsel %vm6102, %v6096, %v6113
        %v6115 = vsel %vm6101, %v6112, %v6114
        %v6116 = vshll.u32 %v6076, 8
        %v6117 = vand.u32 %v6116, 65535
        %v6118 = vshrl.u32 %v6116, 16
        %v6119 = vand.u32 %v6115, 65535
        %v6120 = vshrl.u32 %v6115, 16
        %v6121 = vmul.u32 %v6117, %v6119
        %v6122 = vmul.u32 %v6117, %v6120
        %v6123 = vmul.u32 %v6118, %v6119
        %v6124 = vmul.u32 %v6118, %v6120
        %v6125 = vshll.u32 %v6122, 16
        %v6126 = vshrl.u32 %v6122, 16
        %v6127 = vshll.u32 %v6123, 16
        %v6128 = vshrl.u32 %v6123, 16
        %vm6129 = vc.u32 %v6121, %v6125
        %v6130 = vsel %vm6129, 1, 0
        %v6131 = vadd.s32 %v6121, %v6125
        %v6132 = vadd.s32 %v6124, %v6130
        %vm6133 = vc.u32 %v6131, %v6127
        %v6134 = vsel %vm6133, 1, 0
        %v6135 = vadd.s32 %v6131, %v6127
        %v6136 = vadd.s32 %v6132, %v6134
        %v6137 = vadd.s32 %v6136, %v6126
        %v6138 = vadd.s32 %v6137, %v6128
        %v6139 = vand.u32 %v6116, 65535
        %v6140 = vshrl.u32 %v6116, 16
        %v6141 = vand.u32 %v6111, 65535
        %v6142 = vshrl.u32 %v6111, 16
        %v6143 = vmul.u32 %v6139, %v6141
        %v6144 = vmul.u32 %v6139, %v6142
        %v6145 = vmul.u32 %v6140, %v6141
        %v6146 = vmul.u32 %v6140, %v6142
        %v6147 = vshll.u32 %v6144, 16
        %v6148 = vshrl.u32 %v6144, 16
        %v6149 = vshll.u32 %v6145, 16
        %v6150 = vshrl.u32 %v6145, 16
        %vm6151 = vc.u32 %v6143, %v6147
        %v6152 = vsel %vm6151, 1, 0
        %v6153 = vadd.s32 %v6143, %v6147
        %v6154 = vadd.s32 %v6146, %v6152
        %vm6155 = vc.u32 %v6153, %v6149
        %v6156 = vsel %vm6155, 1, 0
        %v6157 = vadd.s32 %v6153, %v6149
        %v6158 = vadd.s32 %v6154, %v6156
        %v6159 = vadd.s32 %v6158, %v6148
        %v6160 = vadd.s32 %v6159, %v6150
        %v6161 = vmul.u32 %v6116, %v6107
        %v6162 = vadd.s32 %v6138, %v6157
        %vm6163 = vc.u32 %v6138, %v6157
        %v6164 = vadd.s32 %v6160, 1
        %v6165 = vsel %vm6163, %v6164, %v6160
        %v6166 = vadd.s32 %v6161, %v6165
        %v6167 = vadd.s32 %v6166, 536870912
        %v6168 = vshrl.u32 %v6167, 30
        %v6169 = vshll.u32 %v6168, 30
        %v6170 = vsub.s32 %v6166, %v6169
        %vm6171 = vcmp.lt.s32.totalorder %v6170, 0
        %v6172 = vsub.s32 0, %v6170
        %v6173 = vsel %vm6171, %v6172, %v6170
        %v6174 = vclz %v6173
        %v6175 = vsub.s32 %v6174, 2
        %vm6176 = vcmp.gt.s32.totalorder 0, %v6175
        %v6177 = vsel %vm6176, 0, %v6175
        %v6178 = vsub.s32 32, %v6177
        %v6179 = vshll.u32 %v6170, %v6177
        %v6180 = vshrl.u32 %v6162, %v6178
        %v6181 = vor.u32 %v6179, %v6180
        %v6182 = vsub.s32 4294967266, %v6177
        %v6183 = vadd.s32 %v6182, 127
        %v6184 = vshll.u32 %v6183, 23
        %v6185 = vor.u32 4788187, %v6184
        %v6186 = vand.u32 2147483647, %v6185
        %v6188 = vcvt.s32.f32 %v6181
        %v6189 = vmul.f32 %v6188, %v6186
        %v6190 = vxor.u32 %v6189, 2147483648
        %v6191 = vsel %vm6070, %v6190, %v6189
        %v6192 = vsub.s32 4, %v6168
        %v6193 = vsel %vm6070, %v6192, %v6168
        %v6194 = vsel %vm6069, %v460, %v6191
        %v6195 = vsel %vm6069, 0, %v6193
        %v6196 = vmul.f32 %v6194, %v6194
        %v6197 = vmul.f32 %v6196, -0.001358992
        %v6198 = vadd.f32 %v6197, 0.041655596
        %v6199 = vmul.f32 %v6196, %v6198
        %v6200 = vadd.f32 %v6199, -0.4999988
        %v6201 = vmul.f32 %v6196, %v6200
        %v6202 = vadd.f32 1.0, %v6201
        %v6203 = vmul.f32 %v6194, %v6194
        %v6204 = vmul.f32 %v6203, -0.00019511016
        %v6205 = vadd.f32 %v6204, 0.008332121
        %v6206 = vmul.f32 %v6203, %v6205
        %v6207 = vadd.f32 %v6206, -0.16666654
        %v6208 = vmul.f32 %v6203, %v6207
        %v6209 = vadd.f32 %v6208, 1.0
        %v6210 = vmul.f32 %v6209, %v6194
        %vm6211 = vweird.f32 %v460
        %v6212 = vadd.s32 %v6195, 3
        %v6213 = vand.u32 %v6212, 3
        %vm6214 = vcmp.lt.s32.totalorder %v6213, 2
        %vm6215 = vcmp.eq.s32.totalorder %v6213, 0
        %v6216 = vxor.u32 %v6210, 2147483648
        %v6217 = vsel %vm6215, %v6202, %v6216
        %vm6218 = vcmp.eq.s32.totalorder %v6213, 2
        %v6219 = vxor.u32 %v6202, 2147483648
        %v6220 = vsel %vm6218, %v6219, %v6210
        %v6221 = vsel %vm6214, %v6217, %v6220
        %v6222 = vsel %vm6211, nan, %v6221
        %v6223 = vand.u32 2147483647, %v461
        %vm6224 = vcmp.le.f32.partialorder %v6223, 0.7853982
        %vm6225 = vcmp.lt.s32.totalorder %v461, 0
        %v6226 = vand.u32 %v461, 2139095040
        %v6227 = vshrl.u32 %v6226, 23
        %v6228 = vsub.s32 %v6227, 127
        %v6229 = vand.u32 2147483647, %v461
        %v6230 = vand.u32 %v6229, 8388607
        %v6231 = vor.u32 %v6230, 8388608
        %v6232 = vsub.s32 0, %v6231
        %v6233 = vadd.s32 %v6228, 1
        %vm6234 = vcmp.gt.s32.totalorder %v6233, 0
        %v6235 = vsel %vm6234, %v6233, 0
        %v6236 = vshrl.u32 %v6235, 5
        %v6237 = vand.u32 %v6235, 31
        %v6238 = vsub.s32 32, %v6237
        %v6239 = vshrl.u32 683565275, %v6238
        %v6240 = vshll.u32 683565275, %v6237
        %v6241 = vshrl.u32 2475754826, %v6238
        %v6242 = vor.u32 %v6240, %v6241
        %v6243 = vshll.u32 2475754826, %v6237
        %v6244 = vshrl.u32 2131351028, %v6238
        %v6245 = vor.u32 %v6243, %v6244
        %v6246 = vshll.u32 2131351028, %v6237
        %v6247 = vshrl.u32 2102212464, %v6238
        %v6248 = vor.u32 %v6246, %v6247
        %v6249 = vshll.u32 2102212464, %v6237
        %v6250 = vshrl.u32 920167782, %v6238
        %v6251 = vor.u32 %v6249, %v6250
        %v6252 = vshll.u32 920167782, %v6237
        %v6253 = vshrl.u32 1326507024, %v6238
        %v6254 = vor.u32 %v6252, %v6253
        %vm6255 = vcmp.lt.s32.totalorder %v6236, 1
        %vm6256 = vcmp.lt.s32.totalorder %v6236, 2
        %vm6257 = vcmp.lt.s32.totalorder %v6236, 3
        %vm6258 = vcmp.lt.s32.totalorder %v6236, 4
        %v6259 = vsel %vm6255, %v6239, %v6242
        %v6260 = vsel %vm6258, %v6248, 2102212464
        %v6261 = vsel %vm6257, %v6245, %v6260
        %v6262 = vsel %vm6256, %v6259, %v6261
        %v6263 = vsel %vm6255, %v6242, %v6245
        %v6264 = vsel %vm6258, %v6251, 920167782
        %v6265 = vsel %vm6257, %v6248, %v6264
        %v6266 = vsel %vm6256, %v6263, %v6265
        %v6267 = vsel %vm6255, %v6245, %v6248
        %v6268 = vsel %vm6258, %v6254, 1326507024
        %v6269 = vsel %vm6257, %v6251, %v6268
        %v6270 = vsel %vm6256, %v6267, %v6269
        %v6271 = vshll.u32 %v6231, 8
        %v6272 = vand.u32 %v6271, 65535
        %v6273 = vshrl.u32 %v6271, 16
        %v6274 = vand.u32 %v6270, 65535
        %v6275 = vshrl.u32 %v6270, 16
        %v6276 = vmul.u32 %v6272, %v6274
        %v6277 = vmul.u32 %v6272, %v6275
        %v6278 = vmul.u32 %v6273, %v6274
        %v6279 = vmul.u32 %v6273, %v6275
        %v6280 = vshll.u32 %v6277, 16
        %v6281 = vshrl.u32 %v6277, 16
        %v6282 = vshll.u32 %v6278, 16
        %v6283 = vshrl.u32 %v6278, 16
        %vm6284 = vc.u32 %v6276, %v6280
        %v6285 = vsel %vm6284, 1, 0
        %v6286 = vadd.s32 %v6276, %v6280
        %v6287 = vadd.s32 %v6279, %v6285
        %vm6288 = vc.u32 %v6286, %v6282
        %v6289 = vsel %vm6288, 1, 0
        %v6290 = vadd.s32 %v6286, %v6282
        %v6291 = vadd.s32 %v6287, %v6289
        %v6292 = vadd.s32 %v6291, %v6281
        %v6293 = vadd.s32 %v6292, %v6283
        %v6294 = vand.u32 %v6271, 65535
        %v6295 = vshrl.u32 %v6271, 16
        %v6296 = vand.u32 %v6266, 65535
        %v6297 = vshrl.u32 %v6266, 16
        %v6298 = vmul.u32 %v6294, %v6296
        %v6299 = vmul.u32 %v6294, %v6297
        %v6300 = vmul.u32 %v6295, %v6296
        %v6301 = vmul.u32 %v6295, %v6297
        %v6302 = vshll.u32 %v6299, 16
        %v6303 = vshrl.u32 %v6299, 16
        %v6304 = vshll.u32 %v6300, 16
        %v6305 = vshrl.u32 %v6300, 16
        %vm6306 = vc.u32 %v6298, %v6302
        %v6307 = vsel %vm6306, 1, 0
        %v6308 = vadd.s32 %v6298, %v6302
        %v6309 = vadd.s32 %v6301, %v6307
        %vm6310 = vc.u32 %v6308, %v6304
        %v6311 = vsel %vm6310, 1, 0
        %v6312 = vadd.s32 %v6308, %v6304
        %v6313 = vadd.s32 %v6309, %v6311
        %v6314 = vadd.s32 %v6313, %v6303
        %v6315 = vadd.s32 %v6314, %v6305
        %v6316 = vmul.u32 %v6271, %v6262
        %v6317 = vadd.s32 %v6293, %v6312
        %vm6318 = vc.u32 %v6293, %v6312
        %v6319 = vadd.s32 %v6315, 1
        %v6320 = vsel %vm6318, %v6319, %v6315
        %v6321 = vadd.s32 %v6316, %v6320
        %v6322 = vadd.s32 %v6321, 536870912
        %v6323 = vshrl.u32 %v6322, 30
        %v6324 = vshll.u32 %v6323, 30
        %v6325 = vsub.s32 %v6321, %v6324
        %vm6326 = vcmp.lt.s32.totalorder %v6325, 0
        %v6327 = vsub.s32 0, %v6325
        %v6328 = vsel %vm6326, %v6327, %v6325
        %v6329 = vclz %v6328
        %v6330 = vsub.s32 %v6329, 2
        %vm6331 = vcmp.gt.s32.totalorder 0, %v6330
        %v6332 = vsel %vm6331, 0, %v6330
        %v6333 = vsub.s32 32, %v6332
        %v6334 = vshll.u32 %v6325, %v6332
        %v6335 = vshrl.u32 %v6317, %v6333
        %v6336 = vor.u32 %v6334, %v6335
        %v6337 = vsub.s32 4294967266, %v6332
        %v6338 = vadd.s32 %v6337, 127
        %v6339 = vshll.u32 %v6338, 23
        %v6340 = vor.u32 4788187, %v6339
        %v6341 = vand.u32 2147483647, %v6340
        %v6343 = vcvt.s32.f32 %v6336
        %v6344 = vmul.f32 %v6343, %v6341
        %v6345 = vxor.u32 %v6344, 2147483648
        %v6346 = vsel %vm6225, %v6345, %v6344
        %v6347 = vsub.s32 4, %v6323
        %v6348 = vsel %vm6225, %v6347, %v6323
        %v6349 = vsel %vm6224, %v461, %v6346
        %v6350 = vsel %vm6224, 0, %v6348
        %v6351 = vmul.f32 %v6349, %v6349
        %v6352 = vmul.f32 %v6351, -0.001358992
        %v6353 = vadd.f32 %v6352, 0.041655596
        %v6354 = vmul.f32 %v6351, %v6353
        %v6355 = vadd.f32 %v6354, -0.4999988
        %v6356 = vmul.f32 %v6351, %v6355
        %v6357 = vadd.f32 1.0, %v6356
        %v6358 = vmul.f32 %v6349, %v6349
        %v6359 = vmul.f32 %v6358, -0.00019511016
        %v6360 = vadd.f32 %v6359, 0.008332121
        %v6361 = vmul.f32 %v6358, %v6360
        %v6362 = vadd.f32 %v6361, -0.16666654
        %v6363 = vmul.f32 %v6358, %v6362
        %v6364 = vadd.f32 %v6363, 1.0
        %v6365 = vmul.f32 %v6364, %v6349
        %vm6366 = vweird.f32 %v461
        %v6367 = vadd.s32 %v6350, 3
        %v6368 = vand.u32 %v6367, 3
        %vm6369 = vcmp.lt.s32.totalorder %v6368, 2
        %vm6370 = vcmp.eq.s32.totalorder %v6368, 0
        %v6371 = vxor.u32 %v6365, 2147483648
        %v6372 = vsel %vm6370, %v6357, %v6371
        %vm6373 = vcmp.eq.s32.totalorder %v6368, 2
        %v6374 = vxor.u32 %v6357, 2147483648
        %v6375 = vsel %vm6373, %v6374, %v6365
        %v6376 = vsel %vm6369, %v6372, %v6375
        %v6377 = vsel %vm6366, nan, %v6376
        %v6378 = vand.u32 2147483647, %v462
        %vm6379 = vcmp.le.f32.partialorder %v6378, 0.7853982
        %vm6380 = vcmp.lt.s32.totalorder %v462, 0
        %v6381 = vand.u32 %v462, 2139095040
        %v6382 = vshrl.u32 %v6381, 23
        %v6383 = vsub.s32 %v6382, 127
        %v6384 = vand.u32 2147483647, %v462
        %v6385 = vand.u32 %v6384, 8388607
        %v6386 = vor.u32 %v6385, 8388608
        %v6387 = vsub.s32 0, %v6386
        %v6388 = vadd.s32 %v6383, 1
        %vm6389 = vcmp.gt.s32.totalorder %v6388, 0
        %v6390 = vsel %vm6389, %v6388, 0
        %v6391 = vshrl.u32 %v6390, 5
        %v6392 = vand.u32 %v6390, 31
        %v6393 = vsub.s32 32, %v6392
        %v6394 = vshrl.u32 683565275, %v6393
        %v6395 = vshll.u32 683565275, %v6392
        %v6396 = vshrl.u32 2475754826, %v6393
        %v6397 = vor.u32 %v6395, %v6396
        %v6398 = vshll.u32 2475754826, %v6392
        %v6399 = vshrl.u32 2131351028, %v6393
        %v6400 = vor.u32 %v6398, %v6399
        %v6401 = vshll.u32 2131351028, %v6392
        %v6402 = vshrl.u32 2102212464, %v6393
        %v6403 = vor.u32 %v6401, %v6402
        %v6404 = vshll.u32 2102212464, %v6392
        %v6405 = vshrl.u32 920167782, %v6393
        %v6406 = vor.u32 %v6404, %v6405
        %v6407 = vshll.u32 920167782, %v6392
        %v6408 = vshrl.u32 1326507024, %v6393
        %v6409 = vor.u32 %v6407, %v6408
        %vm6410 = vcmp.lt.s32.totalorder %v6391, 1
        %vm6411 = vcmp.lt.s32.totalorder %v6391, 2
        %vm6412 = vcmp.lt.s32.totalorder %v6391, 3
        %vm6413 = vcmp.lt.s32.totalorder %v6391, 4
        %v6414 = vsel %vm6410, %v6394, %v6397
        %v6415 = vsel %vm6413, %v6403, 2102212464
        %v6416 = vsel %vm6412, %v6400, %v6415
        %v6417 = vsel %vm6411, %v6414, %v6416
        %v6418 = vsel %vm6410, %v6397, %v6400
        %v6419 = vsel %vm6413, %v6406, 920167782
        %v6420 = vsel %vm6412, %v6403, %v6419
        %v6421 = vsel %vm6411, %v6418, %v6420
        %v6422 = vsel %vm6410, %v6400, %v6403
        %v6423 = vsel %vm6413, %v6409, 1326507024
        %v6424 = vsel %vm6412, %v6406, %v6423
        %v6425 = vsel %vm6411, %v6422, %v6424
        %v6426 = vshll.u32 %v6386, 8
        %v6427 = vand.u32 %v6426, 65535
        %v6428 = vshrl.u32 %v6426, 16
        %v6429 = vand.u32 %v6425, 65535
        %v6430 = vshrl.u32 %v6425, 16
        %v6431 = vmul.u32 %v6427, %v6429
        %v6432 = vmul.u32 %v6427, %v6430
        %v6433 = vmul.u32 %v6428, %v6429
        %v6434 = vmul.u32 %v6428, %v6430
        %v6435 = vshll.u32 %v6432, 16
        %v6436 = vshrl.u32 %v6432, 16
        %v6437 = vshll.u32 %v6433, 16
        %v6438 = vshrl.u32 %v6433, 16
        %vm6439 = vc.u32 %v6431, %v6435
        %v6440 = vsel %vm6439, 1, 0
        %v6441 = vadd.s32 %v6431, %v6435
        %v6442 = vadd.s32 %v6434, %v6440
        %vm6443 = vc.u32 %v6441, %v6437
        %v6444 = vsel %vm6443, 1, 0
        %v6445 = vadd.s32 %v6441, %v6437
        %v6446 = vadd.s32 %v6442, %v6444
        %v6447 = vadd.s32 %v6446, %v6436
        %v6448 = vadd.s32 %v6447, %v6438
        %v6449 = vand.u32 %v6426, 65535
        %v6450 = vshrl.u32 %v6426, 16
        %v6451 = vand.u32 %v6421, 65535
        %v6452 = vshrl.u32 %v6421, 16
        %v6453 = vmul.u32 %v6449, %v6451
        %v6454 = vmul.u32 %v6449, %v6452
        %v6455 = vmul.u32 %v6450, %v6451
        %v6456 = vmul.u32 %v6450, %v6452
        %v6457 = vshll.u32 %v6454, 16
        %v6458 = vshrl.u32 %v6454, 16
        %v6459 = vshll.u32 %v6455, 16
        %v6460 = vshrl.u32 %v6455, 16
        %vm6461 = vc.u32 %v6453, %v6457
        %v6462 = vsel %vm6461, 1, 0
        %v6463 = vadd.s32 %v6453, %v6457
        %v6464 = vadd.s32 %v6456, %v6462
        %vm6465 = vc.u32 %v6463, %v6459
        %v6466 = vsel %vm6465, 1, 0
        %v6467 = vadd.s32 %v6463, %v6459
        %v6468 = vadd.s32 %v6464, %v6466
        %v6469 = vadd.s32 %v6468, %v6458
        %v6470 = vadd.s32 %v6469, %v6460
        %v6471 = vmul.u32 %v6426, %v6417
        %v6472 = vadd.s32 %v6448, %v6467
        %vm6473 = vc.u32 %v6448, %v6467
        %v6474 = vadd.s32 %v6470, 1
        %v6475 = vsel %vm6473, %v6474, %v6470
        %v6476 = vadd.s32 %v6471, %v6475
        %v6477 = vadd.s32 %v6476, 536870912
        %v6478 = vshrl.u32 %v6477, 30
        %v6479 = vshll.u32 %v6478, 30
        %v6480 = vsub.s32 %v6476, %v6479
        %vm6481 = vcmp.lt.s32.totalorder %v6480, 0
        %v6482 = vsub.s32 0, %v6480
        %v6483 = vsel %vm6481, %v6482, %v6480
        %v6484 = vclz %v6483
        %v6485 = vsub.s32 %v6484, 2
        %vm6486 = vcmp.gt.s32.totalorder 0, %v6485
        %v6487 = vsel %vm6486, 0, %v6485
        %v6488 = vsub.s32 32, %v6487
        %v6489 = vshll.u32 %v6480, %v6487
        %v6490 = vshrl.u32 %v6472, %v6488
        %v6491 = vor.u32 %v6489, %v6490
        %v6492 = vsub.s32 4294967266, %v6487
        %v6493 = vadd.s32 %v6492, 127
        %v6494 = vshll.u32 %v6493, 23
        %v6495 = vor.u32 4788187, %v6494
        %v6496 = vand.u32 2147483647, %v6495
        %v6498 = vcvt.s32.f32 %v6491
        %v6499 = vmul.f32 %v6498, %v6496
        %v6500 = vxor.u32 %v6499, 2147483648
        %v6501 = vsel %vm6380, %v6500, %v6499
        %v6502 = vsub.s32 4, %v6478
        %v6503 = vsel %vm6380, %v6502, %v6478
        %v6504 = vsel %vm6379, %v462, %v6501
        %v6505 = vsel %vm6379, 0, %v6503
        %v6506 = vmul.f32 %v6504, %v6504
        %v6507 = vmul.f32 %v6506, -0.001358992
        %v6508 = vadd.f32 %v6507, 0.041655596
        %v6509 = vmul.f32 %v6506, %v6508
        %v6510 = vadd.f32 %v6509, -0.4999988
        %v6511 = vmul.f32 %v6506, %v6510
        %v6512 = vadd.f32 1.0, %v6511
        %v6513 = vmul.f32 %v6504, %v6504
        %v6514 = vmul.f32 %v6513, -0.00019511016
        %v6515 = vadd.f32 %v6514, 0.008332121
        %v6516 = vmul.f32 %v6513, %v6515
        %v6517 = vadd.f32 %v6516, -0.16666654
        %v6518 = vmul.f32 %v6513, %v6517
        %v6519 = vadd.f32 %v6518, 1.0
        %v6520 = vmul.f32 %v6519, %v6504
        %vm6521 = vweird.f32 %v462
        %v6522 = vadd.s32 %v6505, 3
        %v6523 = vand.u32 %v6522, 3
        %vm6524 = vcmp.lt.s32.totalorder %v6523, 2
        %vm6525 = vcmp.eq.s32.totalorder %v6523, 0
        %v6526 = vxor.u32 %v6520, 2147483648
        %v6527 = vsel %vm6525, %v6512, %v6526
        %vm6528 = vcmp.eq.s32.totalorder %v6523, 2
        %v6529 = vxor.u32 %v6512, 2147483648
        %v6530 = vsel %vm6528, %v6529, %v6520
        %v6531 = vsel %vm6524, %v6527, %v6530
        %v6532 = vsel %vm6521, nan, %v6531
        %v6533 = vand.u32 2147483647, %v463
        %vm6534 = vcmp.le.f32.partialorder %v6533, 0.7853982
        %vm6535 = vcmp.lt.s32.totalorder %v463, 0
        %v6536 = vand.u32 %v463, 2139095040
        %v6537 = vshrl.u32 %v6536, 23
        %v6538 = vsub.s32 %v6537, 127
        %v6539 = vand.u32 2147483647, %v463
        %v6540 = vand.u32 %v6539, 8388607
        %v6541 = vor.u32 %v6540, 8388608
        %v6542 = vsub.s32 0, %v6541
        %v6543 = vadd.s32 %v6538, 1
        %vm6544 = vcmp.gt.s32.totalorder %v6543, 0
        %v6545 = vsel %vm6544, %v6543, 0
        %v6546 = vshrl.u32 %v6545, 5
        %v6547 = vand.u32 %v6545, 31
        %v6548 = vsub.s32 32, %v6547
        %v6549 = vshrl.u32 683565275, %v6548
        %v6550 = vshll.u32 683565275, %v6547
        %v6551 = vshrl.u32 2475754826, %v6548
        %v6552 = vor.u32 %v6550, %v6551
        %v6553 = vshll.u32 2475754826, %v6547
        %v6554 = vshrl.u32 2131351028, %v6548
        %v6555 = vor.u32 %v6553, %v6554
        %v6556 = vshll.u32 2131351028, %v6547
        %v6557 = vshrl.u32 2102212464, %v6548
        %v6558 = vor.u32 %v6556, %v6557
        %v6559 = vshll.u32 2102212464, %v6547
        %v6560 = vshrl.u32 920167782, %v6548
        %v6561 = vor.u32 %v6559, %v6560
        %v6562 = vshll.u32 920167782, %v6547
        %v6563 = vshrl.u32 1326507024, %v6548
        %v6564 = vor.u32 %v6562, %v6563
        %vm6565 = vcmp.lt.s32.totalorder %v6546, 1
        %vm6566 = vcmp.lt.s32.totalorder %v6546, 2
        %vm6567 = vcmp.lt.s32.totalorder %v6546, 3
        %vm6568 = vcmp.lt.s32.totalorder %v6546, 4
        %v6569 = vsel %vm6565, %v6549, %v6552
        %v6570 = vsel %vm6568, %v6558, 2102212464
        %v6571 = vsel %vm6567, %v6555, %v6570
        %v6572 = vsel %vm6566, %v6569, %v6571
        %v6573 = vsel %vm6565, %v6552, %v6555
        %v6574 = vsel %vm6568, %v6561, 920167782
        %v6575 = vsel %vm6567, %v6558, %v6574
        %v6576 = vsel %vm6566, %v6573, %v6575
        %v6577 = vsel %vm6565, %v6555, %v6558
        %v6578 = vsel %vm6568, %v6564, 1326507024
        %v6579 = vsel %vm6567, %v6561, %v6578
        %v6580 = vsel %vm6566, %v6577, %v6579
        %v6581 = vshll.u32 %v6541, 8
        %v6582 = vand.u32 %v6581, 65535
        %v6583 = vshrl.u32 %v6581, 16
        %v6584 = vand.u32 %v6580, 65535
        %v6585 = vshrl.u32 %v6580, 16
        %v6586 = vmul.u32 %v6582, %v6584
        %v6587 = vmul.u32 %v6582, %v6585
        %v6588 = vmul.u32 %v6583, %v6584
        %v6589 = vmul.u32 %v6583, %v6585
        %v6590 = vshll.u32 %v6587, 16
        %v6591 = vshrl.u32 %v6587, 16
        %v6592 = vshll.u32 %v6588, 16
        %v6593 = vshrl.u32 %v6588, 16
        %vm6594 = vc.u32 %v6586, %v6590
        %v6595 = vsel %vm6594, 1, 0
        %v6596 = vadd.s32 %v6586, %v6590
        %v6597 = vadd.s32 %v6589, %v6595
        %vm6598 = vc.u32 %v6596, %v6592
        %v6599 = vsel %vm6598, 1, 0
        %v6600 = vadd.s32 %v6596, %v6592
        %v6601 = vadd.s32 %v6597, %v6599
        %v6602 = vadd.s32 %v6601, %v6591
        %v6603 = vadd.s32 %v6602, %v6593
        %v6604 = vand.u32 %v6581, 65535
        %v6605 = vshrl.u32 %v6581, 16
        %v6606 = vand.u32 %v6576, 65535
        %v6607 = vshrl.u32 %v6576, 16
        %v6608 = vmul.u32 %v6604, %v6606
        %v6609 = vmul.u32 %v6604, %v6607
        %v6610 = vmul.u32 %v6605, %v6606
        %v6611 = vmul.u32 %v6605, %v6607
        %v6612 = vshll.u32 %v6609, 16
        %v6613 = vshrl.u32 %v6609, 16
        %v6614 = vshll.u32 %v6610, 16
        %v6615 = vshrl.u32 %v6610, 16
        %vm6616 = vc.u32 %v6608, %v6612
        %v6617 = vsel %vm6616, 1, 0
        %v6618 = vadd.s32 %v6608, %v6612
        %v6619 = vadd.s32 %v6611, %v6617
        %vm6620 = vc.u32 %v6618, %v6614
        %v6621 = vsel %vm6620, 1, 0
        %v6622 = vadd.s32 %v6618, %v6614
        %v6623 = vadd.s32 %v6619, %v6621
        %v6624 = vadd.s32 %v6623, %v6613
        %v6625 = vadd.s32 %v6624, %v6615
        %v6626 = vmul.u32 %v6581, %v6572
        %v6627 = vadd.s32 %v6603, %v6622
        %vm6628 = vc.u32 %v6603, %v6622
        %v6629 = vadd.s32 %v6625, 1
        %v6630 = vsel %vm6628, %v6629, %v6625
        %v6631 = vadd.s32 %v6626, %v6630
        %v6632 = vadd.s32 %v6631, 536870912
        %v6633 = vshrl.u32 %v6632, 30
        %v6634 = vshll.u32 %v6633, 30
        %v6635 = vsub.s32 %v6631, %v6634
        %vm6636 = vcmp.lt.s32.totalorder %v6635, 0
        %v6637 = vsub.s32 0, %v6635
        %v6638 = vsel %vm6636, %v6637, %v6635
        %v6639 = vclz %v6638
        %v6640 = vsub.s32 %v6639, 2
        %vm6641 = vcmp.gt.s32.totalorder 0, %v6640
        %v6642 = vsel %vm6641, 0, %v6640
        %v6643 = vsub.s32 32, %v6642
        %v6644 = vshll.u32 %v6635, %v6642
        %v6645 = vshrl.u32 %v6627, %v6643
        %v6646 = vor.u32 %v6644, %v6645
        %v6647 = vsub.s32 4294967266, %v6642
        %v6648 = vadd.s32 %v6647, 127
        %v6649 = vshll.u32 %v6648, 23
        %v6650 = vor.u32 4788187, %v6649
        %v6651 = vand.u32 2147483647, %v6650
        %v6653 = vcvt.s32.f32 %v6646
        %v6654 = vmul.f32 %v6653, %v6651
        %v6655 = vxor.u32 %v6654, 2147483648
        %v6656 = vsel %vm6535, %v6655, %v6654
        %v6657 = vsub.s32 4, %v6633
        %v6658 = vsel %vm6535, %v6657, %v6633
        %v6659 = vsel %vm6534, %v463, %v6656
        %v6660 = vsel %vm6534, 0, %v6658
        %v6661 = vmul.f32 %v6659, %v6659
        %v6662 = vmul.f32 %v6661, -0.001358992
        %v6663 = vadd.f32 %v6662, 0.041655596
        %v6664 = vmul.f32 %v6661, %v6663
        %v6665 = vadd.f32 %v6664, -0.4999988
        %v6666 = vmul.f32 %v6661, %v6665
        %v6667 = vadd.f32 1.0, %v6666
        %v6668 = vmul.f32 %v6659, %v6659
        %v6669 = vmul.f32 %v6668, -0.00019511016
        %v6670 = vadd.f32 %v6669, 0.008332121
        %v6671 = vmul.f32 %v6668, %v6670
        %v6672 = vadd.f32 %v6671, -0.16666654
        %v6673 = vmul.f32 %v6668, %v6672
        %v6674 = vadd.f32 %v6673, 1.0
        %v6675 = vmul.f32 %v6674, %v6659
        %vm6676 = vweird.f32 %v463
        %v6677 = vadd.s32 %v6660, 3
        %v6678 = vand.u32 %v6677, 3
        %vm6679 = vcmp.lt.s32.totalorder %v6678, 2
        %vm6680 = vcmp.eq.s32.totalorder %v6678, 0
        %v6681 = vxor.u32 %v6675, 2147483648
        %v6682 = vsel %vm6680, %v6667, %v6681
        %vm6683 = vcmp.eq.s32.totalorder %v6678, 2
        %v6684 = vxor.u32 %v6667, 2147483648
        %v6685 = vsel %vm6683, %v6684, %v6675
        %v6686 = vsel %vm6679, %v6682, %v6685
        %v6687 = vsel %vm6676, nan, %v6686
        %v6688 = vand.u32 2147483647, %v464
        %vm6689 = vcmp.le.f32.partialorder %v6688, 0.7853982
        %vm6690 = vcmp.lt.s32.totalorder %v464, 0
        %v6691 = vand.u32 %v464, 2139095040
        %v6692 = vshrl.u32 %v6691, 23
        %v6693 = vsub.s32 %v6692, 127
        %v6694 = vand.u32 2147483647, %v464
        %v6695 = vand.u32 %v6694, 8388607
        %v6696 = vor.u32 %v6695, 8388608
        %v6697 = vsub.s32 0, %v6696
        %v6698 = vadd.s32 %v6693, 1
        %vm6699 = vcmp.gt.s32.totalorder %v6698, 0
        %v6700 = vsel %vm6699, %v6698, 0
        %v6701 = vshrl.u32 %v6700, 5
        %v6702 = vand.u32 %v6700, 31
        %v6703 = vsub.s32 32, %v6702
        %v6704 = vshrl.u32 683565275, %v6703
        %v6705 = vshll.u32 683565275, %v6702
        %v6706 = vshrl.u32 2475754826, %v6703
        %v6707 = vor.u32 %v6705, %v6706
        %v6708 = vshll.u32 2475754826, %v6702
        %v6709 = vshrl.u32 2131351028, %v6703
        %v6710 = vor.u32 %v6708, %v6709
        %v6711 = vshll.u32 2131351028, %v6702
        %v6712 = vshrl.u32 2102212464, %v6703
        %v6713 = vor.u32 %v6711, %v6712
        %v6714 = vshll.u32 2102212464, %v6702
        %v6715 = vshrl.u32 920167782, %v6703
        %v6716 = vor.u32 %v6714, %v6715
        %v6717 = vshll.u32 920167782, %v6702
        %v6718 = vshrl.u32 1326507024, %v6703
        %v6719 = vor.u32 %v6717, %v6718
        %vm6720 = vcmp.lt.s32.totalorder %v6701, 1
        %vm6721 = vcmp.lt.s32.totalorder %v6701, 2
        %vm6722 = vcmp.lt.s32.totalorder %v6701, 3
        %vm6723 = vcmp.lt.s32.totalorder %v6701, 4
        %v6724 = vsel %vm6720, %v6704, %v6707
        %v6725 = vsel %vm6723, %v6713, 2102212464
        %v6726 = vsel %vm6722, %v6710, %v6725
        %v6727 = vsel %vm6721, %v6724, %v6726
        %v6728 = vsel %vm6720, %v6707, %v6710
        %v6729 = vsel %vm6723, %v6716, 920167782
        %v6730 = vsel %vm6722, %v6713, %v6729
        %v6731 = vsel %vm6721, %v6728, %v6730
        %v6732 = vsel %vm6720, %v6710, %v6713
        %v6733 = vsel %vm6723, %v6719, 1326507024
        %v6734 = vsel %vm6722, %v6716, %v6733
        %v6735 = vsel %vm6721, %v6732, %v6734
        %v6736 = vshll.u32 %v6696, 8
        %v6737 = vand.u32 %v6736, 65535
        %v6738 = vshrl.u32 %v6736, 16
        %v6739 = vand.u32 %v6735, 65535
        %v6740 = vshrl.u32 %v6735, 16
        %v6741 = vmul.u32 %v6737, %v6739
        %v6742 = vmul.u32 %v6737, %v6740
        %v6743 = vmul.u32 %v6738, %v6739
        %v6744 = vmul.u32 %v6738, %v6740
        %v6745 = vshll.u32 %v6742, 16
        %v6746 = vshrl.u32 %v6742, 16
        %v6747 = vshll.u32 %v6743, 16
        %v6748 = vshrl.u32 %v6743, 16
        %vm6749 = vc.u32 %v6741, %v6745
        %v6750 = vsel %vm6749, 1, 0
        %v6751 = vadd.s32 %v6741, %v6745
        %v6752 = vadd.s32 %v6744, %v6750
        %vm6753 = vc.u32 %v6751, %v6747
        %v6754 = vsel %vm6753, 1, 0
        %v6755 = vadd.s32 %v6751, %v6747
        %v6756 = vadd.s32 %v6752, %v6754
        %v6757 = vadd.s32 %v6756, %v6746
        %v6758 = vadd.s32 %v6757, %v6748
        %v6759 = vand.u32 %v6736, 65535
        %v6760 = vshrl.u32 %v6736, 16
        %v6761 = vand.u32 %v6731, 65535
        %v6762 = vshrl.u32 %v6731, 16
        %v6763 = vmul.u32 %v6759, %v6761
        %v6764 = vmul.u32 %v6759, %v6762
        %v6765 = vmul.u32 %v6760, %v6761
        %v6766 = vmul.u32 %v6760, %v6762
        %v6767 = vshll.u32 %v6764, 16
        %v6768 = vshrl.u32 %v6764, 16
        %v6769 = vshll.u32 %v6765, 16
        %v6770 = vshrl.u32 %v6765, 16
        %vm6771 = vc.u32 %v6763, %v6767
        %v6772 = vsel %vm6771, 1, 0
        %v6773 = vadd.s32 %v6763, %v6767
        %v6774 = vadd.s32 %v6766, %v6772
        %vm6775 = vc.u32 %v6773, %v6769
        %v6776 = vsel %vm6775, 1, 0
        %v6777 = vadd.s32 %v6773, %v6769
        %v6778 = vadd.s32 %v6774, %v6776
        %v6779 = vadd.s32 %v6778, %v6768
        %v6780 = vadd.s32 %v6779, %v6770
        %v6781 = vmul.u32 %v6736, %v6727
        %v6782 = vadd.s32 %v6758, %v6777
        %vm6783 = vc.u32 %v6758, %v6777
        %v6784 = vadd.s32 %v6780, 1
        %v6785 = vsel %vm6783, %v6784, %v6780
        %v6786 = vadd.s32 %v6781, %v6785
        %v6787 = vadd.s32 %v6786, 536870912
        %v6788 = vshrl.u32 %v6787, 30
        %v6789 = vshll.u32 %v6788, 30
        %v6790 = vsub.s32 %v6786, %v6789
        %vm6791 = vcmp.lt.s32.totalorder %v6790, 0
        %v6792 = vsub.s32 0, %v6790
        %v6793 = vsel %vm6791, %v6792, %v6790
        %v6794 = vclz %v6793
        %v6795 = vsub.s32 %v6794, 2
        %vm6796 = vcmp.gt.s32.totalorder 0, %v6795
        %v6797 = vsel %vm6796, 0, %v6795
        %v6798 = vsub.s32 32, %v6797
        %v6799 = vshll.u32 %v6790, %v6797
        %v6800 = vshrl.u32 %v6782, %v6798
        %v6801 = vor.u32 %v6799, %v6800
        %v6802 = vsub.s32 4294967266, %v6797
        %v6803 = vadd.s32 %v6802, 127
        %v6804 = vshll.u32 %v6803, 23
        %v6805 = vor.u32 4788187, %v6804
        %v6806 = vand.u32 2147483647, %v6805
        %v6808 = vcvt.s32.f32 %v6801
        %v6809 = vmul.f32 %v6808, %v6806
        %v6810 = vxor.u32 %v6809, 2147483648
        %v6811 = vsel %vm6690, %v6810, %v6809
        %v6812 = vsub.s32 4, %v6788
        %v6813 = vsel %vm6690, %v6812, %v6788
        %v6814 = vsel %vm6689, %v464, %v6811
        %v6815 = vsel %vm6689, 0, %v6813
        %v6816 = vmul.f32 %v6814, %v6814
        %v6817 = vmul.f32 %v6816, -0.001358992
        %v6818 = vadd.f32 %v6817, 0.041655596
        %v6819 = vmul.f32 %v6816, %v6818
        %v6820 = vadd.f32 %v6819, -0.4999988
        %v6821 = vmul.f32 %v6816, %v6820
        %v6822 = vadd.f32 1.0, %v6821
        %v6823 = vmul.f32 %v6814, %v6814
        %v6824 = vmul.f32 %v6823, -0.00019511016
        %v6825 = vadd.f32 %v6824, 0.008332121
        %v6826 = vmul.f32 %v6823, %v6825
        %v6827 = vadd.f32 %v6826, -0.16666654
        %v6828 = vmul.f32 %v6823, %v6827
        %v6829 = vadd.f32 %v6828, 1.0
        %v6830 = vmul.f32 %v6829, %v6814
        %vm6831 = vweird.f32 %v464
        %v6832 = vadd.s32 %v6815, 3
        %v6833 = vand.u32 %v6832, 3
        %vm6834 = vcmp.lt.s32.totalorder %v6833, 2
        %vm6835 = vcmp.eq.s32.totalorder %v6833, 0
        %v6836 = vxor.u32 %v6830, 2147483648
        %v6837 = vsel %vm6835, %v6822, %v6836
        %vm6838 = vcmp.eq.s32.totalorder %v6833, 2
        %v6839 = vxor.u32 %v6822, 2147483648
        %v6840 = vsel %vm6838, %v6839, %v6830
        %v6841 = vsel %vm6834, %v6837, %v6840
        %v6842 = vsel %vm6831, nan, %v6841
        %v6843 = vand.u32 2147483647, %v465
        %vm6844 = vcmp.le.f32.partialorder %v6843, 0.7853982
        %vm6845 = vcmp.lt.s32.totalorder %v465, 0
        %v6846 = vand.u32 %v465, 2139095040
        %v6847 = vshrl.u32 %v6846, 23
        %v6848 = vsub.s32 %v6847, 127
        %v6849 = vand.u32 2147483647, %v465
        %v6850 = vand.u32 %v6849, 8388607
        %v6851 = vor.u32 %v6850, 8388608
        %v6852 = vsub.s32 0, %v6851
        %v6853 = vadd.s32 %v6848, 1
        %vm6854 = vcmp.gt.s32.totalorder %v6853, 0
        %v6855 = vsel %vm6854, %v6853, 0
        %v6856 = vshrl.u32 %v6855, 5
        %v6857 = vand.u32 %v6855, 31
        %v6858 = vsub.s32 32, %v6857
        %v6859 = vshrl.u32 683565275, %v6858
        %v6860 = vshll.u32 683565275, %v6857
        %v6861 = vshrl.u32 2475754826, %v6858
        %v6862 = vor.u32 %v6860, %v6861
        %v6863 = vshll.u32 2475754826, %v6857
        %v6864 = vshrl.u32 2131351028, %v6858
        %v6865 = vor.u32 %v6863, %v6864
        %v6866 = vshll.u32 2131351028, %v6857
        %v6867 = vshrl.u32 2102212464, %v6858
        %v6868 = vor.u32 %v6866, %v6867
        %v6869 = vshll.u32 2102212464, %v6857
        %v6870 = vshrl.u32 920167782, %v6858
        %v6871 = vor.u32 %v6869, %v6870
        %v6872 = vshll.u32 920167782, %v6857
        %v6873 = vshrl.u32 1326507024, %v6858
        %v6874 = vor.u32 %v6872, %v6873
        %vm6875 = vcmp.lt.s32.totalorder %v6856, 1
        %vm6876 = vcmp.lt.s32.totalorder %v6856, 2
        %vm6877 = vcmp.lt.s32.totalorder %v6856, 3
        %vm6878 = vcmp.lt.s32.totalorder %v6856, 4
        %v6879 = vsel %vm6875, %v6859, %v6862
        %v6880 = vsel %vm6878, %v6868, 2102212464
        %v6881 = vsel %vm6877, %v6865, %v6880
        %v6882 = vsel %vm6876, %v6879, %v6881
        %v6883 = vsel %vm6875, %v6862, %v6865
        %v6884 = vsel %vm6878, %v6871, 920167782
        %v6885 = vsel %vm6877, %v6868, %v6884
        %v6886 = vsel %vm6876, %v6883, %v6885
        %v6887 = vsel %vm6875, %v6865, %v6868
        %v6888 = vsel %vm6878, %v6874, 1326507024
        %v6889 = vsel %vm6877, %v6871, %v6888
        %v6890 = vsel %vm6876, %v6887, %v6889
        %v6891 = vshll.u32 %v6851, 8
        %v6892 = vand.u32 %v6891, 65535
        %v6893 = vshrl.u32 %v6891, 16
        %v6894 = vand.u32 %v6890, 65535
        %v6895 = vshrl.u32 %v6890, 16
        %v6896 = vmul.u32 %v6892, %v6894
        %v6897 = vmul.u32 %v6892, %v6895
        %v6898 = vmul.u32 %v6893, %v6894
        %v6899 = vmul.u32 %v6893, %v6895
        %v6900 = vshll.u32 %v6897, 16
        %v6901 = vshrl.u32 %v6897, 16
        %v6902 = vshll.u32 %v6898, 16
        %v6903 = vshrl.u32 %v6898, 16
        %vm6904 = vc.u32 %v6896, %v6900
        %v6905 = vsel %vm6904, 1, 0
        %v6906 = vadd.s32 %v6896, %v6900
        %v6907 = vadd.s32 %v6899, %v6905
        %vm6908 = vc.u32 %v6906, %v6902
        %v6909 = vsel %vm6908, 1, 0
        %v6910 = vadd.s32 %v6906, %v6902
        %v6911 = vadd.s32 %v6907, %v6909
        %v6912 = vadd.s32 %v6911, %v6901
        %v6913 = vadd.s32 %v6912, %v6903
        %v6914 = vand.u32 %v6891, 65535
        %v6915 = vshrl.u32 %v6891, 16
        %v6916 = vand.u32 %v6886, 65535
        %v6917 = vshrl.u32 %v6886, 16
        %v6918 = vmul.u32 %v6914, %v6916
        %v6919 = vmul.u32 %v6914, %v6917
        %v6920 = vmul.u32 %v6915, %v6916
        %v6921 = vmul.u32 %v6915, %v6917
        %v6922 = vshll.u32 %v6919, 16
        %v6923 = vshrl.u32 %v6919, 16
        %v6924 = vshll.u32 %v6920, 16
        %v6925 = vshrl.u32 %v6920, 16
        %vm6926 = vc.u32 %v6918, %v6922
        %v6927 = vsel %vm6926, 1, 0
        %v6928 = vadd.s32 %v6918, %v6922
        %v6929 = vadd.s32 %v6921, %v6927
        %vm6930 = vc.u32 %v6928, %v6924
        %v6931 = vsel %vm6930, 1, 0
        %v6932 = vadd.s32 %v6928, %v6924
        %v6933 = vadd.s32 %v6929, %v6931
        %v6934 = vadd.s32 %v6933, %v6923
        %v6935 = vadd.s32 %v6934, %v6925
        %v6936 = vmul.u32 %v6891, %v6882
        %v6937 = vadd.s32 %v6913, %v6932
        %vm6938 = vc.u32 %v6913, %v6932
        %v6939 = vadd.s32 %v6935, 1
        %v6940 = vsel %vm6938, %v6939, %v6935
        %v6941 = vadd.s32 %v6936, %v6940
        %v6942 = vadd.s32 %v6941, 536870912
        %v6943 = vshrl.u32 %v6942, 30
        %v6944 = vshll.u32 %v6943, 30
        %v6945 = vsub.s32 %v6941, %v6944
        %vm6946 = vcmp.lt.s32.totalorder %v6945, 0
        %v6947 = vsub.s32 0, %v6945
        %v6948 = vsel %vm6946, %v6947, %v6945
        %v6949 = vclz %v6948
        %v6950 = vsub.s32 %v6949, 2
        %vm6951 = vcmp.gt.s32.totalorder 0, %v6950
        %v6952 = vsel %vm6951, 0, %v6950
        %v6953 = vsub.s32 32, %v6952
        %v6954 = vshll.u32 %v6945, %v6952
        %v6955 = vshrl.u32 %v6937, %v6953
        %v6956 = vor.u32 %v6954, %v6955
        %v6957 = vsub.s32 4294967266, %v6952
        %v6958 = vadd.s32 %v6957, 127
        %v6959 = vshll.u32 %v6958, 23
        %v6960 = vor.u32 4788187, %v6959
        %v6961 = vand.u32 2147483647, %v6960
        %v6963 = vcvt.s32.f32 %v6956
        %v6964 = vmul.f32 %v6963, %v6961
        %v6965 = vxor.u32 %v6964, 2147483648
        %v6966 = vsel %vm6845, %v6965, %v6964
        %v6967 = vsub.s32 4, %v6943
        %v6968 = vsel %vm6845, %v6967, %v6943
        %v6969 = vsel %vm6844, %v465, %v6966
        %v6970 = vsel %vm6844, 0, %v6968
        %v6971 = vmul.f32 %v6969, %v6969
        %v6972 = vmul.f32 %v6971, -0.001358992
        %v6973 = vadd.f32 %v6972, 0.041655596
        %v6974 = vmul.f32 %v6971, %v6973
        %v6975 = vadd.f32 %v6974, -0.4999988
        %v6976 = vmul.f32 %v6971, %v6975
        %v6977 = vadd.f32 1.0, %v6976
        %v6978 = vmul.f32 %v6969, %v6969
        %v6979 = vmul.f32 %v6978, -0.00019511016
        %v6980 = vadd.f32 %v6979, 0.008332121
        %v6981 = vmul.f32 %v6978, %v6980
        %v6982 = vadd.f32 %v6981, -0.16666654
        %v6983 = vmul.f32 %v6978, %v6982
        %v6984 = vadd.f32 %v6983, 1.0
        %v6985 = vmul.f32 %v6984, %v6969
        %vm6986 = vweird.f32 %v465
        %v6987 = vadd.s32 %v6970, 3
        %v6988 = vand.u32 %v6987, 3
        %vm6989 = vcmp.lt.s32.totalorder %v6988, 2
        %vm6990 = vcmp.eq.s32.totalorder %v6988, 0
        %v6991 = vxor.u32 %v6985, 2147483648
        %v6992 = vsel %vm6990, %v6977, %v6991
        %vm6993 = vcmp.eq.s32.totalorder %v6988, 2
        %v6994 = vxor.u32 %v6977, 2147483648
        %v6995 = vsel %vm6993, %v6994, %v6985
        %v6996 = vsel %vm6989, %v6992, %v6995
        %v6997 = vsel %vm6986, nan, %v6996
        %v6998 = vand.u32 2147483647, %v466
        %vm6999 = vcmp.le.f32.partialorder %v6998, 0.7853982
        %vm7000 = vcmp.lt.s32.totalorder %v466, 0
        %v7001 = vand.u32 %v466, 2139095040
        %v7002 = vshrl.u32 %v7001, 23
        %v7003 = vsub.s32 %v7002, 127
        %v7004 = vand.u32 2147483647, %v466
        %v7005 = vand.u32 %v7004, 8388607
        %v7006 = vor.u32 %v7005, 8388608
        %v7007 = vsub.s32 0, %v7006
        %v7008 = vadd.s32 %v7003, 1
        %vm7009 = vcmp.gt.s32.totalorder %v7008, 0
        %v7010 = vsel %vm7009, %v7008, 0
        %v7011 = vshrl.u32 %v7010, 5
        %v7012 = vand.u32 %v7010, 31
        %v7013 = vsub.s32 32, %v7012
        %v7014 = vshrl.u32 683565275, %v7013
        %v7015 = vshll.u32 683565275, %v7012
        %v7016 = vshrl.u32 2475754826, %v7013
        %v7017 = vor.u32 %v7015, %v7016
        %v7018 = vshll.u32 2475754826, %v7012
        %v7019 = vshrl.u32 2131351028, %v7013
        %v7020 = vor.u32 %v7018, %v7019
        %v7021 = vshll.u32 2131351028, %v7012
        %v7022 = vshrl.u32 2102212464, %v7013
        %v7023 = vor.u32 %v7021, %v7022
        %v7024 = vshll.u32 2102212464, %v7012
        %v7025 = vshrl.u32 920167782, %v7013
        %v7026 = vor.u32 %v7024, %v7025
        %v7027 = vshll.u32 920167782, %v7012
        %v7028 = vshrl.u32 1326507024, %v7013
        %v7029 = vor.u32 %v7027, %v7028
        %vm7030 = vcmp.lt.s32.totalorder %v7011, 1
        %vm7031 = vcmp.lt.s32.totalorder %v7011, 2
        %vm7032 = vcmp.lt.s32.totalorder %v7011, 3
        %vm7033 = vcmp.lt.s32.totalorder %v7011, 4
        %v7034 = vsel %vm7030, %v7014, %v7017
        %v7035 = vsel %vm7033, %v7023, 2102212464
        %v7036 = vsel %vm7032, %v7020, %v7035
        %v7037 = vsel %vm7031, %v7034, %v7036
        %v7038 = vsel %vm7030, %v7017, %v7020
        %v7039 = vsel %vm7033, %v7026, 920167782
        %v7040 = vsel %vm7032, %v7023, %v7039
        %v7041 = vsel %vm7031, %v7038, %v7040
        %v7042 = vsel %vm7030, %v7020, %v7023
        %v7043 = vsel %vm7033, %v7029, 1326507024
        %v7044 = vsel %vm7032, %v7026, %v7043
        %v7045 = vsel %vm7031, %v7042, %v7044
        %v7046 = vshll.u32 %v7006, 8
        %v7047 = vand.u32 %v7046, 65535
        %v7048 = vshrl.u32 %v7046, 16
        %v7049 = vand.u32 %v7045, 65535
        %v7050 = vshrl.u32 %v7045, 16
        %v7051 = vmul.u32 %v7047, %v7049
        %v7052 = vmul.u32 %v7047, %v7050
        %v7053 = vmul.u32 %v7048, %v7049
        %v7054 = vmul.u32 %v7048, %v7050
        %v7055 = vshll.u32 %v7052, 16
        %v7056 = vshrl.u32 %v7052, 16
        %v7057 = vshll.u32 %v7053, 16
        %v7058 = vshrl.u32 %v7053, 16
        %vm7059 = vc.u32 %v7051, %v7055
        %v7060 = vsel %vm7059, 1, 0
        %v7061 = vadd.s32 %v7051, %v7055
        %v7062 = vadd.s32 %v7054, %v7060
        %vm7063 = vc.u32 %v7061, %v7057
        %v7064 = vsel %vm7063, 1, 0
        %v7065 = vadd.s32 %v7061, %v7057
        %v7066 = vadd.s32 %v7062, %v7064
        %v7067 = vadd.s32 %v7066, %v7056
        %v7068 = vadd.s32 %v7067, %v7058
        %v7069 = vand.u32 %v7046, 65535
        %v7070 = vshrl.u32 %v7046, 16
        %v7071 = vand.u32 %v7041, 65535
        %v7072 = vshrl.u32 %v7041, 16
        %v7073 = vmul.u32 %v7069, %v7071
        %v7074 = vmul.u32 %v7069, %v7072
        %v7075 = vmul.u32 %v7070, %v7071
        %v7076 = vmul.u32 %v7070, %v7072
        %v7077 = vshll.u32 %v7074, 16
        %v7078 = vshrl.u32 %v7074, 16
        %v7079 = vshll.u32 %v7075, 16
        %v7080 = vshrl.u32 %v7075, 16
        %vm7081 = vc.u32 %v7073, %v7077
        %v7082 = vsel %vm7081, 1, 0
        %v7083 = vadd.s32 %v7073, %v7077
        %v7084 = vadd.s32 %v7076, %v7082
        %vm7085 = vc.u32 %v7083, %v7079
        %v7086 = vsel %vm7085, 1, 0
        %v7087 = vadd.s32 %v7083, %v7079
        %v7088 = vadd.s32 %v7084, %v7086
        %v7089 = vadd.s32 %v7088, %v7078
        %v7090 = vadd.s32 %v7089, %v7080
        %v7091 = vmul.u32 %v7046, %v7037
        %v7092 = vadd.s32 %v7068, %v7087
        %vm7093 = vc.u32 %v7068, %v7087
        %v7094 = vadd.s32 %v7090, 1
        %v7095 = vsel %vm7093, %v7094, %v7090
        %v7096 = vadd.s32 %v7091, %v7095
        %v7097 = vadd.s32 %v7096, 536870912
        %v7098 = vshrl.u32 %v7097, 30
        %v7099 = vshll.u32 %v7098, 30
        %v7100 = vsub.s32 %v7096, %v7099
        %vm7101 = vcmp.lt.s32.totalorder %v7100, 0
        %v7102 = vsub.s32 0, %v7100
        %v7103 = vsel %vm7101, %v7102, %v7100
        %v7104 = vclz %v7103
        %v7105 = vsub.s32 %v7104, 2
        %vm7106 = vcmp.gt.s32.totalorder 0, %v7105
        %v7107 = vsel %vm7106, 0, %v7105
        %v7108 = vsub.s32 32, %v7107
        %v7109 = vshll.u32 %v7100, %v7107
        %v7110 = vshrl.u32 %v7092, %v7108
        %v7111 = vor.u32 %v7109, %v7110
        %v7112 = vsub.s32 4294967266, %v7107
        %v7113 = vadd.s32 %v7112, 127
        %v7114 = vshll.u32 %v7113, 23
        %v7115 = vor.u32 4788187, %v7114
        %v7116 = vand.u32 2147483647, %v7115
        %v7118 = vcvt.s32.f32 %v7111
        %v7119 = vmul.f32 %v7118, %v7116
        %v7120 = vxor.u32 %v7119, 2147483648
        %v7121 = vsel %vm7000, %v7120, %v7119
        %v7122 = vsub.s32 4, %v7098
        %v7123 = vsel %vm7000, %v7122, %v7098
        %v7124 = vsel %vm6999, %v466, %v7121
        %v7125 = vsel %vm6999, 0, %v7123
        %v7126 = vmul.f32 %v7124, %v7124
        %v7127 = vmul.f32 %v7126, -0.001358992
        %v7128 = vadd.f32 %v7127, 0.041655596
        %v7129 = vmul.f32 %v7126, %v7128
        %v7130 = vadd.f32 %v7129, -0.4999988
        %v7131 = vmul.f32 %v7126, %v7130
        %v7132 = vadd.f32 1.0, %v7131
        %v7133 = vmul.f32 %v7124, %v7124
        %v7134 = vmul.f32 %v7133, -0.00019511016
        %v7135 = vadd.f32 %v7134, 0.008332121
        %v7136 = vmul.f32 %v7133, %v7135
        %v7137 = vadd.f32 %v7136, -0.16666654
        %v7138 = vmul.f32 %v7133, %v7137
        %v7139 = vadd.f32 %v7138, 1.0
        %v7140 = vmul.f32 %v7139, %v7124
        %vm7141 = vweird.f32 %v466
        %v7142 = vadd.s32 %v7125, 3
        %v7143 = vand.u32 %v7142, 3
        %vm7144 = vcmp.lt.s32.totalorder %v7143, 2
        %vm7145 = vcmp.eq.s32.totalorder %v7143, 0
        %v7146 = vxor.u32 %v7140, 2147483648
        %v7147 = vsel %vm7145, %v7132, %v7146
        %vm7148 = vcmp.eq.s32.totalorder %v7143, 2
        %v7149 = vxor.u32 %v7132, 2147483648
        %v7150 = vsel %vm7148, %v7149, %v7140
        %v7151 = vsel %vm7144, %v7147, %v7150
        %v7152 = vsel %vm7141, nan, %v7151
        %v7153 = vand.u32 2147483647, %v467
        %vm7154 = vcmp.le.f32.partialorder %v7153, 0.7853982
        %vm7155 = vcmp.lt.s32.totalorder %v467, 0
        %v7156 = vand.u32 %v467, 2139095040
        %v7157 = vshrl.u32 %v7156, 23
        %v7158 = vsub.s32 %v7157, 127
        %v7159 = vand.u32 2147483647, %v467
        %v7160 = vand.u32 %v7159, 8388607
        %v7161 = vor.u32 %v7160, 8388608
        %v7162 = vsub.s32 0, %v7161
        %v7163 = vadd.s32 %v7158, 1
        %vm7164 = vcmp.gt.s32.totalorder %v7163, 0
        %v7165 = vsel %vm7164, %v7163, 0
        %v7166 = vshrl.u32 %v7165, 5
        %v7167 = vand.u32 %v7165, 31
        %v7168 = vsub.s32 32, %v7167
        %v7169 = vshrl.u32 683565275, %v7168
        %v7170 = vshll.u32 683565275, %v7167
        %v7171 = vshrl.u32 2475754826, %v7168
        %v7172 = vor.u32 %v7170, %v7171
        %v7173 = vshll.u32 2475754826, %v7167
        %v7174 = vshrl.u32 2131351028, %v7168
        %v7175 = vor.u32 %v7173, %v7174
        %v7176 = vshll.u32 2131351028, %v7167
        %v7177 = vshrl.u32 2102212464, %v7168
        %v7178 = vor.u32 %v7176, %v7177
        %v7179 = vshll.u32 2102212464, %v7167
        %v7180 = vshrl.u32 920167782, %v7168
        %v7181 = vor.u32 %v7179, %v7180
        %v7182 = vshll.u32 920167782, %v7167
        %v7183 = vshrl.u32 1326507024, %v7168
        %v7184 = vor.u32 %v7182, %v7183
        %vm7185 = vcmp.lt.s32.totalorder %v7166, 1
        %vm7186 = vcmp.lt.s32.totalorder %v7166, 2
        %vm7187 = vcmp.lt.s32.totalorder %v7166, 3
        %vm7188 = vcmp.lt.s32.totalorder %v7166, 4
        %v7189 = vsel %vm7185, %v7169, %v7172
        %v7190 = vsel %vm7188, %v7178, 2102212464
        %v7191 = vsel %vm7187, %v7175, %v7190
        %v7192 = vsel %vm7186, %v7189, %v7191
        %v7193 = vsel %vm7185, %v7172, %v7175
        %v7194 = vsel %vm7188, %v7181, 920167782
        %v7195 = vsel %vm7187, %v7178, %v7194
        %v7196 = vsel %vm7186, %v7193, %v7195
        %v7197 = vsel %vm7185, %v7175, %v7178
        %v7198 = vsel %vm7188, %v7184, 1326507024
        %v7199 = vsel %vm7187, %v7181, %v7198
        %v7200 = vsel %vm7186, %v7197, %v7199
        %v7201 = vshll.u32 %v7161, 8
        %v7202 = vand.u32 %v7201, 65535
        %v7203 = vshrl.u32 %v7201, 16
        %v7204 = vand.u32 %v7200, 65535
        %v7205 = vshrl.u32 %v7200, 16
        %v7206 = vmul.u32 %v7202, %v7204
        %v7207 = vmul.u32 %v7202, %v7205
        %v7208 = vmul.u32 %v7203, %v7204
        %v7209 = vmul.u32 %v7203, %v7205
        %v7210 = vshll.u32 %v7207, 16
        %v7211 = vshrl.u32 %v7207, 16
        %v7212 = vshll.u32 %v7208, 16
        %v7213 = vshrl.u32 %v7208, 16
        %vm7214 = vc.u32 %v7206, %v7210
        %v7215 = vsel %vm7214, 1, 0
        %v7216 = vadd.s32 %v7206, %v7210
        %v7217 = vadd.s32 %v7209, %v7215
        %vm7218 = vc.u32 %v7216, %v7212
        %v7219 = vsel %vm7218, 1, 0
        %v7220 = vadd.s32 %v7216, %v7212
        %v7221 = vadd.s32 %v7217, %v7219
        %v7222 = vadd.s32 %v7221, %v7211
        %v7223 = vadd.s32 %v7222, %v7213
        %v7224 = vand.u32 %v7201, 65535
        %v7225 = vshrl.u32 %v7201, 16
        %v7226 = vand.u32 %v7196, 65535
        %v7227 = vshrl.u32 %v7196, 16
        %v7228 = vmul.u32 %v7224, %v7226
        %v7229 = vmul.u32 %v7224, %v7227
        %v7230 = vmul.u32 %v7225, %v7226
        %v7231 = vmul.u32 %v7225, %v7227
        %v7232 = vshll.u32 %v7229, 16
        %v7233 = vshrl.u32 %v7229, 16
        %v7234 = vshll.u32 %v7230, 16
        %v7235 = vshrl.u32 %v7230, 16
        %vm7236 = vc.u32 %v7228, %v7232
        %v7237 = vsel %vm7236, 1, 0
        %v7238 = vadd.s32 %v7228, %v7232
        %v7239 = vadd.s32 %v7231, %v7237
        %vm7240 = vc.u32 %v7238, %v7234
        %v7241 = vsel %vm7240, 1, 0
        %v7242 = vadd.s32 %v7238, %v7234
        %v7243 = vadd.s32 %v7239, %v7241
        %v7244 = vadd.s32 %v7243, %v7233
        %v7245 = vadd.s32 %v7244, %v7235
        %v7246 = vmul.u32 %v7201, %v7192
        %v7247 = vadd.s32 %v7223, %v7242
        %vm7248 = vc.u32 %v7223, %v7242
        %v7249 = vadd.s32 %v7245, 1
        %v7250 = vsel %vm7248, %v7249, %v7245
        %v7251 = vadd.s32 %v7246, %v7250
        %v7252 = vadd.s32 %v7251, 536870912
        %v7253 = vshrl.u32 %v7252, 30
        %v7254 = vshll.u32 %v7253, 30
        %v7255 = vsub.s32 %v7251, %v7254
        %vm7256 = vcmp.lt.s32.totalorder %v7255, 0
        %v7257 = vsub.s32 0, %v7255
        %v7258 = vsel %vm7256, %v7257, %v7255
        %v7259 = vclz %v7258
        %v7260 = vsub.s32 %v7259, 2
        %vm7261 = vcmp.gt.s32.totalorder 0, %v7260
        %v7262 = vsel %vm7261, 0, %v7260
        %v7263 = vsub.s32 32, %v7262
        %v7264 = vshll.u32 %v7255, %v7262
        %v7265 = vshrl.u32 %v7247, %v7263
        %v7266 = vor.u32 %v7264, %v7265
        %v7267 = vsub.s32 4294967266, %v7262
        %v7268 = vadd.s32 %v7267, 127
        %v7269 = vshll.u32 %v7268, 23
        %v7270 = vor.u32 4788187, %v7269
        %v7271 = vand.u32 2147483647, %v7270
        %v7273 = vcvt.s32.f32 %v7266
        %v7274 = vmul.f32 %v7273, %v7271
        %v7275 = vxor.u32 %v7274, 2147483648
        %v7276 = vsel %vm7155, %v7275, %v7274
        %v7277 = vsub.s32 4, %v7253
        %v7278 = vsel %vm7155, %v7277, %v7253
        %v7279 = vsel %vm7154, %v467, %v7276
        %v7280 = vsel %vm7154, 0, %v7278
        %v7281 = vmul.f32 %v7279, %v7279
        %v7282 = vmul.f32 %v7281, -0.001358992
        %v7283 = vadd.f32 %v7282, 0.041655596
        %v7284 = vmul.f32 %v7281, %v7283
        %v7285 = vadd.f32 %v7284, -0.4999988
        %v7286 = vmul.f32 %v7281, %v7285
        %v7287 = vadd.f32 1.0, %v7286
        %v7288 = vmul.f32 %v7279, %v7279
        %v7289 = vmul.f32 %v7288, -0.00019511016
        %v7290 = vadd.f32 %v7289, 0.008332121
        %v7291 = vmul.f32 %v7288, %v7290
        %v7292 = vadd.f32 %v7291, -0.16666654
        %v7293 = vmul.f32 %v7288, %v7292
        %v7294 = vadd.f32 %v7293, 1.0
        %v7295 = vmul.f32 %v7294, %v7279
        %vm7296 = vweird.f32 %v467
        %v7297 = vadd.s32 %v7280, 3
        %v7298 = vand.u32 %v7297, 3
        %vm7299 = vcmp.lt.s32.totalorder %v7298, 2
        %vm7300 = vcmp.eq.s32.totalorder %v7298, 0
        %v7301 = vxor.u32 %v7295, 2147483648
        %v7302 = vsel %vm7300, %v7287, %v7301
        %vm7303 = vcmp.eq.s32.totalorder %v7298, 2
        %v7304 = vxor.u32 %v7287, 2147483648
        %v7305 = vsel %vm7303, %v7304, %v7295
        %v7306 = vsel %vm7299, %v7302, %v7305
        %v7307 = vsel %vm7296, nan, %v7306
        %v7308 = vand.u32 2147483647, %v468
        %vm7309 = vcmp.le.f32.partialorder %v7308, 0.7853982
        %vm7310 = vcmp.lt.s32.totalorder %v468, 0
        %v7311 = vand.u32 %v468, 2139095040
        %v7312 = vshrl.u32 %v7311, 23
        %v7313 = vsub.s32 %v7312, 127
        %v7314 = vand.u32 2147483647, %v468
        %v7315 = vand.u32 %v7314, 8388607
        %v7316 = vor.u32 %v7315, 8388608
        %v7317 = vsub.s32 0, %v7316
        %v7318 = vadd.s32 %v7313, 1
        %vm7319 = vcmp.gt.s32.totalorder %v7318, 0
        %v7320 = vsel %vm7319, %v7318, 0
        %v7321 = vshrl.u32 %v7320, 5
        %v7322 = vand.u32 %v7320, 31
        %v7323 = vsub.s32 32, %v7322
        %v7324 = vshrl.u32 683565275, %v7323
        %v7325 = vshll.u32 683565275, %v7322
        %v7326 = vshrl.u32 2475754826, %v7323
        %v7327 = vor.u32 %v7325, %v7326
        %v7328 = vshll.u32 2475754826, %v7322
        %v7329 = vshrl.u32 2131351028, %v7323
        %v7330 = vor.u32 %v7328, %v7329
        %v7331 = vshll.u32 2131351028, %v7322
        %v7332 = vshrl.u32 2102212464, %v7323
        %v7333 = vor.u32 %v7331, %v7332
        %v7334 = vshll.u32 2102212464, %v7322
        %v7335 = vshrl.u32 920167782, %v7323
        %v7336 = vor.u32 %v7334, %v7335
        %v7337 = vshll.u32 920167782, %v7322
        %v7338 = vshrl.u32 1326507024, %v7323
        %v7339 = vor.u32 %v7337, %v7338
        %vm7340 = vcmp.lt.s32.totalorder %v7321, 1
        %vm7341 = vcmp.lt.s32.totalorder %v7321, 2
        %vm7342 = vcmp.lt.s32.totalorder %v7321, 3
        %vm7343 = vcmp.lt.s32.totalorder %v7321, 4
        %v7344 = vsel %vm7340, %v7324, %v7327
        %v7345 = vsel %vm7343, %v7333, 2102212464
        %v7346 = vsel %vm7342, %v7330, %v7345
        %v7347 = vsel %vm7341, %v7344, %v7346
        %v7348 = vsel %vm7340, %v7327, %v7330
        %v7349 = vsel %vm7343, %v7336, 920167782
        %v7350 = vsel %vm7342, %v7333, %v7349
        %v7351 = vsel %vm7341, %v7348, %v7350
        %v7352 = vsel %vm7340, %v7330, %v7333
        %v7353 = vsel %vm7343, %v7339, 1326507024
        %v7354 = vsel %vm7342, %v7336, %v7353
        %v7355 = vsel %vm7341, %v7352, %v7354
        %v7356 = vshll.u32 %v7316, 8
        %v7357 = vand.u32 %v7356, 65535
        %v7358 = vshrl.u32 %v7356, 16
        %v7359 = vand.u32 %v7355, 65535
        %v7360 = vshrl.u32 %v7355, 16
        %v7361 = vmul.u32 %v7357, %v7359
        %v7362 = vmul.u32 %v7357, %v7360
        %v7363 = vmul.u32 %v7358, %v7359
        %v7364 = vmul.u32 %v7358, %v7360
        %v7365 = vshll.u32 %v7362, 16
        %v7366 = vshrl.u32 %v7362, 16
        %v7367 = vshll.u32 %v7363, 16
        %v7368 = vshrl.u32 %v7363, 16
        %vm7369 = vc.u32 %v7361, %v7365
        %v7370 = vsel %vm7369, 1, 0
        %v7371 = vadd.s32 %v7361, %v7365
        %v7372 = vadd.s32 %v7364, %v7370
        %vm7373 = vc.u32 %v7371, %v7367
        %v7374 = vsel %vm7373, 1, 0
        %v7375 = vadd.s32 %v7371, %v7367
        %v7376 = vadd.s32 %v7372, %v7374
        %v7377 = vadd.s32 %v7376, %v7366
        %v7378 = vadd.s32 %v7377, %v7368
        %v7379 = vand.u32 %v7356, 65535
        %v7380 = vshrl.u32 %v7356, 16
        %v7381 = vand.u32 %v7351, 65535
        %v7382 = vshrl.u32 %v7351, 16
        %v7383 = vmul.u32 %v7379, %v7381
        %v7384 = vmul.u32 %v7379, %v7382
        %v7385 = vmul.u32 %v7380, %v7381
        %v7386 = vmul.u32 %v7380, %v7382
        %v7387 = vshll.u32 %v7384, 16
        %v7388 = vshrl.u32 %v7384, 16
        %v7389 = vshll.u32 %v7385, 16
        %v7390 = vshrl.u32 %v7385, 16
        %vm7391 = vc.u32 %v7383, %v7387
        %v7392 = vsel %vm7391, 1, 0
        %v7393 = vadd.s32 %v7383, %v7387
        %v7394 = vadd.s32 %v7386, %v7392
        %vm7395 = vc.u32 %v7393, %v7389
        %v7396 = vsel %vm7395, 1, 0
        %v7397 = vadd.s32 %v7393, %v7389
        %v7398 = vadd.s32 %v7394, %v7396
        %v7399 = vadd.s32 %v7398, %v7388
        %v7400 = vadd.s32 %v7399, %v7390
        %v7401 = vmul.u32 %v7356, %v7347
        %v7402 = vadd.s32 %v7378, %v7397
        %vm7403 = vc.u32 %v7378, %v7397
        %v7404 = vadd.s32 %v7400, 1
        %v7405 = vsel %vm7403, %v7404, %v7400
        %v7406 = vadd.s32 %v7401, %v7405
        %v7407 = vadd.s32 %v7406, 536870912
        %v7408 = vshrl.u32 %v7407, 30
        %v7409 = vshll.u32 %v7408, 30
        %v7410 = vsub.s32 %v7406, %v7409
        %vm7411 = vcmp.lt.s32.totalorder %v7410, 0
        %v7412 = vsub.s32 0, %v7410
        %v7413 = vsel %vm7411, %v7412, %v7410
        %v7414 = vclz %v7413
        %v7415 = vsub.s32 %v7414, 2
        %vm7416 = vcmp.gt.s32.totalorder 0, %v7415
        %v7417 = vsel %vm7416, 0, %v7415
        %v7418 = vsub.s32 32, %v7417
        %v7419 = vshll.u32 %v7410, %v7417
        %v7420 = vshrl.u32 %v7402, %v7418
        %v7421 = vor.u32 %v7419, %v7420
        %v7422 = vsub.s32 4294967266, %v7417
        %v7423 = vadd.s32 %v7422, 127
        %v7424 = vshll.u32 %v7423, 23
        %v7425 = vor.u32 4788187, %v7424
        %v7426 = vand.u32 2147483647, %v7425
        %v7428 = vcvt.s32.f32 %v7421
        %v7429 = vmul.f32 %v7428, %v7426
        %v7430 = vxor.u32 %v7429, 2147483648
        %v7431 = vsel %vm7310, %v7430, %v7429
        %v7432 = vsub.s32 4, %v7408
        %v7433 = vsel %vm7310, %v7432, %v7408
        %v7434 = vsel %vm7309, %v468, %v7431
        %v7435 = vsel %vm7309, 0, %v7433
        %v7436 = vmul.f32 %v7434, %v7434
        %v7437 = vmul.f32 %v7436, -0.001358992
        %v7438 = vadd.f32 %v7437, 0.041655596
        %v7439 = vmul.f32 %v7436, %v7438
        %v7440 = vadd.f32 %v7439, -0.4999988
        %v7441 = vmul.f32 %v7436, %v7440
        %v7442 = vadd.f32 1.0, %v7441
        %v7443 = vmul.f32 %v7434, %v7434
        %v7444 = vmul.f32 %v7443, -0.00019511016
        %v7445 = vadd.f32 %v7444, 0.008332121
        %v7446 = vmul.f32 %v7443, %v7445
        %v7447 = vadd.f32 %v7446, -0.16666654
        %v7448 = vmul.f32 %v7443, %v7447
        %v7449 = vadd.f32 %v7448, 1.0
        %v7450 = vmul.f32 %v7449, %v7434
        %vm7451 = vweird.f32 %v468
        %v7452 = vadd.s32 %v7435, 3
        %v7453 = vand.u32 %v7452, 3
        %vm7454 = vcmp.lt.s32.totalorder %v7453, 2
        %vm7455 = vcmp.eq.s32.totalorder %v7453, 0
        %v7456 = vxor.u32 %v7450, 2147483648
        %v7457 = vsel %vm7455, %v7442, %v7456
        %vm7458 = vcmp.eq.s32.totalorder %v7453, 2
        %v7459 = vxor.u32 %v7442, 2147483648
        %v7460 = vsel %vm7458, %v7459, %v7450
        %v7461 = vsel %vm7454, %v7457, %v7460
        %v7462 = vsel %vm7451, nan, %v7461
        %v7463 = vand.u32 2147483647, %v469
        %vm7464 = vcmp.le.f32.partialorder %v7463, 0.7853982
        %vm7465 = vcmp.lt.s32.totalorder %v469, 0
        %v7466 = vand.u32 %v469, 2139095040
        %v7467 = vshrl.u32 %v7466, 23
        %v7468 = vsub.s32 %v7467, 127
        %v7469 = vand.u32 2147483647, %v469
        %v7470 = vand.u32 %v7469, 8388607
        %v7471 = vor.u32 %v7470, 8388608
        %v7472 = vsub.s32 0, %v7471
        %v7473 = vadd.s32 %v7468, 1
        %vm7474 = vcmp.gt.s32.totalorder %v7473, 0
        %v7475 = vsel %vm7474, %v7473, 0
        %v7476 = vshrl.u32 %v7475, 5
        %v7477 = vand.u32 %v7475, 31
        %v7478 = vsub.s32 32, %v7477
        %v7479 = vshrl.u32 683565275, %v7478
        %v7480 = vshll.u32 683565275, %v7477
        %v7481 = vshrl.u32 2475754826, %v7478
        %v7482 = vor.u32 %v7480, %v7481
        %v7483 = vshll.u32 2475754826, %v7477
        %v7484 = vshrl.u32 2131351028, %v7478
        %v7485 = vor.u32 %v7483, %v7484
        %v7486 = vshll.u32 2131351028, %v7477
        %v7487 = vshrl.u32 2102212464, %v7478
        %v7488 = vor.u32 %v7486, %v7487
        %v7489 = vshll.u32 2102212464, %v7477
        %v7490 = vshrl.u32 920167782, %v7478
        %v7491 = vor.u32 %v7489, %v7490
        %v7492 = vshll.u32 920167782, %v7477
        %v7493 = vshrl.u32 1326507024, %v7478
        %v7494 = vor.u32 %v7492, %v7493
        %vm7495 = vcmp.lt.s32.totalorder %v7476, 1
        %vm7496 = vcmp.lt.s32.totalorder %v7476, 2
        %vm7497 = vcmp.lt.s32.totalorder %v7476, 3
        %vm7498 = vcmp.lt.s32.totalorder %v7476, 4
        %v7499 = vsel %vm7495, %v7479, %v7482
        %v7500 = vsel %vm7498, %v7488, 2102212464
        %v7501 = vsel %vm7497, %v7485, %v7500
        %v7502 = vsel %vm7496, %v7499, %v7501
        %v7503 = vsel %vm7495, %v7482, %v7485
        %v7504 = vsel %vm7498, %v7491, 920167782
        %v7505 = vsel %vm7497, %v7488, %v7504
        %v7506 = vsel %vm7496, %v7503, %v7505
        %v7507 = vsel %vm7495, %v7485, %v7488
        %v7508 = vsel %vm7498, %v7494, 1326507024
        %v7509 = vsel %vm7497, %v7491, %v7508
        %v7510 = vsel %vm7496, %v7507, %v7509
        %v7511 = vshll.u32 %v7471, 8
        %v7512 = vand.u32 %v7511, 65535
        %v7513 = vshrl.u32 %v7511, 16
        %v7514 = vand.u32 %v7510, 65535
        %v7515 = vshrl.u32 %v7510, 16
        %v7516 = vmul.u32 %v7512, %v7514
        %v7517 = vmul.u32 %v7512, %v7515
        %v7518 = vmul.u32 %v7513, %v7514
        %v7519 = vmul.u32 %v7513, %v7515
        %v7520 = vshll.u32 %v7517, 16
        %v7521 = vshrl.u32 %v7517, 16
        %v7522 = vshll.u32 %v7518, 16
        %v7523 = vshrl.u32 %v7518, 16
        %vm7524 = vc.u32 %v7516, %v7520
        %v7525 = vsel %vm7524, 1, 0
        %v7526 = vadd.s32 %v7516, %v7520
        %v7527 = vadd.s32 %v7519, %v7525
        %vm7528 = vc.u32 %v7526, %v7522
        %v7529 = vsel %vm7528, 1, 0
        %v7530 = vadd.s32 %v7526, %v7522
        %v7531 = vadd.s32 %v7527, %v7529
        %v7532 = vadd.s32 %v7531, %v7521
        %v7533 = vadd.s32 %v7532, %v7523
        %v7534 = vand.u32 %v7511, 65535
        %v7535 = vshrl.u32 %v7511, 16
        %v7536 = vand.u32 %v7506, 65535
        %v7537 = vshrl.u32 %v7506, 16
        %v7538 = vmul.u32 %v7534, %v7536
        %v7539 = vmul.u32 %v7534, %v7537
        %v7540 = vmul.u32 %v7535, %v7536
        %v7541 = vmul.u32 %v7535, %v7537
        %v7542 = vshll.u32 %v7539, 16
        %v7543 = vshrl.u32 %v7539, 16
        %v7544 = vshll.u32 %v7540, 16
        %v7545 = vshrl.u32 %v7540, 16
        %vm7546 = vc.u32 %v7538, %v7542
        %v7547 = vsel %vm7546, 1, 0
        %v7548 = vadd.s32 %v7538, %v7542
        %v7549 = vadd.s32 %v7541, %v7547
        %vm7550 = vc.u32 %v7548, %v7544
        %v7551 = vsel %vm7550, 1, 0
        %v7552 = vadd.s32 %v7548, %v7544
        %v7553 = vadd.s32 %v7549, %v7551
        %v7554 = vadd.s32 %v7553, %v7543
        %v7555 = vadd.s32 %v7554, %v7545
        %v7556 = vmul.u32 %v7511, %v7502
        %v7557 = vadd.s32 %v7533, %v7552
        %vm7558 = vc.u32 %v7533, %v7552
        %v7559 = vadd.s32 %v7555, 1
        %v7560 = vsel %vm7558, %v7559, %v7555
        %v7561 = vadd.s32 %v7556, %v7560
        %v7562 = vadd.s32 %v7561, 536870912
        %v7563 = vshrl.u32 %v7562, 30
        %v7564 = vshll.u32 %v7563, 30
        %v7565 = vsub.s32 %v7561, %v7564
        %vm7566 = vcmp.lt.s32.totalorder %v7565, 0
        %v7567 = vsub.s32 0, %v7565
        %v7568 = vsel %vm7566, %v7567, %v7565
        %v7569 = vclz %v7568
        %v7570 = vsub.s32 %v7569, 2
        %vm7571 = vcmp.gt.s32.totalorder 0, %v7570
        %v7572 = vsel %vm7571, 0, %v7570
        %v7573 = vsub.s32 32, %v7572
        %v7574 = vshll.u32 %v7565, %v7572
        %v7575 = vshrl.u32 %v7557, %v7573
        %v7576 = vor.u32 %v7574, %v7575
        %v7577 = vsub.s32 4294967266, %v7572
        %v7578 = vadd.s32 %v7577, 127
        %v7579 = vshll.u32 %v7578, 23
        %v7580 = vor.u32 4788187, %v7579
        %v7581 = vand.u32 2147483647, %v7580
        %v7583 = vcvt.s32.f32 %v7576
        %v7584 = vmul.f32 %v7583, %v7581
        %v7585 = vxor.u32 %v7584, 2147483648
        %v7586 = vsel %vm7465, %v7585, %v7584
        %v7587 = vsub.s32 4, %v7563
        %v7588 = vsel %vm7465, %v7587, %v7563
        %v7589 = vsel %vm7464, %v469, %v7586
        %v7590 = vsel %vm7464, 0, %v7588
        %v7591 = vmul.f32 %v7589, %v7589
        %v7592 = vmul.f32 %v7591, -0.001358992
        %v7593 = vadd.f32 %v7592, 0.041655596
        %v7594 = vmul.f32 %v7591, %v7593
        %v7595 = vadd.f32 %v7594, -0.4999988
        %v7596 = vmul.f32 %v7591, %v7595
        %v7597 = vadd.f32 1.0, %v7596
        %v7598 = vmul.f32 %v7589, %v7589
        %v7599 = vmul.f32 %v7598, -0.00019511016
        %v7600 = vadd.f32 %v7599, 0.008332121
        %v7601 = vmul.f32 %v7598, %v7600
        %v7602 = vadd.f32 %v7601, -0.16666654
        %v7603 = vmul.f32 %v7598, %v7602
        %v7604 = vadd.f32 %v7603, 1.0
        %v7605 = vmul.f32 %v7604, %v7589
        %vm7606 = vweird.f32 %v469
        %v7607 = vadd.s32 %v7590, 3
        %v7608 = vand.u32 %v7607, 3
        %vm7609 = vcmp.lt.s32.totalorder %v7608, 2
        %vm7610 = vcmp.eq.s32.totalorder %v7608, 0
        %v7611 = vxor.u32 %v7605, 2147483648
        %v7612 = vsel %vm7610, %v7597, %v7611
        %vm7613 = vcmp.eq.s32.totalorder %v7608, 2
        %v7614 = vxor.u32 %v7597, 2147483648
        %v7615 = vsel %vm7613, %v7614, %v7605
        %v7616 = vsel %vm7609, %v7612, %v7615
        %v7617 = vsel %vm7606, nan, %v7616
        %v7618 = vand.u32 2147483647, %v470
        %vm7619 = vcmp.le.f32.partialorder %v7618, 0.7853982
        %vm7620 = vcmp.lt.s32.totalorder %v470, 0
        %v7621 = vand.u32 %v470, 2139095040
        %v7622 = vshrl.u32 %v7621, 23
        %v7623 = vsub.s32 %v7622, 127
        %v7624 = vand.u32 2147483647, %v470
        %v7625 = vand.u32 %v7624, 8388607
        %v7626 = vor.u32 %v7625, 8388608
        %v7627 = vsub.s32 0, %v7626
        %v7628 = vadd.s32 %v7623, 1
        %vm7629 = vcmp.gt.s32.totalorder %v7628, 0
        %v7630 = vsel %vm7629, %v7628, 0
        %v7631 = vshrl.u32 %v7630, 5
        %v7632 = vand.u32 %v7630, 31
        %v7633 = vsub.s32 32, %v7632
        %v7634 = vshrl.u32 683565275, %v7633
        %v7635 = vshll.u32 683565275, %v7632
        %v7636 = vshrl.u32 2475754826, %v7633
        %v7637 = vor.u32 %v7635, %v7636
        %v7638 = vshll.u32 2475754826, %v7632
        %v7639 = vshrl.u32 2131351028, %v7633
        %v7640 = vor.u32 %v7638, %v7639
        %v7641 = vshll.u32 2131351028, %v7632
        %v7642 = vshrl.u32 2102212464, %v7633
        %v7643 = vor.u32 %v7641, %v7642
        %v7644 = vshll.u32 2102212464, %v7632
        %v7645 = vshrl.u32 920167782, %v7633
        %v7646 = vor.u32 %v7644, %v7645
        %v7647 = vshll.u32 920167782, %v7632
        %v7648 = vshrl.u32 1326507024, %v7633
        %v7649 = vor.u32 %v7647, %v7648
        %vm7650 = vcmp.lt.s32.totalorder %v7631, 1
        %vm7651 = vcmp.lt.s32.totalorder %v7631, 2
        %vm7652 = vcmp.lt.s32.totalorder %v7631, 3
        %vm7653 = vcmp.lt.s32.totalorder %v7631, 4
        %v7654 = vsel %vm7650, %v7634, %v7637
        %v7655 = vsel %vm7653, %v7643, 2102212464
        %v7656 = vsel %vm7652, %v7640, %v7655
        %v7657 = vsel %vm7651, %v7654, %v7656
        %v7658 = vsel %vm7650, %v7637, %v7640
        %v7659 = vsel %vm7653, %v7646, 920167782
        %v7660 = vsel %vm7652, %v7643, %v7659
        %v7661 = vsel %vm7651, %v7658, %v7660
        %v7662 = vsel %vm7650, %v7640, %v7643
        %v7663 = vsel %vm7653, %v7649, 1326507024
        %v7664 = vsel %vm7652, %v7646, %v7663
        %v7665 = vsel %vm7651, %v7662, %v7664
        %v7666 = vshll.u32 %v7626, 8
        %v7667 = vand.u32 %v7666, 65535
        %v7668 = vshrl.u32 %v7666, 16
        %v7669 = vand.u32 %v7665, 65535
        %v7670 = vshrl.u32 %v7665, 16
        %v7671 = vmul.u32 %v7667, %v7669
        %v7672 = vmul.u32 %v7667, %v7670
        %v7673 = vmul.u32 %v7668, %v7669
        %v7674 = vmul.u32 %v7668, %v7670
        %v7675 = vshll.u32 %v7672, 16
        %v7676 = vshrl.u32 %v7672, 16
        %v7677 = vshll.u32 %v7673, 16
        %v7678 = vshrl.u32 %v7673, 16
        %vm7679 = vc.u32 %v7671, %v7675
        %v7680 = vsel %vm7679, 1, 0
        %v7681 = vadd.s32 %v7671, %v7675
        %v7682 = vadd.s32 %v7674, %v7680
        %vm7683 = vc.u32 %v7681, %v7677
        %v7684 = vsel %vm7683, 1, 0
        %v7685 = vadd.s32 %v7681, %v7677
        %v7686 = vadd.s32 %v7682, %v7684
        %v7687 = vadd.s32 %v7686, %v7676
        %v7688 = vadd.s32 %v7687, %v7678
        %v7689 = vand.u32 %v7666, 65535
        %v7690 = vshrl.u32 %v7666, 16
        %v7691 = vand.u32 %v7661, 65535
        %v7692 = vshrl.u32 %v7661, 16
        %v7693 = vmul.u32 %v7689, %v7691
        %v7694 = vmul.u32 %v7689, %v7692
        %v7695 = vmul.u32 %v7690, %v7691
        %v7696 = vmul.u32 %v7690, %v7692
        %v7697 = vshll.u32 %v7694, 16
        %v7698 = vshrl.u32 %v7694, 16
        %v7699 = vshll.u32 %v7695, 16
        %v7700 = vshrl.u32 %v7695, 16
        %vm7701 = vc.u32 %v7693, %v7697
        %v7702 = vsel %vm7701, 1, 0
        %v7703 = vadd.s32 %v7693, %v7697
        %v7704 = vadd.s32 %v7696, %v7702
        %vm7705 = vc.u32 %v7703, %v7699
        %v7706 = vsel %vm7705, 1, 0
        %v7707 = vadd.s32 %v7703, %v7699
        %v7708 = vadd.s32 %v7704, %v7706
        %v7709 = vadd.s32 %v7708, %v7698
        %v7710 = vadd.s32 %v7709, %v7700
        %v7711 = vmul.u32 %v7666, %v7657
        %v7712 = vadd.s32 %v7688, %v7707
        %vm7713 = vc.u32 %v7688, %v7707
        %v7714 = vadd.s32 %v7710, 1
        %v7715 = vsel %vm7713, %v7714, %v7710
        %v7716 = vadd.s32 %v7711, %v7715
        %v7717 = vadd.s32 %v7716, 536870912
        %v7718 = vshrl.u32 %v7717, 30
        %v7719 = vshll.u32 %v7718, 30
        %v7720 = vsub.s32 %v7716, %v7719
        %vm7721 = vcmp.lt.s32.totalorder %v7720, 0
        %v7722 = vsub.s32 0, %v7720
        %v7723 = vsel %vm7721, %v7722, %v7720
        %v7724 = vclz %v7723
        %v7725 = vsub.s32 %v7724, 2
        %vm7726 = vcmp.gt.s32.totalorder 0, %v7725
        %v7727 = vsel %vm7726, 0, %v7725
        %v7728 = vsub.s32 32, %v7727
        %v7729 = vshll.u32 %v7720, %v7727
        %v7730 = vshrl.u32 %v7712, %v7728
        %v7731 = vor.u32 %v7729, %v7730
        %v7732 = vsub.s32 4294967266, %v7727
        %v7733 = vadd.s32 %v7732, 127
        %v7734 = vshll.u32 %v7733, 23
        %v7735 = vor.u32 4788187, %v7734
        %v7736 = vand.u32 2147483647, %v7735
        %v7738 = vcvt.s32.f32 %v7731
        %v7739 = vmul.f32 %v7738, %v7736
        %v7740 = vxor.u32 %v7739, 2147483648
        %v7741 = vsel %vm7620, %v7740, %v7739
        %v7742 = vsub.s32 4, %v7718
        %v7743 = vsel %vm7620, %v7742, %v7718
        %v7744 = vsel %vm7619, %v470, %v7741
        %v7745 = vsel %vm7619, 0, %v7743
        %v7746 = vmul.f32 %v7744, %v7744
        %v7747 = vmul.f32 %v7746, -0.001358992
        %v7748 = vadd.f32 %v7747, 0.041655596
        %v7749 = vmul.f32 %v7746, %v7748
        %v7750 = vadd.f32 %v7749, -0.4999988
        %v7751 = vmul.f32 %v7746, %v7750
        %v7752 = vadd.f32 1.0, %v7751
        %v7753 = vmul.f32 %v7744, %v7744
        %v7754 = vmul.f32 %v7753, -0.00019511016
        %v7755 = vadd.f32 %v7754, 0.008332121
        %v7756 = vmul.f32 %v7753, %v7755
        %v7757 = vadd.f32 %v7756, -0.16666654
        %v7758 = vmul.f32 %v7753, %v7757
        %v7759 = vadd.f32 %v7758, 1.0
        %v7760 = vmul.f32 %v7759, %v7744
        %vm7761 = vweird.f32 %v470
        %v7762 = vadd.s32 %v7745, 3
        %v7763 = vand.u32 %v7762, 3
        %vm7764 = vcmp.lt.s32.totalorder %v7763, 2
        %vm7765 = vcmp.eq.s32.totalorder %v7763, 0
        %v7766 = vxor.u32 %v7760, 2147483648
        %v7767 = vsel %vm7765, %v7752, %v7766
        %vm7768 = vcmp.eq.s32.totalorder %v7763, 2
        %v7769 = vxor.u32 %v7752, 2147483648
        %v7770 = vsel %vm7768, %v7769, %v7760
        %v7771 = vsel %vm7764, %v7767, %v7770
        %v7772 = vsel %vm7761, nan, %v7771
        %v7773 = vand.u32 2147483647, %v471
        %vm7774 = vcmp.le.f32.partialorder %v7773, 0.7853982
        %vm7775 = vcmp.lt.s32.totalorder %v471, 0
        %v7776 = vand.u32 %v471, 2139095040
        %v7777 = vshrl.u32 %v7776, 23
        %v7778 = vsub.s32 %v7777, 127
        %v7779 = vand.u32 2147483647, %v471
        %v7780 = vand.u32 %v7779, 8388607
        %v7781 = vor.u32 %v7780, 8388608
        %v7782 = vsub.s32 0, %v7781
        %v7783 = vadd.s32 %v7778, 1
        %vm7784 = vcmp.gt.s32.totalorder %v7783, 0
        %v7785 = vsel %vm7784, %v7783, 0
        %v7786 = vshrl.u32 %v7785, 5
        %v7787 = vand.u32 %v7785, 31
        %v7788 = vsub.s32 32, %v7787
        %v7789 = vshrl.u32 683565275, %v7788
        %v7790 = vshll.u32 683565275, %v7787
        %v7791 = vshrl.u32 2475754826, %v7788
        %v7792 = vor.u32 %v7790, %v7791
        %v7793 = vshll.u32 2475754826, %v7787
        %v7794 = vshrl.u32 2131351028, %v7788
        %v7795 = vor.u32 %v7793, %v7794
        %v7796 = vshll.u32 2131351028, %v7787
        %v7797 = vshrl.u32 2102212464, %v7788
        %v7798 = vor.u32 %v7796, %v7797
        %v7799 = vshll.u32 2102212464, %v7787
        %v7800 = vshrl.u32 920167782, %v7788
        %v7801 = vor.u32 %v7799, %v7800
        %v7802 = vshll.u32 920167782, %v7787
        %v7803 = vshrl.u32 1326507024, %v7788
        %v7804 = vor.u32 %v7802, %v7803
        %vm7805 = vcmp.lt.s32.totalorder %v7786, 1
        %vm7806 = vcmp.lt.s32.totalorder %v7786, 2
        %vm7807 = vcmp.lt.s32.totalorder %v7786, 3
        %vm7808 = vcmp.lt.s32.totalorder %v7786, 4
        %v7809 = vsel %vm7805, %v7789, %v7792
        %v7810 = vsel %vm7808, %v7798, 2102212464
        %v7811 = vsel %vm7807, %v7795, %v7810
        %v7812 = vsel %vm7806, %v7809, %v7811
        %v7813 = vsel %vm7805, %v7792, %v7795
        %v7814 = vsel %vm7808, %v7801, 920167782
        %v7815 = vsel %vm7807, %v7798, %v7814
        %v7816 = vsel %vm7806, %v7813, %v7815
        %v7817 = vsel %vm7805, %v7795, %v7798
        %v7818 = vsel %vm7808, %v7804, 1326507024
        %v7819 = vsel %vm7807, %v7801, %v7818
        %v7820 = vsel %vm7806, %v7817, %v7819
        %v7821 = vshll.u32 %v7781, 8
        %v7822 = vand.u32 %v7821, 65535
        %v7823 = vshrl.u32 %v7821, 16
        %v7824 = vand.u32 %v7820, 65535
        %v7825 = vshrl.u32 %v7820, 16
        %v7826 = vmul.u32 %v7822, %v7824
        %v7827 = vmul.u32 %v7822, %v7825
        %v7828 = vmul.u32 %v7823, %v7824
        %v7829 = vmul.u32 %v7823, %v7825
        %v7830 = vshll.u32 %v7827, 16
        %v7831 = vshrl.u32 %v7827, 16
        %v7832 = vshll.u32 %v7828, 16
        %v7833 = vshrl.u32 %v7828, 16
        %vm7834 = vc.u32 %v7826, %v7830
        %v7835 = vsel %vm7834, 1, 0
        %v7836 = vadd.s32 %v7826, %v7830
        %v7837 = vadd.s32 %v7829, %v7835
        %vm7838 = vc.u32 %v7836, %v7832
        %v7839 = vsel %vm7838, 1, 0
        %v7840 = vadd.s32 %v7836, %v7832
        %v7841 = vadd.s32 %v7837, %v7839
        %v7842 = vadd.s32 %v7841, %v7831
        %v7843 = vadd.s32 %v7842, %v7833
        %v7844 = vand.u32 %v7821, 65535
        %v7845 = vshrl.u32 %v7821, 16
        %v7846 = vand.u32 %v7816, 65535
        %v7847 = vshrl.u32 %v7816, 16
        %v7848 = vmul.u32 %v7844, %v7846
        %v7849 = vmul.u32 %v7844, %v7847
        %v7850 = vmul.u32 %v7845, %v7846
        %v7851 = vmul.u32 %v7845, %v7847
        %v7852 = vshll.u32 %v7849, 16
        %v7853 = vshrl.u32 %v7849, 16
        %v7854 = vshll.u32 %v7850, 16
        %v7855 = vshrl.u32 %v7850, 16
        %vm7856 = vc.u32 %v7848, %v7852
        %v7857 = vsel %vm7856, 1, 0
        %v7858 = vadd.s32 %v7848, %v7852
        %v7859 = vadd.s32 %v7851, %v7857
        %vm7860 = vc.u32 %v7858, %v7854
        %v7861 = vsel %vm7860, 1, 0
        %v7862 = vadd.s32 %v7858, %v7854
        %v7863 = vadd.s32 %v7859, %v7861
        %v7864 = vadd.s32 %v7863, %v7853
        %v7865 = vadd.s32 %v7864, %v7855
        %v7866 = vmul.u32 %v7821, %v7812
        %v7867 = vadd.s32 %v7843, %v7862
        %vm7868 = vc.u32 %v7843, %v7862
        %v7869 = vadd.s32 %v7865, 1
        %v7870 = vsel %vm7868, %v7869, %v7865
        %v7871 = vadd.s32 %v7866, %v7870
        %v7872 = vadd.s32 %v7871, 536870912
        %v7873 = vshrl.u32 %v7872, 30
        %v7874 = vshll.u32 %v7873, 30
        %v7875 = vsub.s32 %v7871, %v7874
        %vm7876 = vcmp.lt.s32.totalorder %v7875, 0
        %v7877 = vsub.s32 0, %v7875
        %v7878 = vsel %vm7876, %v7877, %v7875
        %v7879 = vclz %v7878
        %v7880 = vsub.s32 %v7879, 2
        %vm7881 = vcmp.gt.s32.totalorder 0, %v7880
        %v7882 = vsel %vm7881, 0, %v7880
        %v7883 = vsub.s32 32, %v7882
        %v7884 = vshll.u32 %v7875, %v7882
        %v7885 = vshrl.u32 %v7867, %v7883
        %v7886 = vor.u32 %v7884, %v7885
        %v7887 = vsub.s32 4294967266, %v7882
        %v7888 = vadd.s32 %v7887, 127
        %v7889 = vshll.u32 %v7888, 23
        %v7890 = vor.u32 4788187, %v7889
        %v7891 = vand.u32 2147483647, %v7890
        %v7893 = vcvt.s32.f32 %v7886
        %v7894 = vmul.f32 %v7893, %v7891
        %v7895 = vxor.u32 %v7894, 2147483648
        %v7896 = vsel %vm7775, %v7895, %v7894
        %v7897 = vsub.s32 4, %v7873
        %v7898 = vsel %vm7775, %v7897, %v7873
        %v7899 = vsel %vm7774, %v471, %v7896
        %v7900 = vsel %vm7774, 0, %v7898
        %v7901 = vmul.f32 %v7899, %v7899
        %v7902 = vmul.f32 %v7901, -0.001358992
        %v7903 = vadd.f32 %v7902, 0.041655596
        %v7904 = vmul.f32 %v7901, %v7903
        %v7905 = vadd.f32 %v7904, -0.4999988
        %v7906 = vmul.f32 %v7901, %v7905
        %v7907 = vadd.f32 1.0, %v7906
        %v7908 = vmul.f32 %v7899, %v7899
        %v7909 = vmul.f32 %v7908, -0.00019511016
        %v7910 = vadd.f32 %v7909, 0.008332121
        %v7911 = vmul.f32 %v7908, %v7910
        %v7912 = vadd.f32 %v7911, -0.16666654
        %v7913 = vmul.f32 %v7908, %v7912
        %v7914 = vadd.f32 %v7913, 1.0
        %v7915 = vmul.f32 %v7914, %v7899
        %vm7916 = vweird.f32 %v471
        %v7917 = vadd.s32 %v7900, 3
        %v7918 = vand.u32 %v7917, 3
        %vm7919 = vcmp.lt.s32.totalorder %v7918, 2
        %vm7920 = vcmp.eq.s32.totalorder %v7918, 0
        %v7921 = vxor.u32 %v7915, 2147483648
        %v7922 = vsel %vm7920, %v7907, %v7921
        %vm7923 = vcmp.eq.s32.totalorder %v7918, 2
        %v7924 = vxor.u32 %v7907, 2147483648
        %v7925 = vsel %vm7923, %v7924, %v7915
        %v7926 = vsel %vm7919, %v7922, %v7925
        %v7927 = vsel %vm7916, nan, %v7926
        %v7928 = vand.u32 2147483647, %v472
        %vm7929 = vcmp.le.f32.partialorder %v7928, 0.7853982
        %vm7930 = vcmp.lt.s32.totalorder %v472, 0
        %v7931 = vand.u32 %v472, 2139095040
        %v7932 = vshrl.u32 %v7931, 23
        %v7933 = vsub.s32 %v7932, 127
        %v7934 = vand.u32 2147483647, %v472
        %v7935 = vand.u32 %v7934, 8388607
        %v7936 = vor.u32 %v7935, 8388608
        %v7937 = vsub.s32 0, %v7936
        %v7938 = vadd.s32 %v7933, 1
        %vm7939 = vcmp.gt.s32.totalorder %v7938, 0
        %v7940 = vsel %vm7939, %v7938, 0
        %v7941 = vshrl.u32 %v7940, 5
        %v7942 = vand.u32 %v7940, 31
        %v7943 = vsub.s32 32, %v7942
        %v7944 = vshrl.u32 683565275, %v7943
        %v7945 = vshll.u32 683565275, %v7942
        %v7946 = vshrl.u32 2475754826, %v7943
        %v7947 = vor.u32 %v7945, %v7946
        %v7948 = vshll.u32 2475754826, %v7942
        %v7949 = vshrl.u32 2131351028, %v7943
        %v7950 = vor.u32 %v7948, %v7949
        %v7951 = vshll.u32 2131351028, %v7942
        %v7952 = vshrl.u32 2102212464, %v7943
        %v7953 = vor.u32 %v7951, %v7952
        %v7954 = vshll.u32 2102212464, %v7942
        %v7955 = vshrl.u32 920167782, %v7943
        %v7956 = vor.u32 %v7954, %v7955
        %v7957 = vshll.u32 920167782, %v7942
        %v7958 = vshrl.u32 1326507024, %v7943
        %v7959 = vor.u32 %v7957, %v7958
        %vm7960 = vcmp.lt.s32.totalorder %v7941, 1
        %vm7961 = vcmp.lt.s32.totalorder %v7941, 2
        %vm7962 = vcmp.lt.s32.totalorder %v7941, 3
        %vm7963 = vcmp.lt.s32.totalorder %v7941, 4
        %v7964 = vsel %vm7960, %v7944, %v7947
        %v7965 = vsel %vm7963, %v7953, 2102212464
        %v7966 = vsel %vm7962, %v7950, %v7965
        %v7967 = vsel %vm7961, %v7964, %v7966
        %v7968 = vsel %vm7960, %v7947, %v7950
        %v7969 = vsel %vm7963, %v7956, 920167782
        %v7970 = vsel %vm7962, %v7953, %v7969
        %v7971 = vsel %vm7961, %v7968, %v7970
        %v7972 = vsel %vm7960, %v7950, %v7953
        %v7973 = vsel %vm7963, %v7959, 1326507024
        %v7974 = vsel %vm7962, %v7956, %v7973
        %v7975 = vsel %vm7961, %v7972, %v7974
        %v7976 = vshll.u32 %v7936, 8
        %v7977 = vand.u32 %v7976, 65535
        %v7978 = vshrl.u32 %v7976, 16
        %v7979 = vand.u32 %v7975, 65535
        %v7980 = vshrl.u32 %v7975, 16
        %v7981 = vmul.u32 %v7977, %v7979
        %v7982 = vmul.u32 %v7977, %v7980
        %v7983 = vmul.u32 %v7978, %v7979
        %v7984 = vmul.u32 %v7978, %v7980
        %v7985 = vshll.u32 %v7982, 16
        %v7986 = vshrl.u32 %v7982, 16
        %v7987 = vshll.u32 %v7983, 16
        %v7988 = vshrl.u32 %v7983, 16
        %vm7989 = vc.u32 %v7981, %v7985
        %v7990 = vsel %vm7989, 1, 0
        %v7991 = vadd.s32 %v7981, %v7985
        %v7992 = vadd.s32 %v7984, %v7990
        %vm7993 = vc.u32 %v7991, %v7987
        %v7994 = vsel %vm7993, 1, 0
        %v7995 = vadd.s32 %v7991, %v7987
        %v7996 = vadd.s32 %v7992, %v7994
        %v7997 = vadd.s32 %v7996, %v7986
        %v7998 = vadd.s32 %v7997, %v7988
        %v7999 = vand.u32 %v7976, 65535
        %v8000 = vshrl.u32 %v7976, 16
        %v8001 = vand.u32 %v7971, 65535
        %v8002 = vshrl.u32 %v7971, 16
        %v8003 = vmul.u32 %v7999, %v8001
        %v8004 = vmul.u32 %v7999, %v8002
        %v8005 = vmul.u32 %v8000, %v8001
        %v8006 = vmul.u32 %v8000, %v8002
        %v8007 = vshll.u32 %v8004, 16
        %v8008 = vshrl.u32 %v8004, 16
        %v8009 = vshll.u32 %v8005, 16
        %v8010 = vshrl.u32 %v8005, 16
        %vm8011 = vc.u32 %v8003, %v8007
        %v8012 = vsel %vm8011, 1, 0
        %v8013 = vadd.s32 %v8003, %v8007
        %v8014 = vadd.s32 %v8006, %v8012
        %vm8015 = vc.u32 %v8013, %v8009
        %v8016 = vsel %vm8015, 1, 0
        %v8017 = vadd.s32 %v8013, %v8009
        %v8018 = vadd.s32 %v8014, %v8016
        %v8019 = vadd.s32 %v8018, %v8008
        %v8020 = vadd.s32 %v8019, %v8010
        %v8021 = vmul.u32 %v7976, %v7967
        %v8022 = vadd.s32 %v7998, %v8017
        %vm8023 = vc.u32 %v7998, %v8017
        %v8024 = vadd.s32 %v8020, 1
        %v8025 = vsel %vm8023, %v8024, %v8020
        %v8026 = vadd.s32 %v8021, %v8025
        %v8027 = vadd.s32 %v8026, 536870912
        %v8028 = vshrl.u32 %v8027, 30
        %v8029 = vshll.u32 %v8028, 30
        %v8030 = vsub.s32 %v8026, %v8029
        %vm8031 = vcmp.lt.s32.totalorder %v8030, 0
        %v8032 = vsub.s32 0, %v8030
        %v8033 = vsel %vm8031, %v8032, %v8030
        %v8034 = vclz %v8033
        %v8035 = vsub.s32 %v8034, 2
        %vm8036 = vcmp.gt.s32.totalorder 0, %v8035
        %v8037 = vsel %vm8036, 0, %v8035
        %v8038 = vsub.s32 32, %v8037
        %v8039 = vshll.u32 %v8030, %v8037
        %v8040 = vshrl.u32 %v8022, %v8038
        %v8041 = vor.u32 %v8039, %v8040
        %v8042 = vsub.s32 4294967266, %v8037
        %v8043 = vadd.s32 %v8042, 127
        %v8044 = vshll.u32 %v8043, 23
        %v8045 = vor.u32 4788187, %v8044
        %v8046 = vand.u32 2147483647, %v8045
        %v8048 = vcvt.s32.f32 %v8041
        %v8049 = vmul.f32 %v8048, %v8046
        %v8050 = vxor.u32 %v8049, 2147483648
        %v8051 = vsel %vm7930, %v8050, %v8049
        %v8052 = vsub.s32 4, %v8028
        %v8053 = vsel %vm7930, %v8052, %v8028
        %v8054 = vsel %vm7929, %v472, %v8051
        %v8055 = vsel %vm7929, 0, %v8053
        %v8056 = vmul.f32 %v8054, %v8054
        %v8057 = vmul.f32 %v8056, -0.001358992
        %v8058 = vadd.f32 %v8057, 0.041655596
        %v8059 = vmul.f32 %v8056, %v8058
        %v8060 = vadd.f32 %v8059, -0.4999988
        %v8061 = vmul.f32 %v8056, %v8060
        %v8062 = vadd.f32 1.0, %v8061
        %v8063 = vmul.f32 %v8054, %v8054
        %v8064 = vmul.f32 %v8063, -0.00019511016
        %v8065 = vadd.f32 %v8064, 0.008332121
        %v8066 = vmul.f32 %v8063, %v8065
        %v8067 = vadd.f32 %v8066, -0.16666654
        %v8068 = vmul.f32 %v8063, %v8067
        %v8069 = vadd.f32 %v8068, 1.0
        %v8070 = vmul.f32 %v8069, %v8054
        %vm8071 = vweird.f32 %v472
        %v8072 = vadd.s32 %v8055, 3
        %v8073 = vand.u32 %v8072, 3
        %vm8074 = vcmp.lt.s32.totalorder %v8073, 2
        %vm8075 = vcmp.eq.s32.totalorder %v8073, 0
        %v8076 = vxor.u32 %v8070, 2147483648
        %v8077 = vsel %vm8075, %v8062, %v8076
        %vm8078 = vcmp.eq.s32.totalorder %v8073, 2
        %v8079 = vxor.u32 %v8062, 2147483648
        %v8080 = vsel %vm8078, %v8079, %v8070
        %v8081 = vsel %vm8074, %v8077, %v8080
        %v8082 = vsel %vm8071, nan, %v8081
        %v8083 = vand.u32 2147483647, %v473
        %vm8084 = vcmp.le.f32.partialorder %v8083, 0.7853982
        %vm8085 = vcmp.lt.s32.totalorder %v473, 0
        %v8086 = vand.u32 %v473, 2139095040
        %v8087 = vshrl.u32 %v8086, 23
        %v8088 = vsub.s32 %v8087, 127
        %v8089 = vand.u32 2147483647, %v473
        %v8090 = vand.u32 %v8089, 8388607
        %v8091 = vor.u32 %v8090, 8388608
        %v8092 = vsub.s32 0, %v8091
        %v8093 = vadd.s32 %v8088, 1
        %vm8094 = vcmp.gt.s32.totalorder %v8093, 0
        %v8095 = vsel %vm8094, %v8093, 0
        %v8096 = vshrl.u32 %v8095, 5
        %v8097 = vand.u32 %v8095, 31
        %v8098 = vsub.s32 32, %v8097
        %v8099 = vshrl.u32 683565275, %v8098
        %v8100 = vshll.u32 683565275, %v8097
        %v8101 = vshrl.u32 2475754826, %v8098
        %v8102 = vor.u32 %v8100, %v8101
        %v8103 = vshll.u32 2475754826, %v8097
        %v8104 = vshrl.u32 2131351028, %v8098
        %v8105 = vor.u32 %v8103, %v8104
        %v8106 = vshll.u32 2131351028, %v8097
        %v8107 = vshrl.u32 2102212464, %v8098
        %v8108 = vor.u32 %v8106, %v8107
        %v8109 = vshll.u32 2102212464, %v8097
        %v8110 = vshrl.u32 920167782, %v8098
        %v8111 = vor.u32 %v8109, %v8110
        %v8112 = vshll.u32 920167782, %v8097
        %v8113 = vshrl.u32 1326507024, %v8098
        %v8114 = vor.u32 %v8112, %v8113
        %vm8115 = vcmp.lt.s32.totalorder %v8096, 1
        %vm8116 = vcmp.lt.s32.totalorder %v8096, 2
        %vm8117 = vcmp.lt.s32.totalorder %v8096, 3
        %vm8118 = vcmp.lt.s32.totalorder %v8096, 4
        %v8119 = vsel %vm8115, %v8099, %v8102
        %v8120 = vsel %vm8118, %v8108, 2102212464
        %v8121 = vsel %vm8117, %v8105, %v8120
        %v8122 = vsel %vm8116, %v8119, %v8121
        %v8123 = vsel %vm8115, %v8102, %v8105
        %v8124 = vsel %vm8118, %v8111, 920167782
        %v8125 = vsel %vm8117, %v8108, %v8124
        %v8126 = vsel %vm8116, %v8123, %v8125
        %v8127 = vsel %vm8115, %v8105, %v8108
        %v8128 = vsel %vm8118, %v8114, 1326507024
        %v8129 = vsel %vm8117, %v8111, %v8128
        %v8130 = vsel %vm8116, %v8127, %v8129
        %v8131 = vshll.u32 %v8091, 8
        %v8132 = vand.u32 %v8131, 65535
        %v8133 = vshrl.u32 %v8131, 16
        %v8134 = vand.u32 %v8130, 65535
        %v8135 = vshrl.u32 %v8130, 16
        %v8136 = vmul.u32 %v8132, %v8134
        %v8137 = vmul.u32 %v8132, %v8135
        %v8138 = vmul.u32 %v8133, %v8134
        %v8139 = vmul.u32 %v8133, %v8135
        %v8140 = vshll.u32 %v8137, 16
        %v8141 = vshrl.u32 %v8137, 16
        %v8142 = vshll.u32 %v8138, 16
        %v8143 = vshrl.u32 %v8138, 16
        %vm8144 = vc.u32 %v8136, %v8140
        %v8145 = vsel %vm8144, 1, 0
        %v8146 = vadd.s32 %v8136, %v8140
        %v8147 = vadd.s32 %v8139, %v8145
        %vm8148 = vc.u32 %v8146, %v8142
        %v8149 = vsel %vm8148, 1, 0
        %v8150 = vadd.s32 %v8146, %v8142
        %v8151 = vadd.s32 %v8147, %v8149
        %v8152 = vadd.s32 %v8151, %v8141
        %v8153 = vadd.s32 %v8152, %v8143
        %v8154 = vand.u32 %v8131, 65535
        %v8155 = vshrl.u32 %v8131, 16
        %v8156 = vand.u32 %v8126, 65535
        %v8157 = vshrl.u32 %v8126, 16
        %v8158 = vmul.u32 %v8154, %v8156
        %v8159 = vmul.u32 %v8154, %v8157
        %v8160 = vmul.u32 %v8155, %v8156
        %v8161 = vmul.u32 %v8155, %v8157
        %v8162 = vshll.u32 %v8159, 16
        %v8163 = vshrl.u32 %v8159, 16
        %v8164 = vshll.u32 %v8160, 16
        %v8165 = vshrl.u32 %v8160, 16
        %vm8166 = vc.u32 %v8158, %v8162
        %v8167 = vsel %vm8166, 1, 0
        %v8168 = vadd.s32 %v8158, %v8162
        %v8169 = vadd.s32 %v8161, %v8167
        %vm8170 = vc.u32 %v8168, %v8164
        %v8171 = vsel %vm8170, 1, 0
        %v8172 = vadd.s32 %v8168, %v8164
        %v8173 = vadd.s32 %v8169, %v8171
        %v8174 = vadd.s32 %v8173, %v8163
        %v8175 = vadd.s32 %v8174, %v8165
        %v8176 = vmul.u32 %v8131, %v8122
        %v8177 = vadd.s32 %v8153, %v8172
        %vm8178 = vc.u32 %v8153, %v8172
        %v8179 = vadd.s32 %v8175, 1
        %v8180 = vsel %vm8178, %v8179, %v8175
        %v8181 = vadd.s32 %v8176, %v8180
        %v8182 = vadd.s32 %v8181, 536870912
        %v8183 = vshrl.u32 %v8182, 30
        %v8184 = vshll.u32 %v8183, 30
        %v8185 = vsub.s32 %v8181, %v8184
        %vm8186 = vcmp.lt.s32.totalorder %v8185, 0
        %v8187 = vsub.s32 0, %v8185
        %v8188 = vsel %vm8186, %v8187, %v8185
        %v8189 = vclz %v8188
        %v8190 = vsub.s32 %v8189, 2
        %vm8191 = vcmp.gt.s32.totalorder 0, %v8190
        %v8192 = vsel %vm8191, 0, %v8190
        %v8193 = vsub.s32 32, %v8192
        %v8194 = vshll.u32 %v8185, %v8192
        %v8195 = vshrl.u32 %v8177, %v8193
        %v8196 = vor.u32 %v8194, %v8195
        %v8197 = vsub.s32 4294967266, %v8192
        %v8198 = vadd.s32 %v8197, 127
        %v8199 = vshll.u32 %v8198, 23
        %v8200 = vor.u32 4788187, %v8199
        %v8201 = vand.u32 2147483647, %v8200
        %v8203 = vcvt.s32.f32 %v8196
        %v8204 = vmul.f32 %v8203, %v8201
        %v8205 = vxor.u32 %v8204, 2147483648
        %v8206 = vsel %vm8085, %v8205, %v8204
        %v8207 = vsub.s32 4, %v8183
        %v8208 = vsel %vm8085, %v8207, %v8183
        %v8209 = vsel %vm8084, %v473, %v8206
        %v8210 = vsel %vm8084, 0, %v8208
        %v8211 = vmul.f32 %v8209, %v8209
        %v8212 = vmul.f32 %v8211, -0.001358992
        %v8213 = vadd.f32 %v8212, 0.041655596
        %v8214 = vmul.f32 %v8211, %v8213
        %v8215 = vadd.f32 %v8214, -0.4999988
        %v8216 = vmul.f32 %v8211, %v8215
        %v8217 = vadd.f32 1.0, %v8216
        %v8218 = vmul.f32 %v8209, %v8209
        %v8219 = vmul.f32 %v8218, -0.00019511016
        %v8220 = vadd.f32 %v8219, 0.008332121
        %v8221 = vmul.f32 %v8218, %v8220
        %v8222 = vadd.f32 %v8221, -0.16666654
        %v8223 = vmul.f32 %v8218, %v8222
        %v8224 = vadd.f32 %v8223, 1.0
        %v8225 = vmul.f32 %v8224, %v8209
        %vm8226 = vweird.f32 %v473
        %v8227 = vadd.s32 %v8210, 3
        %v8228 = vand.u32 %v8227, 3
        %vm8229 = vcmp.lt.s32.totalorder %v8228, 2
        %vm8230 = vcmp.eq.s32.totalorder %v8228, 0
        %v8231 = vxor.u32 %v8225, 2147483648
        %v8232 = vsel %vm8230, %v8217, %v8231
        %vm8233 = vcmp.eq.s32.totalorder %v8228, 2
        %v8234 = vxor.u32 %v8217, 2147483648
        %v8235 = vsel %vm8233, %v8234, %v8225
        %v8236 = vsel %vm8229, %v8232, %v8235
        %v8237 = vsel %vm8226, nan, %v8236
        %v8238 = vand.u32 2147483647, %v474
        %vm8239 = vcmp.le.f32.partialorder %v8238, 0.7853982
        %vm8240 = vcmp.lt.s32.totalorder %v474, 0
        %v8241 = vand.u32 %v474, 2139095040
        %v8242 = vshrl.u32 %v8241, 23
        %v8243 = vsub.s32 %v8242, 127
        %v8244 = vand.u32 2147483647, %v474
        %v8245 = vand.u32 %v8244, 8388607
        %v8246 = vor.u32 %v8245, 8388608
        %v8247 = vsub.s32 0, %v8246
        %v8248 = vadd.s32 %v8243, 1
        %vm8249 = vcmp.gt.s32.totalorder %v8248, 0
        %v8250 = vsel %vm8249, %v8248, 0
        %v8251 = vshrl.u32 %v8250, 5
        %v8252 = vand.u32 %v8250, 31
        %v8253 = vsub.s32 32, %v8252
        %v8254 = vshrl.u32 683565275, %v8253
        %v8255 = vshll.u32 683565275, %v8252
        %v8256 = vshrl.u32 2475754826, %v8253
        %v8257 = vor.u32 %v8255, %v8256
        %v8258 = vshll.u32 2475754826, %v8252
        %v8259 = vshrl.u32 2131351028, %v8253
        %v8260 = vor.u32 %v8258, %v8259
        %v8261 = vshll.u32 2131351028, %v8252
        %v8262 = vshrl.u32 2102212464, %v8253
        %v8263 = vor.u32 %v8261, %v8262
        %v8264 = vshll.u32 2102212464, %v8252
        %v8265 = vshrl.u32 920167782, %v8253
        %v8266 = vor.u32 %v8264, %v8265
        %v8267 = vshll.u32 920167782, %v8252
        %v8268 = vshrl.u32 1326507024, %v8253
        %v8269 = vor.u32 %v8267, %v8268
        %vm8270 = vcmp.lt.s32.totalorder %v8251, 1
        %vm8271 = vcmp.lt.s32.totalorder %v8251, 2
        %vm8272 = vcmp.lt.s32.totalorder %v8251, 3
        %vm8273 = vcmp.lt.s32.totalorder %v8251, 4
        %v8274 = vsel %vm8270, %v8254, %v8257
        %v8275 = vsel %vm8273, %v8263, 2102212464
        %v8276 = vsel %vm8272, %v8260, %v8275
        %v8277 = vsel %vm8271, %v8274, %v8276
        %v8278 = vsel %vm8270, %v8257, %v8260
        %v8279 = vsel %vm8273, %v8266, 920167782
        %v8280 = vsel %vm8272, %v8263, %v8279
        %v8281 = vsel %vm8271, %v8278, %v8280
        %v8282 = vsel %vm8270, %v8260, %v8263
        %v8283 = vsel %vm8273, %v8269, 1326507024
        %v8284 = vsel %vm8272, %v8266, %v8283
        %v8285 = vsel %vm8271, %v8282, %v8284
        %v8286 = vshll.u32 %v8246, 8
        %v8287 = vand.u32 %v8286, 65535
        %v8288 = vshrl.u32 %v8286, 16
        %v8289 = vand.u32 %v8285, 65535
        %v8290 = vshrl.u32 %v8285, 16
        %v8291 = vmul.u32 %v8287, %v8289
        %v8292 = vmul.u32 %v8287, %v8290
        %v8293 = vmul.u32 %v8288, %v8289
        %v8294 = vmul.u32 %v8288, %v8290
        %v8295 = vshll.u32 %v8292, 16
        %v8296 = vshrl.u32 %v8292, 16
        %v8297 = vshll.u32 %v8293, 16
        %v8298 = vshrl.u32 %v8293, 16
        %vm8299 = vc.u32 %v8291, %v8295
        %v8300 = vsel %vm8299, 1, 0
        %v8301 = vadd.s32 %v8291, %v8295
        %v8302 = vadd.s32 %v8294, %v8300
        %vm8303 = vc.u32 %v8301, %v8297
        %v8304 = vsel %vm8303, 1, 0
        %v8305 = vadd.s32 %v8301, %v8297
        %v8306 = vadd.s32 %v8302, %v8304
        %v8307 = vadd.s32 %v8306, %v8296
        %v8308 = vadd.s32 %v8307, %v8298
        %v8309 = vand.u32 %v8286, 65535
        %v8310 = vshrl.u32 %v8286, 16
        %v8311 = vand.u32 %v8281, 65535
        %v8312 = vshrl.u32 %v8281, 16
        %v8313 = vmul.u32 %v8309, %v8311
        %v8314 = vmul.u32 %v8309, %v8312
        %v8315 = vmul.u32 %v8310, %v8311
        %v8316 = vmul.u32 %v8310, %v8312
        %v8317 = vshll.u32 %v8314, 16
        %v8318 = vshrl.u32 %v8314, 16
        %v8319 = vshll.u32 %v8315, 16
        %v8320 = vshrl.u32 %v8315, 16
        %vm8321 = vc.u32 %v8313, %v8317
        %v8322 = vsel %vm8321, 1, 0
        %v8323 = vadd.s32 %v8313, %v8317
        %v8324 = vadd.s32 %v8316, %v8322
        %vm8325 = vc.u32 %v8323, %v8319
        %v8326 = vsel %vm8325, 1, 0
        %v8327 = vadd.s32 %v8323, %v8319
        %v8328 = vadd.s32 %v8324, %v8326
        %v8329 = vadd.s32 %v8328, %v8318
        %v8330 = vadd.s32 %v8329, %v8320
        %v8331 = vmul.u32 %v8286, %v8277
        %v8332 = vadd.s32 %v8308, %v8327
        %vm8333 = vc.u32 %v8308, %v8327
        %v8334 = vadd.s32 %v8330, 1
        %v8335 = vsel %vm8333, %v8334, %v8330
        %v8336 = vadd.s32 %v8331, %v8335
        %v8337 = vadd.s32 %v8336, 536870912
        %v8338 = vshrl.u32 %v8337, 30
        %v8339 = vshll.u32 %v8338, 30
        %v8340 = vsub.s32 %v8336, %v8339
        %vm8341 = vcmp.lt.s32.totalorder %v8340, 0
        %v8342 = vsub.s32 0, %v8340
        %v8343 = vsel %vm8341, %v8342, %v8340
        %v8344 = vclz %v8343
        %v8345 = vsub.s32 %v8344, 2
        %vm8346 = vcmp.gt.s32.totalorder 0, %v8345
        %v8347 = vsel %vm8346, 0, %v8345
        %v8348 = vsub.s32 32, %v8347
        %v8349 = vshll.u32 %v8340, %v8347
        %v8350 = vshrl.u32 %v8332, %v8348
        %v8351 = vor.u32 %v8349, %v8350
        %v8352 = vsub.s32 4294967266, %v8347
        %v8353 = vadd.s32 %v8352, 127
        %v8354 = vshll.u32 %v8353, 23
        %v8355 = vor.u32 4788187, %v8354
        %v8356 = vand.u32 2147483647, %v8355
        %v8358 = vcvt.s32.f32 %v8351
        %v8359 = vmul.f32 %v8358, %v8356
        %v8360 = vxor.u32 %v8359, 2147483648
        %v8361 = vsel %vm8240, %v8360, %v8359
        %v8362 = vsub.s32 4, %v8338
        %v8363 = vsel %vm8240, %v8362, %v8338
        %v8364 = vsel %vm8239, %v474, %v8361
        %v8365 = vsel %vm8239, 0, %v8363
        %v8366 = vmul.f32 %v8364, %v8364
        %v8367 = vmul.f32 %v8366, -0.001358992
        %v8368 = vadd.f32 %v8367, 0.041655596
        %v8369 = vmul.f32 %v8366, %v8368
        %v8370 = vadd.f32 %v8369, -0.4999988
        %v8371 = vmul.f32 %v8366, %v8370
        %v8372 = vadd.f32 1.0, %v8371
        %v8373 = vmul.f32 %v8364, %v8364
        %v8374 = vmul.f32 %v8373, -0.00019511016
        %v8375 = vadd.f32 %v8374, 0.008332121
        %v8376 = vmul.f32 %v8373, %v8375
        %v8377 = vadd.f32 %v8376, -0.16666654
        %v8378 = vmul.f32 %v8373, %v8377
        %v8379 = vadd.f32 %v8378, 1.0
        %v8380 = vmul.f32 %v8379, %v8364
        %vm8381 = vweird.f32 %v474
        %v8382 = vadd.s32 %v8365, 3
        %v8383 = vand.u32 %v8382, 3
        %vm8384 = vcmp.lt.s32.totalorder %v8383, 2
        %vm8385 = vcmp.eq.s32.totalorder %v8383, 0
        %v8386 = vxor.u32 %v8380, 2147483648
        %v8387 = vsel %vm8385, %v8372, %v8386
        %vm8388 = vcmp.eq.s32.totalorder %v8383, 2
        %v8389 = vxor.u32 %v8372, 2147483648
        %v8390 = vsel %vm8388, %v8389, %v8380
        %v8391 = vsel %vm8384, %v8387, %v8390
        %v8392 = vsel %vm8381, nan, %v8391
        %v8393 = vand.u32 2147483647, %v475
        %vm8394 = vcmp.le.f32.partialorder %v8393, 0.7853982
        %vm8395 = vcmp.lt.s32.totalorder %v475, 0
        %v8396 = vand.u32 %v475, 2139095040
        %v8397 = vshrl.u32 %v8396, 23
        %v8398 = vsub.s32 %v8397, 127
        %v8399 = vand.u32 2147483647, %v475
        %v8400 = vand.u32 %v8399, 8388607
        %v8401 = vor.u32 %v8400, 8388608
        %v8402 = vsub.s32 0, %v8401
        %v8403 = vadd.s32 %v8398, 1
        %vm8404 = vcmp.gt.s32.totalorder %v8403, 0
        %v8405 = vsel %vm8404, %v8403, 0
        %v8406 = vshrl.u32 %v8405, 5
        %v8407 = vand.u32 %v8405, 31
        %v8408 = vsub.s32 32, %v8407
        %v8409 = vshrl.u32 683565275, %v8408
        %v8410 = vshll.u32 683565275, %v8407
        %v8411 = vshrl.u32 2475754826, %v8408
        %v8412 = vor.u32 %v8410, %v8411
        %v8413 = vshll.u32 2475754826, %v8407
        %v8414 = vshrl.u32 2131351028, %v8408
        %v8415 = vor.u32 %v8413, %v8414
        %v8416 = vshll.u32 2131351028, %v8407
        %v8417 = vshrl.u32 2102212464, %v8408
        %v8418 = vor.u32 %v8416, %v8417
        %v8419 = vshll.u32 2102212464, %v8407
        %v8420 = vshrl.u32 920167782, %v8408
        %v8421 = vor.u32 %v8419, %v8420
        %v8422 = vshll.u32 920167782, %v8407
        %v8423 = vshrl.u32 1326507024, %v8408
        %v8424 = vor.u32 %v8422, %v8423
        %vm8425 = vcmp.lt.s32.totalorder %v8406, 1
        %vm8426 = vcmp.lt.s32.totalorder %v8406, 2
        %vm8427 = vcmp.lt.s32.totalorder %v8406, 3
        %vm8428 = vcmp.lt.s32.totalorder %v8406, 4
        %v8429 = vsel %vm8425, %v8409, %v8412
        %v8430 = vsel %vm8428, %v8418, 2102212464
        %v8431 = vsel %vm8427, %v8415, %v8430
        %v8432 = vsel %vm8426, %v8429, %v8431
        %v8433 = vsel %vm8425, %v8412, %v8415
        %v8434 = vsel %vm8428, %v8421, 920167782
        %v8435 = vsel %vm8427, %v8418, %v8434
        %v8436 = vsel %vm8426, %v8433, %v8435
        %v8437 = vsel %vm8425, %v8415, %v8418
        %v8438 = vsel %vm8428, %v8424, 1326507024
        %v8439 = vsel %vm8427, %v8421, %v8438
        %v8440 = vsel %vm8426, %v8437, %v8439
        %v8441 = vshll.u32 %v8401, 8
        %v8442 = vand.u32 %v8441, 65535
        %v8443 = vshrl.u32 %v8441, 16
        %v8444 = vand.u32 %v8440, 65535
        %v8445 = vshrl.u32 %v8440, 16
        %v8446 = vmul.u32 %v8442, %v8444
        %v8447 = vmul.u32 %v8442, %v8445
        %v8448 = vmul.u32 %v8443, %v8444
        %v8449 = vmul.u32 %v8443, %v8445
        %v8450 = vshll.u32 %v8447, 16
        %v8451 = vshrl.u32 %v8447, 16
        %v8452 = vshll.u32 %v8448, 16
        %v8453 = vshrl.u32 %v8448, 16
        %vm8454 = vc.u32 %v8446, %v8450
        %v8455 = vsel %vm8454, 1, 0
        %v8456 = vadd.s32 %v8446, %v8450
        %v8457 = vadd.s32 %v8449, %v8455
        %vm8458 = vc.u32 %v8456, %v8452
        %v8459 = vsel %vm8458, 1, 0
        %v8460 = vadd.s32 %v8456, %v8452
        %v8461 = vadd.s32 %v8457, %v8459
        %v8462 = vadd.s32 %v8461, %v8451
        %v8463 = vadd.s32 %v8462, %v8453
        %v8464 = vand.u32 %v8441, 65535
        %v8465 = vshrl.u32 %v8441, 16
        %v8466 = vand.u32 %v8436, 65535
        %v8467 = vshrl.u32 %v8436, 16
        %v8468 = vmul.u32 %v8464, %v8466
        %v8469 = vmul.u32 %v8464, %v8467
        %v8470 = vmul.u32 %v8465, %v8466
        %v8471 = vmul.u32 %v8465, %v8467
        %v8472 = vshll.u32 %v8469, 16
        %v8473 = vshrl.u32 %v8469, 16
        %v8474 = vshll.u32 %v8470, 16
        %v8475 = vshrl.u32 %v8470, 16
        %vm8476 = vc.u32 %v8468, %v8472
        %v8477 = vsel %vm8476, 1, 0
        %v8478 = vadd.s32 %v8468, %v8472
        %v8479 = vadd.s32 %v8471, %v8477
        %vm8480 = vc.u32 %v8478, %v8474
        %v8481 = vsel %vm8480, 1, 0
        %v8482 = vadd.s32 %v8478, %v8474
        %v8483 = vadd.s32 %v8479, %v8481
        %v8484 = vadd.s32 %v8483, %v8473
        %v8485 = vadd.s32 %v8484, %v8475
        %v8486 = vmul.u32 %v8441, %v8432
        %v8487 = vadd.s32 %v8463, %v8482
        %vm8488 = vc.u32 %v8463, %v8482
        %v8489 = vadd.s32 %v8485, 1
        %v8490 = vsel %vm8488, %v8489, %v8485
        %v8491 = vadd.s32 %v8486, %v8490
        %v8492 = vadd.s32 %v8491, 536870912
        %v8493 = vshrl.u32 %v8492, 30
        %v8494 = vshll.u32 %v8493, 30
        %v8495 = vsub.s32 %v8491, %v8494
        %vm8496 = vcmp.lt.s32.totalorder %v8495, 0
        %v8497 = vsub.s32 0, %v8495
        %v8498 = vsel %vm8496, %v8497, %v8495
        %v8499 = vclz %v8498
        %v8500 = vsub.s32 %v8499, 2
        %vm8501 = vcmp.gt.s32.totalorder 0, %v8500
        %v8502 = vsel %vm8501, 0, %v8500
        %v8503 = vsub.s32 32, %v8502
        %v8504 = vshll.u32 %v8495, %v8502
        %v8505 = vshrl.u32 %v8487, %v8503
        %v8506 = vor.u32 %v8504, %v8505
        %v8507 = vsub.s32 4294967266, %v8502
        %v8508 = vadd.s32 %v8507, 127
        %v8509 = vshll.u32 %v8508, 23
        %v8510 = vor.u32 4788187, %v8509
        %v8511 = vand.u32 2147483647, %v8510
        %v8513 = vcvt.s32.f32 %v8506
        %v8514 = vmul.f32 %v8513, %v8511
        %v8515 = vxor.u32 %v8514, 2147483648
        %v8516 = vsel %vm8395, %v8515, %v8514
        %v8517 = vsub.s32 4, %v8493
        %v8518 = vsel %vm8395, %v8517, %v8493
        %v8519 = vsel %vm8394, %v475, %v8516
        %v8520 = vsel %vm8394, 0, %v8518
        %v8521 = vmul.f32 %v8519, %v8519
        %v8522 = vmul.f32 %v8521, -0.001358992
        %v8523 = vadd.f32 %v8522, 0.041655596
        %v8524 = vmul.f32 %v8521, %v8523
        %v8525 = vadd.f32 %v8524, -0.4999988
        %v8526 = vmul.f32 %v8521, %v8525
        %v8527 = vadd.f32 1.0, %v8526
        %v8528 = vmul.f32 %v8519, %v8519
        %v8529 = vmul.f32 %v8528, -0.00019511016
        %v8530 = vadd.f32 %v8529, 0.008332121
        %v8531 = vmul.f32 %v8528, %v8530
        %v8532 = vadd.f32 %v8531, -0.16666654
        %v8533 = vmul.f32 %v8528, %v8532
        %v8534 = vadd.f32 %v8533, 1.0
        %v8535 = vmul.f32 %v8534, %v8519
        %vm8536 = vweird.f32 %v475
        %v8537 = vadd.s32 %v8520, 3
        %v8538 = vand.u32 %v8537, 3
        %vm8539 = vcmp.lt.s32.totalorder %v8538, 2
        %vm8540 = vcmp.eq.s32.totalorder %v8538, 0
        %v8541 = vxor.u32 %v8535, 2147483648
        %v8542 = vsel %vm8540, %v8527, %v8541
        %vm8543 = vcmp.eq.s32.totalorder %v8538, 2
        %v8544 = vxor.u32 %v8527, 2147483648
        %v8545 = vsel %vm8543, %v8544, %v8535
        %v8546 = vsel %vm8539, %v8542, %v8545
        %v8547 = vsel %vm8536, nan, %v8546
        %v8548 = vand.u32 2147483647, %v476
        %vm8549 = vcmp.le.f32.partialorder %v8548, 0.7853982
        %vm8550 = vcmp.lt.s32.totalorder %v476, 0
        %v8551 = vand.u32 %v476, 2139095040
        %v8552 = vshrl.u32 %v8551, 23
        %v8553 = vsub.s32 %v8552, 127
        %v8554 = vand.u32 2147483647, %v476
        %v8555 = vand.u32 %v8554, 8388607
        %v8556 = vor.u32 %v8555, 8388608
        %v8557 = vsub.s32 0, %v8556
        %v8558 = vadd.s32 %v8553, 1
        %vm8559 = vcmp.gt.s32.totalorder %v8558, 0
        %v8560 = vsel %vm8559, %v8558, 0
        %v8561 = vshrl.u32 %v8560, 5
        %v8562 = vand.u32 %v8560, 31
        %v8563 = vsub.s32 32, %v8562
        %v8564 = vshrl.u32 683565275, %v8563
        %v8565 = vshll.u32 683565275, %v8562
        %v8566 = vshrl.u32 2475754826, %v8563
        %v8567 = vor.u32 %v8565, %v8566
        %v8568 = vshll.u32 2475754826, %v8562
        %v8569 = vshrl.u32 2131351028, %v8563
        %v8570 = vor.u32 %v8568, %v8569
        %v8571 = vshll.u32 2131351028, %v8562
        %v8572 = vshrl.u32 2102212464, %v8563
        %v8573 = vor.u32 %v8571, %v8572
        %v8574 = vshll.u32 2102212464, %v8562
        %v8575 = vshrl.u32 920167782, %v8563
        %v8576 = vor.u32 %v8574, %v8575
        %v8577 = vshll.u32 920167782, %v8562
        %v8578 = vshrl.u32 1326507024, %v8563
        %v8579 = vor.u32 %v8577, %v8578
        %vm8580 = vcmp.lt.s32.totalorder %v8561, 1
        %vm8581 = vcmp.lt.s32.totalorder %v8561, 2
        %vm8582 = vcmp.lt.s32.totalorder %v8561, 3
        %vm8583 = vcmp.lt.s32.totalorder %v8561, 4
        %v8584 = vsel %vm8580, %v8564, %v8567
        %v8585 = vsel %vm8583, %v8573, 2102212464
        %v8586 = vsel %vm8582, %v8570, %v8585
        %v8587 = vsel %vm8581, %v8584, %v8586
        %v8588 = vsel %vm8580, %v8567, %v8570
        %v8589 = vsel %vm8583, %v8576, 920167782
        %v8590 = vsel %vm8582, %v8573, %v8589
        %v8591 = vsel %vm8581, %v8588, %v8590
        %v8592 = vsel %vm8580, %v8570, %v8573
        %v8593 = vsel %vm8583, %v8579, 1326507024
        %v8594 = vsel %vm8582, %v8576, %v8593
        %v8595 = vsel %vm8581, %v8592, %v8594
        %v8596 = vshll.u32 %v8556, 8
        %v8597 = vand.u32 %v8596, 65535
        %v8598 = vshrl.u32 %v8596, 16
        %v8599 = vand.u32 %v8595, 65535
        %v8600 = vshrl.u32 %v8595, 16
        %v8601 = vmul.u32 %v8597, %v8599
        %v8602 = vmul.u32 %v8597, %v8600
        %v8603 = vmul.u32 %v8598, %v8599
        %v8604 = vmul.u32 %v8598, %v8600
        %v8605 = vshll.u32 %v8602, 16
        %v8606 = vshrl.u32 %v8602, 16
        %v8607 = vshll.u32 %v8603, 16
        %v8608 = vshrl.u32 %v8603, 16
        %vm8609 = vc.u32 %v8601, %v8605
        %v8610 = vsel %vm8609, 1, 0
        %v8611 = vadd.s32 %v8601, %v8605
        %v8612 = vadd.s32 %v8604, %v8610
        %vm8613 = vc.u32 %v8611, %v8607
        %v8614 = vsel %vm8613, 1, 0
        %v8615 = vadd.s32 %v8611, %v8607
        %v8616 = vadd.s32 %v8612, %v8614
        %v8617 = vadd.s32 %v8616, %v8606
        %v8618 = vadd.s32 %v8617, %v8608
        %v8619 = vand.u32 %v8596, 65535
        %v8620 = vshrl.u32 %v8596, 16
        %v8621 = vand.u32 %v8591, 65535
        %v8622 = vshrl.u32 %v8591, 16
        %v8623 = vmul.u32 %v8619, %v8621
        %v8624 = vmul.u32 %v8619, %v8622
        %v8625 = vmul.u32 %v8620, %v8621
        %v8626 = vmul.u32 %v8620, %v8622
        %v8627 = vshll.u32 %v8624, 16
        %v8628 = vshrl.u32 %v8624, 16
        %v8629 = vshll.u32 %v8625, 16
        %v8630 = vshrl.u32 %v8625, 16
        %vm8631 = vc.u32 %v8623, %v8627
        %v8632 = vsel %vm8631, 1, 0
        %v8633 = vadd.s32 %v8623, %v8627
        %v8634 = vadd.s32 %v8626, %v8632
        %vm8635 = vc.u32 %v8633, %v8629
        %v8636 = vsel %vm8635, 1, 0
        %v8637 = vadd.s32 %v8633, %v8629
        %v8638 = vadd.s32 %v8634, %v8636
        %v8639 = vadd.s32 %v8638, %v8628
        %v8640 = vadd.s32 %v8639, %v8630
        %v8641 = vmul.u32 %v8596, %v8587
        %v8642 = vadd.s32 %v8618, %v8637
        %vm8643 = vc.u32 %v8618, %v8637
        %v8644 = vadd.s32 %v8640, 1
        %v8645 = vsel %vm8643, %v8644, %v8640
        %v8646 = vadd.s32 %v8641, %v8645
        %v8647 = vadd.s32 %v8646, 536870912
        %v8648 = vshrl.u32 %v8647, 30
        %v8649 = vshll.u32 %v8648, 30
        %v8650 = vsub.s32 %v8646, %v8649
        %vm8651 = vcmp.lt.s32.totalorder %v8650, 0
        %v8652 = vsub.s32 0, %v8650
        %v8653 = vsel %vm8651, %v8652, %v8650
        %v8654 = vclz %v8653
        %v8655 = vsub.s32 %v8654, 2
        %vm8656 = vcmp.gt.s32.totalorder 0, %v8655
        %v8657 = vsel %vm8656, 0, %v8655
        %v8658 = vsub.s32 32, %v8657
        %v8659 = vshll.u32 %v8650, %v8657
        %v8660 = vshrl.u32 %v8642, %v8658
        %v8661 = vor.u32 %v8659, %v8660
        %v8662 = vsub.s32 4294967266, %v8657
        %v8663 = vadd.s32 %v8662, 127
        %v8664 = vshll.u32 %v8663, 23
        %v8665 = vor.u32 4788187, %v8664
        %v8666 = vand.u32 2147483647, %v8665
        %v8668 = vcvt.s32.f32 %v8661
        %v8669 = vmul.f32 %v8668, %v8666
        %v8670 = vxor.u32 %v8669, 2147483648
        %v8671 = vsel %vm8550, %v8670, %v8669
        %v8672 = vsub.s32 4, %v8648
        %v8673 = vsel %vm8550, %v8672, %v8648
        %v8674 = vsel %vm8549, %v476, %v8671
        %v8675 = vsel %vm8549, 0, %v8673
        %v8676 = vmul.f32 %v8674, %v8674
        %v8677 = vmul.f32 %v8676, -0.001358992
        %v8678 = vadd.f32 %v8677, 0.041655596
        %v8679 = vmul.f32 %v8676, %v8678
        %v8680 = vadd.f32 %v8679, -0.4999988
        %v8681 = vmul.f32 %v8676, %v8680
        %v8682 = vadd.f32 1.0, %v8681
        %v8683 = vmul.f32 %v8674, %v8674
        %v8684 = vmul.f32 %v8683, -0.00019511016
        %v8685 = vadd.f32 %v8684, 0.008332121
        %v8686 = vmul.f32 %v8683, %v8685
        %v8687 = vadd.f32 %v8686, -0.16666654
        %v8688 = vmul.f32 %v8683, %v8687
        %v8689 = vadd.f32 %v8688, 1.0
        %v8690 = vmul.f32 %v8689, %v8674
        %vm8691 = vweird.f32 %v476
        %v8692 = vadd.s32 %v8675, 3
        %v8693 = vand.u32 %v8692, 3
        %vm8694 = vcmp.lt.s32.totalorder %v8693, 2
        %vm8695 = vcmp.eq.s32.totalorder %v8693, 0
        %v8696 = vxor.u32 %v8690, 2147483648
        %v8697 = vsel %vm8695, %v8682, %v8696
        %vm8698 = vcmp.eq.s32.totalorder %v8693, 2
        %v8699 = vxor.u32 %v8682, 2147483648
        %v8700 = vsel %vm8698, %v8699, %v8690
        %v8701 = vsel %vm8694, %v8697, %v8700
        %v8702 = vsel %vm8691, nan, %v8701
        %v8703 = vand.u32 2147483647, %v477
        %vm8704 = vcmp.le.f32.partialorder %v8703, 0.7853982
        %vm8705 = vcmp.lt.s32.totalorder %v477, 0
        %v8706 = vand.u32 %v477, 2139095040
        %v8707 = vshrl.u32 %v8706, 23
        %v8708 = vsub.s32 %v8707, 127
        %v8709 = vand.u32 2147483647, %v477
        %v8710 = vand.u32 %v8709, 8388607
        %v8711 = vor.u32 %v8710, 8388608
        %v8712 = vsub.s32 0, %v8711
        %v8713 = vadd.s32 %v8708, 1
        %vm8714 = vcmp.gt.s32.totalorder %v8713, 0
        %v8715 = vsel %vm8714, %v8713, 0
        %v8716 = vshrl.u32 %v8715, 5
        %v8717 = vand.u32 %v8715, 31
        %v8718 = vsub.s32 32, %v8717
        %v8719 = vshrl.u32 683565275, %v8718
        %v8720 = vshll.u32 683565275, %v8717
        %v8721 = vshrl.u32 2475754826, %v8718
        %v8722 = vor.u32 %v8720, %v8721
        %v8723 = vshll.u32 2475754826, %v8717
        %v8724 = vshrl.u32 2131351028, %v8718
        %v8725 = vor.u32 %v8723, %v8724
        %v8726 = vshll.u32 2131351028, %v8717
        %v8727 = vshrl.u32 2102212464, %v8718
        %v8728 = vor.u32 %v8726, %v8727
        %v8729 = vshll.u32 2102212464, %v8717
        %v8730 = vshrl.u32 920167782, %v8718
        %v8731 = vor.u32 %v8729, %v8730
        %v8732 = vshll.u32 920167782, %v8717
        %v8733 = vshrl.u32 1326507024, %v8718
        %v8734 = vor.u32 %v8732, %v8733
        %vm8735 = vcmp.lt.s32.totalorder %v8716, 1
        %vm8736 = vcmp.lt.s32.totalorder %v8716, 2
        %vm8737 = vcmp.lt.s32.totalorder %v8716, 3
        %vm8738 = vcmp.lt.s32.totalorder %v8716, 4
        %v8739 = vsel %vm8735, %v8719, %v8722
        %v8740 = vsel %vm8738, %v8728, 2102212464
        %v8741 = vsel %vm8737, %v8725, %v8740
        %v8742 = vsel %vm8736, %v8739, %v8741
        %v8743 = vsel %vm8735, %v8722, %v8725
        %v8744 = vsel %vm8738, %v8731, 920167782
        %v8745 = vsel %vm8737, %v8728, %v8744
        %v8746 = vsel %vm8736, %v8743, %v8745
        %v8747 = vsel %vm8735, %v8725, %v8728
        %v8748 = vsel %vm8738, %v8734, 1326507024
        %v8749 = vsel %vm8737, %v8731, %v8748
        %v8750 = vsel %vm8736, %v8747, %v8749
        %v8751 = vshll.u32 %v8711, 8
        %v8752 = vand.u32 %v8751, 65535
        %v8753 = vshrl.u32 %v8751, 16
        %v8754 = vand.u32 %v8750, 65535
        %v8755 = vshrl.u32 %v8750, 16
        %v8756 = vmul.u32 %v8752, %v8754
        %v8757 = vmul.u32 %v8752, %v8755
        %v8758 = vmul.u32 %v8753, %v8754
        %v8759 = vmul.u32 %v8753, %v8755
        %v8760 = vshll.u32 %v8757, 16
        %v8761 = vshrl.u32 %v8757, 16
        %v8762 = vshll.u32 %v8758, 16
        %v8763 = vshrl.u32 %v8758, 16
        %vm8764 = vc.u32 %v8756, %v8760
        %v8765 = vsel %vm8764, 1, 0
        %v8766 = vadd.s32 %v8756, %v8760
        %v8767 = vadd.s32 %v8759, %v8765
        %vm8768 = vc.u32 %v8766, %v8762
        %v8769 = vsel %vm8768, 1, 0
        %v8770 = vadd.s32 %v8766, %v8762
        %v8771 = vadd.s32 %v8767, %v8769
        %v8772 = vadd.s32 %v8771, %v8761
        %v8773 = vadd.s32 %v8772, %v8763
        %v8774 = vand.u32 %v8751, 65535
        %v8775 = vshrl.u32 %v8751, 16
        %v8776 = vand.u32 %v8746, 65535
        %v8777 = vshrl.u32 %v8746, 16
        %v8778 = vmul.u32 %v8774, %v8776
        %v8779 = vmul.u32 %v8774, %v8777
        %v8780 = vmul.u32 %v8775, %v8776
        %v8781 = vmul.u32 %v8775, %v8777
        %v8782 = vshll.u32 %v8779, 16
        %v8783 = vshrl.u32 %v8779, 16
        %v8784 = vshll.u32 %v8780, 16
        %v8785 = vshrl.u32 %v8780, 16
        %vm8786 = vc.u32 %v8778, %v8782
        %v8787 = vsel %vm8786, 1, 0
        %v8788 = vadd.s32 %v8778, %v8782
        %v8789 = vadd.s32 %v8781, %v8787
        %vm8790 = vc.u32 %v8788, %v8784
        %v8791 = vsel %vm8790, 1, 0
        %v8792 = vadd.s32 %v8788, %v8784
        %v8793 = vadd.s32 %v8789, %v8791
        %v8794 = vadd.s32 %v8793, %v8783
        %v8795 = vadd.s32 %v8794, %v8785
        %v8796 = vmul.u32 %v8751, %v8742
        %v8797 = vadd.s32 %v8773, %v8792
        %vm8798 = vc.u32 %v8773, %v8792
        %v8799 = vadd.s32 %v8795, 1
        %v8800 = vsel %vm8798, %v8799, %v8795
        %v8801 = vadd.s32 %v8796, %v8800
        %v8802 = vadd.s32 %v8801, 536870912
        %v8803 = vshrl.u32 %v8802, 30
        %v8804 = vshll.u32 %v8803, 30
        %v8805 = vsub.s32 %v8801, %v8804
        %vm8806 = vcmp.lt.s32.totalorder %v8805, 0
        %v8807 = vsub.s32 0, %v8805
        %v8808 = vsel %vm8806, %v8807, %v8805
        %v8809 = vclz %v8808
        %v8810 = vsub.s32 %v8809, 2
        %vm8811 = vcmp.gt.s32.totalorder 0, %v8810
        %v8812 = vsel %vm8811, 0, %v8810
        %v8813 = vsub.s32 32, %v8812
        %v8814 = vshll.u32 %v8805, %v8812
        %v8815 = vshrl.u32 %v8797, %v8813
        %v8816 = vor.u32 %v8814, %v8815
        %v8817 = vsub.s32 4294967266, %v8812
        %v8818 = vadd.s32 %v8817, 127
        %v8819 = vshll.u32 %v8818, 23
        %v8820 = vor.u32 4788187, %v8819
        %v8821 = vand.u32 2147483647, %v8820
        %v8823 = vcvt.s32.f32 %v8816
        %v8824 = vmul.f32 %v8823, %v8821
        %v8825 = vxor.u32 %v8824, 2147483648
        %v8826 = vsel %vm8705, %v8825, %v8824
        %v8827 = vsub.s32 4, %v8803
        %v8828 = vsel %vm8705, %v8827, %v8803
        %v8829 = vsel %vm8704, %v477, %v8826
        %v8830 = vsel %vm8704, 0, %v8828
        %v8831 = vmul.f32 %v8829, %v8829
        %v8832 = vmul.f32 %v8831, -0.001358992
        %v8833 = vadd.f32 %v8832, 0.041655596
        %v8834 = vmul.f32 %v8831, %v8833
        %v8835 = vadd.f32 %v8834, -0.4999988
        %v8836 = vmul.f32 %v8831, %v8835
        %v8837 = vadd.f32 1.0, %v8836
        %v8838 = vmul.f32 %v8829, %v8829
        %v8839 = vmul.f32 %v8838, -0.00019511016
        %v8840 = vadd.f32 %v8839, 0.008332121
        %v8841 = vmul.f32 %v8838, %v8840
        %v8842 = vadd.f32 %v8841, -0.16666654
        %v8843 = vmul.f32 %v8838, %v8842
        %v8844 = vadd.f32 %v8843, 1.0
        %v8845 = vmul.f32 %v8844, %v8829
        %vm8846 = vweird.f32 %v477
        %v8847 = vadd.s32 %v8830, 3
        %v8848 = vand.u32 %v8847, 3
        %vm8849 = vcmp.lt.s32.totalorder %v8848, 2
        %vm8850 = vcmp.eq.s32.totalorder %v8848, 0
        %v8851 = vxor.u32 %v8845, 2147483648
        %v8852 = vsel %vm8850, %v8837, %v8851
        %vm8853 = vcmp.eq.s32.totalorder %v8848, 2
        %v8854 = vxor.u32 %v8837, 2147483648
        %v8855 = vsel %vm8853, %v8854, %v8845
        %v8856 = vsel %vm8849, %v8852, %v8855
        %v8857 = vsel %vm8846, nan, %v8856
        %v8858 = vand.u32 2147483647, %v478
        %vm8859 = vcmp.le.f32.partialorder %v8858, 0.7853982
        %vm8860 = vcmp.lt.s32.totalorder %v478, 0
        %v8861 = vand.u32 %v478, 2139095040
        %v8862 = vshrl.u32 %v8861, 23
        %v8863 = vsub.s32 %v8862, 127
        %v8864 = vand.u32 2147483647, %v478
        %v8865 = vand.u32 %v8864, 8388607
        %v8866 = vor.u32 %v8865, 8388608
        %v8867 = vsub.s32 0, %v8866
        %v8868 = vadd.s32 %v8863, 1
        %vm8869 = vcmp.gt.s32.totalorder %v8868, 0
        %v8870 = vsel %vm8869, %v8868, 0
        %v8871 = vshrl.u32 %v8870, 5
        %v8872 = vand.u32 %v8870, 31
        %v8873 = vsub.s32 32, %v8872
        %v8874 = vshrl.u32 683565275, %v8873
        %v8875 = vshll.u32 683565275, %v8872
        %v8876 = vshrl.u32 2475754826, %v8873
        %v8877 = vor.u32 %v8875, %v8876
        %v8878 = vshll.u32 2475754826, %v8872
        %v8879 = vshrl.u32 2131351028, %v8873
        %v8880 = vor.u32 %v8878, %v8879
        %v8881 = vshll.u32 2131351028, %v8872
        %v8882 = vshrl.u32 2102212464, %v8873
        %v8883 = vor.u32 %v8881, %v8882
        %v8884 = vshll.u32 2102212464, %v8872
        %v8885 = vshrl.u32 920167782, %v8873
        %v8886 = vor.u32 %v8884, %v8885
        %v8887 = vshll.u32 920167782, %v8872
        %v8888 = vshrl.u32 1326507024, %v8873
        %v8889 = vor.u32 %v8887, %v8888
        %vm8890 = vcmp.lt.s32.totalorder %v8871, 1
        %vm8891 = vcmp.lt.s32.totalorder %v8871, 2
        %vm8892 = vcmp.lt.s32.totalorder %v8871, 3
        %vm8893 = vcmp.lt.s32.totalorder %v8871, 4
        %v8894 = vsel %vm8890, %v8874, %v8877
        %v8895 = vsel %vm8893, %v8883, 2102212464
        %v8896 = vsel %vm8892, %v8880, %v8895
        %v8897 = vsel %vm8891, %v8894, %v8896
        %v8898 = vsel %vm8890, %v8877, %v8880
        %v8899 = vsel %vm8893, %v8886, 920167782
        %v8900 = vsel %vm8892, %v8883, %v8899
        %v8901 = vsel %vm8891, %v8898, %v8900
        %v8902 = vsel %vm8890, %v8880, %v8883
        %v8903 = vsel %vm8893, %v8889, 1326507024
        %v8904 = vsel %vm8892, %v8886, %v8903
        %v8905 = vsel %vm8891, %v8902, %v8904
        %v8906 = vshll.u32 %v8866, 8
        %v8907 = vand.u32 %v8906, 65535
        %v8908 = vshrl.u32 %v8906, 16
        %v8909 = vand.u32 %v8905, 65535
        %v8910 = vshrl.u32 %v8905, 16
        %v8911 = vmul.u32 %v8907, %v8909
        %v8912 = vmul.u32 %v8907, %v8910
        %v8913 = vmul.u32 %v8908, %v8909
        %v8914 = vmul.u32 %v8908, %v8910
        %v8915 = vshll.u32 %v8912, 16
        %v8916 = vshrl.u32 %v8912, 16
        %v8917 = vshll.u32 %v8913, 16
        %v8918 = vshrl.u32 %v8913, 16
        %vm8919 = vc.u32 %v8911, %v8915
        %v8920 = vsel %vm8919, 1, 0
        %v8921 = vadd.s32 %v8911, %v8915
        %v8922 = vadd.s32 %v8914, %v8920
        %vm8923 = vc.u32 %v8921, %v8917
        %v8924 = vsel %vm8923, 1, 0
        %v8925 = vadd.s32 %v8921, %v8917
        %v8926 = vadd.s32 %v8922, %v8924
        %v8927 = vadd.s32 %v8926, %v8916
        %v8928 = vadd.s32 %v8927, %v8918
        %v8929 = vand.u32 %v8906, 65535
        %v8930 = vshrl.u32 %v8906, 16
        %v8931 = vand.u32 %v8901, 65535
        %v8932 = vshrl.u32 %v8901, 16
        %v8933 = vmul.u32 %v8929, %v8931
        %v8934 = vmul.u32 %v8929, %v8932
        %v8935 = vmul.u32 %v8930, %v8931
        %v8936 = vmul.u32 %v8930, %v8932
        %v8937 = vshll.u32 %v8934, 16
        %v8938 = vshrl.u32 %v8934, 16
        %v8939 = vshll.u32 %v8935, 16
        %v8940 = vshrl.u32 %v8935, 16
        %vm8941 = vc.u32 %v8933, %v8937
        %v8942 = vsel %vm8941, 1, 0
        %v8943 = vadd.s32 %v8933, %v8937
        %v8944 = vadd.s32 %v8936, %v8942
        %vm8945 = vc.u32 %v8943, %v8939
        %v8946 = vsel %vm8945, 1, 0
        %v8947 = vadd.s32 %v8943, %v8939
        %v8948 = vadd.s32 %v8944, %v8946
        %v8949 = vadd.s32 %v8948, %v8938
        %v8950 = vadd.s32 %v8949, %v8940
        %v8951 = vmul.u32 %v8906, %v8897
        %v8952 = vadd.s32 %v8928, %v8947
        %vm8953 = vc.u32 %v8928, %v8947
        %v8954 = vadd.s32 %v8950, 1
        %v8955 = vsel %vm8953, %v8954, %v8950
        %v8956 = vadd.s32 %v8951, %v8955
        %v8957 = vadd.s32 %v8956, 536870912
        %v8958 = vshrl.u32 %v8957, 30
        %v8959 = vshll.u32 %v8958, 30
        %v8960 = vsub.s32 %v8956, %v8959
        %vm8961 = vcmp.lt.s32.totalorder %v8960, 0
        %v8962 = vsub.s32 0, %v8960
        %v8963 = vsel %vm8961, %v8962, %v8960
        %v8964 = vclz %v8963
        %v8965 = vsub.s32 %v8964, 2
        %vm8966 = vcmp.gt.s32.totalorder 0, %v8965
        %v8967 = vsel %vm8966, 0, %v8965
        %v8968 = vsub.s32 32, %v8967
        %v8969 = vshll.u32 %v8960, %v8967
        %v8970 = vshrl.u32 %v8952, %v8968
        %v8971 = vor.u32 %v8969, %v8970
        %v8972 = vsub.s32 4294967266, %v8967
        %v8973 = vadd.s32 %v8972, 127
        %v8974 = vshll.u32 %v8973, 23
        %v8975 = vor.u32 4788187, %v8974
        %v8976 = vand.u32 2147483647, %v8975
        %v8978 = vcvt.s32.f32 %v8971
        %v8979 = vmul.f32 %v8978, %v8976
        %v8980 = vxor.u32 %v8979, 2147483648
        %v8981 = vsel %vm8860, %v8980, %v8979
        %v8982 = vsub.s32 4, %v8958
        %v8983 = vsel %vm8860, %v8982, %v8958
        %v8984 = vsel %vm8859, %v478, %v8981
        %v8985 = vsel %vm8859, 0, %v8983
        %v8986 = vmul.f32 %v8984, %v8984
        %v8987 = vmul.f32 %v8986, -0.001358992
        %v8988 = vadd.f32 %v8987, 0.041655596
        %v8989 = vmul.f32 %v8986, %v8988
        %v8990 = vadd.f32 %v8989, -0.4999988
        %v8991 = vmul.f32 %v8986, %v8990
        %v8992 = vadd.f32 1.0, %v8991
        %v8993 = vmul.f32 %v8984, %v8984
        %v8994 = vmul.f32 %v8993, -0.00019511016
        %v8995 = vadd.f32 %v8994, 0.008332121
        %v8996 = vmul.f32 %v8993, %v8995
        %v8997 = vadd.f32 %v8996, -0.16666654
        %v8998 = vmul.f32 %v8993, %v8997
        %v8999 = vadd.f32 %v8998, 1.0
        %v9000 = vmul.f32 %v8999, %v8984
        %vm9001 = vweird.f32 %v478
        %v9002 = vadd.s32 %v8985, 3
        %v9003 = vand.u32 %v9002, 3
        %vm9004 = vcmp.lt.s32.totalorder %v9003, 2
        %vm9005 = vcmp.eq.s32.totalorder %v9003, 0
        %v9006 = vxor.u32 %v9000, 2147483648
        %v9007 = vsel %vm9005, %v8992, %v9006
        %vm9008 = vcmp.eq.s32.totalorder %v9003, 2
        %v9009 = vxor.u32 %v8992, 2147483648
        %v9010 = vsel %vm9008, %v9009, %v9000
        %v9011 = vsel %vm9004, %v9007, %v9010
        %v9012 = vsel %vm9001, nan, %v9011
        %v9013 = vand.u32 2147483647, %v479
        %vm9014 = vcmp.le.f32.partialorder %v9013, 0.7853982
        %vm9015 = vcmp.lt.s32.totalorder %v479, 0
        %v9016 = vand.u32 %v479, 2139095040
        %v9017 = vshrl.u32 %v9016, 23
        %v9018 = vsub.s32 %v9017, 127
        %v9019 = vand.u32 2147483647, %v479
        %v9020 = vand.u32 %v9019, 8388607
        %v9021 = vor.u32 %v9020, 8388608
        %v9022 = vsub.s32 0, %v9021
        %v9023 = vadd.s32 %v9018, 1
        %vm9024 = vcmp.gt.s32.totalorder %v9023, 0
        %v9025 = vsel %vm9024, %v9023, 0
        %v9026 = vshrl.u32 %v9025, 5
        %v9027 = vand.u32 %v9025, 31
        %v9028 = vsub.s32 32, %v9027
        %v9029 = vshrl.u32 683565275, %v9028
        %v9030 = vshll.u32 683565275, %v9027
        %v9031 = vshrl.u32 2475754826, %v9028
        %v9032 = vor.u32 %v9030, %v9031
        %v9033 = vshll.u32 2475754826, %v9027
        %v9034 = vshrl.u32 2131351028, %v9028
        %v9035 = vor.u32 %v9033, %v9034
        %v9036 = vshll.u32 2131351028, %v9027
        %v9037 = vshrl.u32 2102212464, %v9028
        %v9038 = vor.u32 %v9036, %v9037
        %v9039 = vshll.u32 2102212464, %v9027
        %v9040 = vshrl.u32 920167782, %v9028
        %v9041 = vor.u32 %v9039, %v9040
        %v9042 = vshll.u32 920167782, %v9027
        %v9043 = vshrl.u32 1326507024, %v9028
        %v9044 = vor.u32 %v9042, %v9043
        %vm9045 = vcmp.lt.s32.totalorder %v9026, 1
        %vm9046 = vcmp.lt.s32.totalorder %v9026, 2
        %vm9047 = vcmp.lt.s32.totalorder %v9026, 3
        %vm9048 = vcmp.lt.s32.totalorder %v9026, 4
        %v9049 = vsel %vm9045, %v9029, %v9032
        %v9050 = vsel %vm9048, %v9038, 2102212464
        %v9051 = vsel %vm9047, %v9035, %v9050
        %v9052 = vsel %vm9046, %v9049, %v9051
        %v9053 = vsel %vm9045, %v9032, %v9035
        %v9054 = vsel %vm9048, %v9041, 920167782
        %v9055 = vsel %vm9047, %v9038, %v9054
        %v9056 = vsel %vm9046, %v9053, %v9055
        %v9057 = vsel %vm9045, %v9035, %v9038
        %v9058 = vsel %vm9048, %v9044, 1326507024
        %v9059 = vsel %vm9047, %v9041, %v9058
        %v9060 = vsel %vm9046, %v9057, %v9059
        %v9061 = vshll.u32 %v9021, 8
        %v9062 = vand.u32 %v9061, 65535
        %v9063 = vshrl.u32 %v9061, 16
        %v9064 = vand.u32 %v9060, 65535
        %v9065 = vshrl.u32 %v9060, 16
        %v9066 = vmul.u32 %v9062, %v9064
        %v9067 = vmul.u32 %v9062, %v9065
        %v9068 = vmul.u32 %v9063, %v9064
        %v9069 = vmul.u32 %v9063, %v9065
        %v9070 = vshll.u32 %v9067, 16
        %v9071 = vshrl.u32 %v9067, 16
        %v9072 = vshll.u32 %v9068, 16
        %v9073 = vshrl.u32 %v9068, 16
        %vm9074 = vc.u32 %v9066, %v9070
        %v9075 = vsel %vm9074, 1, 0
        %v9076 = vadd.s32 %v9066, %v9070
        %v9077 = vadd.s32 %v9069, %v9075
        %vm9078 = vc.u32 %v9076, %v9072
        %v9079 = vsel %vm9078, 1, 0
        %v9080 = vadd.s32 %v9076, %v9072
        %v9081 = vadd.s32 %v9077, %v9079
        %v9082 = vadd.s32 %v9081, %v9071
        %v9083 = vadd.s32 %v9082, %v9073
        %v9084 = vand.u32 %v9061, 65535
        %v9085 = vshrl.u32 %v9061, 16
        %v9086 = vand.u32 %v9056, 65535
        %v9087 = vshrl.u32 %v9056, 16
        %v9088 = vmul.u32 %v9084, %v9086
        %v9089 = vmul.u32 %v9084, %v9087
        %v9090 = vmul.u32 %v9085, %v9086
        %v9091 = vmul.u32 %v9085, %v9087
        %v9092 = vshll.u32 %v9089, 16
        %v9093 = vshrl.u32 %v9089, 16
        %v9094 = vshll.u32 %v9090, 16
        %v9095 = vshrl.u32 %v9090, 16
        %vm9096 = vc.u32 %v9088, %v9092
        %v9097 = vsel %vm9096, 1, 0
        %v9098 = vadd.s32 %v9088, %v9092
        %v9099 = vadd.s32 %v9091, %v9097
        %vm9100 = vc.u32 %v9098, %v9094
        %v9101 = vsel %vm9100, 1, 0
        %v9102 = vadd.s32 %v9098, %v9094
        %v9103 = vadd.s32 %v9099, %v9101
        %v9104 = vadd.s32 %v9103, %v9093
        %v9105 = vadd.s32 %v9104, %v9095
        %v9106 = vmul.u32 %v9061, %v9052
        %v9107 = vadd.s32 %v9083, %v9102
        %vm9108 = vc.u32 %v9083, %v9102
        %v9109 = vadd.s32 %v9105, 1
        %v9110 = vsel %vm9108, %v9109, %v9105
        %v9111 = vadd.s32 %v9106, %v9110
        %v9112 = vadd.s32 %v9111, 536870912
        %v9113 = vshrl.u32 %v9112, 30
        %v9114 = vshll.u32 %v9113, 30
        %v9115 = vsub.s32 %v9111, %v9114
        %vm9116 = vcmp.lt.s32.totalorder %v9115, 0
        %v9117 = vsub.s32 0, %v9115
        %v9118 = vsel %vm9116, %v9117, %v9115
        %v9119 = vclz %v9118
        %v9120 = vsub.s32 %v9119, 2
        %vm9121 = vcmp.gt.s32.totalorder 0, %v9120
        %v9122 = vsel %vm9121, 0, %v9120
        %v9123 = vsub.s32 32, %v9122
        %v9124 = vshll.u32 %v9115, %v9122
        %v9125 = vshrl.u32 %v9107, %v9123
        %v9126 = vor.u32 %v9124, %v9125
        %v9127 = vsub.s32 4294967266, %v9122
        %v9128 = vadd.s32 %v9127, 127
        %v9129 = vshll.u32 %v9128, 23
        %v9130 = vor.u32 4788187, %v9129
        %v9131 = vand.u32 2147483647, %v9130
        %v9133 = vcvt.s32.f32 %v9126
        %v9134 = vmul.f32 %v9133, %v9131
        %v9135 = vxor.u32 %v9134, 2147483648
        %v9136 = vsel %vm9015, %v9135, %v9134
        %v9137 = vsub.s32 4, %v9113
        %v9138 = vsel %vm9015, %v9137, %v9113
        %v9139 = vsel %vm9014, %v479, %v9136
        %v9140 = vsel %vm9014, 0, %v9138
        %v9141 = vmul.f32 %v9139, %v9139
        %v9142 = vmul.f32 %v9141, -0.001358992
        %v9143 = vadd.f32 %v9142, 0.041655596
        %v9144 = vmul.f32 %v9141, %v9143
        %v9145 = vadd.f32 %v9144, -0.4999988
        %v9146 = vmul.f32 %v9141, %v9145
        %v9147 = vadd.f32 1.0, %v9146
        %v9148 = vmul.f32 %v9139, %v9139
        %v9149 = vmul.f32 %v9148, -0.00019511016
        %v9150 = vadd.f32 %v9149, 0.008332121
        %v9151 = vmul.f32 %v9148, %v9150
        %v9152 = vadd.f32 %v9151, -0.16666654
        %v9153 = vmul.f32 %v9148, %v9152
        %v9154 = vadd.f32 %v9153, 1.0
        %v9155 = vmul.f32 %v9154, %v9139
        %vm9156 = vweird.f32 %v479
        %v9157 = vadd.s32 %v9140, 3
        %v9158 = vand.u32 %v9157, 3
        %vm9159 = vcmp.lt.s32.totalorder %v9158, 2
        %vm9160 = vcmp.eq.s32.totalorder %v9158, 0
        %v9161 = vxor.u32 %v9155, 2147483648
        %v9162 = vsel %vm9160, %v9147, %v9161
        %vm9163 = vcmp.eq.s32.totalorder %v9158, 2
        %v9164 = vxor.u32 %v9147, 2147483648
        %v9165 = vsel %vm9163, %v9164, %v9155
        %v9166 = vsel %vm9159, %v9162, %v9165
        %v9167 = vsel %vm9156, nan, %v9166
        %v9168 = vand.u32 2147483647, %v480
        %vm9169 = vcmp.le.f32.partialorder %v9168, 0.7853982
        %vm9170 = vcmp.lt.s32.totalorder %v480, 0
        %v9171 = vand.u32 %v480, 2139095040
        %v9172 = vshrl.u32 %v9171, 23
        %v9173 = vsub.s32 %v9172, 127
        %v9174 = vand.u32 2147483647, %v480
        %v9175 = vand.u32 %v9174, 8388607
        %v9176 = vor.u32 %v9175, 8388608
        %v9177 = vsub.s32 0, %v9176
        %v9178 = vadd.s32 %v9173, 1
        %vm9179 = vcmp.gt.s32.totalorder %v9178, 0
        %v9180 = vsel %vm9179, %v9178, 0
        %v9181 = vshrl.u32 %v9180, 5
        %v9182 = vand.u32 %v9180, 31
        %v9183 = vsub.s32 32, %v9182
        %v9184 = vshrl.u32 683565275, %v9183
        %v9185 = vshll.u32 683565275, %v9182
        %v9186 = vshrl.u32 2475754826, %v9183
        %v9187 = vor.u32 %v9185, %v9186
        %v9188 = vshll.u32 2475754826, %v9182
        %v9189 = vshrl.u32 2131351028, %v9183
        %v9190 = vor.u32 %v9188, %v9189
        %v9191 = vshll.u32 2131351028, %v9182
        %v9192 = vshrl.u32 2102212464, %v9183
        %v9193 = vor.u32 %v9191, %v9192
        %v9194 = vshll.u32 2102212464, %v9182
        %v9195 = vshrl.u32 920167782, %v9183
        %v9196 = vor.u32 %v9194, %v9195
        %v9197 = vshll.u32 920167782, %v9182
        %v9198 = vshrl.u32 1326507024, %v9183
        %v9199 = vor.u32 %v9197, %v9198
        %vm9200 = vcmp.lt.s32.totalorder %v9181, 1
        %vm9201 = vcmp.lt.s32.totalorder %v9181, 2
        %vm9202 = vcmp.lt.s32.totalorder %v9181, 3
        %vm9203 = vcmp.lt.s32.totalorder %v9181, 4
        %v9204 = vsel %vm9200, %v9184, %v9187
        %v9205 = vsel %vm9203, %v9193, 2102212464
        %v9206 = vsel %vm9202, %v9190, %v9205
        %v9207 = vsel %vm9201, %v9204, %v9206
        %v9208 = vsel %vm9200, %v9187, %v9190
        %v9209 = vsel %vm9203, %v9196, 920167782
        %v9210 = vsel %vm9202, %v9193, %v9209
        %v9211 = vsel %vm9201, %v9208, %v9210
        %v9212 = vsel %vm9200, %v9190, %v9193
        %v9213 = vsel %vm9203, %v9199, 1326507024
        %v9214 = vsel %vm9202, %v9196, %v9213
        %v9215 = vsel %vm9201, %v9212, %v9214
        %v9216 = vshll.u32 %v9176, 8
        %v9217 = vand.u32 %v9216, 65535
        %v9218 = vshrl.u32 %v9216, 16
        %v9219 = vand.u32 %v9215, 65535
        %v9220 = vshrl.u32 %v9215, 16
        %v9221 = vmul.u32 %v9217, %v9219
        %v9222 = vmul.u32 %v9217, %v9220
        %v9223 = vmul.u32 %v9218, %v9219
        %v9224 = vmul.u32 %v9218, %v9220
        %v9225 = vshll.u32 %v9222, 16
        %v9226 = vshrl.u32 %v9222, 16
        %v9227 = vshll.u32 %v9223, 16
        %v9228 = vshrl.u32 %v9223, 16
        %vm9229 = vc.u32 %v9221, %v9225
        %v9230 = vsel %vm9229, 1, 0
        %v9231 = vadd.s32 %v9221, %v9225
        %v9232 = vadd.s32 %v9224, %v9230
        %vm9233 = vc.u32 %v9231, %v9227
        %v9234 = vsel %vm9233, 1, 0
        %v9235 = vadd.s32 %v9231, %v9227
        %v9236 = vadd.s32 %v9232, %v9234
        %v9237 = vadd.s32 %v9236, %v9226
        %v9238 = vadd.s32 %v9237, %v9228
        %v9239 = vand.u32 %v9216, 65535
        %v9240 = vshrl.u32 %v9216, 16
        %v9241 = vand.u32 %v9211, 65535
        %v9242 = vshrl.u32 %v9211, 16
        %v9243 = vmul.u32 %v9239, %v9241
        %v9244 = vmul.u32 %v9239, %v9242
        %v9245 = vmul.u32 %v9240, %v9241
        %v9246 = vmul.u32 %v9240, %v9242
        %v9247 = vshll.u32 %v9244, 16
        %v9248 = vshrl.u32 %v9244, 16
        %v9249 = vshll.u32 %v9245, 16
        %v9250 = vshrl.u32 %v9245, 16
        %vm9251 = vc.u32 %v9243, %v9247
        %v9252 = vsel %vm9251, 1, 0
        %v9253 = vadd.s32 %v9243, %v9247
        %v9254 = vadd.s32 %v9246, %v9252
        %vm9255 = vc.u32 %v9253, %v9249
        %v9256 = vsel %vm9255, 1, 0
        %v9257 = vadd.s32 %v9253, %v9249
        %v9258 = vadd.s32 %v9254, %v9256
        %v9259 = vadd.s32 %v9258, %v9248
        %v9260 = vadd.s32 %v9259, %v9250
        %v9261 = vmul.u32 %v9216, %v9207
        %v9262 = vadd.s32 %v9238, %v9257
        %vm9263 = vc.u32 %v9238, %v9257
        %v9264 = vadd.s32 %v9260, 1
        %v9265 = vsel %vm9263, %v9264, %v9260
        %v9266 = vadd.s32 %v9261, %v9265
        %v9267 = vadd.s32 %v9266, 536870912
        %v9268 = vshrl.u32 %v9267, 30
        %v9269 = vshll.u32 %v9268, 30
        %v9270 = vsub.s32 %v9266, %v9269
        %vm9271 = vcmp.lt.s32.totalorder %v9270, 0
        %v9272 = vsub.s32 0, %v9270
        %v9273 = vsel %vm9271, %v9272, %v9270
        %v9274 = vclz %v9273
        %v9275 = vsub.s32 %v9274, 2
        %vm9276 = vcmp.gt.s32.totalorder 0, %v9275
        %v9277 = vsel %vm9276, 0, %v9275
        %v9278 = vsub.s32 32, %v9277
        %v9279 = vshll.u32 %v9270, %v9277
        %v9280 = vshrl.u32 %v9262, %v9278
        %v9281 = vor.u32 %v9279, %v9280
        %v9282 = vsub.s32 4294967266, %v9277
        %v9283 = vadd.s32 %v9282, 127
        %v9284 = vshll.u32 %v9283, 23
        %v9285 = vor.u32 4788187, %v9284
        %v9286 = vand.u32 2147483647, %v9285
        %v9288 = vcvt.s32.f32 %v9281
        %v9289 = vmul.f32 %v9288, %v9286
        %v9290 = vxor.u32 %v9289, 2147483648
        %v9291 = vsel %vm9170, %v9290, %v9289
        %v9292 = vsub.s32 4, %v9268
        %v9293 = vsel %vm9170, %v9292, %v9268
        %v9294 = vsel %vm9169, %v480, %v9291
        %v9295 = vsel %vm9169, 0, %v9293
        %v9296 = vmul.f32 %v9294, %v9294
        %v9297 = vmul.f32 %v9296, -0.001358992
        %v9298 = vadd.f32 %v9297, 0.041655596
        %v9299 = vmul.f32 %v9296, %v9298
        %v9300 = vadd.f32 %v9299, -0.4999988
        %v9301 = vmul.f32 %v9296, %v9300
        %v9302 = vadd.f32 1.0, %v9301
        %v9303 = vmul.f32 %v9294, %v9294
        %v9304 = vmul.f32 %v9303, -0.00019511016
        %v9305 = vadd.f32 %v9304, 0.008332121
        %v9306 = vmul.f32 %v9303, %v9305
        %v9307 = vadd.f32 %v9306, -0.16666654
        %v9308 = vmul.f32 %v9303, %v9307
        %v9309 = vadd.f32 %v9308, 1.0
        %v9310 = vmul.f32 %v9309, %v9294
        %vm9311 = vweird.f32 %v480
        %v9312 = vadd.s32 %v9295, 3
        %v9313 = vand.u32 %v9312, 3
        %vm9314 = vcmp.lt.s32.totalorder %v9313, 2
        %vm9315 = vcmp.eq.s32.totalorder %v9313, 0
        %v9316 = vxor.u32 %v9310, 2147483648
        %v9317 = vsel %vm9315, %v9302, %v9316
        %vm9318 = vcmp.eq.s32.totalorder %v9313, 2
        %v9319 = vxor.u32 %v9302, 2147483648
        %v9320 = vsel %vm9318, %v9319, %v9310
        %v9321 = vsel %vm9314, %v9317, %v9320
        %v9322 = vsel %vm9311, nan, %v9321
        %v9323 = vand.u32 2147483647, %v481
        %vm9324 = vcmp.le.f32.partialorder %v9323, 0.7853982
        %vm9325 = vcmp.lt.s32.totalorder %v481, 0
        %v9326 = vand.u32 %v481, 2139095040
        %v9327 = vshrl.u32 %v9326, 23
        %v9328 = vsub.s32 %v9327, 127
        %v9329 = vand.u32 2147483647, %v481
        %v9330 = vand.u32 %v9329, 8388607
        %v9331 = vor.u32 %v9330, 8388608
        %v9332 = vsub.s32 0, %v9331
        %v9333 = vadd.s32 %v9328, 1
        %vm9334 = vcmp.gt.s32.totalorder %v9333, 0
        %v9335 = vsel %vm9334, %v9333, 0
        %v9336 = vshrl.u32 %v9335, 5
        %v9337 = vand.u32 %v9335, 31
        %v9338 = vsub.s32 32, %v9337
        %v9339 = vshrl.u32 683565275, %v9338
        %v9340 = vshll.u32 683565275, %v9337
        %v9341 = vshrl.u32 2475754826, %v9338
        %v9342 = vor.u32 %v9340, %v9341
        %v9343 = vshll.u32 2475754826, %v9337
        %v9344 = vshrl.u32 2131351028, %v9338
        %v9345 = vor.u32 %v9343, %v9344
        %v9346 = vshll.u32 2131351028, %v9337
        %v9347 = vshrl.u32 2102212464, %v9338
        %v9348 = vor.u32 %v9346, %v9347
        %v9349 = vshll.u32 2102212464, %v9337
        %v9350 = vshrl.u32 920167782, %v9338
        %v9351 = vor.u32 %v9349, %v9350
        %v9352 = vshll.u32 920167782, %v9337
        %v9353 = vshrl.u32 1326507024, %v9338
        %v9354 = vor.u32 %v9352, %v9353
        %vm9355 = vcmp.lt.s32.totalorder %v9336, 1
        %vm9356 = vcmp.lt.s32.totalorder %v9336, 2
        %vm9357 = vcmp.lt.s32.totalorder %v9336, 3
        %vm9358 = vcmp.lt.s32.totalorder %v9336, 4
        %v9359 = vsel %vm9355, %v9339, %v9342
        %v9360 = vsel %vm9358, %v9348, 2102212464
        %v9361 = vsel %vm9357, %v9345, %v9360
        %v9362 = vsel %vm9356, %v9359, %v9361
        %v9363 = vsel %vm9355, %v9342, %v9345
        %v9364 = vsel %vm9358, %v9351, 920167782
        %v9365 = vsel %vm9357, %v9348, %v9364
        %v9366 = vsel %vm9356, %v9363, %v9365
        %v9367 = vsel %vm9355, %v9345, %v9348
        %v9368 = vsel %vm9358, %v9354, 1326507024
        %v9369 = vsel %vm9357, %v9351, %v9368
        %v9370 = vsel %vm9356, %v9367, %v9369
        %v9371 = vshll.u32 %v9331, 8
        %v9372 = vand.u32 %v9371, 65535
        %v9373 = vshrl.u32 %v9371, 16
        %v9374 = vand.u32 %v9370, 65535
        %v9375 = vshrl.u32 %v9370, 16
        %v9376 = vmul.u32 %v9372, %v9374
        %v9377 = vmul.u32 %v9372, %v9375
        %v9378 = vmul.u32 %v9373, %v9374
        %v9379 = vmul.u32 %v9373, %v9375
        %v9380 = vshll.u32 %v9377, 16
        %v9381 = vshrl.u32 %v9377, 16
        %v9382 = vshll.u32 %v9378, 16
        %v9383 = vshrl.u32 %v9378, 16
        %vm9384 = vc.u32 %v9376, %v9380
        %v9385 = vsel %vm9384, 1, 0
        %v9386 = vadd.s32 %v9376, %v9380
        %v9387 = vadd.s32 %v9379, %v9385
        %vm9388 = vc.u32 %v9386, %v9382
        %v9389 = vsel %vm9388, 1, 0
        %v9390 = vadd.s32 %v9386, %v9382
        %v9391 = vadd.s32 %v9387, %v9389
        %v9392 = vadd.s32 %v9391, %v9381
        %v9393 = vadd.s32 %v9392, %v9383
        %v9394 = vand.u32 %v9371, 65535
        %v9395 = vshrl.u32 %v9371, 16
        %v9396 = vand.u32 %v9366, 65535
        %v9397 = vshrl.u32 %v9366, 16
        %v9398 = vmul.u32 %v9394, %v9396
        %v9399 = vmul.u32 %v9394, %v9397
        %v9400 = vmul.u32 %v9395, %v9396
        %v9401 = vmul.u32 %v9395, %v9397
        %v9402 = vshll.u32 %v9399, 16
        %v9403 = vshrl.u32 %v9399, 16
        %v9404 = vshll.u32 %v9400, 16
        %v9405 = vshrl.u32 %v9400, 16
        %vm9406 = vc.u32 %v9398, %v9402
        %v9407 = vsel %vm9406, 1, 0
        %v9408 = vadd.s32 %v9398, %v9402
        %v9409 = vadd.s32 %v9401, %v9407
        %vm9410 = vc.u32 %v9408, %v9404
        %v9411 = vsel %vm9410, 1, 0
        %v9412 = vadd.s32 %v9408, %v9404
        %v9413 = vadd.s32 %v9409, %v9411
        %v9414 = vadd.s32 %v9413, %v9403
        %v9415 = vadd.s32 %v9414, %v9405
        %v9416 = vmul.u32 %v9371, %v9362
        %v9417 = vadd.s32 %v9393, %v9412
        %vm9418 = vc.u32 %v9393, %v9412
        %v9419 = vadd.s32 %v9415, 1
        %v9420 = vsel %vm9418, %v9419, %v9415
        %v9421 = vadd.s32 %v9416, %v9420
        %v9422 = vadd.s32 %v9421, 536870912
        %v9423 = vshrl.u32 %v9422, 30
        %v9424 = vshll.u32 %v9423, 30
        %v9425 = vsub.s32 %v9421, %v9424
        %vm9426 = vcmp.lt.s32.totalorder %v9425, 0
        %v9427 = vsub.s32 0, %v9425
        %v9428 = vsel %vm9426, %v9427, %v9425
        %v9429 = vclz %v9428
        %v9430 = vsub.s32 %v9429, 2
        %vm9431 = vcmp.gt.s32.totalorder 0, %v9430
        %v9432 = vsel %vm9431, 0, %v9430
        %v9433 = vsub.s32 32, %v9432
        %v9434 = vshll.u32 %v9425, %v9432
        %v9435 = vshrl.u32 %v9417, %v9433
        %v9436 = vor.u32 %v9434, %v9435
        %v9437 = vsub.s32 4294967266, %v9432
        %v9438 = vadd.s32 %v9437, 127
        %v9439 = vshll.u32 %v9438, 23
        %v9440 = vor.u32 4788187, %v9439
        %v9441 = vand.u32 2147483647, %v9440
        %v9443 = vcvt.s32.f32 %v9436
        %v9444 = vmul.f32 %v9443, %v9441
        %v9445 = vxor.u32 %v9444, 2147483648
        %v9446 = vsel %vm9325, %v9445, %v9444
        %v9447 = vsub.s32 4, %v9423
        %v9448 = vsel %vm9325, %v9447, %v9423
        %v9449 = vsel %vm9324, %v481, %v9446
        %v9450 = vsel %vm9324, 0, %v9448
        %v9451 = vmul.f32 %v9449, %v9449
        %v9452 = vmul.f32 %v9451, -0.001358992
        %v9453 = vadd.f32 %v9452, 0.041655596
        %v9454 = vmul.f32 %v9451, %v9453
        %v9455 = vadd.f32 %v9454, -0.4999988
        %v9456 = vmul.f32 %v9451, %v9455
        %v9457 = vadd.f32 1.0, %v9456
        %v9458 = vmul.f32 %v9449, %v9449
        %v9459 = vmul.f32 %v9458, -0.00019511016
        %v9460 = vadd.f32 %v9459, 0.008332121
        %v9461 = vmul.f32 %v9458, %v9460
        %v9462 = vadd.f32 %v9461, -0.16666654
        %v9463 = vmul.f32 %v9458, %v9462
        %v9464 = vadd.f32 %v9463, 1.0
        %v9465 = vmul.f32 %v9464, %v9449
        %vm9466 = vweird.f32 %v481
        %v9467 = vadd.s32 %v9450, 3
        %v9468 = vand.u32 %v9467, 3
        %vm9469 = vcmp.lt.s32.totalorder %v9468, 2
        %vm9470 = vcmp.eq.s32.totalorder %v9468, 0
        %v9471 = vxor.u32 %v9465, 2147483648
        %v9472 = vsel %vm9470, %v9457, %v9471
        %vm9473 = vcmp.eq.s32.totalorder %v9468, 2
        %v9474 = vxor.u32 %v9457, 2147483648
        %v9475 = vsel %vm9473, %v9474, %v9465
        %v9476 = vsel %vm9469, %v9472, %v9475
        %v9477 = vsel %vm9466, nan, %v9476
        %v9478 = vand.u32 2147483647, %v482
        %vm9479 = vcmp.le.f32.partialorder %v9478, 0.7853982
        %vm9480 = vcmp.lt.s32.totalorder %v482, 0
        %v9481 = vand.u32 %v482, 2139095040
        %v9482 = vshrl.u32 %v9481, 23
        %v9483 = vsub.s32 %v9482, 127
        %v9484 = vand.u32 2147483647, %v482
        %v9485 = vand.u32 %v9484, 8388607
        %v9486 = vor.u32 %v9485, 8388608
        %v9487 = vsub.s32 0, %v9486
        %v9488 = vadd.s32 %v9483, 1
        %vm9489 = vcmp.gt.s32.totalorder %v9488, 0
        %v9490 = vsel %vm9489, %v9488, 0
        %v9491 = vshrl.u32 %v9490, 5
        %v9492 = vand.u32 %v9490, 31
        %v9493 = vsub.s32 32, %v9492
        %v9494 = vshrl.u32 683565275, %v9493
        %v9495 = vshll.u32 683565275, %v9492
        %v9496 = vshrl.u32 2475754826, %v9493
        %v9497 = vor.u32 %v9495, %v9496
        %v9498 = vshll.u32 2475754826, %v9492
        %v9499 = vshrl.u32 2131351028, %v9493
        %v9500 = vor.u32 %v9498, %v9499
        %v9501 = vshll.u32 2131351028, %v9492
        %v9502 = vshrl.u32 2102212464, %v9493
        %v9503 = vor.u32 %v9501, %v9502
        %v9504 = vshll.u32 2102212464, %v9492
        %v9505 = vshrl.u32 920167782, %v9493
        %v9506 = vor.u32 %v9504, %v9505
        %v9507 = vshll.u32 920167782, %v9492
        %v9508 = vshrl.u32 1326507024, %v9493
        %v9509 = vor.u32 %v9507, %v9508
        %vm9510 = vcmp.lt.s32.totalorder %v9491, 1
        %vm9511 = vcmp.lt.s32.totalorder %v9491, 2
        %vm9512 = vcmp.lt.s32.totalorder %v9491, 3
        %vm9513 = vcmp.lt.s32.totalorder %v9491, 4
        %v9514 = vsel %vm9510, %v9494, %v9497
        %v9515 = vsel %vm9513, %v9503, 2102212464
        %v9516 = vsel %vm9512, %v9500, %v9515
        %v9517 = vsel %vm9511, %v9514, %v9516
        %v9518 = vsel %vm9510, %v9497, %v9500
        %v9519 = vsel %vm9513, %v9506, 920167782
        %v9520 = vsel %vm9512, %v9503, %v9519
        %v9521 = vsel %vm9511, %v9518, %v9520
        %v9522 = vsel %vm9510, %v9500, %v9503
        %v9523 = vsel %vm9513, %v9509, 1326507024
        %v9524 = vsel %vm9512, %v9506, %v9523
        %v9525 = vsel %vm9511, %v9522, %v9524
        %v9526 = vshll.u32 %v9486, 8
        %v9527 = vand.u32 %v9526, 65535
        %v9528 = vshrl.u32 %v9526, 16
        %v9529 = vand.u32 %v9525, 65535
        %v9530 = vshrl.u32 %v9525, 16
        %v9531 = vmul.u32 %v9527, %v9529
        %v9532 = vmul.u32 %v9527, %v9530
        %v9533 = vmul.u32 %v9528, %v9529
        %v9534 = vmul.u32 %v9528, %v9530
        %v9535 = vshll.u32 %v9532, 16
        %v9536 = vshrl.u32 %v9532, 16
        %v9537 = vshll.u32 %v9533, 16
        %v9538 = vshrl.u32 %v9533, 16
        %vm9539 = vc.u32 %v9531, %v9535
        %v9540 = vsel %vm9539, 1, 0
        %v9541 = vadd.s32 %v9531, %v9535
        %v9542 = vadd.s32 %v9534, %v9540
        %vm9543 = vc.u32 %v9541, %v9537
        %v9544 = vsel %vm9543, 1, 0
        %v9545 = vadd.s32 %v9541, %v9537
        %v9546 = vadd.s32 %v9542, %v9544
        %v9547 = vadd.s32 %v9546, %v9536
        %v9548 = vadd.s32 %v9547, %v9538
        %v9549 = vand.u32 %v9526, 65535
        %v9550 = vshrl.u32 %v9526, 16
        %v9551 = vand.u32 %v9521, 65535
        %v9552 = vshrl.u32 %v9521, 16
        %v9553 = vmul.u32 %v9549, %v9551
        %v9554 = vmul.u32 %v9549, %v9552
        %v9555 = vmul.u32 %v9550, %v9551
        %v9556 = vmul.u32 %v9550, %v9552
        %v9557 = vshll.u32 %v9554, 16
        %v9558 = vshrl.u32 %v9554, 16
        %v9559 = vshll.u32 %v9555, 16
        %v9560 = vshrl.u32 %v9555, 16
        %vm9561 = vc.u32 %v9553, %v9557
        %v9562 = vsel %vm9561, 1, 0
        %v9563 = vadd.s32 %v9553, %v9557
        %v9564 = vadd.s32 %v9556, %v9562
        %vm9565 = vc.u32 %v9563, %v9559
        %v9566 = vsel %vm9565, 1, 0
        %v9567 = vadd.s32 %v9563, %v9559
        %v9568 = vadd.s32 %v9564, %v9566
        %v9569 = vadd.s32 %v9568, %v9558
        %v9570 = vadd.s32 %v9569, %v9560
        %v9571 = vmul.u32 %v9526, %v9517
        %v9572 = vadd.s32 %v9548, %v9567
        %vm9573 = vc.u32 %v9548, %v9567
        %v9574 = vadd.s32 %v9570, 1
        %v9575 = vsel %vm9573, %v9574, %v9570
        %v9576 = vadd.s32 %v9571, %v9575
        %v9577 = vadd.s32 %v9576, 536870912
        %v9578 = vshrl.u32 %v9577, 30
        %v9579 = vshll.u32 %v9578, 30
        %v9580 = vsub.s32 %v9576, %v9579
        %vm9581 = vcmp.lt.s32.totalorder %v9580, 0
        %v9582 = vsub.s32 0, %v9580
        %v9583 = vsel %vm9581, %v9582, %v9580
        %v9584 = vclz %v9583
        %v9585 = vsub.s32 %v9584, 2
        %vm9586 = vcmp.gt.s32.totalorder 0, %v9585
        %v9587 = vsel %vm9586, 0, %v9585
        %v9588 = vsub.s32 32, %v9587
        %v9589 = vshll.u32 %v9580, %v9587
        %v9590 = vshrl.u32 %v9572, %v9588
        %v9591 = vor.u32 %v9589, %v9590
        %v9592 = vsub.s32 4294967266, %v9587
        %v9593 = vadd.s32 %v9592, 127
        %v9594 = vshll.u32 %v9593, 23
        %v9595 = vor.u32 4788187, %v9594
        %v9596 = vand.u32 2147483647, %v9595
        %v9598 = vcvt.s32.f32 %v9591
        %v9599 = vmul.f32 %v9598, %v9596
        %v9600 = vxor.u32 %v9599, 2147483648
        %v9601 = vsel %vm9480, %v9600, %v9599
        %v9602 = vsub.s32 4, %v9578
        %v9603 = vsel %vm9480, %v9602, %v9578
        %v9604 = vsel %vm9479, %v482, %v9601
        %v9605 = vsel %vm9479, 0, %v9603
        %v9606 = vmul.f32 %v9604, %v9604
        %v9607 = vmul.f32 %v9606, -0.001358992
        %v9608 = vadd.f32 %v9607, 0.041655596
        %v9609 = vmul.f32 %v9606, %v9608
        %v9610 = vadd.f32 %v9609, -0.4999988
        %v9611 = vmul.f32 %v9606, %v9610
        %v9612 = vadd.f32 1.0, %v9611
        %v9613 = vmul.f32 %v9604, %v9604
        %v9614 = vmul.f32 %v9613, -0.00019511016
        %v9615 = vadd.f32 %v9614, 0.008332121
        %v9616 = vmul.f32 %v9613, %v9615
        %v9617 = vadd.f32 %v9616, -0.16666654
        %v9618 = vmul.f32 %v9613, %v9617
        %v9619 = vadd.f32 %v9618, 1.0
        %v9620 = vmul.f32 %v9619, %v9604
        %vm9621 = vweird.f32 %v482
        %v9622 = vadd.s32 %v9605, 3
        %v9623 = vand.u32 %v9622, 3
        %vm9624 = vcmp.lt.s32.totalorder %v9623, 2
        %vm9625 = vcmp.eq.s32.totalorder %v9623, 0
        %v9626 = vxor.u32 %v9620, 2147483648
        %v9627 = vsel %vm9625, %v9612, %v9626
        %vm9628 = vcmp.eq.s32.totalorder %v9623, 2
        %v9629 = vxor.u32 %v9612, 2147483648
        %v9630 = vsel %vm9628, %v9629, %v9620
        %v9631 = vsel %vm9624, %v9627, %v9630
        %v9632 = vsel %vm9621, nan, %v9631
        %v9633 = vand.u32 2147483647, %v483
        %vm9634 = vcmp.le.f32.partialorder %v9633, 0.7853982
        %vm9635 = vcmp.lt.s32.totalorder %v483, 0
        %v9636 = vand.u32 %v483, 2139095040
        %v9637 = vshrl.u32 %v9636, 23
        %v9638 = vsub.s32 %v9637, 127
        %v9639 = vand.u32 2147483647, %v483
        %v9640 = vand.u32 %v9639, 8388607
        %v9641 = vor.u32 %v9640, 8388608
        %v9642 = vsub.s32 0, %v9641
        %v9643 = vadd.s32 %v9638, 1
        %vm9644 = vcmp.gt.s32.totalorder %v9643, 0
        %v9645 = vsel %vm9644, %v9643, 0
        %v9646 = vshrl.u32 %v9645, 5
        %v9647 = vand.u32 %v9645, 31
        %v9648 = vsub.s32 32, %v9647
        %v9649 = vshrl.u32 683565275, %v9648
        %v9650 = vshll.u32 683565275, %v9647
        %v9651 = vshrl.u32 2475754826, %v9648
        %v9652 = vor.u32 %v9650, %v9651
        %v9653 = vshll.u32 2475754826, %v9647
        %v9654 = vshrl.u32 2131351028, %v9648
        %v9655 = vor.u32 %v9653, %v9654
        %v9656 = vshll.u32 2131351028, %v9647
        %v9657 = vshrl.u32 2102212464, %v9648
        %v9658 = vor.u32 %v9656, %v9657
        %v9659 = vshll.u32 2102212464, %v9647
        %v9660 = vshrl.u32 920167782, %v9648
        %v9661 = vor.u32 %v9659, %v9660
        %v9662 = vshll.u32 920167782, %v9647
        %v9663 = vshrl.u32 1326507024, %v9648
        %v9664 = vor.u32 %v9662, %v9663
        %vm9665 = vcmp.lt.s32.totalorder %v9646, 1
        %vm9666 = vcmp.lt.s32.totalorder %v9646, 2
        %vm9667 = vcmp.lt.s32.totalorder %v9646, 3
        %vm9668 = vcmp.lt.s32.totalorder %v9646, 4
        %v9669 = vsel %vm9665, %v9649, %v9652
        %v9670 = vsel %vm9668, %v9658, 2102212464
        %v9671 = vsel %vm9667, %v9655, %v9670
        %v9672 = vsel %vm9666, %v9669, %v9671
        %v9673 = vsel %vm9665, %v9652, %v9655
        %v9674 = vsel %vm9668, %v9661, 920167782
        %v9675 = vsel %vm9667, %v9658, %v9674
        %v9676 = vsel %vm9666, %v9673, %v9675
        %v9677 = vsel %vm9665, %v9655, %v9658
        %v9678 = vsel %vm9668, %v9664, 1326507024
        %v9679 = vsel %vm9667, %v9661, %v9678
        %v9680 = vsel %vm9666, %v9677, %v9679
        %v9681 = vshll.u32 %v9641, 8
        %v9682 = vand.u32 %v9681, 65535
        %v9683 = vshrl.u32 %v9681, 16
        %v9684 = vand.u32 %v9680, 65535
        %v9685 = vshrl.u32 %v9680, 16
        %v9686 = vmul.u32 %v9682, %v9684
        %v9687 = vmul.u32 %v9682, %v9685
        %v9688 = vmul.u32 %v9683, %v9684
        %v9689 = vmul.u32 %v9683, %v9685
        %v9690 = vshll.u32 %v9687, 16
        %v9691 = vshrl.u32 %v9687, 16
        %v9692 = vshll.u32 %v9688, 16
        %v9693 = vshrl.u32 %v9688, 16
        %vm9694 = vc.u32 %v9686, %v9690
        %v9695 = vsel %vm9694, 1, 0
        %v9696 = vadd.s32 %v9686, %v9690
        %v9697 = vadd.s32 %v9689, %v9695
        %vm9698 = vc.u32 %v9696, %v9692
        %v9699 = vsel %vm9698, 1, 0
        %v9700 = vadd.s32 %v9696, %v9692
        %v9701 = vadd.s32 %v9697, %v9699
        %v9702 = vadd.s32 %v9701, %v9691
        %v9703 = vadd.s32 %v9702, %v9693
        %v9704 = vand.u32 %v9681, 65535
        %v9705 = vshrl.u32 %v9681, 16
        %v9706 = vand.u32 %v9676, 65535
        %v9707 = vshrl.u32 %v9676, 16
        %v9708 = vmul.u32 %v9704, %v9706
        %v9709 = vmul.u32 %v9704, %v9707
        %v9710 = vmul.u32 %v9705, %v9706
        %v9711 = vmul.u32 %v9705, %v9707
        %v9712 = vshll.u32 %v9709, 16
        %v9713 = vshrl.u32 %v9709, 16
        %v9714 = vshll.u32 %v9710, 16
        %v9715 = vshrl.u32 %v9710, 16
        %vm9716 = vc.u32 %v9708, %v9712
        %v9717 = vsel %vm9716, 1, 0
        %v9718 = vadd.s32 %v9708, %v9712
        %v9719 = vadd.s32 %v9711, %v9717
        %vm9720 = vc.u32 %v9718, %v9714
        %v9721 = vsel %vm9720, 1, 0
        %v9722 = vadd.s32 %v9718, %v9714
        %v9723 = vadd.s32 %v9719, %v9721
        %v9724 = vadd.s32 %v9723, %v9713
        %v9725 = vadd.s32 %v9724, %v9715
        %v9726 = vmul.u32 %v9681, %v9672
        %v9727 = vadd.s32 %v9703, %v9722
        %vm9728 = vc.u32 %v9703, %v9722
        %v9729 = vadd.s32 %v9725, 1
        %v9730 = vsel %vm9728, %v9729, %v9725
        %v9731 = vadd.s32 %v9726, %v9730
        %v9732 = vadd.s32 %v9731, 536870912
        %v9733 = vshrl.u32 %v9732, 30
        %v9734 = vshll.u32 %v9733, 30
        %v9735 = vsub.s32 %v9731, %v9734
        %vm9736 = vcmp.lt.s32.totalorder %v9735, 0
        %v9737 = vsub.s32 0, %v9735
        %v9738 = vsel %vm9736, %v9737, %v9735
        %v9739 = vclz %v9738
        %v9740 = vsub.s32 %v9739, 2
        %vm9741 = vcmp.gt.s32.totalorder 0, %v9740
        %v9742 = vsel %vm9741, 0, %v9740
        %v9743 = vsub.s32 32, %v9742
        %v9744 = vshll.u32 %v9735, %v9742
        %v9745 = vshrl.u32 %v9727, %v9743
        %v9746 = vor.u32 %v9744, %v9745
        %v9747 = vsub.s32 4294967266, %v9742
        %v9748 = vadd.s32 %v9747, 127
        %v9749 = vshll.u32 %v9748, 23
        %v9750 = vor.u32 4788187, %v9749
        %v9751 = vand.u32 2147483647, %v9750
        %v9753 = vcvt.s32.f32 %v9746
        %v9754 = vmul.f32 %v9753, %v9751
        %v9755 = vxor.u32 %v9754, 2147483648
        %v9756 = vsel %vm9635, %v9755, %v9754
        %v9757 = vsub.s32 4, %v9733
        %v9758 = vsel %vm9635, %v9757, %v9733
        %v9759 = vsel %vm9634, %v483, %v9756
        %v9760 = vsel %vm9634, 0, %v9758
        %v9761 = vmul.f32 %v9759, %v9759
        %v9762 = vmul.f32 %v9761, -0.001358992
        %v9763 = vadd.f32 %v9762, 0.041655596
        %v9764 = vmul.f32 %v9761, %v9763
        %v9765 = vadd.f32 %v9764, -0.4999988
        %v9766 = vmul.f32 %v9761, %v9765
        %v9767 = vadd.f32 1.0, %v9766
        %v9768 = vmul.f32 %v9759, %v9759
        %v9769 = vmul.f32 %v9768, -0.00019511016
        %v9770 = vadd.f32 %v9769, 0.008332121
        %v9771 = vmul.f32 %v9768, %v9770
        %v9772 = vadd.f32 %v9771, -0.16666654
        %v9773 = vmul.f32 %v9768, %v9772
        %v9774 = vadd.f32 %v9773, 1.0
        %v9775 = vmul.f32 %v9774, %v9759
        %vm9776 = vweird.f32 %v483
        %v9777 = vadd.s32 %v9760, 3
        %v9778 = vand.u32 %v9777, 3
        %vm9779 = vcmp.lt.s32.totalorder %v9778, 2
        %vm9780 = vcmp.eq.s32.totalorder %v9778, 0
        %v9781 = vxor.u32 %v9775, 2147483648
        %v9782 = vsel %vm9780, %v9767, %v9781
        %vm9783 = vcmp.eq.s32.totalorder %v9778, 2
        %v9784 = vxor.u32 %v9767, 2147483648
        %v9785 = vsel %vm9783, %v9784, %v9775
        %v9786 = vsel %vm9779, %v9782, %v9785
        %v9787 = vsel %vm9776, nan, %v9786
        %v9788 = vand.u32 2147483647, %v484
        %vm9789 = vcmp.le.f32.partialorder %v9788, 0.7853982
        %vm9790 = vcmp.lt.s32.totalorder %v484, 0
        %v9791 = vand.u32 %v484, 2139095040
        %v9792 = vshrl.u32 %v9791, 23
        %v9793 = vsub.s32 %v9792, 127
        %v9794 = vand.u32 2147483647, %v484
        %v9795 = vand.u32 %v9794, 8388607
        %v9796 = vor.u32 %v9795, 8388608
        %v9797 = vsub.s32 0, %v9796
        %v9798 = vadd.s32 %v9793, 1
        %vm9799 = vcmp.gt.s32.totalorder %v9798, 0
        %v9800 = vsel %vm9799, %v9798, 0
        %v9801 = vshrl.u32 %v9800, 5
        %v9802 = vand.u32 %v9800, 31
        %v9803 = vsub.s32 32, %v9802
        %v9804 = vshrl.u32 683565275, %v9803
        %v9805 = vshll.u32 683565275, %v9802
        %v9806 = vshrl.u32 2475754826, %v9803
        %v9807 = vor.u32 %v9805, %v9806
        %v9808 = vshll.u32 2475754826, %v9802
        %v9809 = vshrl.u32 2131351028, %v9803
        %v9810 = vor.u32 %v9808, %v9809
        %v9811 = vshll.u32 2131351028, %v9802
        %v9812 = vshrl.u32 2102212464, %v9803
        %v9813 = vor.u32 %v9811, %v9812
        %v9814 = vshll.u32 2102212464, %v9802
        %v9815 = vshrl.u32 920167782, %v9803
        %v9816 = vor.u32 %v9814, %v9815
        %v9817 = vshll.u32 920167782, %v9802
        %v9818 = vshrl.u32 1326507024, %v9803
        %v9819 = vor.u32 %v9817, %v9818
        %vm9820 = vcmp.lt.s32.totalorder %v9801, 1
        %vm9821 = vcmp.lt.s32.totalorder %v9801, 2
        %vm9822 = vcmp.lt.s32.totalorder %v9801, 3
        %vm9823 = vcmp.lt.s32.totalorder %v9801, 4
        %v9824 = vsel %vm9820, %v9804, %v9807
        %v9825 = vsel %vm9823, %v9813, 2102212464
        %v9826 = vsel %vm9822, %v9810, %v9825
        %v9827 = vsel %vm9821, %v9824, %v9826
        %v9828 = vsel %vm9820, %v9807, %v9810
        %v9829 = vsel %vm9823, %v9816, 920167782
        %v9830 = vsel %vm9822, %v9813, %v9829
        %v9831 = vsel %vm9821, %v9828, %v9830
        %v9832 = vsel %vm9820, %v9810, %v9813
        %v9833 = vsel %vm9823, %v9819, 1326507024
        %v9834 = vsel %vm9822, %v9816, %v9833
        %v9835 = vsel %vm9821, %v9832, %v9834
        %v9836 = vshll.u32 %v9796, 8
        %v9837 = vand.u32 %v9836, 65535
        %v9838 = vshrl.u32 %v9836, 16
        %v9839 = vand.u32 %v9835, 65535
        %v9840 = vshrl.u32 %v9835, 16
        %v9841 = vmul.u32 %v9837, %v9839
        %v9842 = vmul.u32 %v9837, %v9840
        %v9843 = vmul.u32 %v9838, %v9839
        %v9844 = vmul.u32 %v9838, %v9840
        %v9845 = vshll.u32 %v9842, 16
        %v9846 = vshrl.u32 %v9842, 16
        %v9847 = vshll.u32 %v9843, 16
        %v9848 = vshrl.u32 %v9843, 16
        %vm9849 = vc.u32 %v9841, %v9845
        %v9850 = vsel %vm9849, 1, 0
        %v9851 = vadd.s32 %v9841, %v9845
        %v9852 = vadd.s32 %v9844, %v9850
        %vm9853 = vc.u32 %v9851, %v9847
        %v9854 = vsel %vm9853, 1, 0
        %v9855 = vadd.s32 %v9851, %v9847
        %v9856 = vadd.s32 %v9852, %v9854
        %v9857 = vadd.s32 %v9856, %v9846
        %v9858 = vadd.s32 %v9857, %v9848
        %v9859 = vand.u32 %v9836, 65535
        %v9860 = vshrl.u32 %v9836, 16
        %v9861 = vand.u32 %v9831, 65535
        %v9862 = vshrl.u32 %v9831, 16
        %v9863 = vmul.u32 %v9859, %v9861
        %v9864 = vmul.u32 %v9859, %v9862
        %v9865 = vmul.u32 %v9860, %v9861
        %v9866 = vmul.u32 %v9860, %v9862
        %v9867 = vshll.u32 %v9864, 16
        %v9868 = vshrl.u32 %v9864, 16
        %v9869 = vshll.u32 %v9865, 16
        %v9870 = vshrl.u32 %v9865, 16
        %vm9871 = vc.u32 %v9863, %v9867
        %v9872 = vsel %vm9871, 1, 0
        %v9873 = vadd.s32 %v9863, %v9867
        %v9874 = vadd.s32 %v9866, %v9872
        %vm9875 = vc.u32 %v9873, %v9869
        %v9876 = vsel %vm9875, 1, 0
        %v9877 = vadd.s32 %v9873, %v9869
        %v9878 = vadd.s32 %v9874, %v9876
        %v9879 = vadd.s32 %v9878, %v9868
        %v9880 = vadd.s32 %v9879, %v9870
        %v9881 = vmul.u32 %v9836, %v9827
        %v9882 = vadd.s32 %v9858, %v9877
        %vm9883 = vc.u32 %v9858, %v9877
        %v9884 = vadd.s32 %v9880, 1
        %v9885 = vsel %vm9883, %v9884, %v9880
        %v9886 = vadd.s32 %v9881, %v9885
        %v9887 = vadd.s32 %v9886, 536870912
        %v9888 = vshrl.u32 %v9887, 30
        %v9889 = vshll.u32 %v9888, 30
        %v9890 = vsub.s32 %v9886, %v9889
        %vm9891 = vcmp.lt.s32.totalorder %v9890, 0
        %v9892 = vsub.s32 0, %v9890
        %v9893 = vsel %vm9891, %v9892, %v9890
        %v9894 = vclz %v9893
        %v9895 = vsub.s32 %v9894, 2
        %vm9896 = vcmp.gt.s32.totalorder 0, %v9895
        %v9897 = vsel %vm9896, 0, %v9895
        %v9898 = vsub.s32 32, %v9897
        %v9899 = vshll.u32 %v9890, %v9897
        %v9900 = vshrl.u32 %v9882, %v9898
        %v9901 = vor.u32 %v9899, %v9900
        %v9902 = vsub.s32 4294967266, %v9897
        %v9903 = vadd.s32 %v9902, 127
        %v9904 = vshll.u32 %v9903, 23
        %v9905 = vor.u32 4788187, %v9904
        %v9906 = vand.u32 2147483647, %v9905
        %v9908 = vcvt.s32.f32 %v9901
        %v9909 = vmul.f32 %v9908, %v9906
        %v9910 = vxor.u32 %v9909, 2147483648
        %v9911 = vsel %vm9790, %v9910, %v9909
        %v9912 = vsub.s32 4, %v9888
        %v9913 = vsel %vm9790, %v9912, %v9888
        %v9914 = vsel %vm9789, %v484, %v9911
        %v9915 = vsel %vm9789, 0, %v9913
        %v9916 = vmul.f32 %v9914, %v9914
        %v9917 = vmul.f32 %v9916, -0.001358992
        %v9918 = vadd.f32 %v9917, 0.041655596
        %v9919 = vmul.f32 %v9916, %v9918
        %v9920 = vadd.f32 %v9919, -0.4999988
        %v9921 = vmul.f32 %v9916, %v9920
        %v9922 = vadd.f32 1.0, %v9921
        %v9923 = vmul.f32 %v9914, %v9914
        %v9924 = vmul.f32 %v9923, -0.00019511016
        %v9925 = vadd.f32 %v9924, 0.008332121
        %v9926 = vmul.f32 %v9923, %v9925
        %v9927 = vadd.f32 %v9926, -0.16666654
        %v9928 = vmul.f32 %v9923, %v9927
        %v9929 = vadd.f32 %v9928, 1.0
        %v9930 = vmul.f32 %v9929, %v9914
        %vm9931 = vweird.f32 %v484
        %v9932 = vadd.s32 %v9915, 3
        %v9933 = vand.u32 %v9932, 3
        %vm9934 = vcmp.lt.s32.totalorder %v9933, 2
        %vm9935 = vcmp.eq.s32.totalorder %v9933, 0
        %v9936 = vxor.u32 %v9930, 2147483648
        %v9937 = vsel %vm9935, %v9922, %v9936
        %vm9938 = vcmp.eq.s32.totalorder %v9933, 2
        %v9939 = vxor.u32 %v9922, 2147483648
        %v9940 = vsel %vm9938, %v9939, %v9930
        %v9941 = vsel %vm9934, %v9937, %v9940
        %v9942 = vsel %vm9931, nan, %v9941
        %v9943 = vand.u32 2147483647, %v485
        %vm9944 = vcmp.le.f32.partialorder %v9943, 0.7853982
        %vm9945 = vcmp.lt.s32.totalorder %v485, 0
        %v9946 = vand.u32 %v485, 2139095040
        %v9947 = vshrl.u32 %v9946, 23
        %v9948 = vsub.s32 %v9947, 127
        %v9949 = vand.u32 2147483647, %v485
        %v9950 = vand.u32 %v9949, 8388607
        %v9951 = vor.u32 %v9950, 8388608
        %v9952 = vsub.s32 0, %v9951
        %v9953 = vadd.s32 %v9948, 1
        %vm9954 = vcmp.gt.s32.totalorder %v9953, 0
        %v9955 = vsel %vm9954, %v9953, 0
        %v9956 = vshrl.u32 %v9955, 5
        %v9957 = vand.u32 %v9955, 31
        %v9958 = vsub.s32 32, %v9957
        %v9959 = vshrl.u32 683565275, %v9958
        %v9960 = vshll.u32 683565275, %v9957
        %v9961 = vshrl.u32 2475754826, %v9958
        %v9962 = vor.u32 %v9960, %v9961
        %v9963 = vshll.u32 2475754826, %v9957
        %v9964 = vshrl.u32 2131351028, %v9958
        %v9965 = vor.u32 %v9963, %v9964
        %v9966 = vshll.u32 2131351028, %v9957
        %v9967 = vshrl.u32 2102212464, %v9958
        %v9968 = vor.u32 %v9966, %v9967
        %v9969 = vshll.u32 2102212464, %v9957
        %v9970 = vshrl.u32 920167782, %v9958
        %v9971 = vor.u32 %v9969, %v9970
        %v9972 = vshll.u32 920167782, %v9957
        %v9973 = vshrl.u32 1326507024, %v9958
        %v9974 = vor.u32 %v9972, %v9973
        %vm9975 = vcmp.lt.s32.totalorder %v9956, 1
        %vm9976 = vcmp.lt.s32.totalorder %v9956, 2
        %vm9977 = vcmp.lt.s32.totalorder %v9956, 3
        %vm9978 = vcmp.lt.s32.totalorder %v9956, 4
        %v9979 = vsel %vm9975, %v9959, %v9962
        %v9980 = vsel %vm9978, %v9968, 2102212464
        %v9981 = vsel %vm9977, %v9965, %v9980
        %v9982 = vsel %vm9976, %v9979, %v9981
        %v9983 = vsel %vm9975, %v9962, %v9965
        %v9984 = vsel %vm9978, %v9971, 920167782
        %v9985 = vsel %vm9977, %v9968, %v9984
        %v9986 = vsel %vm9976, %v9983, %v9985
        %v9987 = vsel %vm9975, %v9965, %v9968
        %v9988 = vsel %vm9978, %v9974, 1326507024
        %v9989 = vsel %vm9977, %v9971, %v9988
        %v9990 = vsel %vm9976, %v9987, %v9989
        %v9991 = vshll.u32 %v9951, 8
        %v9992 = vand.u32 %v9991, 65535
        %v9993 = vshrl.u32 %v9991, 16
        %v9994 = vand.u32 %v9990, 65535
        %v9995 = vshrl.u32 %v9990, 16
        %v9996 = vmul.u32 %v9992, %v9994
        %v9997 = vmul.u32 %v9992, %v9995
        %v9998 = vmul.u32 %v9993, %v9994
        %v9999 = vmul.u32 %v9993, %v9995
        %v10000 = vshll.u32 %v9997, 16
        %v10001 = vshrl.u32 %v9997, 16
        %v10002 = vshll.u32 %v9998, 16
        %v10003 = vshrl.u32 %v9998, 16
        %vm10004 = vc.u32 %v9996, %v10000
        %v10005 = vsel %vm10004, 1, 0
        %v10006 = vadd.s32 %v9996, %v10000
        %v10007 = vadd.s32 %v9999, %v10005
        %vm10008 = vc.u32 %v10006, %v10002
        %v10009 = vsel %vm10008, 1, 0
        %v10010 = vadd.s32 %v10006, %v10002
        %v10011 = vadd.s32 %v10007, %v10009
        %v10012 = vadd.s32 %v10011, %v10001
        %v10013 = vadd.s32 %v10012, %v10003
        %v10014 = vand.u32 %v9991, 65535
        %v10015 = vshrl.u32 %v9991, 16
        %v10016 = vand.u32 %v9986, 65535
        %v10017 = vshrl.u32 %v9986, 16
        %v10018 = vmul.u32 %v10014, %v10016
        %v10019 = vmul.u32 %v10014, %v10017
        %v10020 = vmul.u32 %v10015, %v10016
        %v10021 = vmul.u32 %v10015, %v10017
        %v10022 = vshll.u32 %v10019, 16
        %v10023 = vshrl.u32 %v10019, 16
        %v10024 = vshll.u32 %v10020, 16
        %v10025 = vshrl.u32 %v10020, 16
        %vm10026 = vc.u32 %v10018, %v10022
        %v10027 = vsel %vm10026, 1, 0
        %v10028 = vadd.s32 %v10018, %v10022
        %v10029 = vadd.s32 %v10021, %v10027
        %vm10030 = vc.u32 %v10028, %v10024
        %v10031 = vsel %vm10030, 1, 0
        %v10032 = vadd.s32 %v10028, %v10024
        %v10033 = vadd.s32 %v10029, %v10031
        %v10034 = vadd.s32 %v10033, %v10023
        %v10035 = vadd.s32 %v10034, %v10025
        %v10036 = vmul.u32 %v9991, %v9982
        %v10037 = vadd.s32 %v10013, %v10032
        %vm10038 = vc.u32 %v10013, %v10032
        %v10039 = vadd.s32 %v10035, 1
        %v10040 = vsel %vm10038, %v10039, %v10035
        %v10041 = vadd.s32 %v10036, %v10040
        %v10042 = vadd.s32 %v10041, 536870912
        %v10043 = vshrl.u32 %v10042, 30
        %v10044 = vshll.u32 %v10043, 30
        %v10045 = vsub.s32 %v10041, %v10044
        %vm10046 = vcmp.lt.s32.totalorder %v10045, 0
        %v10047 = vsub.s32 0, %v10045
        %v10048 = vsel %vm10046, %v10047, %v10045
        %v10049 = vclz %v10048
        %v10050 = vsub.s32 %v10049, 2
        %vm10051 = vcmp.gt.s32.totalorder 0, %v10050
        %v10052 = vsel %vm10051, 0, %v10050
        %v10053 = vsub.s32 32, %v10052
        %v10054 = vshll.u32 %v10045, %v10052
        %v10055 = vshrl.u32 %v10037, %v10053
        %v10056 = vor.u32 %v10054, %v10055
        %v10057 = vsub.s32 4294967266, %v10052
        %v10058 = vadd.s32 %v10057, 127
        %v10059 = vshll.u32 %v10058, 23
        %v10060 = vor.u32 4788187, %v10059
        %v10061 = vand.u32 2147483647, %v10060
        %v10063 = vcvt.s32.f32 %v10056
        %v10064 = vmul.f32 %v10063, %v10061
        %v10065 = vxor.u32 %v10064, 2147483648
        %v10066 = vsel %vm9945, %v10065, %v10064
        %v10067 = vsub.s32 4, %v10043
        %v10068 = vsel %vm9945, %v10067, %v10043
        %v10069 = vsel %vm9944, %v485, %v10066
        %v10070 = vsel %vm9944, 0, %v10068
        %v10071 = vmul.f32 %v10069, %v10069
        %v10072 = vmul.f32 %v10071, -0.001358992
        %v10073 = vadd.f32 %v10072, 0.041655596
        %v10074 = vmul.f32 %v10071, %v10073
        %v10075 = vadd.f32 %v10074, -0.4999988
        %v10076 = vmul.f32 %v10071, %v10075
        %v10077 = vadd.f32 1.0, %v10076
        %v10078 = vmul.f32 %v10069, %v10069
        %v10079 = vmul.f32 %v10078, -0.00019511016
        %v10080 = vadd.f32 %v10079, 0.008332121
        %v10081 = vmul.f32 %v10078, %v10080
        %v10082 = vadd.f32 %v10081, -0.16666654
        %v10083 = vmul.f32 %v10078, %v10082
        %v10084 = vadd.f32 %v10083, 1.0
        %v10085 = vmul.f32 %v10084, %v10069
        %vm10086 = vweird.f32 %v485
        %v10087 = vadd.s32 %v10070, 3
        %v10088 = vand.u32 %v10087, 3
        %vm10089 = vcmp.lt.s32.totalorder %v10088, 2
        %vm10090 = vcmp.eq.s32.totalorder %v10088, 0
        %v10091 = vxor.u32 %v10085, 2147483648
        %v10092 = vsel %vm10090, %v10077, %v10091
        %vm10093 = vcmp.eq.s32.totalorder %v10088, 2
        %v10094 = vxor.u32 %v10077, 2147483648
        %v10095 = vsel %vm10093, %v10094, %v10085
        %v10096 = vsel %vm10089, %v10092, %v10095
        %v10097 = vsel %vm10086, nan, %v10096
        %v10098 = vand.u32 2147483647, %v486
        %vm10099 = vcmp.le.f32.partialorder %v10098, 0.7853982
        %vm10100 = vcmp.lt.s32.totalorder %v486, 0
        %v10101 = vand.u32 %v486, 2139095040
        %v10102 = vshrl.u32 %v10101, 23
        %v10103 = vsub.s32 %v10102, 127
        %v10104 = vand.u32 2147483647, %v486
        %v10105 = vand.u32 %v10104, 8388607
        %v10106 = vor.u32 %v10105, 8388608
        %v10107 = vsub.s32 0, %v10106
        %v10108 = vadd.s32 %v10103, 1
        %vm10109 = vcmp.gt.s32.totalorder %v10108, 0
        %v10110 = vsel %vm10109, %v10108, 0
        %v10111 = vshrl.u32 %v10110, 5
        %v10112 = vand.u32 %v10110, 31
        %v10113 = vsub.s32 32, %v10112
        %v10114 = vshrl.u32 683565275, %v10113
        %v10115 = vshll.u32 683565275, %v10112
        %v10116 = vshrl.u32 2475754826, %v10113
        %v10117 = vor.u32 %v10115, %v10116
        %v10118 = vshll.u32 2475754826, %v10112
        %v10119 = vshrl.u32 2131351028, %v10113
        %v10120 = vor.u32 %v10118, %v10119
        %v10121 = vshll.u32 2131351028, %v10112
        %v10122 = vshrl.u32 2102212464, %v10113
        %v10123 = vor.u32 %v10121, %v10122
        %v10124 = vshll.u32 2102212464, %v10112
        %v10125 = vshrl.u32 920167782, %v10113
        %v10126 = vor.u32 %v10124, %v10125
        %v10127 = vshll.u32 920167782, %v10112
        %v10128 = vshrl.u32 1326507024, %v10113
        %v10129 = vor.u32 %v10127, %v10128
        %vm10130 = vcmp.lt.s32.totalorder %v10111, 1
        %vm10131 = vcmp.lt.s32.totalorder %v10111, 2
        %vm10132 = vcmp.lt.s32.totalorder %v10111, 3
        %vm10133 = vcmp.lt.s32.totalorder %v10111, 4
        %v10134 = vsel %vm10130, %v10114, %v10117
        %v10135 = vsel %vm10133, %v10123, 2102212464
        %v10136 = vsel %vm10132, %v10120, %v10135
        %v10137 = vsel %vm10131, %v10134, %v10136
        %v10138 = vsel %vm10130, %v10117, %v10120
        %v10139 = vsel %vm10133, %v10126, 920167782
        %v10140 = vsel %vm10132, %v10123, %v10139
        %v10141 = vsel %vm10131, %v10138, %v10140
        %v10142 = vsel %vm10130, %v10120, %v10123
        %v10143 = vsel %vm10133, %v10129, 1326507024
        %v10144 = vsel %vm10132, %v10126, %v10143
        %v10145 = vsel %vm10131, %v10142, %v10144
        %v10146 = vshll.u32 %v10106, 8
        %v10147 = vand.u32 %v10146, 65535
        %v10148 = vshrl.u32 %v10146, 16
        %v10149 = vand.u32 %v10145, 65535
        %v10150 = vshrl.u32 %v10145, 16
        %v10151 = vmul.u32 %v10147, %v10149
        %v10152 = vmul.u32 %v10147, %v10150
        %v10153 = vmul.u32 %v10148, %v10149
        %v10154 = vmul.u32 %v10148, %v10150
        %v10155 = vshll.u32 %v10152, 16
        %v10156 = vshrl.u32 %v10152, 16
        %v10157 = vshll.u32 %v10153, 16
        %v10158 = vshrl.u32 %v10153, 16
        %vm10159 = vc.u32 %v10151, %v10155
        %v10160 = vsel %vm10159, 1, 0
        %v10161 = vadd.s32 %v10151, %v10155
        %v10162 = vadd.s32 %v10154, %v10160
        %vm10163 = vc.u32 %v10161, %v10157
        %v10164 = vsel %vm10163, 1, 0
        %v10165 = vadd.s32 %v10161, %v10157
        %v10166 = vadd.s32 %v10162, %v10164
        %v10167 = vadd.s32 %v10166, %v10156
        %v10168 = vadd.s32 %v10167, %v10158
        %v10169 = vand.u32 %v10146, 65535
        %v10170 = vshrl.u32 %v10146, 16
        %v10171 = vand.u32 %v10141, 65535
        %v10172 = vshrl.u32 %v10141, 16
        %v10173 = vmul.u32 %v10169, %v10171
        %v10174 = vmul.u32 %v10169, %v10172
        %v10175 = vmul.u32 %v10170, %v10171
        %v10176 = vmul.u32 %v10170, %v10172
        %v10177 = vshll.u32 %v10174, 16
        %v10178 = vshrl.u32 %v10174, 16
        %v10179 = vshll.u32 %v10175, 16
        %v10180 = vshrl.u32 %v10175, 16
        %vm10181 = vc.u32 %v10173, %v10177
        %v10182 = vsel %vm10181, 1, 0
        %v10183 = vadd.s32 %v10173, %v10177
        %v10184 = vadd.s32 %v10176, %v10182
        %vm10185 = vc.u32 %v10183, %v10179
        %v10186 = vsel %vm10185, 1, 0
        %v10187 = vadd.s32 %v10183, %v10179
        %v10188 = vadd.s32 %v10184, %v10186
        %v10189 = vadd.s32 %v10188, %v10178
        %v10190 = vadd.s32 %v10189, %v10180
        %v10191 = vmul.u32 %v10146, %v10137
        %v10192 = vadd.s32 %v10168, %v10187
        %vm10193 = vc.u32 %v10168, %v10187
        %v10194 = vadd.s32 %v10190, 1
        %v10195 = vsel %vm10193, %v10194, %v10190
        %v10196 = vadd.s32 %v10191, %v10195
        %v10197 = vadd.s32 %v10196, 536870912
        %v10198 = vshrl.u32 %v10197, 30
        %v10199 = vshll.u32 %v10198, 30
        %v10200 = vsub.s32 %v10196, %v10199
        %vm10201 = vcmp.lt.s32.totalorder %v10200, 0
        %v10202 = vsub.s32 0, %v10200
        %v10203 = vsel %vm10201, %v10202, %v10200
        %v10204 = vclz %v10203
        %v10205 = vsub.s32 %v10204, 2
        %vm10206 = vcmp.gt.s32.totalorder 0, %v10205
        %v10207 = vsel %vm10206, 0, %v10205
        %v10208 = vsub.s32 32, %v10207
        %v10209 = vshll.u32 %v10200, %v10207
        %v10210 = vshrl.u32 %v10192, %v10208
        %v10211 = vor.u32 %v10209, %v10210
        %v10212 = vsub.s32 4294967266, %v10207
        %v10213 = vadd.s32 %v10212, 127
        %v10214 = vshll.u32 %v10213, 23
        %v10215 = vor.u32 4788187, %v10214
        %v10216 = vand.u32 2147483647, %v10215
        %v10218 = vcvt.s32.f32 %v10211
        %v10219 = vmul.f32 %v10218, %v10216
        %v10220 = vxor.u32 %v10219, 2147483648
        %v10221 = vsel %vm10100, %v10220, %v10219
        %v10222 = vsub.s32 4, %v10198
        %v10223 = vsel %vm10100, %v10222, %v10198
        %v10224 = vsel %vm10099, %v486, %v10221
        %v10225 = vsel %vm10099, 0, %v10223
        %v10226 = vmul.f32 %v10224, %v10224
        %v10227 = vmul.f32 %v10226, -0.001358992
        %v10228 = vadd.f32 %v10227, 0.041655596
        %v10229 = vmul.f32 %v10226, %v10228
        %v10230 = vadd.f32 %v10229, -0.4999988
        %v10231 = vmul.f32 %v10226, %v10230
        %v10232 = vadd.f32 1.0, %v10231
        %v10233 = vmul.f32 %v10224, %v10224
        %v10234 = vmul.f32 %v10233, -0.00019511016
        %v10235 = vadd.f32 %v10234, 0.008332121
        %v10236 = vmul.f32 %v10233, %v10235
        %v10237 = vadd.f32 %v10236, -0.16666654
        %v10238 = vmul.f32 %v10233, %v10237
        %v10239 = vadd.f32 %v10238, 1.0
        %v10240 = vmul.f32 %v10239, %v10224
        %vm10241 = vweird.f32 %v486
        %v10242 = vadd.s32 %v10225, 3
        %v10243 = vand.u32 %v10242, 3
        %vm10244 = vcmp.lt.s32.totalorder %v10243, 2
        %vm10245 = vcmp.eq.s32.totalorder %v10243, 0
        %v10246 = vxor.u32 %v10240, 2147483648
        %v10247 = vsel %vm10245, %v10232, %v10246
        %vm10248 = vcmp.eq.s32.totalorder %v10243, 2
        %v10249 = vxor.u32 %v10232, 2147483648
        %v10250 = vsel %vm10248, %v10249, %v10240
        %v10251 = vsel %vm10244, %v10247, %v10250
        %v10252 = vsel %vm10241, nan, %v10251
        %v10253 = vand.u32 2147483647, %v487
        %vm10254 = vcmp.le.f32.partialorder %v10253, 0.7853982
        %vm10255 = vcmp.lt.s32.totalorder %v487, 0
        %v10256 = vand.u32 %v487, 2139095040
        %v10257 = vshrl.u32 %v10256, 23
        %v10258 = vsub.s32 %v10257, 127
        %v10259 = vand.u32 2147483647, %v487
        %v10260 = vand.u32 %v10259, 8388607
        %v10261 = vor.u32 %v10260, 8388608
        %v10262 = vsub.s32 0, %v10261
        %v10263 = vadd.s32 %v10258, 1
        %vm10264 = vcmp.gt.s32.totalorder %v10263, 0
        %v10265 = vsel %vm10264, %v10263, 0
        %v10266 = vshrl.u32 %v10265, 5
        %v10267 = vand.u32 %v10265, 31
        %v10268 = vsub.s32 32, %v10267
        %v10269 = vshrl.u32 683565275, %v10268
        %v10270 = vshll.u32 683565275, %v10267
        %v10271 = vshrl.u32 2475754826, %v10268
        %v10272 = vor.u32 %v10270, %v10271
        %v10273 = vshll.u32 2475754826, %v10267
        %v10274 = vshrl.u32 2131351028, %v10268
        %v10275 = vor.u32 %v10273, %v10274
        %v10276 = vshll.u32 2131351028, %v10267
        %v10277 = vshrl.u32 2102212464, %v10268
        %v10278 = vor.u32 %v10276, %v10277
        %v10279 = vshll.u32 2102212464, %v10267
        %v10280 = vshrl.u32 920167782, %v10268
        %v10281 = vor.u32 %v10279, %v10280
        %v10282 = vshll.u32 920167782, %v10267
        %v10283 = vshrl.u32 1326507024, %v10268
        %v10284 = vor.u32 %v10282, %v10283
        %vm10285 = vcmp.lt.s32.totalorder %v10266, 1
        %vm10286 = vcmp.lt.s32.totalorder %v10266, 2
        %vm10287 = vcmp.lt.s32.totalorder %v10266, 3
        %vm10288 = vcmp.lt.s32.totalorder %v10266, 4
        %v10289 = vsel %vm10285, %v10269, %v10272
        %v10290 = vsel %vm10288, %v10278, 2102212464
        %v10291 = vsel %vm10287, %v10275, %v10290
        %v10292 = vsel %vm10286, %v10289, %v10291
        %v10293 = vsel %vm10285, %v10272, %v10275
        %v10294 = vsel %vm10288, %v10281, 920167782
        %v10295 = vsel %vm10287, %v10278, %v10294
        %v10296 = vsel %vm10286, %v10293, %v10295
        %v10297 = vsel %vm10285, %v10275, %v10278
        %v10298 = vsel %vm10288, %v10284, 1326507024
        %v10299 = vsel %vm10287, %v10281, %v10298
        %v10300 = vsel %vm10286, %v10297, %v10299
        %v10301 = vshll.u32 %v10261, 8
        %v10302 = vand.u32 %v10301, 65535
        %v10303 = vshrl.u32 %v10301, 16
        %v10304 = vand.u32 %v10300, 65535
        %v10305 = vshrl.u32 %v10300, 16
        %v10306 = vmul.u32 %v10302, %v10304
        %v10307 = vmul.u32 %v10302, %v10305
        %v10308 = vmul.u32 %v10303, %v10304
        %v10309 = vmul.u32 %v10303, %v10305
        %v10310 = vshll.u32 %v10307, 16
        %v10311 = vshrl.u32 %v10307, 16
        %v10312 = vshll.u32 %v10308, 16
        %v10313 = vshrl.u32 %v10308, 16
        %vm10314 = vc.u32 %v10306, %v10310
        %v10315 = vsel %vm10314, 1, 0
        %v10316 = vadd.s32 %v10306, %v10310
        %v10317 = vadd.s32 %v10309, %v10315
        %vm10318 = vc.u32 %v10316, %v10312
        %v10319 = vsel %vm10318, 1, 0
        %v10320 = vadd.s32 %v10316, %v10312
        %v10321 = vadd.s32 %v10317, %v10319
        %v10322 = vadd.s32 %v10321, %v10311
        %v10323 = vadd.s32 %v10322, %v10313
        %v10324 = vand.u32 %v10301, 65535
        %v10325 = vshrl.u32 %v10301, 16
        %v10326 = vand.u32 %v10296, 65535
        %v10327 = vshrl.u32 %v10296, 16
        %v10328 = vmul.u32 %v10324, %v10326
        %v10329 = vmul.u32 %v10324, %v10327
        %v10330 = vmul.u32 %v10325, %v10326
        %v10331 = vmul.u32 %v10325, %v10327
        %v10332 = vshll.u32 %v10329, 16
        %v10333 = vshrl.u32 %v10329, 16
        %v10334 = vshll.u32 %v10330, 16
        %v10335 = vshrl.u32 %v10330, 16
        %vm10336 = vc.u32 %v10328, %v10332
        %v10337 = vsel %vm10336, 1, 0
        %v10338 = vadd.s32 %v10328, %v10332
        %v10339 = vadd.s32 %v10331, %v10337
        %vm10340 = vc.u32 %v10338, %v10334
        %v10341 = vsel %vm10340, 1, 0
        %v10342 = vadd.s32 %v10338, %v10334
        %v10343 = vadd.s32 %v10339, %v10341
        %v10344 = vadd.s32 %v10343, %v10333
        %v10345 = vadd.s32 %v10344, %v10335
        %v10346 = vmul.u32 %v10301, %v10292
        %v10347 = vadd.s32 %v10323, %v10342
        %vm10348 = vc.u32 %v10323, %v10342
        %v10349 = vadd.s32 %v10345, 1
        %v10350 = vsel %vm10348, %v10349, %v10345
        %v10351 = vadd.s32 %v10346, %v10350
        %v10352 = vadd.s32 %v10351, 536870912
        %v10353 = vshrl.u32 %v10352, 30
        %v10354 = vshll.u32 %v10353, 30
        %v10355 = vsub.s32 %v10351, %v10354
        %vm10356 = vcmp.lt.s32.totalorder %v10355, 0
        %v10357 = vsub.s32 0, %v10355
        %v10358 = vsel %vm10356, %v10357, %v10355
        %v10359 = vclz %v10358
        %v10360 = vsub.s32 %v10359, 2
        %vm10361 = vcmp.gt.s32.totalorder 0, %v10360
        %v10362 = vsel %vm10361, 0, %v10360
        %v10363 = vsub.s32 32, %v10362
        %v10364 = vshll.u32 %v10355, %v10362
        %v10365 = vshrl.u32 %v10347, %v10363
        %v10366 = vor.u32 %v10364, %v10365
        %v10367 = vsub.s32 4294967266, %v10362
        %v10368 = vadd.s32 %v10367, 127
        %v10369 = vshll.u32 %v10368, 23
        %v10370 = vor.u32 4788187, %v10369
        %v10371 = vand.u32 2147483647, %v10370
        %v10373 = vcvt.s32.f32 %v10366
        %v10374 = vmul.f32 %v10373, %v10371
        %v10375 = vxor.u32 %v10374, 2147483648
        %v10376 = vsel %vm10255, %v10375, %v10374
        %v10377 = vsub.s32 4, %v10353
        %v10378 = vsel %vm10255, %v10377, %v10353
        %v10379 = vsel %vm10254, %v487, %v10376
        %v10380 = vsel %vm10254, 0, %v10378
        %v10381 = vmul.f32 %v10379, %v10379
        %v10382 = vmul.f32 %v10381, -0.001358992
        %v10383 = vadd.f32 %v10382, 0.041655596
        %v10384 = vmul.f32 %v10381, %v10383
        %v10385 = vadd.f32 %v10384, -0.4999988
        %v10386 = vmul.f32 %v10381, %v10385
        %v10387 = vadd.f32 1.0, %v10386
        %v10388 = vmul.f32 %v10379, %v10379
        %v10389 = vmul.f32 %v10388, -0.00019511016
        %v10390 = vadd.f32 %v10389, 0.008332121
        %v10391 = vmul.f32 %v10388, %v10390
        %v10392 = vadd.f32 %v10391, -0.16666654
        %v10393 = vmul.f32 %v10388, %v10392
        %v10394 = vadd.f32 %v10393, 1.0
        %v10395 = vmul.f32 %v10394, %v10379
        %vm10396 = vweird.f32 %v487
        %v10397 = vadd.s32 %v10380, 3
        %v10398 = vand.u32 %v10397, 3
        %vm10399 = vcmp.lt.s32.totalorder %v10398, 2
        %vm10400 = vcmp.eq.s32.totalorder %v10398, 0
        %v10401 = vxor.u32 %v10395, 2147483648
        %v10402 = vsel %vm10400, %v10387, %v10401
        %vm10403 = vcmp.eq.s32.totalorder %v10398, 2
        %v10404 = vxor.u32 %v10387, 2147483648
        %v10405 = vsel %vm10403, %v10404, %v10395
        %v10406 = vsel %vm10399, %v10402, %v10405
        %v10407 = vsel %vm10396, nan, %v10406
        %10408 = vst [vmem:[%s151] sm:$0xff] %v642
        %10409 = vst [vmem:[%s151 + $0x8] sm:$0xff] %v797
        %10410 = vst [vmem:[%s151 + $0x10] sm:$0xff] %v952
        %10411 = vst [vmem:[%s151 + $0x18] sm:$0xff] %v1107
        %10412 = vst [vmem:[%s151 + $0x20] sm:$0xff] %v1262
        %10413 = vst [vmem:[%s151 + $0x28] sm:$0xff] %v1417
        %10414 = vst [vmem:[%s151 + $0x30] sm:$0xff] %v1572
        %10415 = vst [vmem:[%s151 + $0x38] sm:$0xff] %v1727
        %10416 = vst [vmem:[%s151 + $0x40] sm:$0xff] %v1882
        %10417 = vst [vmem:[%s151 + $0x48] sm:$0xff] %v2037
        %10418 = vst [vmem:[%s151 + $0x50] sm:$0xff] %v2192
        %10419 = vst [vmem:[%s151 + $0x58] sm:$0xff] %v2347
        %10420 = vst [vmem:[%s151 + $0x60] sm:$0xff] %v2502
        %10421 = vst [vmem:[%s151 + $0x68] sm:$0xff] %v2657
        %10422 = vst [vmem:[%s151 + $0x70] sm:$0xff] %v2812
        %10423 = vst [vmem:[%s151 + $0x78] sm:$0xff] %v2967
        %10424 = vst [vmem:[%s151 + $0x80] sm:$0xff] %v3122
        %10425 = vst [vmem:[%s151 + $0x88] sm:$0xff] %v3277
        %10426 = vst [vmem:[%s151 + $0x90] sm:$0xff] %v3432
        %10427 = vst [vmem:[%s151 + $0x98] sm:$0xff] %v3587
        %10428 = vst [vmem:[%s151 + $0xa0] sm:$0xff] %v3742
        %10429 = vst [vmem:[%s151 + $0xa8] sm:$0xff] %v3897
        %10430 = vst [vmem:[%s151 + $0xb0] sm:$0xff] %v4052
        %10431 = vst [vmem:[%s151 + $0xb8] sm:$0xff] %v4207
        %10432 = vst [vmem:[%s151 + $0xc0] sm:$0xff] %v4362
        %10433 = vst [vmem:[%s151 + $0xc8] sm:$0xff] %v4517
        %10434 = vst [vmem:[%s151 + $0xd0] sm:$0xff] %v4672
        %10435 = vst [vmem:[%s151 + $0xd8] sm:$0xff] %v4827
        %10436 = vst [vmem:[%s151 + $0xe0] sm:$0xff] %v4982
        %10437 = vst [vmem:[%s151 + $0xe8] sm:$0xff] %v5137
        %10438 = vst [vmem:[%s151 + $0xf0] sm:$0xff] %v5292
        %10439 = vst [vmem:[%s151 + $0xf8] sm:$0xff] %v5447
        %10440 = vst [vmem:[%s151 + $0x100] sm:$0xff] %v5602
        %10441 = vst [vmem:[%s151 + $0x108] sm:$0xff] %v5757
        %10442 = vst [vmem:[%s151 + $0x110] sm:$0xff] %v5912
        %10443 = vst [vmem:[%s151 + $0x118] sm:$0xff] %v6067
        %10444 = vst [vmem:[%s151 + $0x120] sm:$0xff] %v6222
        %10445 = vst [vmem:[%s151 + $0x128] sm:$0xff] %v6377
        %10446 = vst [vmem:[%s151 + $0x130] sm:$0xff] %v6532
        %10447 = vst [vmem:[%s151 + $0x138] sm:$0xff] %v6687
        %10448 = vst [vmem:[%s151 + $0x140] sm:$0xff] %v6842
        %10449 = vst [vmem:[%s151 + $0x148] sm:$0xff] %v6997
        %10450 = vst [vmem:[%s151 + $0x150] sm:$0xff] %v7152
        %10451 = vst [vmem:[%s151 + $0x158] sm:$0xff] %v7307
        %10452 = vst [vmem:[%s151 + $0x160] sm:$0xff] %v7462
        %10453 = vst [vmem:[%s151 + $0x168] sm:$0xff] %v7617
        %10454 = vst [vmem:[%s151 + $0x170] sm:$0xff] %v7772
        %10455 = vst [vmem:[%s151 + $0x178] sm:$0xff] %v7927
        %10456 = vst [vmem:[%s151 + $0x180] sm:$0xff] %v8082
        %10457 = vst [vmem:[%s151 + $0x188] sm:$0xff] %v8237
        %10458 = vst [vmem:[%s151 + $0x190] sm:$0xff] %v8392
        %10459 = vst [vmem:[%s151 + $0x198] sm:$0xff] %v8547
        %10460 = vst [vmem:[%s151 + $0x1a0] sm:$0xff] %v8702
        %10461 = vst [vmem:[%s151 + $0x1a8] sm:$0xff] %v8857
        %10462 = vst [vmem:[%s151 + $0x1b0] sm:$0xff] %v9012
        %10463 = vst [vmem:[%s151 + $0x1b8] sm:$0xff] %v9167
        %10464 = vst [vmem:[%s151 + $0x1c0] sm:$0xff] %v9322
        %10465 = vst [vmem:[%s151 + $0x1c8] sm:$0xff] %v9477
        %10466 = vst [vmem:[%s151 + $0x1d0] sm:$0xff] %v9632
        %10467 = vst [vmem:[%s151 + $0x1d8] sm:$0xff] %v9787
        %10468 = vst [vmem:[%s151 + $0x1e0] sm:$0xff] %v9942
        %10469 = vst [vmem:[%s151 + $0x1e8] sm:$0xff] %v10097
        %10470 = vst [vmem:[%s151 + $0x1f0] sm:$0xff] %v10252
        %10471 = vst [vmem:[%s151 + $0x1f8] sm:$0xff] %v10407
        %s10472 = sand.u32 %s68, 1
        %s10473 = scalar_lea.sflag [#allocation4], %s10472
        %s10474 = sand.u32 %s68, 1
        %s10475 = smul.addr %s10474, 512
        %s10476 = scalar_lea.vmem [#allocation7], %s10475
        // Predicated region
        $region37: #{tpu_custom_call.1} parent=27 // pred_check
          %p10477 = pneg %p78
        $region38: #{tpu_custom_call.1} parent=27 // pred_check_branch
          %10479 = sbr.rel (%p10477) target = $region40
        $region39: #{tpu_custom_call.1} parent=27 // pred_region
          %s10480 = smul.u32 64, %s18
          %s10481 = ssub.s32 625, %s10480
          %p10482 = scmp.lt.s32.totalorder %s10481, 64
          %s10483 = scalar_select %p10482, %s10481, 64
          %s10484 = smul.u32 8, %s10483
          %s10485 = ssub.s32 512, %s10484
          %s10486 = sshll.u32 %s10485, 4
          %10487 = vsyncadd %s10473, %s10486
          %p10488 = scmp.ne.s32.totalorder 0, %s10484
          %s10489 = smul.addr %s10480, 8
          %s10490 = scalar_lea.hbm %s2, %s10489
          %s10491 = smul.u32 8, %s10483
          %s10492 = sshll.u32 %s10476, 4
          %s10493 = int_to_ptr.vmem [resolvable:$true] %s10492
          %s10494 = sshll.u32 %s10490, 4
          %s10495 = int_to_ptr.hbm [resolvable:$true] %s10494
          %s10496 = sshll.u32 %s10491, 4
          %10500 = dma.vmem_to_hbm [thread:$0]  (%p10488), %s10493, %s10496, %s10495, %s10473, 128, 128, 8
        $region40: #{tpu_custom_call.1} parent=27 // pred_fallthru
          _
      $region28: #{tpu_custom_call.1} parent=5 // pred_fallthru
        _
      %p10501 = scmp.le.s32.totalorder 2, %s13
      // Predicated region
      $region41: #{tpu_custom_call.1} parent=5 // pred_check
        %p10502 = pneg %p10501
      $region42: #{tpu_custom_call.1} parent=5 // pred_check_branch
        %10504 = sbr.rel (%p10502) target = $region44
      $region43: #{tpu_custom_call.1} parent=5 // pred_region
        %s10505 = ssub.s32 %s13, 2
        // Predicated region
        $region45: #{tpu_custom_call.1} parent=43 // pred_check
          %p10506 = pneg %p84
        $region46: #{tpu_custom_call.1} parent=43 // pred_check_branch
          %10508 = sbr.rel (%p10506) target = $region48
        $region47: #{tpu_custom_call.1} parent=43 // pred_region
          %s10509 = sand.u32 %s69, 1
          %s10510 = scalar_lea.sflag [#allocation4], %s10509
          %s10511 = sand.u32 %s69, 1
          %s10512 = smul.addr %s10511, 512
          %s10513 = scalar_lea.vmem [#allocation7], %s10512
          %10515 = dma.done %s10510, 8192
        $region48: #{tpu_custom_call.1} parent=43 // pred_fallthru
          _
      $region44: #{tpu_custom_call.1} parent=5 // pred_fallthru
        _
    $region6: #{tpu_custom_call.1} parent=1 // loop_footer
      %s17 = sadd.s32 1, %s13
    $region7: #{tpu_custom_call.1} parent=1 // loop_footer_branch
      %12 = sbr.rel target = $region3
    $region8: #{tpu_custom_call.1} parent=1 // loop_exit
      _
    %10516 = vsyncpa [#allocation3], 1
    %s10517 = scalar_lea.sflag [#allocation3], 1
    %10518 = vsyncpa %s10517, 1
    %10519 = vsyncpa [#allocation6], 1
    %10520 = vsyncpa [#allocation4], 1
    %s10521 = scalar_lea.sflag [#allocation4], 1
    %10522 = vsyncpa %s10521, 1

</llo_original>
